<compile_context>
chip_gen: v7x
topology: tpu7x:2x2x1
jax: 0.10.0
libtpu: 0.0.40
codegen_flags: <defaults>
</compile_context>

<pallas_src>
import math
import numpy as np
import jax
import jax.numpy as jnp
from jax.experimental import pallas as pl
from jax.experimental.pallas import tpu as pltpu

# ---- model config (args + nn.TransformerEncoderLayer defaults) -------------
VOCAB_SIZE = 32
D_MODEL    = 32
NHEAD      = 4
NUM_LAYERS = 2
DIM_FF     = 2048          # nn.TransformerEncoderLayer default dim_feedforward
FF_CHUNK   = 512           # FFN hidden-dim chunk (keeps live intermediate small)
LN_EPS     = 1e-5
HEAD_DIM   = D_MODEL // NHEAD
NEG_INF    = -1e30         # additive mask value (exp underflows to exactly 0)


# ---------------------------------------------------------------------------
# Fused forward: one pallas_call for embedding + both encoder layers + fc head
# ---------------------------------------------------------------------------
def transformer_forward(packed, input_ids, attention_mask=None):
    B, S = input_ids.shape
    T = B * S
    D, H, Dh, V = D_MODEL, NHEAD, HEAD_DIM, VOCAB_SIZE

    ids = input_ids.reshape(T, 1).astype(jnp.int32)
    if attention_mask is None:
        attention_mask = jnp.ones((B, S), jnp.int32)

    # O(T) mask ingredients; the (T,T) additive mask is built INSIDE the kernel.
    #   q_bid[t]  = batch id of query token t
    #   k_bid[t]  = batch id of key token t, or -1 if that key is padding
    bid = np.repeat(np.arange(B, dtype=np.int32), S)                     # static
    q_bid = jnp.asarray(bid.reshape(T, 1))                               # (T,1) i32
    k_bid = jnp.where(attention_mask.reshape(1, T) != 0,
                      jnp.asarray(bid.reshape(1, T)), -1).astype(jnp.int32)

    def kernel(ids_ref, qbid_ref, kbid_ref, emb_ref,
               wqkv_ref, bqkv_ref, wo_ref, bo_ref,
               ln1g_ref, ln1b_ref, w1_ref, b1_ref, w2_ref, b2_ref,
               ln2g_ref, ln2b_ref, fcw_ref, fcb_ref, o_ref):
        # ---- embedding lookup as a one-hot matmul (stays in VMEM) ----
        onehot = (ids_ref[...] ==
                  jax.lax.broadcasted_iota(jnp.int32, (T, V), 1)).astype(jnp.float32)
        x = jnp.dot(onehot, emb_ref[...], preferred_element_type=jnp.float32)   # (T, D)

        # ---- (T,T) additive mask: attend iff same batch row AND key not padded ----
        addmask = jnp.where(qbid_ref[...] == kbid_ref[...],
                            0.0, NEG_INF).astype(jnp.float32)                   # (T, T)

        def layer_norm(h, g, b):
            mu = jnp.mean(h, axis=-1, keepdims=True)
            var = jnp.mean((h - mu) ** 2, axis=-1, keepdims=True)
            return (h - mu) * jax.lax.rsqrt(var + LN_EPS) * g + b

        for l in range(NUM_LAYERS):                 # static unroll over layers
            # ---- fused QKV projection: one lane-dense (T,D)@(D,3D) matmul ----
            qkv = (jnp.dot(x, wqkv_ref[l], preferred_element_type=jnp.float32)
                   + bqkv_ref[l])                                                # (T, 3D)

            # ---- per-head attention (heads = static Dh-wide lane slices) ----
            ctx_heads = []
            for h in range(H):
                qh = qkv[:, h * Dh:(h + 1) * Dh]            # 1/sqrt(Dh) already folded
                kh = qkv[:, D + h * Dh:D + (h + 1) * Dh]
                vh = qkv[:, 2 * D + h * Dh:2 * D + (h + 1) * Dh]
                s = jnp.einsum('qd,kd->qk', qh, kh,
                               preferred_element_type=jnp.float32) + addmask     # (T,T)
                s = s - jnp.max(s, axis=-1, keepdims=True)
                p = jnp.exp(s)
                denom = jnp.sum(p, axis=-1, keepdims=True)                        # (T,1)
                c = jnp.dot(p, vh, preferred_element_type=jnp.float32)            # (T,Dh)
                ctx_heads.append(c * pl.reciprocal(denom, approx=True))
            ctx = jnp.concatenate(ctx_heads, axis=-1)        # (T, D), heads along lanes

            # ---- output projection: one (T,D)@(D,D) matmul ----
            attn = (jnp.dot(ctx, wo_ref[l], preferred_element_type=jnp.float32)
                    + bo_ref[l])

            # ---- residual + LayerNorm 1 (post-norm, PyTorch default) ----
            x1 = layer_norm(x + attn, ln1g_ref[l], ln1b_ref[l])

            # ---- FFN: bf16 weights straight to MXU, f32 accumulation,
            #      hidden dim chunked to keep the live intermediate small ----
            x1_bf = x1.astype(jnp.bfloat16)
            acc = jnp.zeros((T, D), jnp.float32)
            for c0 in range(0, DIM_FF, FF_CHUNK):            # static unroll
                c1 = c0 + FF_CHUNK
                hid = (jnp.dot(x1_bf, w1_ref[l, :, c0:c1],
                               preferred_element_type=jnp.float32)
                       + b1_ref[l, :, c0:c1])
                hid = jnp.maximum(hid, 0.0).astype(jnp.bfloat16)
                acc = acc + jnp.dot(hid, w2_ref[l, c0:c1, :],
                                    preferred_element_type=jnp.float32)
            ff = acc + b2_ref[l]

            # ---- residual + LayerNorm 2 ----
            x = layer_norm(x1 + ff, ln2g_ref[l], ln2b_ref[l])

        # ---- last-token classifier head; only (B, 1) leaves VMEM ----
        x_last = x.reshape(B, S, D)[:, S - 1, :]                                  # (B, D)
        o_ref[...] = (jnp.dot(x_last, fcw_ref[...],
                              preferred_element_type=jnp.float32) + fcb_ref[...])

    args = (ids, q_bid, k_bid, packed["emb"],
            packed["wqkv"], packed["bqkv"], packed["wo"], packed["bo"],
            packed["ln1_g"], packed["ln1_b"],
            packed["ff_w1"], packed["ff_b1"], packed["ff_w2"], packed["ff_b2"],
            packed["ln2_g"], packed["ln2_b"],
            packed["fc_w"], packed["fc_b"])
    vmem = pl.BlockSpec(memory_space=pltpu.MemorySpace.VMEM)
    return pl.pallas_call(
        kernel,
        out_shape=jax.ShapeDtypeStruct((B, 1), jnp.float32),
        in_specs=[vmem] * len(args),
        out_specs=vmem,
    )(*args)


# ---------------------------------------------------------------------------
# Parameter init (PyTorch layout/semantics) + one-time host-side packing
# ---------------------------------------------------------------------------
def init_params(key):
    def nrm(k, shape, s=0.05):
        return (s * jax.random.normal(k, shape)).astype(jnp.float32)

    keys = jax.random.split(key, 2 + NUM_LAYERS)
    params = {
        "embedding": nrm(keys[0], (VOCAB_SIZE, D_MODEL), 1.0),
        "fc_w": nrm(keys[1], (D_MODEL, 1)),        # stored transposed: (in, out)
        "fc_b": jnp.zeros((1, 1), jnp.float32),
        "layers": [],
    }
    for i in range(NUM_LAYERS):
        lk = jax.random.split(keys[2 + i], 6)
        params["layers"].append({
            "wqkv": nrm(lk[0], (D_MODEL, 3 * D_MODEL)),      # in_proj_weight.T
            "bqkv": nrm(lk[1], (1, 3 * D_MODEL)),
            "wo":   nrm(lk[2], (D_MODEL, D_MODEL)),          # out_proj.weight.T
            "bo":   nrm(lk[3], (1, D_MODEL)),
            "g1":   jnp.ones((1, D_MODEL), jnp.float32),
            "beta1": jnp.zeros((1, D_MODEL), jnp.float32),
            "w1":   nrm(lk[4], (D_MODEL, DIM_FF)),           # linear1.weight.T
            "b1":   jnp.zeros((1, DIM_FF), jnp.float32),
            "w2":   nrm(lk[5], (DIM_FF, D_MODEL)),           # linear2.weight.T
            "b2":   jnp.zeros((1, D_MODEL), jnp.float32),
            "g2":   jnp.ones((1, D_MODEL), jnp.float32),
            "beta2": jnp.zeros((1, D_MODEL), jnp.float32),
        })
    return params


def pack_params(params):
    """One-time host-side repack for the fused kernel:
       - wqkv kept as a single lane-dense (D, 3D) slab per layer with the
         1/sqrt(head_dim) scale folded into the q columns (weights AND bias),
       - per-layer arrays stacked along a leading NUM_LAYERS dim,
       - FFN weights cast to bfloat16 (fed directly to the MXU in-kernel)."""
    D = D_MODEL
    scale = 1.0 / math.sqrt(HEAD_DIM)

    wqkv, bqkv, wo, bo = [], [], [], []
    ln1_g, ln1_b, ln2_g, ln2_b = [], [], [], []
    w1, b1, w2, b2 = [], [], [], []
    for lp in params["layers"]:
        w, b = lp["wqkv"], lp["bqkv"]
        wqkv.append(jnp.concatenate([w[:, :D] * scale, w[:, D:]], axis=1))  # (D, 3D)
        bqkv.append(jnp.concatenate([b[:, :D] * scale, b[:, D:]], axis=1))  # (1, 3D)
        wo.append(lp["wo"]); bo.append(lp["bo"])
        ln1_g.append(lp["g1"]); ln1_b.append(lp["beta1"])
        ln2_g.append(lp["g2"]); ln2_b.append(lp["beta2"])
        w1.append(lp["w1"].astype(jnp.bfloat16)); b1.append(lp["b1"])
        w2.append(lp["w2"].astype(jnp.bfloat16)); b2.append(lp["b2"])

    stack = lambda xs: jnp.stack(xs, axis=0)
    return {
        "emb": params["embedding"].astype(jnp.float32),
        "wqkv": stack(wqkv), "bqkv": stack(bqkv),
        "wo": stack(wo), "bo": stack(bo),
        "ln1_g": stack(ln1_g), "ln1_b": stack(ln1_b),
        "ff_w1": stack(w1), "ff_b1": stack(b1),
        "ff_w2": stack(w2), "ff_b2": stack(b2),
        "ln2_g": stack(ln2_g), "ln2_b": stack(ln2_b),
        "fc_w": params["fc_w"], "fc_b": params["fc_b"],
    }


# ---------------------------------------------------------------------------
# Pure-JAX reference (PyTorch semantics, f32 everywhere) for a sanity check
# ---------------------------------------------------------------------------
def reference_forward(params, input_ids, attention_mask):
    x = params["embedding"][input_ids].astype(jnp.float32)
    B, S, D = x.shape
    mask_neg = jnp.where(attention_mask == 0, -jnp.inf, 0.0)
    for lp in params["layers"]:
        xf = x.reshape(B * S, D)
        qkv = xf @ lp["wqkv"] + lp["bqkv"]
        q = qkv[:, :D].reshape(B, S, NHEAD, HEAD_DIM)
        k = qkv[:, D:2 * D].reshape(B, S, NHEAD, HEAD_DIM)
        v = qkv[:, 2 * D:].reshape(B, S, NHEAD, HEAD_DIM)
        s = jnp.einsum('bqhd,bkhd->bhqk', q, k) / math.sqrt(HEAD_DIM)
        s = s + mask_neg[:, None, None, :]
        p = jax.nn.softmax(s, axis=-1)
        ctx = jnp.einsum('bhqk,bkhd->bqhd', p, v).reshape(B * S, D)
        attn = ctx @ lp["wo"] + lp["bo"]

        def ln(h, g, b):
            mu = jnp.mean(h, axis=-1, keepdims=True)
            var = jnp.mean((h - mu) ** 2, axis=-1, keepdims=True)
            return (h - mu) * jax.lax.rsqrt(var + LN_EPS) * g + b

        x1 = ln(xf + attn, lp["g1"], lp["beta1"])
        ff = jnp.maximum(x1 @ lp["w1"] + lp["b1"], 0.0) @ lp["w2"] + lp["b2"]
        x = ln(x1 + ff, lp["g2"], lp["beta2"]).reshape(B, S, D)
    return x[:, -1, :] @ params["fc_w"] + params["fc_b"]


# ---------------------------------------------------------------------------
if __name__ == "__main__":
    key = jax.random.PRNGKey(0)
    pkey, ikey = jax.random.split(key)

    params = init_params(pkey)
    packed = pack_params(params)     # one-time host-side repack for the kernel

    B, S = 2, 8
    input_ids = jax.random.randint(ikey, (B, S), 0, VOCAB_SIZE, dtype=jnp.int32)
    attention_mask = jnp.array([[1, 1, 1, 1, 1, 1, 1, 1],
                                [1, 1, 1, 1, 1, 1, 0, 0]], dtype=jnp.int32)

    out = transformer_forward(packed, input_ids, attention_mask)
    out = jax.block_until_ready(out)

    ref = reference_forward(params, input_ids, attention_mask)
    assert out.shape == (B, 1), out.shape
    # Tolerance documents the intentional mixed precision in the kernel
    # (bf16 FFN matmuls with f32 accumulation + approximate softmax reciprocal).
    assert jnp.allclose(out, ref, atol=1e-2, rtol=1e-2), (out, ref)

    print("KERNEL_OK")
</pallas_src>

<mosaic_0001>
module attributes {stable_mosaic.version = 11 : i64} {
  func.func @kernel(%arg0: memref<16x1xi32, #tpu.memory_space<vmem>>, %arg1: memref<16x1xi32, #tpu.memory_space<vmem>>, %arg2: memref<1x16xi32, #tpu.memory_space<vmem>>, %arg3: memref<32x32xf32, #tpu.memory_space<vmem>>, %arg4: memref<2x32x96xf32, #tpu.memory_space<vmem>>, %arg5: memref<2x1x96xf32, #tpu.memory_space<vmem>>, %arg6: memref<2x32x32xf32, #tpu.memory_space<vmem>>, %arg7: memref<2x1x32xf32, #tpu.memory_space<vmem>>, %arg8: memref<2x1x32xf32, #tpu.memory_space<vmem>>, %arg9: memref<2x1x32xf32, #tpu.memory_space<vmem>>, %arg10: memref<2x32x2048xbf16, #tpu.memory_space<vmem>>, %arg11: memref<2x1x2048xf32, #tpu.memory_space<vmem>>, %arg12: memref<2x2048x32xbf16, #tpu.memory_space<vmem>>, %arg13: memref<2x1x32xf32, #tpu.memory_space<vmem>>, %arg14: memref<2x1x32xf32, #tpu.memory_space<vmem>>, %arg15: memref<2x1x32xf32, #tpu.memory_space<vmem>>, %arg16: memref<32x1xf32, #tpu.memory_space<vmem>>, %arg17: memref<1x1xf32, #tpu.memory_space<vmem>>, %arg18: memref<2x1xf32, #tpu.memory_space<vmem>>) attributes {dimension_semantics = [], scalar_prefetch = 0 : i64, scratch_operands = 0 : i64, tpu.core_type = #tpu.core_type<tc>} {
    %c0 = arith.constant 0 : index
    %c0_0 = arith.constant 0 : index
    %0 = vector.load %arg0[%c0, %c0_0] : memref<16x1xi32, #tpu.memory_space<vmem>>, vector<16x1xi32>
    %1 = tpu.iota {dimensions = array<i32: 1>} : vector<16x32xi32>
    %2 = vector.broadcast %0 : vector<16x1xi32> to vector<16x32xi32>
    %3 = arith.cmpi eq, %2, %1 : vector<16x32xi32>
    %4 = arith.extui %3 : vector<16x32xi1> to vector<16x32xi32>
    %5 = arith.sitofp %4 : vector<16x32xi32> to vector<16x32xf32>
    %c0_1 = arith.constant 0 : index
    %c0_2 = arith.constant 0 : index
    %6 = vector.load %arg3[%c0_1, %c0_2] : memref<32x32xf32, #tpu.memory_space<vmem>>, vector<32x32xf32>
    %cst = arith.constant dense<0.000000e+00> : vector<16x32xf32>
    %7 = tpu.matmul %5, %6, %cst {dimension_numbers = #tpu.dot_dimension_numbers<[1], [0], [0], [1], [0, 0, 1, 1], [], []>} : vector<16x32xf32>, vector<32x32xf32>, vector<16x32xf32> -> vector<16x32xf32>
    %c0_3 = arith.constant 0 : index
    %c0_4 = arith.constant 0 : index
    %8 = vector.load %arg1[%c0_3, %c0_4] : memref<16x1xi32, #tpu.memory_space<vmem>>, vector<16x1xi32>
    %c0_5 = arith.constant 0 : index
    %c0_6 = arith.constant 0 : index
    %9 = vector.load %arg2[%c0_5, %c0_6] : memref<1x16xi32, #tpu.memory_space<vmem>>, vector<1x16xi32>
    %10 = vector.broadcast %8 : vector<16x1xi32> to vector<16x16xi32>
    %11 = vector.broadcast %9 : vector<1x16xi32> to vector<16x16xi32>
    %12 = arith.cmpi eq, %10, %11 : vector<16x16xi32>
    %cst_7 = arith.constant 0.000000e+00 : f32
    %cst_8 = arith.constant -1.000000e+30 : f32
    %13 = vector.broadcast %cst_7 : f32 to vector<16x16xf32>
    %14 = vector.broadcast %cst_8 : f32 to vector<16x16xf32>
    %15 = arith.select %12, %13, %14 : vector<16x16xi1>, vector<16x16xf32>
    %c0_9 = arith.constant 0 : index
    %c0_10 = arith.constant 0 : index
    %c0_11 = arith.constant 0 : index
    %16 = vector.load %arg4[%c0_9, %c0_10, %c0_11] : memref<2x32x96xf32, #tpu.memory_space<vmem>>, vector<1x32x96xf32>
    %17 = vector.shape_cast %16 : vector<1x32x96xf32> to vector<32x96xf32>
    %cst_12 = arith.constant dense<0.000000e+00> : vector<16x96xf32>
    %18 = tpu.matmul %7, %17, %cst_12 {dimension_numbers = #tpu.dot_dimension_numbers<[1], [0], [0], [1], [0, 0, 1, 1], [], []>} : vector<16x32xf32>, vector<32x96xf32>, vector<16x96xf32> -> vector<16x96xf32>
    %c0_13 = arith.constant 0 : index
    %c0_14 = arith.constant 0 : index
    %c0_15 = arith.constant 0 : index
    %19 = vector.load %arg5[%c0_13, %c0_14, %c0_15] : memref<2x1x96xf32, #tpu.memory_space<vmem>>, vector<1x1x96xf32>
    %20 = vector.shape_cast %19 : vector<1x1x96xf32> to vector<1x96xf32>
    %21 = vector.broadcast %20 : vector<1x96xf32> to vector<16x96xf32>
    %22 = arith.addf %18, %21 : vector<16x96xf32>
    %23 = vector.extract_strided_slice %22 {offsets = [0, 0], sizes = [16, 8], strides = [1, 1]} : vector<16x96xf32> to vector<16x8xf32>
    %24 = vector.extract_strided_slice %22 {offsets = [0, 32], sizes = [16, 8], strides = [1, 1]} : vector<16x96xf32> to vector<16x8xf32>
    %25 = vector.extract_strided_slice %22 {offsets = [0, 64], sizes = [16, 8], strides = [1, 1]} : vector<16x96xf32> to vector<16x8xf32>
    "tpu.trace_start"() <{level = 10 : i32, message = "qd,kd->qk"}> : () -> ()
    %cst_16 = arith.constant dense<0.000000e+00> : vector<16x16xf32>
    %26 = tpu.matmul %23, %24, %cst_16 {dimension_numbers = #tpu.dot_dimension_numbers<[1], [1], [0], [0], [0, 0, 1, 0], [], []>} : vector<16x8xf32>, vector<16x8xf32>, vector<16x16xf32> -> vector<16x16xf32>
    "tpu.trace_stop"() : () -> ()
    %27 = arith.addf %26, %15 : vector<16x16xf32>
    %cst_17 = arith.constant dense<0xFF800000> : vector<16xf32>
    %28 = vector.multi_reduction <maximumf>, %27, %cst_17 [1] : vector<16x16xf32> to vector<16xf32>
    %29 = vector.shape_cast %28 : vector<16xf32> to vector<16x1xf32>
    %30 = vector.broadcast %29 : vector<16x1xf32> to vector<16x16xf32>
    %31 = arith.subf %27, %30 : vector<16x16xf32>
    %32 = math.exp %31 : vector<16x16xf32>
    %cst_18 = arith.constant dense<0.000000e+00> : vector<16xf32>
    %33 = vector.multi_reduction <add>, %32, %cst_18 [1] : vector<16x16xf32> to vector<16xf32>
    %34 = vector.shape_cast %33 : vector<16xf32> to vector<16x1xf32>
    %cst_19 = arith.constant dense<0.000000e+00> : vector<16x8xf32>
    %35 = tpu.matmul %32, %25, %cst_19 {dimension_numbers = #tpu.dot_dimension_numbers<[1], [0], [0], [1], [0, 0, 1, 1], [], []>} : vector<16x16xf32>, vector<16x8xf32>, vector<16x8xf32> -> vector<16x8xf32>
    %36 = tpu.reciprocal %34 {approx = true} : vector<16x1xf32> -> vector<16x1xf32>
    %37 = vector.broadcast %36 : vector<16x1xf32> to vector<16x8xf32>
    %38 = arith.mulf %35, %37 : vector<16x8xf32>
    %39 = vector.extract_strided_slice %22 {offsets = [0, 8], sizes = [16, 8], strides = [1, 1]} : vector<16x96xf32> to vector<16x8xf32>
    %40 = vector.extract_strided_slice %22 {offsets = [0, 40], sizes = [16, 8], strides = [1, 1]} : vector<16x96xf32> to vector<16x8xf32>
    %41 = vector.extract_strided_slice %22 {offsets = [0, 72], sizes = [16, 8], strides = [1, 1]} : vector<16x96xf32> to vector<16x8xf32>
    "tpu.trace_start"() <{level = 10 : i32, message = "qd,kd->qk"}> : () -> ()
    %cst_20 = arith.constant dense<0.000000e+00> : vector<16x16xf32>
    %42 = tpu.matmul %39, %40, %cst_20 {dimension_numbers = #tpu.dot_dimension_numbers<[1], [1], [0], [0], [0, 0, 1, 0], [], []>} : vector<16x8xf32>, vector<16x8xf32>, vector<16x16xf32> -> vector<16x16xf32>
    "tpu.trace_stop"() : () -> ()
    %43 = arith.addf %42, %15 : vector<16x16xf32>
    %cst_21 = arith.constant dense<0xFF800000> : vector<16xf32>
    %44 = vector.multi_reduction <maximumf>, %43, %cst_21 [1] : vector<16x16xf32> to vector<16xf32>
    %45 = vector.shape_cast %44 : vector<16xf32> to vector<16x1xf32>
    %46 = vector.broadcast %45 : vector<16x1xf32> to vector<16x16xf32>
    %47 = arith.subf %43, %46 : vector<16x16xf32>
    %48 = math.exp %47 : vector<16x16xf32>
    %cst_22 = arith.constant dense<0.000000e+00> : vector<16xf32>
    %49 = vector.multi_reduction <add>, %48, %cst_22 [1] : vector<16x16xf32> to vector<16xf32>
    %50 = vector.shape_cast %49 : vector<16xf32> to vector<16x1xf32>
    %cst_23 = arith.constant dense<0.000000e+00> : vector<16x8xf32>
    %51 = tpu.matmul %48, %41, %cst_23 {dimension_numbers = #tpu.dot_dimension_numbers<[1], [0], [0], [1], [0, 0, 1, 1], [], []>} : vector<16x16xf32>, vector<16x8xf32>, vector<16x8xf32> -> vector<16x8xf32>
    %52 = tpu.reciprocal %50 {approx = true} : vector<16x1xf32> -> vector<16x1xf32>
    %53 = vector.broadcast %52 : vector<16x1xf32> to vector<16x8xf32>
    %54 = arith.mulf %51, %53 : vector<16x8xf32>
    %55 = vector.extract_strided_slice %22 {offsets = [0, 16], sizes = [16, 8], strides = [1, 1]} : vector<16x96xf32> to vector<16x8xf32>
    %56 = vector.extract_strided_slice %22 {offsets = [0, 48], sizes = [16, 8], strides = [1, 1]} : vector<16x96xf32> to vector<16x8xf32>
    %57 = vector.extract_strided_slice %22 {offsets = [0, 80], sizes = [16, 8], strides = [1, 1]} : vector<16x96xf32> to vector<16x8xf32>
    "tpu.trace_start"() <{level = 10 : i32, message = "qd,kd->qk"}> : () -> ()
    %cst_24 = arith.constant dense<0.000000e+00> : vector<16x16xf32>
    %58 = tpu.matmul %55, %56, %cst_24 {dimension_numbers = #tpu.dot_dimension_numbers<[1], [1], [0], [0], [0, 0, 1, 0], [], []>} : vector<16x8xf32>, vector<16x8xf32>, vector<16x16xf32> -> vector<16x16xf32>
    "tpu.trace_stop"() : () -> ()
    %59 = arith.addf %58, %15 : vector<16x16xf32>
    %cst_25 = arith.constant dense<0xFF800000> : vector<16xf32>
    %60 = vector.multi_reduction <maximumf>, %59, %cst_25 [1] : vector<16x16xf32> to vector<16xf32>
    %61 = vector.shape_cast %60 : vector<16xf32> to vector<16x1xf32>
    %62 = vector.broadcast %61 : vector<16x1xf32> to vector<16x16xf32>
    %63 = arith.subf %59, %62 : vector<16x16xf32>
    %64 = math.exp %63 : vector<16x16xf32>
    %cst_26 = arith.constant dense<0.000000e+00> : vector<16xf32>
    %65 = vector.multi_reduction <add>, %64, %cst_26 [1] : vector<16x16xf32> to vector<16xf32>
    %66 = vector.shape_cast %65 : vector<16xf32> to vector<16x1xf32>
    %cst_27 = arith.constant dense<0.000000e+00> : vector<16x8xf32>
    %67 = tpu.matmul %64, %57, %cst_27 {dimension_numbers = #tpu.dot_dimension_numbers<[1], [0], [0], [1], [0, 0, 1, 1], [], []>} : vector<16x16xf32>, vector<16x8xf32>, vector<16x8xf32> -> vector<16x8xf32>
    %68 = tpu.reciprocal %66 {approx = true} : vector<16x1xf32> -> vector<16x1xf32>
    %69 = vector.broadcast %68 : vector<16x1xf32> to vector<16x8xf32>
    %70 = arith.mulf %67, %69 : vector<16x8xf32>
    %71 = vector.extract_strided_slice %22 {offsets = [0, 24], sizes = [16, 8], strides = [1, 1]} : vector<16x96xf32> to vector<16x8xf32>
    %72 = vector.extract_strided_slice %22 {offsets = [0, 56], sizes = [16, 8], strides = [1, 1]} : vector<16x96xf32> to vector<16x8xf32>
    %73 = vector.extract_strided_slice %22 {offsets = [0, 88], sizes = [16, 8], strides = [1, 1]} : vector<16x96xf32> to vector<16x8xf32>
    "tpu.trace_start"() <{level = 10 : i32, message = "qd,kd->qk"}> : () -> ()
    %cst_28 = arith.constant dense<0.000000e+00> : vector<16x16xf32>
    %74 = tpu.matmul %71, %72, %cst_28 {dimension_numbers = #tpu.dot_dimension_numbers<[1], [1], [0], [0], [0, 0, 1, 0], [], []>} : vector<16x8xf32>, vector<16x8xf32>, vector<16x16xf32> -> vector<16x16xf32>
    "tpu.trace_stop"() : () -> ()
    %75 = arith.addf %74, %15 : vector<16x16xf32>
    %cst_29 = arith.constant dense<0xFF800000> : vector<16xf32>
    %76 = vector.multi_reduction <maximumf>, %75, %cst_29 [1] : vector<16x16xf32> to vector<16xf32>
    %77 = vector.shape_cast %76 : vector<16xf32> to vector<16x1xf32>
    %78 = vector.broadcast %77 : vector<16x1xf32> to vector<16x16xf32>
    %79 = arith.subf %75, %78 : vector<16x16xf32>
    %80 = math.exp %79 : vector<16x16xf32>
    %cst_30 = arith.constant dense<0.000000e+00> : vector<16xf32>
    %81 = vector.multi_reduction <add>, %80, %cst_30 [1] : vector<16x16xf32> to vector<16xf32>
    %82 = vector.shape_cast %81 : vector<16xf32> to vector<16x1xf32>
    %cst_31 = arith.constant dense<0.000000e+00> : vector<16x8xf32>
    %83 = tpu.matmul %80, %73, %cst_31 {dimension_numbers = #tpu.dot_dimension_numbers<[1], [0], [0], [1], [0, 0, 1, 1], [], []>} : vector<16x16xf32>, vector<16x8xf32>, vector<16x8xf32> -> vector<16x8xf32>
    %84 = tpu.reciprocal %82 {approx = true} : vector<16x1xf32> -> vector<16x1xf32>
    %85 = vector.broadcast %84 : vector<16x1xf32> to vector<16x8xf32>
    %86 = arith.mulf %83, %85 : vector<16x8xf32>
    %87 = tpu.concatenate %38, %54, %70, %86 in 1 : vector<16x8xf32>, vector<16x8xf32>, vector<16x8xf32>, vector<16x8xf32> -> vector<16x32xf32>
    %c0_32 = arith.constant 0 : index
    %c0_33 = arith.constant 0 : index
    %c0_34 = arith.constant 0 : index
    %88 = vector.load %arg6[%c0_32, %c0_33, %c0_34] : memref<2x32x32xf32, #tpu.memory_space<vmem>>, vector<1x32x32xf32>
    %89 = vector.shape_cast %88 : vector<1x32x32xf32> to vector<32x32xf32>
    %cst_35 = arith.constant dense<0.000000e+00> : vector<16x32xf32>
    %90 = tpu.matmul %87, %89, %cst_35 {dimension_numbers = #tpu.dot_dimension_numbers<[1], [0], [0], [1], [0, 0, 1, 1], [], []>} : vector<16x32xf32>, vector<32x32xf32>, vector<16x32xf32> -> vector<16x32xf32>
    %c0_36 = arith.constant 0 : index
    %c0_37 = arith.constant 0 : index
    %c0_38 = arith.constant 0 : index
    %91 = vector.load %arg7[%c0_36, %c0_37, %c0_38] : memref<2x1x32xf32, #tpu.memory_space<vmem>>, vector<1x1x32xf32>
    %92 = vector.shape_cast %91 : vector<1x1x32xf32> to vector<1x32xf32>
    %93 = vector.broadcast %92 : vector<1x32xf32> to vector<16x32xf32>
    %94 = arith.addf %90, %93 : vector<16x32xf32>
    %95 = arith.addf %7, %94 : vector<16x32xf32>
    %c0_39 = arith.constant 0 : index
    %c0_40 = arith.constant 0 : index
    %c0_41 = arith.constant 0 : index
    %96 = vector.load %arg8[%c0_39, %c0_40, %c0_41] : memref<2x1x32xf32, #tpu.memory_space<vmem>>, vector<1x1x32xf32>
    %97 = vector.shape_cast %96 : vector<1x1x32xf32> to vector<1x32xf32>
    %c0_42 = arith.constant 0 : index
    %c0_43 = arith.constant 0 : index
    %c0_44 = arith.constant 0 : index
    %98 = vector.load %arg9[%c0_42, %c0_43, %c0_44] : memref<2x1x32xf32, #tpu.memory_space<vmem>>, vector<1x1x32xf32>
    %99 = vector.shape_cast %98 : vector<1x1x32xf32> to vector<1x32xf32>
    %cst_45 = arith.constant dense<0.000000e+00> : vector<16xf32>
    %100 = vector.multi_reduction <add>, %95, %cst_45 [1] : vector<16x32xf32> to vector<16xf32>
    %101 = vector.shape_cast %100 : vector<16xf32> to vector<16x1xf32>
    %cst_46 = arith.constant 3.200000e+01 : f32
    %102 = vector.broadcast %cst_46 : f32 to vector<16x1xf32>
    %103 = arith.divf %101, %102 : vector<16x1xf32>
    %104 = vector.broadcast %103 : vector<16x1xf32> to vector<16x32xf32>
    %105 = arith.subf %95, %104 : vector<16x32xf32>
    %106 = arith.mulf %105, %105 : vector<16x32xf32>
    %cst_47 = arith.constant dense<0.000000e+00> : vector<16xf32>
    %107 = vector.multi_reduction <add>, %106, %cst_47 [1] : vector<16x32xf32> to vector<16xf32>
    %108 = vector.shape_cast %107 : vector<16xf32> to vector<16x1xf32>
    %cst_48 = arith.constant 3.200000e+01 : f32
    %109 = vector.broadcast %cst_48 : f32 to vector<16x1xf32>
    %110 = arith.divf %108, %109 : vector<16x1xf32>
    %111 = vector.broadcast %103 : vector<16x1xf32> to vector<16x32xf32>
    %112 = arith.subf %95, %111 : vector<16x32xf32>
    %cst_49 = arith.constant 9.99999974E-6 : f32
    %113 = vector.broadcast %cst_49 : f32 to vector<16x1xf32>
    %114 = arith.addf %110, %113 : vector<16x1xf32>
    %115 = math.rsqrt %114 : vector<16x1xf32>
    %116 = vector.broadcast %115 : vector<16x1xf32> to vector<16x32xf32>
    %117 = arith.mulf %112, %116 : vector<16x32xf32>
    %118 = vector.broadcast %97 : vector<1x32xf32> to vector<16x32xf32>
    %119 = arith.mulf %117, %118 : vector<16x32xf32>
    %120 = vector.broadcast %99 : vector<1x32xf32> to vector<16x32xf32>
    %121 = arith.addf %119, %120 : vector<16x32xf32>
    %122 = arith.truncf %121 : vector<16x32xf32> to vector<16x32xbf16>
    %cst_50 = arith.constant 0.000000e+00 : f32
    %123 = vector.broadcast %cst_50 : f32 to vector<16x32xf32>
    %c0_51 = arith.constant 0 : index
    %c0_52 = arith.constant 0 : index
    %c0_53 = arith.constant 0 : index
    %124 = vector.load %arg10[%c0_51, %c0_52, %c0_53] : memref<2x32x2048xbf16, #tpu.memory_space<vmem>>, vector<1x32x512xbf16>
    %125 = vector.shape_cast %124 : vector<1x32x512xbf16> to vector<32x512xbf16>
    %cst_54 = arith.constant dense<0.000000e+00> : vector<16x512xf32>
    %126 = tpu.matmul %122, %125, %cst_54 {dimension_numbers = #tpu.dot_dimension_numbers<[1], [0], [0], [1], [0, 0, 1, 1], [], []>} : vector<16x32xbf16>, vector<32x512xbf16>, vector<16x512xf32> -> vector<16x512xf32>
    %c0_55 = arith.constant 0 : index
    %c0_56 = arith.constant 0 : index
    %c0_57 = arith.constant 0 : index
    %127 = vector.load %arg11[%c0_55, %c0_56, %c0_57] : memref<2x1x2048xf32, #tpu.memory_space<vmem>>, vector<1x1x512xf32>
    %128 = vector.shape_cast %127 : vector<1x1x512xf32> to vector<1x512xf32>
    %129 = vector.broadcast %128 : vector<1x512xf32> to vector<16x512xf32>
    %130 = arith.addf %126, %129 : vector<16x512xf32>
    %cst_58 = arith.constant 0.000000e+00 : f32
    %131 = vector.broadcast %cst_58 : f32 to vector<16x512xf32>
    %132 = arith.maximumf %130, %131 : vector<16x512xf32>
    %133 = arith.truncf %132 : vector<16x512xf32> to vector<16x512xbf16>
    %c0_59 = arith.constant 0 : index
    %c0_60 = arith.constant 0 : index
    %c0_61 = arith.constant 0 : index
    %134 = vector.load %arg12[%c0_59, %c0_60, %c0_61] : memref<2x2048x32xbf16, #tpu.memory_space<vmem>>, vector<1x512x32xbf16>
    %135 = vector.shape_cast %134 : vector<1x512x32xbf16> to vector<512x32xbf16>
    %cst_62 = arith.constant dense<0.000000e+00> : vector<16x32xf32>
    %136 = tpu.matmul %133, %135, %cst_62 {dimension_numbers = #tpu.dot_dimension_numbers<[1], [0], [0], [1], [0, 0, 1, 1], [], []>} : vector<16x512xbf16>, vector<512x32xbf16>, vector<16x32xf32> -> vector<16x32xf32>
    %137 = arith.addf %123, %136 : vector<16x32xf32>
    %c0_63 = arith.constant 0 : index
    %c0_64 = arith.constant 0 : index
    %c512 = arith.constant 512 : index
    %138 = vector.load %arg10[%c0_63, %c0_64, %c512] : memref<2x32x2048xbf16, #tpu.memory_space<vmem>>, vector<1x32x512xbf16>
    %139 = vector.shape_cast %138 : vector<1x32x512xbf16> to vector<32x512xbf16>
    %cst_65 = arith.constant dense<0.000000e+00> : vector<16x512xf32>
    %140 = tpu.matmul %122, %139, %cst_65 {dimension_numbers = #tpu.dot_dimension_numbers<[1], [0], [0], [1], [0, 0, 1, 1], [], []>} : vector<16x32xbf16>, vector<32x512xbf16>, vector<16x512xf32> -> vector<16x512xf32>
    %c0_66 = arith.constant 0 : index
    %c0_67 = arith.constant 0 : index
    %c512_68 = arith.constant 512 : index
    %141 = vector.load %arg11[%c0_66, %c0_67, %c512_68] : memref<2x1x2048xf32, #tpu.memory_space<vmem>>, vector<1x1x512xf32>
    %142 = vector.shape_cast %141 : vector<1x1x512xf32> to vector<1x512xf32>
    %143 = vector.broadcast %142 : vector<1x512xf32> to vector<16x512xf32>
    %144 = arith.addf %140, %143 : vector<16x512xf32>
    %cst_69 = arith.constant 0.000000e+00 : f32
    %145 = vector.broadcast %cst_69 : f32 to vector<16x512xf32>
    %146 = arith.maximumf %144, %145 : vector<16x512xf32>
    %147 = arith.truncf %146 : vector<16x512xf32> to vector<16x512xbf16>
    %c0_70 = arith.constant 0 : index
    %c512_71 = arith.constant 512 : index
    %c0_72 = arith.constant 0 : index
    %148 = vector.load %arg12[%c0_70, %c512_71, %c0_72] : memref<2x2048x32xbf16, #tpu.memory_space<vmem>>, vector<1x512x32xbf16>
    %149 = vector.shape_cast %148 : vector<1x512x32xbf16> to vector<512x32xbf16>
    %cst_73 = arith.constant dense<0.000000e+00> : vector<16x32xf32>
    %150 = tpu.matmul %147, %149, %cst_73 {dimension_numbers = #tpu.dot_dimension_numbers<[1], [0], [0], [1], [0, 0, 1, 1], [], []>} : vector<16x512xbf16>, vector<512x32xbf16>, vector<16x32xf32> -> vector<16x32xf32>
    %151 = arith.addf %137, %150 : vector<16x32xf32>
    %c0_74 = arith.constant 0 : index
    %c0_75 = arith.constant 0 : index
    %c1024 = arith.constant 1024 : index
    %152 = vector.load %arg10[%c0_74, %c0_75, %c1024] : memref<2x32x2048xbf16, #tpu.memory_space<vmem>>, vector<1x32x512xbf16>
    %153 = vector.shape_cast %152 : vector<1x32x512xbf16> to vector<32x512xbf16>
    %cst_76 = arith.constant dense<0.000000e+00> : vector<16x512xf32>
    %154 = tpu.matmul %122, %153, %cst_76 {dimension_numbers = #tpu.dot_dimension_numbers<[1], [0], [0], [1], [0, 0, 1, 1], [], []>} : vector<16x32xbf16>, vector<32x512xbf16>, vector<16x512xf32> -> vector<16x512xf32>
    %c0_77 = arith.constant 0 : index
    %c0_78 = arith.constant 0 : index
    %c1024_79 = arith.constant 1024 : index
    %155 = vector.load %arg11[%c0_77, %c0_78, %c1024_79] : memref<2x1x2048xf32, #tpu.memory_space<vmem>>, vector<1x1x512xf32>
    %156 = vector.shape_cast %155 : vector<1x1x512xf32> to vector<1x512xf32>
    %157 = vector.broadcast %156 : vector<1x512xf32> to vector<16x512xf32>
    %158 = arith.addf %154, %157 : vector<16x512xf32>
    %cst_80 = arith.constant 0.000000e+00 : f32
    %159 = vector.broadcast %cst_80 : f32 to vector<16x512xf32>
    %160 = arith.maximumf %158, %159 : vector<16x512xf32>
    %161 = arith.truncf %160 : vector<16x512xf32> to vector<16x512xbf16>
    %c0_81 = arith.constant 0 : index
    %c1024_82 = arith.constant 1024 : index
    %c0_83 = arith.constant 0 : index
    %162 = vector.load %arg12[%c0_81, %c1024_82, %c0_83] : memref<2x2048x32xbf16, #tpu.memory_space<vmem>>, vector<1x512x32xbf16>
    %163 = vector.shape_cast %162 : vector<1x512x32xbf16> to vector<512x32xbf16>
    %cst_84 = arith.constant dense<0.000000e+00> : vector<16x32xf32>
    %164 = tpu.matmul %161, %163, %cst_84 {dimension_numbers = #tpu.dot_dimension_numbers<[1], [0], [0], [1], [0, 0, 1, 1], [], []>} : vector<16x512xbf16>, vector<512x32xbf16>, vector<16x32xf32> -> vector<16x32xf32>
    %165 = arith.addf %151, %164 : vector<16x32xf32>
    %c0_85 = arith.constant 0 : index
    %c0_86 = arith.constant 0 : index
    %c1536 = arith.constant 1536 : index
    %166 = vector.load %arg10[%c0_85, %c0_86, %c1536] : memref<2x32x2048xbf16, #tpu.memory_space<vmem>>, vector<1x32x512xbf16>
    %167 = vector.shape_cast %166 : vector<1x32x512xbf16> to vector<32x512xbf16>
    %cst_87 = arith.constant dense<0.000000e+00> : vector<16x512xf32>
    %168 = tpu.matmul %122, %167, %cst_87 {dimension_numbers = #tpu.dot_dimension_numbers<[1], [0], [0], [1], [0, 0, 1, 1], [], []>} : vector<16x32xbf16>, vector<32x512xbf16>, vector<16x512xf32> -> vector<16x512xf32>
    %c0_88 = arith.constant 0 : index
    %c0_89 = arith.constant 0 : index
    %c1536_90 = arith.constant 1536 : index
    %169 = vector.load %arg11[%c0_88, %c0_89, %c1536_90] : memref<2x1x2048xf32, #tpu.memory_space<vmem>>, vector<1x1x512xf32>
    %170 = vector.shape_cast %169 : vector<1x1x512xf32> to vector<1x512xf32>
    %171 = vector.broadcast %170 : vector<1x512xf32> to vector<16x512xf32>
    %172 = arith.addf %168, %171 : vector<16x512xf32>
    %cst_91 = arith.constant 0.000000e+00 : f32
    %173 = vector.broadcast %cst_91 : f32 to vector<16x512xf32>
    %174 = arith.maximumf %172, %173 : vector<16x512xf32>
    %175 = arith.truncf %174 : vector<16x512xf32> to vector<16x512xbf16>
    %c0_92 = arith.constant 0 : index
    %c1536_93 = arith.constant 1536 : index
    %c0_94 = arith.constant 0 : index
    %176 = vector.load %arg12[%c0_92, %c1536_93, %c0_94] : memref<2x2048x32xbf16, #tpu.memory_space<vmem>>, vector<1x512x32xbf16>
    %177 = vector.shape_cast %176 : vector<1x512x32xbf16> to vector<512x32xbf16>
    %cst_95 = arith.constant dense<0.000000e+00> : vector<16x32xf32>
    %178 = tpu.matmul %175, %177, %cst_95 {dimension_numbers = #tpu.dot_dimension_numbers<[1], [0], [0], [1], [0, 0, 1, 1], [], []>} : vector<16x512xbf16>, vector<512x32xbf16>, vector<16x32xf32> -> vector<16x32xf32>
    %179 = arith.addf %165, %178 : vector<16x32xf32>
    %c0_96 = arith.constant 0 : index
    %c0_97 = arith.constant 0 : index
    %c0_98 = arith.constant 0 : index
    %180 = vector.load %arg13[%c0_96, %c0_97, %c0_98] : memref<2x1x32xf32, #tpu.memory_space<vmem>>, vector<1x1x32xf32>
    %181 = vector.shape_cast %180 : vector<1x1x32xf32> to vector<1x32xf32>
    %182 = vector.broadcast %181 : vector<1x32xf32> to vector<16x32xf32>
    %183 = arith.addf %179, %182 : vector<16x32xf32>
    %184 = arith.addf %121, %183 : vector<16x32xf32>
    %c0_99 = arith.constant 0 : index
    %c0_100 = arith.constant 0 : index
    %c0_101 = arith.constant 0 : index
    %185 = vector.load %arg14[%c0_99, %c0_100, %c0_101] : memref<2x1x32xf32, #tpu.memory_space<vmem>>, vector<1x1x32xf32>
    %186 = vector.shape_cast %185 : vector<1x1x32xf32> to vector<1x32xf32>
    %c0_102 = arith.constant 0 : index
    %c0_103 = arith.constant 0 : index
    %c0_104 = arith.constant 0 : index
    %187 = vector.load %arg15[%c0_102, %c0_103, %c0_104] : memref<2x1x32xf32, #tpu.memory_space<vmem>>, vector<1x1x32xf32>
    %188 = vector.shape_cast %187 : vector<1x1x32xf32> to vector<1x32xf32>
    %cst_105 = arith.constant dense<0.000000e+00> : vector<16xf32>
    %189 = vector.multi_reduction <add>, %184, %cst_105 [1] : vector<16x32xf32> to vector<16xf32>
    %190 = vector.shape_cast %189 : vector<16xf32> to vector<16x1xf32>
    %cst_106 = arith.constant 3.200000e+01 : f32
    %191 = vector.broadcast %cst_106 : f32 to vector<16x1xf32>
    %192 = arith.divf %190, %191 : vector<16x1xf32>
    %193 = vector.broadcast %192 : vector<16x1xf32> to vector<16x32xf32>
    %194 = arith.subf %184, %193 : vector<16x32xf32>
    %195 = arith.mulf %194, %194 : vector<16x32xf32>
    %cst_107 = arith.constant dense<0.000000e+00> : vector<16xf32>
    %196 = vector.multi_reduction <add>, %195, %cst_107 [1] : vector<16x32xf32> to vector<16xf32>
    %197 = vector.shape_cast %196 : vector<16xf32> to vector<16x1xf32>
    %cst_108 = arith.constant 3.200000e+01 : f32
    %198 = vector.broadcast %cst_108 : f32 to vector<16x1xf32>
    %199 = arith.divf %197, %198 : vector<16x1xf32>
    %200 = vector.broadcast %192 : vector<16x1xf32> to vector<16x32xf32>
    %201 = arith.subf %184, %200 : vector<16x32xf32>
    %cst_109 = arith.constant 9.99999974E-6 : f32
    %202 = vector.broadcast %cst_109 : f32 to vector<16x1xf32>
    %203 = arith.addf %199, %202 : vector<16x1xf32>
    %204 = math.rsqrt %203 : vector<16x1xf32>
    %205 = vector.broadcast %204 : vector<16x1xf32> to vector<16x32xf32>
    %206 = arith.mulf %201, %205 : vector<16x32xf32>
    %207 = vector.broadcast %186 : vector<1x32xf32> to vector<16x32xf32>
    %208 = arith.mulf %206, %207 : vector<16x32xf32>
    %209 = vector.broadcast %188 : vector<1x32xf32> to vector<16x32xf32>
    %210 = arith.addf %208, %209 : vector<16x32xf32>
    %c1 = arith.constant 1 : index
    %c0_110 = arith.constant 0 : index
    %c0_111 = arith.constant 0 : index
    %211 = vector.load %arg4[%c1, %c0_110, %c0_111] : memref<2x32x96xf32, #tpu.memory_space<vmem>>, vector<1x32x96xf32>
    %212 = vector.shape_cast %211 : vector<1x32x96xf32> to vector<32x96xf32>
    %cst_112 = arith.constant dense<0.000000e+00> : vector<16x96xf32>
    %213 = tpu.matmul %210, %212, %cst_112 {dimension_numbers = #tpu.dot_dimension_numbers<[1], [0], [0], [1], [0, 0, 1, 1], [], []>} : vector<16x32xf32>, vector<32x96xf32>, vector<16x96xf32> -> vector<16x96xf32>
    %c1_113 = arith.constant 1 : index
    %c0_114 = arith.constant 0 : index
    %c0_115 = arith.constant 0 : index
    %214 = vector.load %arg5[%c1_113, %c0_114, %c0_115] : memref<2x1x96xf32, #tpu.memory_space<vmem>>, vector<1x1x96xf32>
    %215 = vector.shape_cast %214 : vector<1x1x96xf32> to vector<1x96xf32>
    %216 = vector.broadcast %215 : vector<1x96xf32> to vector<16x96xf32>
    %217 = arith.addf %213, %216 : vector<16x96xf32>
    %218 = vector.extract_strided_slice %217 {offsets = [0, 0], sizes = [16, 8], strides = [1, 1]} : vector<16x96xf32> to vector<16x8xf32>
    %219 = vector.extract_strided_slice %217 {offsets = [0, 32], sizes = [16, 8], strides = [1, 1]} : vector<16x96xf32> to vector<16x8xf32>
    %220 = vector.extract_strided_slice %217 {offsets = [0, 64], sizes = [16, 8], strides = [1, 1]} : vector<16x96xf32> to vector<16x8xf32>
    "tpu.trace_start"() <{level = 10 : i32, message = "qd,kd->qk"}> : () -> ()
    %cst_116 = arith.constant dense<0.000000e+00> : vector<16x16xf32>
    %221 = tpu.matmul %218, %219, %cst_116 {dimension_numbers = #tpu.dot_dimension_numbers<[1], [1], [0], [0], [0, 0, 1, 0], [], []>} : vector<16x8xf32>, vector<16x8xf32>, vector<16x16xf32> -> vector<16x16xf32>
    "tpu.trace_stop"() : () -> ()
    %222 = arith.addf %221, %15 : vector<16x16xf32>
    %cst_117 = arith.constant dense<0xFF800000> : vector<16xf32>
    %223 = vector.multi_reduction <maximumf>, %222, %cst_117 [1] : vector<16x16xf32> to vector<16xf32>
    %224 = vector.shape_cast %223 : vector<16xf32> to vector<16x1xf32>
    %225 = vector.broadcast %224 : vector<16x1xf32> to vector<16x16xf32>
    %226 = arith.subf %222, %225 : vector<16x16xf32>
    %227 = math.exp %226 : vector<16x16xf32>
    %cst_118 = arith.constant dense<0.000000e+00> : vector<16xf32>
    %228 = vector.multi_reduction <add>, %227, %cst_118 [1] : vector<16x16xf32> to vector<16xf32>
    %229 = vector.shape_cast %228 : vector<16xf32> to vector<16x1xf32>
    %cst_119 = arith.constant dense<0.000000e+00> : vector<16x8xf32>
    %230 = tpu.matmul %227, %220, %cst_119 {dimension_numbers = #tpu.dot_dimension_numbers<[1], [0], [0], [1], [0, 0, 1, 1], [], []>} : vector<16x16xf32>, vector<16x8xf32>, vector<16x8xf32> -> vector<16x8xf32>
    %231 = tpu.reciprocal %229 {approx = true} : vector<16x1xf32> -> vector<16x1xf32>
    %232 = vector.broadcast %231 : vector<16x1xf32> to vector<16x8xf32>
    %233 = arith.mulf %230, %232 : vector<16x8xf32>
    %234 = vector.extract_strided_slice %217 {offsets = [0, 8], sizes = [16, 8], strides = [1, 1]} : vector<16x96xf32> to vector<16x8xf32>
    %235 = vector.extract_strided_slice %217 {offsets = [0, 40], sizes = [16, 8], strides = [1, 1]} : vector<16x96xf32> to vector<16x8xf32>
    %236 = vector.extract_strided_slice %217 {offsets = [0, 72], sizes = [16, 8], strides = [1, 1]} : vector<16x96xf32> to vector<16x8xf32>
    "tpu.trace_start"() <{level = 10 : i32, message = "qd,kd->qk"}> : () -> ()
    %cst_120 = arith.constant dense<0.000000e+00> : vector<16x16xf32>
    %237 = tpu.matmul %234, %235, %cst_120 {dimension_numbers = #tpu.dot_dimension_numbers<[1], [1], [0], [0], [0, 0, 1, 0], [], []>} : vector<16x8xf32>, vector<16x8xf32>, vector<16x16xf32> -> vector<16x16xf32>
    "tpu.trace_stop"() : () -> ()
    %238 = arith.addf %237, %15 : vector<16x16xf32>
    %cst_121 = arith.constant dense<0xFF800000> : vector<16xf32>
    %239 = vector.multi_reduction <maximumf>, %238, %cst_121 [1] : vector<16x16xf32> to vector<16xf32>
    %240 = vector.shape_cast %239 : vector<16xf32> to vector<16x1xf32>
    %241 = vector.broadcast %240 : vector<16x1xf32> to vector<16x16xf32>
    %242 = arith.subf %238, %241 : vector<16x16xf32>
    %243 = math.exp %242 : vector<16x16xf32>
    %cst_122 = arith.constant dense<0.000000e+00> : vector<16xf32>
    %244 = vector.multi_reduction <add>, %243, %cst_122 [1] : vector<16x16xf32> to vector<16xf32>
    %245 = vector.shape_cast %244 : vector<16xf32> to vector<16x1xf32>
    %cst_123 = arith.constant dense<0.000000e+00> : vector<16x8xf32>
    %246 = tpu.matmul %243, %236, %cst_123 {dimension_numbers = #tpu.dot_dimension_numbers<[1], [0], [0], [1], [0, 0, 1, 1], [], []>} : vector<16x16xf32>, vector<16x8xf32>, vector<16x8xf32> -> vector<16x8xf32>
    %247 = tpu.reciprocal %245 {approx = true} : vector<16x1xf32> -> vector<16x1xf32>
    %248 = vector.broadcast %247 : vector<16x1xf32> to vector<16x8xf32>
    %249 = arith.mulf %246, %248 : vector<16x8xf32>
    %250 = vector.extract_strided_slice %217 {offsets = [0, 16], sizes = [16, 8], strides = [1, 1]} : vector<16x96xf32> to vector<16x8xf32>
    %251 = vector.extract_strided_slice %217 {offsets = [0, 48], sizes = [16, 8], strides = [1, 1]} : vector<16x96xf32> to vector<16x8xf32>
    %252 = vector.extract_strided_slice %217 {offsets = [0, 80], sizes = [16, 8], strides = [1, 1]} : vector<16x96xf32> to vector<16x8xf32>
    "tpu.trace_start"() <{level = 10 : i32, message = "qd,kd->qk"}> : () -> ()
    %cst_124 = arith.constant dense<0.000000e+00> : vector<16x16xf32>
    %253 = tpu.matmul %250, %251, %cst_124 {dimension_numbers = #tpu.dot_dimension_numbers<[1], [1], [0], [0], [0, 0, 1, 0], [], []>} : vector<16x8xf32>, vector<16x8xf32>, vector<16x16xf32> -> vector<16x16xf32>
    "tpu.trace_stop"() : () -> ()
    %254 = arith.addf %253, %15 : vector<16x16xf32>
    %cst_125 = arith.constant dense<0xFF800000> : vector<16xf32>
    %255 = vector.multi_reduction <maximumf>, %254, %cst_125 [1] : vector<16x16xf32> to vector<16xf32>
    %256 = vector.shape_cast %255 : vector<16xf32> to vector<16x1xf32>
    %257 = vector.broadcast %256 : vector<16x1xf32> to vector<16x16xf32>
    %258 = arith.subf %254, %257 : vector<16x16xf32>
    %259 = math.exp %258 : vector<16x16xf32>
    %cst_126 = arith.constant dense<0.000000e+00> : vector<16xf32>
    %260 = vector.multi_reduction <add>, %259, %cst_126 [1] : vector<16x16xf32> to vector<16xf32>
    %261 = vector.shape_cast %260 : vector<16xf32> to vector<16x1xf32>
    %cst_127 = arith.constant dense<0.000000e+00> : vector<16x8xf32>
    %262 = tpu.matmul %259, %252, %cst_127 {dimension_numbers = #tpu.dot_dimension_numbers<[1], [0], [0], [1], [0, 0, 1, 1], [], []>} : vector<16x16xf32>, vector<16x8xf32>, vector<16x8xf32> -> vector<16x8xf32>
    %263 = tpu.reciprocal %261 {approx = true} : vector<16x1xf32> -> vector<16x1xf32>
    %264 = vector.broadcast %263 : vector<16x1xf32> to vector<16x8xf32>
    %265 = arith.mulf %262, %264 : vector<16x8xf32>
    %266 = vector.extract_strided_slice %217 {offsets = [0, 24], sizes = [16, 8], strides = [1, 1]} : vector<16x96xf32> to vector<16x8xf32>
    %267 = vector.extract_strided_slice %217 {offsets = [0, 56], sizes = [16, 8], strides = [1, 1]} : vector<16x96xf32> to vector<16x8xf32>
    %268 = vector.extract_strided_slice %217 {offsets = [0, 88], sizes = [16, 8], strides = [1, 1]} : vector<16x96xf32> to vector<16x8xf32>
    "tpu.trace_start"() <{level = 10 : i32, message = "qd,kd->qk"}> : () -> ()
    %cst_128 = arith.constant dense<0.000000e+00> : vector<16x16xf32>
    %269 = tpu.matmul %266, %267, %cst_128 {dimension_numbers = #tpu.dot_dimension_numbers<[1], [1], [0], [0], [0, 0, 1, 0], [], []>} : vector<16x8xf32>, vector<16x8xf32>, vector<16x16xf32> -> vector<16x16xf32>
    "tpu.trace_stop"() : () -> ()
    %270 = arith.addf %269, %15 : vector<16x16xf32>
    %cst_129 = arith.constant dense<0xFF800000> : vector<16xf32>
    %271 = vector.multi_reduction <maximumf>, %270, %cst_129 [1] : vector<16x16xf32> to vector<16xf32>
    %272 = vector.shape_cast %271 : vector<16xf32> to vector<16x1xf32>
    %273 = vector.broadcast %272 : vector<16x1xf32> to vector<16x16xf32>
    %274 = arith.subf %270, %273 : vector<16x16xf32>
    %275 = math.exp %274 : vector<16x16xf32>
    %cst_130 = arith.constant dense<0.000000e+00> : vector<16xf32>
    %276 = vector.multi_reduction <add>, %275, %cst_130 [1] : vector<16x16xf32> to vector<16xf32>
    %277 = vector.shape_cast %276 : vector<16xf32> to vector<16x1xf32>
    %cst_131 = arith.constant dense<0.000000e+00> : vector<16x8xf32>
    %278 = tpu.matmul %275, %268, %cst_131 {dimension_numbers = #tpu.dot_dimension_numbers<[1], [0], [0], [1], [0, 0, 1, 1], [], []>} : vector<16x16xf32>, vector<16x8xf32>, vector<16x8xf32> -> vector<16x8xf32>
    %279 = tpu.reciprocal %277 {approx = true} : vector<16x1xf32> -> vector<16x1xf32>
    %280 = vector.broadcast %279 : vector<16x1xf32> to vector<16x8xf32>
    %281 = arith.mulf %278, %280 : vector<16x8xf32>
    %282 = tpu.concatenate %233, %249, %265, %281 in 1 : vector<16x8xf32>, vector<16x8xf32>, vector<16x8xf32>, vector<16x8xf32> -> vector<16x32xf32>
    %c1_132 = arith.constant 1 : index
    %c0_133 = arith.constant 0 : index
    %c0_134 = arith.constant 0 : index
    %283 = vector.load %arg6[%c1_132, %c0_133, %c0_134] : memref<2x32x32xf32, #tpu.memory_space<vmem>>, vector<1x32x32xf32>
    %284 = vector.shape_cast %283 : vector<1x32x32xf32> to vector<32x32xf32>
    %cst_135 = arith.constant dense<0.000000e+00> : vector<16x32xf32>
    %285 = tpu.matmul %282, %284, %cst_135 {dimension_numbers = #tpu.dot_dimension_numbers<[1], [0], [0], [1], [0, 0, 1, 1], [], []>} : vector<16x32xf32>, vector<32x32xf32>, vector<16x32xf32> -> vector<16x32xf32>
    %c1_136 = arith.constant 1 : index
    %c0_137 = arith.constant 0 : index
    %c0_138 = arith.constant 0 : index
    %286 = vector.load %arg7[%c1_136, %c0_137, %c0_138] : memref<2x1x32xf32, #tpu.memory_space<vmem>>, vector<1x1x32xf32>
    %287 = vector.shape_cast %286 : vector<1x1x32xf32> to vector<1x32xf32>
    %288 = vector.broadcast %287 : vector<1x32xf32> to vector<16x32xf32>
    %289 = arith.addf %285, %288 : vector<16x32xf32>
    %290 = arith.addf %210, %289 : vector<16x32xf32>
    %c1_139 = arith.constant 1 : index
    %c0_140 = arith.constant 0 : index
    %c0_141 = arith.constant 0 : index
    %291 = vector.load %arg8[%c1_139, %c0_140, %c0_141] : memref<2x1x32xf32, #tpu.memory_space<vmem>>, vector<1x1x32xf32>
    %292 = vector.shape_cast %291 : vector<1x1x32xf32> to vector<1x32xf32>
    %c1_142 = arith.constant 1 : index
    %c0_143 = arith.constant 0 : index
    %c0_144 = arith.constant 0 : index
    %293 = vector.load %arg9[%c1_142, %c0_143, %c0_144] : memref<2x1x32xf32, #tpu.memory_space<vmem>>, vector<1x1x32xf32>
    %294 = vector.shape_cast %293 : vector<1x1x32xf32> to vector<1x32xf32>
    %cst_145 = arith.constant dense<0.000000e+00> : vector<16xf32>
    %295 = vector.multi_reduction <add>, %290, %cst_145 [1] : vector<16x32xf32> to vector<16xf32>
    %296 = vector.shape_cast %295 : vector<16xf32> to vector<16x1xf32>
    %cst_146 = arith.constant 3.200000e+01 : f32
    %297 = vector.broadcast %cst_146 : f32 to vector<16x1xf32>
    %298 = arith.divf %296, %297 : vector<16x1xf32>
    %299 = vector.broadcast %298 : vector<16x1xf32> to vector<16x32xf32>
    %300 = arith.subf %290, %299 : vector<16x32xf32>
    %301 = arith.mulf %300, %300 : vector<16x32xf32>
    %cst_147 = arith.constant dense<0.000000e+00> : vector<16xf32>
    %302 = vector.multi_reduction <add>, %301, %cst_147 [1] : vector<16x32xf32> to vector<16xf32>
    %303 = vector.shape_cast %302 : vector<16xf32> to vector<16x1xf32>
    %cst_148 = arith.constant 3.200000e+01 : f32
    %304 = vector.broadcast %cst_148 : f32 to vector<16x1xf32>
    %305 = arith.divf %303, %304 : vector<16x1xf32>
    %306 = vector.broadcast %298 : vector<16x1xf32> to vector<16x32xf32>
    %307 = arith.subf %290, %306 : vector<16x32xf32>
    %cst_149 = arith.constant 9.99999974E-6 : f32
    %308 = vector.broadcast %cst_149 : f32 to vector<16x1xf32>
    %309 = arith.addf %305, %308 : vector<16x1xf32>
    %310 = math.rsqrt %309 : vector<16x1xf32>
    %311 = vector.broadcast %310 : vector<16x1xf32> to vector<16x32xf32>
    %312 = arith.mulf %307, %311 : vector<16x32xf32>
    %313 = vector.broadcast %292 : vector<1x32xf32> to vector<16x32xf32>
    %314 = arith.mulf %312, %313 : vector<16x32xf32>
    %315 = vector.broadcast %294 : vector<1x32xf32> to vector<16x32xf32>
    %316 = arith.addf %314, %315 : vector<16x32xf32>
    %317 = arith.truncf %316 : vector<16x32xf32> to vector<16x32xbf16>
    %cst_150 = arith.constant 0.000000e+00 : f32
    %318 = vector.broadcast %cst_150 : f32 to vector<16x32xf32>
    %c1_151 = arith.constant 1 : index
    %c0_152 = arith.constant 0 : index
    %c0_153 = arith.constant 0 : index
    %319 = vector.load %arg10[%c1_151, %c0_152, %c0_153] : memref<2x32x2048xbf16, #tpu.memory_space<vmem>>, vector<1x32x512xbf16>
    %320 = vector.shape_cast %319 : vector<1x32x512xbf16> to vector<32x512xbf16>
    %cst_154 = arith.constant dense<0.000000e+00> : vector<16x512xf32>
    %321 = tpu.matmul %317, %320, %cst_154 {dimension_numbers = #tpu.dot_dimension_numbers<[1], [0], [0], [1], [0, 0, 1, 1], [], []>} : vector<16x32xbf16>, vector<32x512xbf16>, vector<16x512xf32> -> vector<16x512xf32>
    %c1_155 = arith.constant 1 : index
    %c0_156 = arith.constant 0 : index
    %c0_157 = arith.constant 0 : index
    %322 = vector.load %arg11[%c1_155, %c0_156, %c0_157] : memref<2x1x2048xf32, #tpu.memory_space<vmem>>, vector<1x1x512xf32>
    %323 = vector.shape_cast %322 : vector<1x1x512xf32> to vector<1x512xf32>
    %324 = vector.broadcast %323 : vector<1x512xf32> to vector<16x512xf32>
    %325 = arith.addf %321, %324 : vector<16x512xf32>
    %cst_158 = arith.constant 0.000000e+00 : f32
    %326 = vector.broadcast %cst_158 : f32 to vector<16x512xf32>
    %327 = arith.maximumf %325, %326 : vector<16x512xf32>
    %328 = arith.truncf %327 : vector<16x512xf32> to vector<16x512xbf16>
    %c1_159 = arith.constant 1 : index
    %c0_160 = arith.constant 0 : index
    %c0_161 = arith.constant 0 : index
    %329 = vector.load %arg12[%c1_159, %c0_160, %c0_161] : memref<2x2048x32xbf16, #tpu.memory_space<vmem>>, vector<1x512x32xbf16>
    %330 = vector.shape_cast %329 : vector<1x512x32xbf16> to vector<512x32xbf16>
    %cst_162 = arith.constant dense<0.000000e+00> : vector<16x32xf32>
    %331 = tpu.matmul %328, %330, %cst_162 {dimension_numbers = #tpu.dot_dimension_numbers<[1], [0], [0], [1], [0, 0, 1, 1], [], []>} : vector<16x512xbf16>, vector<512x32xbf16>, vector<16x32xf32> -> vector<16x32xf32>
    %332 = arith.addf %318, %331 : vector<16x32xf32>
    %c1_163 = arith.constant 1 : index
    %c0_164 = arith.constant 0 : index
    %c512_165 = arith.constant 512 : index
    %333 = vector.load %arg10[%c1_163, %c0_164, %c512_165] : memref<2x32x2048xbf16, #tpu.memory_space<vmem>>, vector<1x32x512xbf16>
    %334 = vector.shape_cast %333 : vector<1x32x512xbf16> to vector<32x512xbf16>
    %cst_166 = arith.constant dense<0.000000e+00> : vector<16x512xf32>
    %335 = tpu.matmul %317, %334, %cst_166 {dimension_numbers = #tpu.dot_dimension_numbers<[1], [0], [0], [1], [0, 0, 1, 1], [], []>} : vector<16x32xbf16>, vector<32x512xbf16>, vector<16x512xf32> -> vector<16x512xf32>
    %c1_167 = arith.constant 1 : index
    %c0_168 = arith.constant 0 : index
    %c512_169 = arith.constant 512 : index
    %336 = vector.load %arg11[%c1_167, %c0_168, %c512_169] : memref<2x1x2048xf32, #tpu.memory_space<vmem>>, vector<1x1x512xf32>
    %337 = vector.shape_cast %336 : vector<1x1x512xf32> to vector<1x512xf32>
    %338 = vector.broadcast %337 : vector<1x512xf32> to vector<16x512xf32>
    %339 = arith.addf %335, %338 : vector<16x512xf32>
    %cst_170 = arith.constant 0.000000e+00 : f32
    %340 = vector.broadcast %cst_170 : f32 to vector<16x512xf32>
    %341 = arith.maximumf %339, %340 : vector<16x512xf32>
    %342 = arith.truncf %341 : vector<16x512xf32> to vector<16x512xbf16>
    %c1_171 = arith.constant 1 : index
    %c512_172 = arith.constant 512 : index
    %c0_173 = arith.constant 0 : index
    %343 = vector.load %arg12[%c1_171, %c512_172, %c0_173] : memref<2x2048x32xbf16, #tpu.memory_space<vmem>>, vector<1x512x32xbf16>
    %344 = vector.shape_cast %343 : vector<1x512x32xbf16> to vector<512x32xbf16>
    %cst_174 = arith.constant dense<0.000000e+00> : vector<16x32xf32>
    %345 = tpu.matmul %342, %344, %cst_174 {dimension_numbers = #tpu.dot_dimension_numbers<[1], [0], [0], [1], [0, 0, 1, 1], [], []>} : vector<16x512xbf16>, vector<512x32xbf16>, vector<16x32xf32> -> vector<16x32xf32>
    %346 = arith.addf %332, %345 : vector<16x32xf32>
    %c1_175 = arith.constant 1 : index
    %c0_176 = arith.constant 0 : index
    %c1024_177 = arith.constant 1024 : index
    %347 = vector.load %arg10[%c1_175, %c0_176, %c1024_177] : memref<2x32x2048xbf16, #tpu.memory_space<vmem>>, vector<1x32x512xbf16>
    %348 = vector.shape_cast %347 : vector<1x32x512xbf16> to vector<32x512xbf16>
    %cst_178 = arith.constant dense<0.000000e+00> : vector<16x512xf32>
    %349 = tpu.matmul %317, %348, %cst_178 {dimension_numbers = #tpu.dot_dimension_numbers<[1], [0], [0], [1], [0, 0, 1, 1], [], []>} : vector<16x32xbf16>, vector<32x512xbf16>, vector<16x512xf32> -> vector<16x512xf32>
    %c1_179 = arith.constant 1 : index
    %c0_180 = arith.constant 0 : index
    %c1024_181 = arith.constant 1024 : index
    %350 = vector.load %arg11[%c1_179, %c0_180, %c1024_181] : memref<2x1x2048xf32, #tpu.memory_space<vmem>>, vector<1x1x512xf32>
    %351 = vector.shape_cast %350 : vector<1x1x512xf32> to vector<1x512xf32>
    %352 = vector.broadcast %351 : vector<1x512xf32> to vector<16x512xf32>
    %353 = arith.addf %349, %352 : vector<16x512xf32>
    %cst_182 = arith.constant 0.000000e+00 : f32
    %354 = vector.broadcast %cst_182 : f32 to vector<16x512xf32>
    %355 = arith.maximumf %353, %354 : vector<16x512xf32>
    %356 = arith.truncf %355 : vector<16x512xf32> to vector<16x512xbf16>
    %c1_183 = arith.constant 1 : index
    %c1024_184 = arith.constant 1024 : index
    %c0_185 = arith.constant 0 : index
    %357 = vector.load %arg12[%c1_183, %c1024_184, %c0_185] : memref<2x2048x32xbf16, #tpu.memory_space<vmem>>, vector<1x512x32xbf16>
    %358 = vector.shape_cast %357 : vector<1x512x32xbf16> to vector<512x32xbf16>
    %cst_186 = arith.constant dense<0.000000e+00> : vector<16x32xf32>
    %359 = tpu.matmul %356, %358, %cst_186 {dimension_numbers = #tpu.dot_dimension_numbers<[1], [0], [0], [1], [0, 0, 1, 1], [], []>} : vector<16x512xbf16>, vector<512x32xbf16>, vector<16x32xf32> -> vector<16x32xf32>
    %360 = arith.addf %346, %359 : vector<16x32xf32>
    %c1_187 = arith.constant 1 : index
    %c0_188 = arith.constant 0 : index
    %c1536_189 = arith.constant 1536 : index
    %361 = vector.load %arg10[%c1_187, %c0_188, %c1536_189] : memref<2x32x2048xbf16, #tpu.memory_space<vmem>>, vector<1x32x512xbf16>
    %362 = vector.shape_cast %361 : vector<1x32x512xbf16> to vector<32x512xbf16>
    %cst_190 = arith.constant dense<0.000000e+00> : vector<16x512xf32>
    %363 = tpu.matmul %317, %362, %cst_190 {dimension_numbers = #tpu.dot_dimension_numbers<[1], [0], [0], [1], [0, 0, 1, 1], [], []>} : vector<16x32xbf16>, vector<32x512xbf16>, vector<16x512xf32> -> vector<16x512xf32>
    %c1_191 = arith.constant 1 : index
    %c0_192 = arith.constant 0 : index
    %c1536_193 = arith.constant 1536 : index
    %364 = vector.load %arg11[%c1_191, %c0_192, %c1536_193] : memref<2x1x2048xf32, #tpu.memory_space<vmem>>, vector<1x1x512xf32>
    %365 = vector.shape_cast %364 : vector<1x1x512xf32> to vector<1x512xf32>
    %366 = vector.broadcast %365 : vector<1x512xf32> to vector<16x512xf32>
    %367 = arith.addf %363, %366 : vector<16x512xf32>
    %cst_194 = arith.constant 0.000000e+00 : f32
    %368 = vector.broadcast %cst_194 : f32 to vector<16x512xf32>
    %369 = arith.maximumf %367, %368 : vector<16x512xf32>
    %370 = arith.truncf %369 : vector<16x512xf32> to vector<16x512xbf16>
    %c1_195 = arith.constant 1 : index
    %c1536_196 = arith.constant 1536 : index
    %c0_197 = arith.constant 0 : index
    %371 = vector.load %arg12[%c1_195, %c1536_196, %c0_197] : memref<2x2048x32xbf16, #tpu.memory_space<vmem>>, vector<1x512x32xbf16>
    %372 = vector.shape_cast %371 : vector<1x512x32xbf16> to vector<512x32xbf16>
    %cst_198 = arith.constant dense<0.000000e+00> : vector<16x32xf32>
    %373 = tpu.matmul %370, %372, %cst_198 {dimension_numbers = #tpu.dot_dimension_numbers<[1], [0], [0], [1], [0, 0, 1, 1], [], []>} : vector<16x512xbf16>, vector<512x32xbf16>, vector<16x32xf32> -> vector<16x32xf32>
    %374 = arith.addf %360, %373 : vector<16x32xf32>
    %c1_199 = arith.constant 1 : index
    %c0_200 = arith.constant 0 : index
    %c0_201 = arith.constant 0 : index
    %375 = vector.load %arg13[%c1_199, %c0_200, %c0_201] : memref<2x1x32xf32, #tpu.memory_space<vmem>>, vector<1x1x32xf32>
    %376 = vector.shape_cast %375 : vector<1x1x32xf32> to vector<1x32xf32>
    %377 = vector.broadcast %376 : vector<1x32xf32> to vector<16x32xf32>
    %378 = arith.addf %374, %377 : vector<16x32xf32>
    %379 = arith.addf %316, %378 : vector<16x32xf32>
    %c1_202 = arith.constant 1 : index
    %c0_203 = arith.constant 0 : index
    %c0_204 = arith.constant 0 : index
    %380 = vector.load %arg14[%c1_202, %c0_203, %c0_204] : memref<2x1x32xf32, #tpu.memory_space<vmem>>, vector<1x1x32xf32>
    %381 = vector.shape_cast %380 : vector<1x1x32xf32> to vector<1x32xf32>
    %c1_205 = arith.constant 1 : index
    %c0_206 = arith.constant 0 : index
    %c0_207 = arith.constant 0 : index
    %382 = vector.load %arg15[%c1_205, %c0_206, %c0_207] : memref<2x1x32xf32, #tpu.memory_space<vmem>>, vector<1x1x32xf32>
    %383 = vector.shape_cast %382 : vector<1x1x32xf32> to vector<1x32xf32>
    %cst_208 = arith.constant dense<0.000000e+00> : vector<16xf32>
    %384 = vector.multi_reduction <add>, %379, %cst_208 [1] : vector<16x32xf32> to vector<16xf32>
    %385 = vector.shape_cast %384 : vector<16xf32> to vector<16x1xf32>
    %cst_209 = arith.constant 3.200000e+01 : f32
    %386 = vector.broadcast %cst_209 : f32 to vector<16x1xf32>
    %387 = arith.divf %385, %386 : vector<16x1xf32>
    %388 = vector.broadcast %387 : vector<16x1xf32> to vector<16x32xf32>
    %389 = arith.subf %379, %388 : vector<16x32xf32>
    %390 = arith.mulf %389, %389 : vector<16x32xf32>
    %cst_210 = arith.constant dense<0.000000e+00> : vector<16xf32>
    %391 = vector.multi_reduction <add>, %390, %cst_210 [1] : vector<16x32xf32> to vector<16xf32>
    %392 = vector.shape_cast %391 : vector<16xf32> to vector<16x1xf32>
    %cst_211 = arith.constant 3.200000e+01 : f32
    %393 = vector.broadcast %cst_211 : f32 to vector<16x1xf32>
    %394 = arith.divf %392, %393 : vector<16x1xf32>
    %395 = vector.broadcast %387 : vector<16x1xf32> to vector<16x32xf32>
    %396 = arith.subf %379, %395 : vector<16x32xf32>
    %cst_212 = arith.constant 9.99999974E-6 : f32
    %397 = vector.broadcast %cst_212 : f32 to vector<16x1xf32>
    %398 = arith.addf %394, %397 : vector<16x1xf32>
    %399 = math.rsqrt %398 : vector<16x1xf32>
    %400 = vector.broadcast %399 : vector<16x1xf32> to vector<16x32xf32>
    %401 = arith.mulf %396, %400 : vector<16x32xf32>
    %402 = vector.broadcast %381 : vector<1x32xf32> to vector<16x32xf32>
    %403 = arith.mulf %401, %402 : vector<16x32xf32>
    %404 = vector.broadcast %383 : vector<1x32xf32> to vector<16x32xf32>
    %405 = arith.addf %403, %404 : vector<16x32xf32>
    %406 = vector.shape_cast %405 : vector<16x32xf32> to vector<2x8x32xf32>
    %407 = vector.extract_strided_slice %406 {offsets = [0, 7, 0], sizes = [2, 1, 32], strides = [1, 1, 1]} : vector<2x8x32xf32> to vector<2x1x32xf32>
    %408 = vector.shape_cast %407 : vector<2x1x32xf32> to vector<2x32xf32>
    %c0_213 = arith.constant 0 : index
    %c0_214 = arith.constant 0 : index
    %409 = vector.load %arg16[%c0_213, %c0_214] : memref<32x1xf32, #tpu.memory_space<vmem>>, vector<32x1xf32>
    %cst_215 = arith.constant dense<0.000000e+00> : vector<2x1xf32>
    %410 = tpu.matmul %408, %409, %cst_215 {dimension_numbers = #tpu.dot_dimension_numbers<[1], [0], [0], [1], [0, 0, 1, 1], [], []>} : vector<2x32xf32>, vector<32x1xf32>, vector<2x1xf32> -> vector<2x1xf32>
    %c0_216 = arith.constant 0 : index
    %c0_217 = arith.constant 0 : index
    %411 = vector.load %arg17[%c0_216, %c0_217] : memref<1x1xf32, #tpu.memory_space<vmem>>, vector<1x1xf32>
    %412 = vector.broadcast %411 : vector<1x1xf32> to vector<2x1xf32>
    %413 = arith.addf %410, %412 : vector<2x1xf32>
    %c0_218 = arith.constant 0 : index
    %c0_219 = arith.constant 0 : index
    %414 = vector.load %arg18[%c0_218, %c0_219] : memref<2x1xf32, #tpu.memory_space<vmem>>, vector<2x1xf32>
    tpu.vector_store %arg18[%c0_218, %c0_219], %413 {strides = array<i32>} : memref<2x1xf32, #tpu.memory_space<vmem>>, vector<2x1xf32>,
    return
  }
}

</mosaic_0001>

<llo_original>
// kernel: tpu_custom_call.1
$region0: #{tpu_custom_call.1}
  #allocation0 [shape = 'u32[]', space=smem, size = 0x4, offset = 0x4, fixed_abs, tag = 'smem constant byte address 0x4 - core index']
  #allocation1 [shape = 'u32[144,128]{1,0:T(1,128)}', space=vmem, size = 0x12000, scoped, tag = 'internal scratch']
  #allocation2 [shape = 'f32[1,1]{1,0:T(1,128)S(1)}', space=vmem, size = 0x200, scoped, tag = 'scoped memory for tpu_custom_call.1']
  %s0 = inlined_call_operand.vmem [shape: s32[16,1], index: 0, kind: input, shape index: {}]
  %s1 = inlined_call_operand.vmem [shape: s32[16,1], index: 1, kind: input, shape index: {}]
  %s2 = inlined_call_operand.vmem [shape: s32[1,16], index: 2, kind: input, shape index: {}]
  %s3 = inlined_call_operand.vmem [shape: f32[32,32], index: 3, kind: input, shape index: {}]
  %s4 = inlined_call_operand.vmem [shape: f32[2,32,96], index: 4, kind: input, shape index: {}]
  %s5 = inlined_call_operand.vmem [shape: f32[2,1,96], index: 5, kind: input, shape index: {}]
  %s6 = inlined_call_operand.vmem [shape: f32[2,32,32], index: 6, kind: input, shape index: {}]
  %s7 = inlined_call_operand.vmem [shape: f32[2,1,32], index: 7, kind: input, shape index: {}]
  %s8 = inlined_call_operand.vmem [shape: f32[2,1,32], index: 8, kind: input, shape index: {}]
  %s9 = inlined_call_operand.vmem [shape: f32[2,1,32], index: 9, kind: input, shape index: {}]
  %s10 = inlined_call_operand.vmem [shape: bf16[2,32,2048], index: 10, kind: input, shape index: {}]
  %s11 = inlined_call_operand.vmem [shape: f32[2,1,2048], index: 11, kind: input, shape index: {}]
  %s12 = inlined_call_operand.vmem [shape: bf16[2,2048,32], index: 12, kind: input, shape index: {}]
  %s13 = inlined_call_operand.vmem [shape: f32[2,1,32], index: 13, kind: input, shape index: {}]
  %s14 = inlined_call_operand.vmem [shape: f32[2,1,32], index: 14, kind: input, shape index: {}]
  %s15 = inlined_call_operand.vmem [shape: f32[2,1,32], index: 15, kind: input, shape index: {}]
  %s16 = inlined_call_operand.vmem [shape: f32[32,1], index: 16, kind: input, shape index: {}]
  %s17 = inlined_call_operand.<no memory space> [shape: f32[1,1], index: 17, kind: input, shape index: {}]
  %s18 = inlined_call_operand.vmem [shape: f32[2,1], index: 18, kind: output, shape index: {}]
  %s19 = sld [smem:[#allocation0]]
  $region82: #{tpu_custom_call.1} parent=0
    _
  %s21 = ssub.s32 1, %s19
  %s22 = scalar_select 0, %s21, %s19
  %v23 = vstv %s17
  %24 = vst [vmem:[#allocation2] sm:$0x1] %v23
  // Predicated region
  $region2: #{tpu_custom_call.1} parent=0 // pred_check
    _
  $region3: #{tpu_custom_call.1} parent=0 // pred_check_branch
    %26 = sbr.rel (0) target = $region5
  $region4: #{tpu_custom_call.1} parent=0 // pred_region
    _
  $region5: #{tpu_custom_call.1} parent=0 // pred_fallthru
    _
  // Predicated region
  $region6: #{tpu_custom_call.1} parent=0 // pred_check
    _
  $region7: #{tpu_custom_call.1} parent=0 // pred_check_branch
    %28 = sbr.rel (0) target = $region9
  $region8: #{tpu_custom_call.1} parent=0 // pred_region
    _
  $region9: #{tpu_custom_call.1} parent=0 // pred_fallthru
    _
  // Predicated region
  $region10: #{tpu_custom_call.1} parent=0 // pred_check
    _
  $region11: #{tpu_custom_call.1} parent=0 // pred_check_branch
    %30 = sbr.rel (0) target = $region13
  $region12: #{tpu_custom_call.1} parent=0 // pred_region
    _
  $region13: #{tpu_custom_call.1} parent=0 // pred_fallthru
    _
  // Predicated region
  $region14: #{tpu_custom_call.1} parent=0 // pred_check
    _
  $region15: #{tpu_custom_call.1} parent=0 // pred_check_branch
    %32 = sbr.rel (0) target = $region17
  $region16: #{tpu_custom_call.1} parent=0 // pred_region
    _
  $region17: #{tpu_custom_call.1} parent=0 // pred_fallthru
    _
  // Predicated region
  $region18: #{tpu_custom_call.1} parent=0 // pred_check
    _
  $region19: #{tpu_custom_call.1} parent=0 // pred_check_branch
    %34 = sbr.rel (0) target = $region21
  $region20: #{tpu_custom_call.1} parent=0 // pred_region
    _
  $region21: #{tpu_custom_call.1} parent=0 // pred_fallthru
    _
  // Predicated region
  $region22: #{tpu_custom_call.1} parent=0 // pred_check
    _
  $region23: #{tpu_custom_call.1} parent=0 // pred_check_branch
    %36 = sbr.rel (0) target = $region25
  $region24: #{tpu_custom_call.1} parent=0 // pred_region
    _
  $region25: #{tpu_custom_call.1} parent=0 // pred_fallthru
    _
  // Predicated region
  $region26: #{tpu_custom_call.1} parent=0 // pred_check
    _
  $region27: #{tpu_custom_call.1} parent=0 // pred_check_branch
    %38 = sbr.rel (0) target = $region29
  $region28: #{tpu_custom_call.1} parent=0 // pred_region
    _
  $region29: #{tpu_custom_call.1} parent=0 // pred_fallthru
    _
  // Predicated region
  $region30: #{tpu_custom_call.1} parent=0 // pred_check
    _
  $region31: #{tpu_custom_call.1} parent=0 // pred_check_branch
    %40 = sbr.rel (0) target = $region33
  $region32: #{tpu_custom_call.1} parent=0 // pred_region
    _
  $region33: #{tpu_custom_call.1} parent=0 // pred_fallthru
    _
  // Predicated region
  $region34: #{tpu_custom_call.1} parent=0 // pred_check
    _
  $region35: #{tpu_custom_call.1} parent=0 // pred_check_branch
    %42 = sbr.rel (0) target = $region37
  $region36: #{tpu_custom_call.1} parent=0 // pred_region
    _
  $region37: #{tpu_custom_call.1} parent=0 // pred_fallthru
    _
  // Predicated region
  $region38: #{tpu_custom_call.1} parent=0 // pred_check
    _
  $region39: #{tpu_custom_call.1} parent=0 // pred_check_branch
    %44 = sbr.rel (0) target = $region41
  $region40: #{tpu_custom_call.1} parent=0 // pred_region
    _
  $region41: #{tpu_custom_call.1} parent=0 // pred_fallthru
    _
  // Predicated region
  $region42: #{tpu_custom_call.1} parent=0 // pred_check
    _
  $region43: #{tpu_custom_call.1} parent=0 // pred_check_branch
    %46 = sbr.rel (0) target = $region45
  $region44: #{tpu_custom_call.1} parent=0 // pred_region
    _
  $region45: #{tpu_custom_call.1} parent=0 // pred_fallthru
    _
  // Predicated region
  $region46: #{tpu_custom_call.1} parent=0 // pred_check
    _
  $region47: #{tpu_custom_call.1} parent=0 // pred_check_branch
    %48 = sbr.rel (0) target = $region49
  $region48: #{tpu_custom_call.1} parent=0 // pred_region
    _
  $region49: #{tpu_custom_call.1} parent=0 // pred_fallthru
    _
  // Predicated region
  $region50: #{tpu_custom_call.1} parent=0 // pred_check
    _
  $region51: #{tpu_custom_call.1} parent=0 // pred_check_branch
    %50 = sbr.rel (0) target = $region53
  $region52: #{tpu_custom_call.1} parent=0 // pred_region
    _
  $region53: #{tpu_custom_call.1} parent=0 // pred_fallthru
    _
  // Predicated region
  $region54: #{tpu_custom_call.1} parent=0 // pred_check
    _
  $region55: #{tpu_custom_call.1} parent=0 // pred_check_branch
    %52 = sbr.rel (0) target = $region57
  $region56: #{tpu_custom_call.1} parent=0 // pred_region
    _
  $region57: #{tpu_custom_call.1} parent=0 // pred_fallthru
    _
  // Predicated region
  $region58: #{tpu_custom_call.1} parent=0 // pred_check
    _
  $region59: #{tpu_custom_call.1} parent=0 // pred_check_branch
    %54 = sbr.rel (0) target = $region61
  $region60: #{tpu_custom_call.1} parent=0 // pred_region
    _
  $region61: #{tpu_custom_call.1} parent=0 // pred_fallthru
    _
  // Predicated region
  $region62: #{tpu_custom_call.1} parent=0 // pred_check
    _
  $region63: #{tpu_custom_call.1} parent=0 // pred_check_branch
    %56 = sbr.rel (0) target = $region65
  $region64: #{tpu_custom_call.1} parent=0 // pred_region
    _
  $region65: #{tpu_custom_call.1} parent=0 // pred_fallthru
    _
  // Predicated region
  $region66: #{tpu_custom_call.1} parent=0 // pred_check
    _
  $region67: #{tpu_custom_call.1} parent=0 // pred_check_branch
    %58 = sbr.rel (0) target = $region69
  $region68: #{tpu_custom_call.1} parent=0 // pred_region
    _
  $region69: #{tpu_custom_call.1} parent=0 // pred_fallthru
    _
  // Predicated region
  $region70: #{tpu_custom_call.1} parent=0 // pred_check
    _
  $region71: #{tpu_custom_call.1} parent=0 // pred_check_branch
    %60 = sbr.rel (0) target = $region73
  $region72: #{tpu_custom_call.1} parent=0 // pred_region
    _
  $region73: #{tpu_custom_call.1} parent=0 // pred_fallthru
    _
  %v62 = vld [vmem:[%s0] sm:$0xff]
  %v63 = vld [vmem:[%s0 + $0x8] sm:$0xff]
  %v64 = vlaneseq
  %v65 = vand.u32 %v64, 127
  %66 = vset.pattern.permute.xlu0 0
  %67 = vperm.xlu0 %66, %v62
  %v68 = vpop.permute.xlu0 %67
  %69 = vset.pattern.permute.xlu0 0
  %70 = vperm.xlu0 %69, %v63
  %v71 = vpop.permute.xlu0 %70
  %vm72 = vcmp.eq.s32.totalorder %v68, %v65
  %vm73 = vcmp.eq.s32.totalorder %v71, %v65
  %v74 = vsel %vm72, 1, 0
  %v75 = vsel %vm73, 1, 0
  %v76 = vcvt.s32.f32 %v74
  %v77 = vcvt.s32.f32 %v75
  %v78 = vld [vmem:[%s3] sm:$0xff]
  %v79 = vld [vmem:[%s3 + $0x8] sm:$0xff]
  %v80 = vld [vmem:[%s3 + $0x10] sm:$0xff]
  %v81 = vld [vmem:[%s3 + $0x18] sm:$0xff]
  %vm82 = vcmask 261120
  %v84 = vsel %vm82, %v76, 0
  %v87 = vsel %vm82, %v77, 0
  %89 = vmatprep.subr.mxu0 0.0
  %90 = vmatpush1.msra.mxu0 %v78
  %91 = vmatprep.subr.mxu0 0.0
  %92 = vmatpush1.msra.mxu0 %v79
  %93 = vmatprep.subr.mxu0 0.0
  %94 = vmatpush1.msra.mxu0 %v80
  %95 = vmatprep.subr.mxu0 0.0
  %96 = vmatpush1.msra.mxu0 %v81
  %97 = vmatprep.subr.mxu0 0.0
  %98 = vmatpush1.msra.mxu0 0.0
  %99 = vmatprep.subr.mxu0 0.0
  %100 = vmatpush1.msra.mxu0 0.0
  %101 = vmatprep.subr.mxu0 0.0
  %102 = vmatpush1.msra.mxu0 0.0
  %103 = vmatprep.subr.mxu0 0.0
  %104 = vmatpush1.msra.mxu0 0.0
  %105 = vmatprep.subr.mxu0 0.0
  %106 = vmatpush1.msra.mxu0 0.0
  %107 = vmatprep.subr.mxu0 0.0
  %108 = vmatpush1.msra.mxu0 0.0
  %109 = vmatprep.subr.mxu0 0.0
  %110 = vmatpush1.msra.mxu0 0.0
  %111 = vmatprep.subr.mxu0 0.0
  %112 = vmatpush1.msra.mxu0 0.0
  %113 = vmatprep.subr.mxu0 0.0
  %114 = vmatpush1.msra.mxu0 0.0
  %115 = vmatprep.subr.mxu0 0.0
  %116 = vmatpush1.msra.mxu0 0.0
  %117 = vmatprep.subr.mxu0 0.0
  %118 = vmatpush1.msra.mxu0 0.0
  %119 = vmatprep.subr.mxu0 0.0
  %120 = vmatpush1.msra.mxu0 0.0
  %121 = vmatprep.subr.mxu0 0.0
  %122 = vmatpush1.msra.mxu0 0.0
  %123 = vmatprep.subr.mxu0 0.0
  %124 = vmatpush1.msra.mxu0 0.0
  %125 = vmatprep.subr.mxu0 0.0
  %126 = vmatpush1.msra.mxu0 0.0
  %127 = vmatprep.subr.mxu0 0.0
  %128 = vmatpush1.msra.mxu0 0.0
  %129 = vmatprep.subr.mxu0 0.0
  %130 = vmatpush1.msra.mxu0 0.0
  %131 = vmatprep.subr.mxu0 0.0
  %132 = vmatpush1.msra.mxu0 0.0
  %133 = vmatprep.subr.mxu0 0.0
  %134 = vmatpush1.msra.mxu0 0.0
  %135 = vmatprep.subr.mxu0 0.0
  %136 = vmatpush1.msra.mxu0 0.0
  %137 = vmatprep.subr.mxu0 0.0
  %138 = vmatpush1.msra.mxu0 0.0
  %139 = vmatprep.subr.mxu0 0.0
  %140 = vmatpush1.msra.mxu0 0.0
  %141 = vmatprep.subr.mxu0 0.0
  %142 = vmatpush1.msra.mxu0 0.0
  %143 = vmatprep.subr.mxu0 0.0
  %144 = vmatpush1.msra.mxu0 0.0
  %145 = vmatprep.subr.mxu0 0.0
  %146 = vmatpush1.msra.mxu0 0.0
  %147 = vmatprep.subr.mxu0 0.0
  %148 = vmatpush1.msra.mxu0 0.0
  %149 = vmatprep.subr.mxu0 0.0
  %150 = vmatpush1.msra.mxu0 0.0
  %151 = vmatprep.subr.mxu0 0.0
  %152 = vmatpush1.msra.mxu0 0.0
  %153 = vmatprep.mubr.f32.mxu0 0.0
  %154 = vmatmul.mubr.f32.gmra.mrb[0].mxu0 %v84
  %v155 = vpop.f32.mrb[0].mxu0
  %v156 = vadd.f32 0.0, %v155
  %v157 = vpop.f32.mrb[0].mxu0
  %158 = vmatprep.mubr.f32.mxu0 0.0
  %159 = vmatmul.mubr.f32.gmra.mrb[0].mxu0 %v87
  %v160 = vpop.f32.mrb[0].mxu0
  %v161 = vadd.f32 0.0, %v160
  %v162 = vpop.f32.mrb[0].mxu0
  %163 = vdwg.mxu0
  %v164 = vld [vmem:[%s1] sm:$0xff]
  %v165 = vld [vmem:[%s1 + $0x8] sm:$0xff]
  %v166 = vld [vmem:[%s2] sm:$0x1]
  %167 = vset.pattern.permute.xlu0 0
  %168 = vperm.xlu0 %167, %v164
  %v169 = vpop.permute.xlu0 %168
  %170 = vset.pattern.permute.xlu0 0
  %171 = vperm.xlu0 %170, %v165
  %v172 = vpop.permute.xlu0 %171
  %v173 = vlaneseq
  %v174 = vshrl.u32 %v173, 7
  %v175 = vsub.s32 0, %v174
  %v176 = vrot.slane %v166, %v175
  %vm177 = vcmp.eq.s32.totalorder %v169, %v176
  %vm178 = vcmp.eq.s32.totalorder %v172, %v176
  %v179 = vsel %vm177, 0.0, -1e+30
  %v180 = vsel %vm178, 0.0, -1e+30
  %v181 = vld [vmem:[%s4] sm:$0xff]
  %v182 = vld [vmem:[%s4 + $0x8] sm:$0xff]
  %v183 = vld [vmem:[%s4 + $0x10] sm:$0xff]
  %v184 = vld [vmem:[%s4 + $0x18] sm:$0xff]
  %v185 = vld [vmem:[%s5] sm:$0x1]
  %v187 = vlaneseq
  %v188 = vshrl.u32 %v187, 7
  %v189 = vsub.s32 0, %v188
  %v190 = vrot.slane %v185, %v189
  %v193 = vsel %vm82, %v156, 0
  %v196 = vsel %vm82, %v161, 0
  %198 = vmatprep.subr.mxu0 0.0
  %199 = vmatpush1.msra.mxu0 %v181
  %200 = vmatprep.subr.mxu0 0.0
  %201 = vmatpush1.msra.mxu0 %v182
  %202 = vmatprep.subr.mxu0 0.0
  %203 = vmatpush1.msra.mxu0 %v183
  %204 = vmatprep.subr.mxu0 0.0
  %205 = vmatpush1.msra.mxu0 %v184
  %206 = vmatprep.subr.mxu0 0.0
  %207 = vmatpush1.msra.mxu0 0.0
  %208 = vmatprep.subr.mxu0 0.0
  %209 = vmatpush1.msra.mxu0 0.0
  %210 = vmatprep.subr.mxu0 0.0
  %211 = vmatpush1.msra.mxu0 0.0
  %212 = vmatprep.subr.mxu0 0.0
  %213 = vmatpush1.msra.mxu0 0.0
  %214 = vmatprep.subr.mxu0 0.0
  %215 = vmatpush1.msra.mxu0 0.0
  %216 = vmatprep.subr.mxu0 0.0
  %217 = vmatpush1.msra.mxu0 0.0
  %218 = vmatprep.subr.mxu0 0.0
  %219 = vmatpush1.msra.mxu0 0.0
  %220 = vmatprep.subr.mxu0 0.0
  %221 = vmatpush1.msra.mxu0 0.0
  %222 = vmatprep.subr.mxu0 0.0
  %223 = vmatpush1.msra.mxu0 0.0
  %224 = vmatprep.subr.mxu0 0.0
  %225 = vmatpush1.msra.mxu0 0.0
  %226 = vmatprep.subr.mxu0 0.0
  %227 = vmatpush1.msra.mxu0 0.0
  %228 = vmatprep.subr.mxu0 0.0
  %229 = vmatpush1.msra.mxu0 0.0
  %230 = vmatprep.subr.mxu0 0.0
  %231 = vmatpush1.msra.mxu0 0.0
  %232 = vmatprep.subr.mxu0 0.0
  %233 = vmatpush1.msra.mxu0 0.0
  %234 = vmatprep.subr.mxu0 0.0
  %235 = vmatpush1.msra.mxu0 0.0
  %236 = vmatprep.subr.mxu0 0.0
  %237 = vmatpush1.msra.mxu0 0.0
  %238 = vmatprep.subr.mxu0 0.0
  %239 = vmatpush1.msra.mxu0 0.0
  %240 = vmatprep.subr.mxu0 0.0
  %241 = vmatpush1.msra.mxu0 0.0
  %242 = vmatprep.subr.mxu0 0.0
  %243 = vmatpush1.msra.mxu0 0.0
  %244 = vmatprep.subr.mxu0 0.0
  %245 = vmatpush1.msra.mxu0 0.0
  %246 = vmatprep.subr.mxu0 0.0
  %247 = vmatpush1.msra.mxu0 0.0
  %248 = vmatprep.subr.mxu0 0.0
  %249 = vmatpush1.msra.mxu0 0.0
  %250 = vmatprep.subr.mxu0 0.0
  %251 = vmatpush1.msra.mxu0 0.0
  %252 = vmatprep.subr.mxu0 0.0
  %253 = vmatpush1.msra.mxu0 0.0
  %254 = vmatprep.subr.mxu0 0.0
  %255 = vmatpush1.msra.mxu0 0.0
  %256 = vmatprep.subr.mxu0 0.0
  %257 = vmatpush1.msra.mxu0 0.0
  %258 = vmatprep.subr.mxu0 0.0
  %259 = vmatpush1.msra.mxu0 0.0
  %260 = vmatprep.subr.mxu0 0.0
  %261 = vmatpush1.msra.mxu0 0.0
  %262 = vmatprep.mubr.f32.mxu0 0.0
  %263 = vmatmul.mubr.f32.gmra.mrb[0].mxu0 %v193
  %v264 = vpop.f32.mrb[0].mxu0
  %v265 = vadd.f32 %v190, %v264
  %v266 = vpop.f32.mrb[0].mxu0
  %267 = vmatprep.mubr.f32.mxu0 0.0
  %268 = vmatmul.mubr.f32.gmra.mrb[0].mxu0 %v196
  %v269 = vpop.f32.mrb[0].mxu0
  %v270 = vadd.f32 %v190, %v269
  %v271 = vpop.f32.mrb[0].mxu0
  %272 = vdwg.mxu0
  %275 = vrot.lane.b32.xlu0 %v265, 96
  %v276 = vpop.permute.xlu0 %275
  %277 = vrot.lane.b32.xlu0 %v270, 96
  %v278 = vpop.permute.xlu0 %277
  %vm279 = vcmask 64512
  %v280 = vsel %vm279, %v265, 0
  %v282 = vsel %vm279, %v270, 0
  %v284 = vsel %vm279, %v276, 0
  %v286 = vsel %vm279, %v278, 0
  %288 = vmatprep.subr.mxu0 0.0
  %289 = vmatpush1.xpose.msra.mxu0 %v284
  %290 = vmatprep.subr.mxu0 0.0
  %291 = vmatpush1.xpose.msra.mxu0 %v286
  %292 = vmatprep.subr.mxu0 0.0
  %293 = vmatpush1.xpose.msra.mxu0 0.0
  %294 = vmatprep.subr.mxu0 0.0
  %295 = vmatpush1.xpose.msra.mxu0 0.0
  %296 = vmatprep.subr.mxu0 0.0
  %297 = vmatpush1.xpose.msra.mxu0 0.0
  %298 = vmatprep.subr.mxu0 0.0
  %299 = vmatpush1.xpose.msra.mxu0 0.0
  %300 = vmatprep.subr.mxu0 0.0
  %301 = vmatpush1.xpose.msra.mxu0 0.0
  %302 = vmatprep.subr.mxu0 0.0
  %303 = vmatpush1.xpose.msra.mxu0 0.0
  %304 = vmatprep.subr.mxu0 0.0
  %305 = vmatpush1.xpose.msra.mxu0 0.0
  %306 = vmatprep.subr.mxu0 0.0
  %307 = vmatpush1.xpose.msra.mxu0 0.0
  %308 = vmatprep.subr.mxu0 0.0
  %309 = vmatpush1.xpose.msra.mxu0 0.0
  %310 = vmatprep.subr.mxu0 0.0
  %311 = vmatpush1.xpose.msra.mxu0 0.0
  %312 = vmatprep.subr.mxu0 0.0
  %313 = vmatpush1.xpose.msra.mxu0 0.0
  %314 = vmatprep.subr.mxu0 0.0
  %315 = vmatpush1.xpose.msra.mxu0 0.0
  %316 = vmatprep.subr.mxu0 0.0
  %317 = vmatpush1.xpose.msra.mxu0 0.0
  %318 = vmatprep.subr.mxu0 0.0
  %319 = vmatpush1.xpose.msra.mxu0 0.0
  %320 = vmatprep.subr.mxu0 0.0
  %321 = vmatpush1.xpose.msra.mxu0 0.0
  %322 = vmatprep.subr.mxu0 0.0
  %323 = vmatpush1.xpose.msra.mxu0 0.0
  %324 = vmatprep.subr.mxu0 0.0
  %325 = vmatpush1.xpose.msra.mxu0 0.0
  %326 = vmatprep.subr.mxu0 0.0
  %327 = vmatpush1.xpose.msra.mxu0 0.0
  %328 = vmatprep.subr.mxu0 0.0
  %329 = vmatpush1.xpose.msra.mxu0 0.0
  %330 = vmatprep.subr.mxu0 0.0
  %331 = vmatpush1.xpose.msra.mxu0 0.0
  %332 = vmatprep.subr.mxu0 0.0
  %333 = vmatpush1.xpose.msra.mxu0 0.0
  %334 = vmatprep.subr.mxu0 0.0
  %335 = vmatpush1.xpose.msra.mxu0 0.0
  %336 = vmatprep.subr.mxu0 0.0
  %337 = vmatpush1.xpose.msra.mxu0 0.0
  %338 = vmatprep.subr.mxu0 0.0
  %339 = vmatpush1.xpose.msra.mxu0 0.0
  %340 = vmatprep.subr.mxu0 0.0
  %341 = vmatpush1.xpose.msra.mxu0 0.0
  %342 = vmatprep.subr.mxu0 0.0
  %343 = vmatpush1.xpose.msra.mxu0 0.0
  %344 = vmatprep.subr.mxu0 0.0
  %345 = vmatpush1.xpose.msra.mxu0 0.0
  %346 = vmatprep.subr.mxu0 0.0
  %347 = vmatpush1.xpose.msra.mxu0 0.0
  %348 = vmatprep.subr.mxu0 0.0
  %349 = vmatpush1.xpose.msra.mxu0 0.0
  %350 = vmatprep.subr.mxu0 0.0
  %351 = vmatpush1.xpose.msra.mxu0 0.0
  %352 = vmatprep.mubr.f32.mxu0 0.0
  %353 = vmatmul.mubr.f32.gmra.mrb[0].mxu0 %v280
  %v354 = vpop.f32.mrb[0].mxu0
  %v355 = vadd.f32 %v179, %v354
  %v356 = vpop.f32.mrb[0].mxu0
  %357 = vmatprep.mubr.f32.mxu0 0.0
  %358 = vmatmul.mubr.f32.gmra.mrb[0].mxu0 %v282
  %v359 = vpop.f32.mrb[0].mxu0
  %v360 = vadd.f32 %v180, %v359
  %v361 = vpop.f32.mrb[0].mxu0
  %362 = vdwg.mxu0
  %vm363 = vcmask 130048
  %v364 = vsel %vm363, %v355, -inf
  %365 = vmax.xlane.f32.xlu0 %v364
  %v366 = vpop.xlane.xlu0 %365
  %v367 = vsel %vm363, %v360, -inf
  %368 = vmax.xlane.f32.xlu0 %v367
  %v369 = vpop.xlane.xlu0 %368
  %v370 = vsub.f32 %v355, %v366
  %v371 = vsub.f32 %v360, %v369
  %v372 = vmul.f32 %v370, 1.442695
  %v373 = vpow.pop %v372
  %v374 = vmul.f32 %v371, 1.442695
  %v375 = vpow.pop %v374
  %v376 = vsel %vm363, %v373, 0.0
  %377 = vadd.xlane.f32.xlu0 %v376
  %v378 = vpop.xlane.xlu0 %377
  %v379 = vsel %vm363, %v375, 0.0
  %380 = vadd.xlane.f32.xlu0 %v379
  %v381 = vpop.xlane.xlu0 %380
  %382 = vrot.lane.b32.xlu0 %v265, 64
  %v383 = vpop.permute.xlu0 %382
  %384 = vrot.lane.b32.xlu0 %v270, 64
  %v385 = vpop.permute.xlu0 %384
  %v389 = vsel %vm363, %v373, 0
  %v392 = vsel %vm363, %v375, 0
  %394 = vmatprep.subr.mxu0 0.0
  %395 = vmatpush1.msra.mxu0 %v383
  %396 = vmatprep.subr.mxu0 0.0
  %397 = vmatpush1.msra.mxu0 %v385
  %398 = vmatprep.subr.mxu0 0.0
  %399 = vmatpush1.msra.mxu0 0.0
  %400 = vmatprep.subr.mxu0 0.0
  %401 = vmatpush1.msra.mxu0 0.0
  %402 = vmatprep.subr.mxu0 0.0
  %403 = vmatpush1.msra.mxu0 0.0
  %404 = vmatprep.subr.mxu0 0.0
  %405 = vmatpush1.msra.mxu0 0.0
  %406 = vmatprep.subr.mxu0 0.0
  %407 = vmatpush1.msra.mxu0 0.0
  %408 = vmatprep.subr.mxu0 0.0
  %409 = vmatpush1.msra.mxu0 0.0
  %410 = vmatprep.subr.mxu0 0.0
  %411 = vmatpush1.msra.mxu0 0.0
  %412 = vmatprep.subr.mxu0 0.0
  %413 = vmatpush1.msra.mxu0 0.0
  %414 = vmatprep.subr.mxu0 0.0
  %415 = vmatpush1.msra.mxu0 0.0
  %416 = vmatprep.subr.mxu0 0.0
  %417 = vmatpush1.msra.mxu0 0.0
  %418 = vmatprep.subr.mxu0 0.0
  %419 = vmatpush1.msra.mxu0 0.0
  %420 = vmatprep.subr.mxu0 0.0
  %421 = vmatpush1.msra.mxu0 0.0
  %422 = vmatprep.subr.mxu0 0.0
  %423 = vmatpush1.msra.mxu0 0.0
  %424 = vmatprep.subr.mxu0 0.0
  %425 = vmatpush1.msra.mxu0 0.0
  %426 = vmatprep.subr.mxu0 0.0
  %427 = vmatpush1.msra.mxu0 0.0
  %428 = vmatprep.subr.mxu0 0.0
  %429 = vmatpush1.msra.mxu0 0.0
  %430 = vmatprep.subr.mxu0 0.0
  %431 = vmatpush1.msra.mxu0 0.0
  %432 = vmatprep.subr.mxu0 0.0
  %433 = vmatpush1.msra.mxu0 0.0
  %434 = vmatprep.subr.mxu0 0.0
  %435 = vmatpush1.msra.mxu0 0.0
  %436 = vmatprep.subr.mxu0 0.0
  %437 = vmatpush1.msra.mxu0 0.0
  %438 = vmatprep.subr.mxu0 0.0
  %439 = vmatpush1.msra.mxu0 0.0
  %440 = vmatprep.subr.mxu0 0.0
  %441 = vmatpush1.msra.mxu0 0.0
  %442 = vmatprep.subr.mxu0 0.0
  %443 = vmatpush1.msra.mxu0 0.0
  %444 = vmatprep.subr.mxu0 0.0
  %445 = vmatpush1.msra.mxu0 0.0
  %446 = vmatprep.subr.mxu0 0.0
  %447 = vmatpush1.msra.mxu0 0.0
  %448 = vmatprep.subr.mxu0 0.0
  %449 = vmatpush1.msra.mxu0 0.0
  %450 = vmatprep.subr.mxu0 0.0
  %451 = vmatpush1.msra.mxu0 0.0
  %452 = vmatprep.subr.mxu0 0.0
  %453 = vmatpush1.msra.mxu0 0.0
  %454 = vmatprep.subr.mxu0 0.0
  %455 = vmatpush1.msra.mxu0 0.0
  %456 = vmatprep.subr.mxu0 0.0
  %457 = vmatpush1.msra.mxu0 0.0
  %458 = vmatprep.mubr.f32.mxu0 0.0
  %459 = vmatmul.mubr.f32.gmra.mrb[0].mxu0 %v389
  %v460 = vpop.f32.mrb[0].mxu0
  %v461 = vadd.f32 0.0, %v460
  %v462 = vpop.f32.mrb[0].mxu0
  %463 = vmatprep.mubr.f32.mxu0 0.0
  %464 = vmatmul.mubr.f32.gmra.mrb[0].mxu0 %v392
  %v465 = vpop.f32.mrb[0].mxu0
  %v466 = vadd.f32 0.0, %v465
  %v467 = vpop.f32.mrb[0].mxu0
  %468 = vdwg.mxu0
  %v469 = vrcp.pop %v378
  %v470 = vrcp.pop %v381
  %v471 = vmul.f32 %v461, %v469
  %v472 = vmul.f32 %v466, %v470
  %473 = vrot.lane.b32.xlu0 %v265, 120
  %v474 = vpop.permute.xlu0 %473
  %475 = vrot.lane.b32.xlu0 %v270, 120
  %v476 = vpop.permute.xlu0 %475
  %477 = vrot.lane.b32.xlu0 %v265, 88
  %v478 = vpop.permute.xlu0 %477
  %479 = vrot.lane.b32.xlu0 %v270, 88
  %v480 = vpop.permute.xlu0 %479
  %v481 = vsel %vm279, %v474, 0
  %v483 = vsel %vm279, %v476, 0
  %v485 = vsel %vm279, %v478, 0
  %v487 = vsel %vm279, %v480, 0
  %489 = vmatprep.subr.mxu0 0.0
  %490 = vmatpush1.xpose.msra.mxu0 %v485
  %491 = vmatprep.subr.mxu0 0.0
  %492 = vmatpush1.xpose.msra.mxu0 %v487
  %493 = vmatprep.subr.mxu0 0.0
  %494 = vmatpush1.xpose.msra.mxu0 0.0
  %495 = vmatprep.subr.mxu0 0.0
  %496 = vmatpush1.xpose.msra.mxu0 0.0
  %497 = vmatprep.subr.mxu0 0.0
  %498 = vmatpush1.xpose.msra.mxu0 0.0
  %499 = vmatprep.subr.mxu0 0.0
  %500 = vmatpush1.xpose.msra.mxu0 0.0
  %501 = vmatprep.subr.mxu0 0.0
  %502 = vmatpush1.xpose.msra.mxu0 0.0
  %503 = vmatprep.subr.mxu0 0.0
  %504 = vmatpush1.xpose.msra.mxu0 0.0
  %505 = vmatprep.subr.mxu0 0.0
  %506 = vmatpush1.xpose.msra.mxu0 0.0
  %507 = vmatprep.subr.mxu0 0.0
  %508 = vmatpush1.xpose.msra.mxu0 0.0
  %509 = vmatprep.subr.mxu0 0.0
  %510 = vmatpush1.xpose.msra.mxu0 0.0
  %511 = vmatprep.subr.mxu0 0.0
  %512 = vmatpush1.xpose.msra.mxu0 0.0
  %513 = vmatprep.subr.mxu0 0.0
  %514 = vmatpush1.xpose.msra.mxu0 0.0
  %515 = vmatprep.subr.mxu0 0.0
  %516 = vmatpush1.xpose.msra.mxu0 0.0
  %517 = vmatprep.subr.mxu0 0.0
  %518 = vmatpush1.xpose.msra.mxu0 0.0
  %519 = vmatprep.subr.mxu0 0.0
  %520 = vmatpush1.xpose.msra.mxu0 0.0
  %521 = vmatprep.subr.mxu0 0.0
  %522 = vmatpush1.xpose.msra.mxu0 0.0
  %523 = vmatprep.subr.mxu0 0.0
  %524 = vmatpush1.xpose.msra.mxu0 0.0
  %525 = vmatprep.subr.mxu0 0.0
  %526 = vmatpush1.xpose.msra.mxu0 0.0
  %527 = vmatprep.subr.mxu0 0.0
  %528 = vmatpush1.xpose.msra.mxu0 0.0
  %529 = vmatprep.subr.mxu0 0.0
  %530 = vmatpush1.xpose.msra.mxu0 0.0
  %531 = vmatprep.subr.mxu0 0.0
  %532 = vmatpush1.xpose.msra.mxu0 0.0
  %533 = vmatprep.subr.mxu0 0.0
  %534 = vmatpush1.xpose.msra.mxu0 0.0
  %535 = vmatprep.subr.mxu0 0.0
  %536 = vmatpush1.xpose.msra.mxu0 0.0
  %537 = vmatprep.subr.mxu0 0.0
  %538 = vmatpush1.xpose.msra.mxu0 0.0
  %539 = vmatprep.subr.mxu0 0.0
  %540 = vmatpush1.xpose.msra.mxu0 0.0
  %541 = vmatprep.subr.mxu0 0.0
  %542 = vmatpush1.xpose.msra.mxu0 0.0
  %543 = vmatprep.subr.mxu0 0.0
  %544 = vmatpush1.xpose.msra.mxu0 0.0
  %545 = vmatprep.subr.mxu0 0.0
  %546 = vmatpush1.xpose.msra.mxu0 0.0
  %547 = vmatprep.subr.mxu0 0.0
  %548 = vmatpush1.xpose.msra.mxu0 0.0
  %549 = vmatprep.subr.mxu0 0.0
  %550 = vmatpush1.xpose.msra.mxu0 0.0
  %551 = vmatprep.subr.mxu0 0.0
  %552 = vmatpush1.xpose.msra.mxu0 0.0
  %553 = vmatprep.mubr.f32.mxu0 0.0
  %554 = vmatmul.mubr.f32.gmra.mrb[0].mxu0 %v481
  %v555 = vpop.f32.mrb[0].mxu0
  %v556 = vadd.f32 %v179, %v555
  %v557 = vpop.f32.mrb[0].mxu0
  %558 = vmatprep.mubr.f32.mxu0 0.0
  %559 = vmatmul.mubr.f32.gmra.mrb[0].mxu0 %v483
  %v560 = vpop.f32.mrb[0].mxu0
  %v561 = vadd.f32 %v180, %v560
  %v562 = vpop.f32.mrb[0].mxu0
  %563 = vdwg.mxu0
  %v564 = vsel %vm363, %v556, -inf
  %565 = vmax.xlane.f32.xlu0 %v564
  %v566 = vpop.xlane.xlu0 %565
  %v567 = vsel %vm363, %v561, -inf
  %568 = vmax.xlane.f32.xlu0 %v567
  %v569 = vpop.xlane.xlu0 %568
  %v570 = vsub.f32 %v556, %v566
  %v571 = vsub.f32 %v561, %v569
  %v572 = vmul.f32 %v570, 1.442695
  %v573 = vpow.pop %v572
  %v574 = vmul.f32 %v571, 1.442695
  %v575 = vpow.pop %v574
  %v576 = vsel %vm363, %v573, 0.0
  %577 = vadd.xlane.f32.xlu0 %v576
  %v578 = vpop.xlane.xlu0 %577
  %v579 = vsel %vm363, %v575, 0.0
  %580 = vadd.xlane.f32.xlu0 %v579
  %v581 = vpop.xlane.xlu0 %580
  %582 = vrot.lane.b32.xlu0 %v265, 56
  %v583 = vpop.permute.xlu0 %582
  %584 = vrot.lane.b32.xlu0 %v270, 56
  %v585 = vpop.permute.xlu0 %584
  %v589 = vsel %vm363, %v573, 0
  %v592 = vsel %vm363, %v575, 0
  %594 = vmatprep.subr.mxu0 0.0
  %595 = vmatpush1.msra.mxu0 %v583
  %596 = vmatprep.subr.mxu0 0.0
  %597 = vmatpush1.msra.mxu0 %v585
  %598 = vmatprep.subr.mxu0 0.0
  %599 = vmatpush1.msra.mxu0 0.0
  %600 = vmatprep.subr.mxu0 0.0
  %601 = vmatpush1.msra.mxu0 0.0
  %602 = vmatprep.subr.mxu0 0.0
  %603 = vmatpush1.msra.mxu0 0.0
  %604 = vmatprep.subr.mxu0 0.0
  %605 = vmatpush1.msra.mxu0 0.0
  %606 = vmatprep.subr.mxu0 0.0
  %607 = vmatpush1.msra.mxu0 0.0
  %608 = vmatprep.subr.mxu0 0.0
  %609 = vmatpush1.msra.mxu0 0.0
  %610 = vmatprep.subr.mxu0 0.0
  %611 = vmatpush1.msra.mxu0 0.0
  %612 = vmatprep.subr.mxu0 0.0
  %613 = vmatpush1.msra.mxu0 0.0
  %614 = vmatprep.subr.mxu0 0.0
  %615 = vmatpush1.msra.mxu0 0.0
  %616 = vmatprep.subr.mxu0 0.0
  %617 = vmatpush1.msra.mxu0 0.0
  %618 = vmatprep.subr.mxu0 0.0
  %619 = vmatpush1.msra.mxu0 0.0
  %620 = vmatprep.subr.mxu0 0.0
  %621 = vmatpush1.msra.mxu0 0.0
  %622 = vmatprep.subr.mxu0 0.0
  %623 = vmatpush1.msra.mxu0 0.0
  %624 = vmatprep.subr.mxu0 0.0
  %625 = vmatpush1.msra.mxu0 0.0
  %626 = vmatprep.subr.mxu0 0.0
  %627 = vmatpush1.msra.mxu0 0.0
  %628 = vmatprep.subr.mxu0 0.0
  %629 = vmatpush1.msra.mxu0 0.0
  %630 = vmatprep.subr.mxu0 0.0
  %631 = vmatpush1.msra.mxu0 0.0
  %632 = vmatprep.subr.mxu0 0.0
  %633 = vmatpush1.msra.mxu0 0.0
  %634 = vmatprep.subr.mxu0 0.0
  %635 = vmatpush1.msra.mxu0 0.0
  %636 = vmatprep.subr.mxu0 0.0
  %637 = vmatpush1.msra.mxu0 0.0
  %638 = vmatprep.subr.mxu0 0.0
  %639 = vmatpush1.msra.mxu0 0.0
  %640 = vmatprep.subr.mxu0 0.0
  %641 = vmatpush1.msra.mxu0 0.0
  %642 = vmatprep.subr.mxu0 0.0
  %643 = vmatpush1.msra.mxu0 0.0
  %644 = vmatprep.subr.mxu0 0.0
  %645 = vmatpush1.msra.mxu0 0.0
  %646 = vmatprep.subr.mxu0 0.0
  %647 = vmatpush1.msra.mxu0 0.0
  %648 = vmatprep.subr.mxu0 0.0
  %649 = vmatpush1.msra.mxu0 0.0
  %650 = vmatprep.subr.mxu0 0.0
  %651 = vmatpush1.msra.mxu0 0.0
  %652 = vmatprep.subr.mxu0 0.0
  %653 = vmatpush1.msra.mxu0 0.0
  %654 = vmatprep.subr.mxu0 0.0
  %655 = vmatpush1.msra.mxu0 0.0
  %656 = vmatprep.subr.mxu0 0.0
  %657 = vmatpush1.msra.mxu0 0.0
  %658 = vmatprep.mubr.f32.mxu0 0.0
  %659 = vmatmul.mubr.f32.gmra.mrb[0].mxu0 %v589
  %v660 = vpop.f32.mrb[0].mxu0
  %v661 = vadd.f32 0.0, %v660
  %v662 = vpop.f32.mrb[0].mxu0
  %663 = vmatprep.mubr.f32.mxu0 0.0
  %664 = vmatmul.mubr.f32.gmra.mrb[0].mxu0 %v592
  %v665 = vpop.f32.mrb[0].mxu0
  %v666 = vadd.f32 0.0, %v665
  %v667 = vpop.f32.mrb[0].mxu0
  %668 = vdwg.mxu0
  %v669 = vrcp.pop %v578
  %v670 = vrcp.pop %v581
  %v671 = vmul.f32 %v661, %v669
  %v672 = vmul.f32 %v666, %v670
  %673 = vrot.lane.b32.xlu0 %v265, 112
  %v674 = vpop.permute.xlu0 %673
  %675 = vrot.lane.b32.xlu0 %v270, 112
  %v676 = vpop.permute.xlu0 %675
  %677 = vrot.lane.b32.xlu0 %v265, 80
  %v678 = vpop.permute.xlu0 %677
  %679 = vrot.lane.b32.xlu0 %v270, 80
  %v680 = vpop.permute.xlu0 %679
  %v681 = vsel %vm279, %v674, 0
  %v683 = vsel %vm279, %v676, 0
  %v685 = vsel %vm279, %v678, 0
  %v687 = vsel %vm279, %v680, 0
  %689 = vmatprep.subr.mxu0 0.0
  %690 = vmatpush1.xpose.msra.mxu0 %v685
  %691 = vmatprep.subr.mxu0 0.0
  %692 = vmatpush1.xpose.msra.mxu0 %v687
  %693 = vmatprep.subr.mxu0 0.0
  %694 = vmatpush1.xpose.msra.mxu0 0.0
  %695 = vmatprep.subr.mxu0 0.0
  %696 = vmatpush1.xpose.msra.mxu0 0.0
  %697 = vmatprep.subr.mxu0 0.0
  %698 = vmatpush1.xpose.msra.mxu0 0.0
  %699 = vmatprep.subr.mxu0 0.0
  %700 = vmatpush1.xpose.msra.mxu0 0.0
  %701 = vmatprep.subr.mxu0 0.0
  %702 = vmatpush1.xpose.msra.mxu0 0.0
  %703 = vmatprep.subr.mxu0 0.0
  %704 = vmatpush1.xpose.msra.mxu0 0.0
  %705 = vmatprep.subr.mxu0 0.0
  %706 = vmatpush1.xpose.msra.mxu0 0.0
  %707 = vmatprep.subr.mxu0 0.0
  %708 = vmatpush1.xpose.msra.mxu0 0.0
  %709 = vmatprep.subr.mxu0 0.0
  %710 = vmatpush1.xpose.msra.mxu0 0.0
  %711 = vmatprep.subr.mxu0 0.0
  %712 = vmatpush1.xpose.msra.mxu0 0.0
  %713 = vmatprep.subr.mxu0 0.0
  %714 = vmatpush1.xpose.msra.mxu0 0.0
  %715 = vmatprep.subr.mxu0 0.0
  %716 = vmatpush1.xpose.msra.mxu0 0.0
  %717 = vmatprep.subr.mxu0 0.0
  %718 = vmatpush1.xpose.msra.mxu0 0.0
  %719 = vmatprep.subr.mxu0 0.0
  %720 = vmatpush1.xpose.msra.mxu0 0.0
  %721 = vmatprep.subr.mxu0 0.0
  %722 = vmatpush1.xpose.msra.mxu0 0.0
  %723 = vmatprep.subr.mxu0 0.0
  %724 = vmatpush1.xpose.msra.mxu0 0.0
  %725 = vmatprep.subr.mxu0 0.0
  %726 = vmatpush1.xpose.msra.mxu0 0.0
  %727 = vmatprep.subr.mxu0 0.0
  %728 = vmatpush1.xpose.msra.mxu0 0.0
  %729 = vmatprep.subr.mxu0 0.0
  %730 = vmatpush1.xpose.msra.mxu0 0.0
  %731 = vmatprep.subr.mxu0 0.0
  %732 = vmatpush1.xpose.msra.mxu0 0.0
  %733 = vmatprep.subr.mxu0 0.0
  %734 = vmatpush1.xpose.msra.mxu0 0.0
  %735 = vmatprep.subr.mxu0 0.0
  %736 = vmatpush1.xpose.msra.mxu0 0.0
  %737 = vmatprep.subr.mxu0 0.0
  %738 = vmatpush1.xpose.msra.mxu0 0.0
  %739 = vmatprep.subr.mxu0 0.0
  %740 = vmatpush1.xpose.msra.mxu0 0.0
  %741 = vmatprep.subr.mxu0 0.0
  %742 = vmatpush1.xpose.msra.mxu0 0.0
  %743 = vmatprep.subr.mxu0 0.0
  %744 = vmatpush1.xpose.msra.mxu0 0.0
  %745 = vmatprep.subr.mxu0 0.0
  %746 = vmatpush1.xpose.msra.mxu0 0.0
  %747 = vmatprep.subr.mxu0 0.0
  %748 = vmatpush1.xpose.msra.mxu0 0.0
  %749 = vmatprep.subr.mxu0 0.0
  %750 = vmatpush1.xpose.msra.mxu0 0.0
  %751 = vmatprep.subr.mxu0 0.0
  %752 = vmatpush1.xpose.msra.mxu0 0.0
  %753 = vmatprep.mubr.f32.mxu0 0.0
  %754 = vmatmul.mubr.f32.gmra.mrb[0].mxu0 %v681
  %v755 = vpop.f32.mrb[0].mxu0
  %v756 = vadd.f32 %v179, %v755
  %v757 = vpop.f32.mrb[0].mxu0
  %758 = vmatprep.mubr.f32.mxu0 0.0
  %759 = vmatmul.mubr.f32.gmra.mrb[0].mxu0 %v683
  %v760 = vpop.f32.mrb[0].mxu0
  %v761 = vadd.f32 %v180, %v760
  %v762 = vpop.f32.mrb[0].mxu0
  %763 = vdwg.mxu0
  %v764 = vsel %vm363, %v756, -inf
  %765 = vmax.xlane.f32.xlu0 %v764
  %v766 = vpop.xlane.xlu0 %765
  %v767 = vsel %vm363, %v761, -inf
  %768 = vmax.xlane.f32.xlu0 %v767
  %v769 = vpop.xlane.xlu0 %768
  %v770 = vsub.f32 %v756, %v766
  %v771 = vsub.f32 %v761, %v769
  %v772 = vmul.f32 %v770, 1.442695
  %v773 = vpow.pop %v772
  %v774 = vmul.f32 %v771, 1.442695
  %v775 = vpow.pop %v774
  %v776 = vsel %vm363, %v773, 0.0
  %777 = vadd.xlane.f32.xlu0 %v776
  %v778 = vpop.xlane.xlu0 %777
  %v779 = vsel %vm363, %v775, 0.0
  %780 = vadd.xlane.f32.xlu0 %v779
  %v781 = vpop.xlane.xlu0 %780
  %782 = vrot.lane.b32.xlu0 %v265, 48
  %v783 = vpop.permute.xlu0 %782
  %784 = vrot.lane.b32.xlu0 %v270, 48
  %v785 = vpop.permute.xlu0 %784
  %v789 = vsel %vm363, %v773, 0
  %v792 = vsel %vm363, %v775, 0
  %794 = vmatprep.subr.mxu0 0.0
  %795 = vmatpush1.msra.mxu0 %v783
  %796 = vmatprep.subr.mxu0 0.0
  %797 = vmatpush1.msra.mxu0 %v785
  %798 = vmatprep.subr.mxu0 0.0
  %799 = vmatpush1.msra.mxu0 0.0
  %800 = vmatprep.subr.mxu0 0.0
  %801 = vmatpush1.msra.mxu0 0.0
  %802 = vmatprep.subr.mxu0 0.0
  %803 = vmatpush1.msra.mxu0 0.0
  %804 = vmatprep.subr.mxu0 0.0
  %805 = vmatpush1.msra.mxu0 0.0
  %806 = vmatprep.subr.mxu0 0.0
  %807 = vmatpush1.msra.mxu0 0.0
  %808 = vmatprep.subr.mxu0 0.0
  %809 = vmatpush1.msra.mxu0 0.0
  %810 = vmatprep.subr.mxu0 0.0
  %811 = vmatpush1.msra.mxu0 0.0
  %812 = vmatprep.subr.mxu0 0.0
  %813 = vmatpush1.msra.mxu0 0.0
  %814 = vmatprep.subr.mxu0 0.0
  %815 = vmatpush1.msra.mxu0 0.0
  %816 = vmatprep.subr.mxu0 0.0
  %817 = vmatpush1.msra.mxu0 0.0
  %818 = vmatprep.subr.mxu0 0.0
  %819 = vmatpush1.msra.mxu0 0.0
  %820 = vmatprep.subr.mxu0 0.0
  %821 = vmatpush1.msra.mxu0 0.0
  %822 = vmatprep.subr.mxu0 0.0
  %823 = vmatpush1.msra.mxu0 0.0
  %824 = vmatprep.subr.mxu0 0.0
  %825 = vmatpush1.msra.mxu0 0.0
  %826 = vmatprep.subr.mxu0 0.0
  %827 = vmatpush1.msra.mxu0 0.0
  %828 = vmatprep.subr.mxu0 0.0
  %829 = vmatpush1.msra.mxu0 0.0
  %830 = vmatprep.subr.mxu0 0.0
  %831 = vmatpush1.msra.mxu0 0.0
  %832 = vmatprep.subr.mxu0 0.0
  %833 = vmatpush1.msra.mxu0 0.0
  %834 = vmatprep.subr.mxu0 0.0
  %835 = vmatpush1.msra.mxu0 0.0
  %836 = vmatprep.subr.mxu0 0.0
  %837 = vmatpush1.msra.mxu0 0.0
  %838 = vmatprep.subr.mxu0 0.0
  %839 = vmatpush1.msra.mxu0 0.0
  %840 = vmatprep.subr.mxu0 0.0
  %841 = vmatpush1.msra.mxu0 0.0
  %842 = vmatprep.subr.mxu0 0.0
  %843 = vmatpush1.msra.mxu0 0.0
  %844 = vmatprep.subr.mxu0 0.0
  %845 = vmatpush1.msra.mxu0 0.0
  %846 = vmatprep.subr.mxu0 0.0
  %847 = vmatpush1.msra.mxu0 0.0
  %848 = vmatprep.subr.mxu0 0.0
  %849 = vmatpush1.msra.mxu0 0.0
  %850 = vmatprep.subr.mxu0 0.0
  %851 = vmatpush1.msra.mxu0 0.0
  %852 = vmatprep.subr.mxu0 0.0
  %853 = vmatpush1.msra.mxu0 0.0
  %854 = vmatprep.subr.mxu0 0.0
  %855 = vmatpush1.msra.mxu0 0.0
  %856 = vmatprep.subr.mxu0 0.0
  %857 = vmatpush1.msra.mxu0 0.0
  %858 = vmatprep.mubr.f32.mxu0 0.0
  %859 = vmatmul.mubr.f32.gmra.mrb[0].mxu0 %v789
  %v860 = vpop.f32.mrb[0].mxu0
  %v861 = vadd.f32 0.0, %v860
  %v862 = vpop.f32.mrb[0].mxu0
  %863 = vmatprep.mubr.f32.mxu0 0.0
  %864 = vmatmul.mubr.f32.gmra.mrb[0].mxu0 %v792
  %v865 = vpop.f32.mrb[0].mxu0
  %v866 = vadd.f32 0.0, %v865
  %v867 = vpop.f32.mrb[0].mxu0
  %868 = vdwg.mxu0
  %v869 = vrcp.pop %v778
  %v870 = vrcp.pop %v781
  %v871 = vmul.f32 %v861, %v869
  %v872 = vmul.f32 %v866, %v870
  %873 = vrot.lane.b32.xlu0 %v265, 104
  %v874 = vpop.permute.xlu0 %873
  %875 = vrot.lane.b32.xlu0 %v270, 104
  %v876 = vpop.permute.xlu0 %875
  %877 = vrot.lane.b32.xlu0 %v265, 72
  %v878 = vpop.permute.xlu0 %877
  %879 = vrot.lane.b32.xlu0 %v270, 72
  %v880 = vpop.permute.xlu0 %879
  %v881 = vsel %vm279, %v874, 0
  %v883 = vsel %vm279, %v876, 0
  %v885 = vsel %vm279, %v878, 0
  %v887 = vsel %vm279, %v880, 0
  %889 = vmatprep.subr.mxu0 0.0
  %890 = vmatpush1.xpose.msra.mxu0 %v885
  %891 = vmatprep.subr.mxu0 0.0
  %892 = vmatpush1.xpose.msra.mxu0 %v887
  %893 = vmatprep.subr.mxu0 0.0
  %894 = vmatpush1.xpose.msra.mxu0 0.0
  %895 = vmatprep.subr.mxu0 0.0
  %896 = vmatpush1.xpose.msra.mxu0 0.0
  %897 = vmatprep.subr.mxu0 0.0
  %898 = vmatpush1.xpose.msra.mxu0 0.0
  %899 = vmatprep.subr.mxu0 0.0
  %900 = vmatpush1.xpose.msra.mxu0 0.0
  %901 = vmatprep.subr.mxu0 0.0
  %902 = vmatpush1.xpose.msra.mxu0 0.0
  %903 = vmatprep.subr.mxu0 0.0
  %904 = vmatpush1.xpose.msra.mxu0 0.0
  %905 = vmatprep.subr.mxu0 0.0
  %906 = vmatpush1.xpose.msra.mxu0 0.0
  %907 = vmatprep.subr.mxu0 0.0
  %908 = vmatpush1.xpose.msra.mxu0 0.0
  %909 = vmatprep.subr.mxu0 0.0
  %910 = vmatpush1.xpose.msra.mxu0 0.0
  %911 = vmatprep.subr.mxu0 0.0
  %912 = vmatpush1.xpose.msra.mxu0 0.0
  %913 = vmatprep.subr.mxu0 0.0
  %914 = vmatpush1.xpose.msra.mxu0 0.0
  %915 = vmatprep.subr.mxu0 0.0
  %916 = vmatpush1.xpose.msra.mxu0 0.0
  %917 = vmatprep.subr.mxu0 0.0
  %918 = vmatpush1.xpose.msra.mxu0 0.0
  %919 = vmatprep.subr.mxu0 0.0
  %920 = vmatpush1.xpose.msra.mxu0 0.0
  %921 = vmatprep.subr.mxu0 0.0
  %922 = vmatpush1.xpose.msra.mxu0 0.0
  %923 = vmatprep.subr.mxu0 0.0
  %924 = vmatpush1.xpose.msra.mxu0 0.0
  %925 = vmatprep.subr.mxu0 0.0
  %926 = vmatpush1.xpose.msra.mxu0 0.0
  %927 = vmatprep.subr.mxu0 0.0
  %928 = vmatpush1.xpose.msra.mxu0 0.0
  %929 = vmatprep.subr.mxu0 0.0
  %930 = vmatpush1.xpose.msra.mxu0 0.0
  %931 = vmatprep.subr.mxu0 0.0
  %932 = vmatpush1.xpose.msra.mxu0 0.0
  %933 = vmatprep.subr.mxu0 0.0
  %934 = vmatpush1.xpose.msra.mxu0 0.0
  %935 = vmatprep.subr.mxu0 0.0
  %936 = vmatpush1.xpose.msra.mxu0 0.0
  %937 = vmatprep.subr.mxu0 0.0
  %938 = vmatpush1.xpose.msra.mxu0 0.0
  %939 = vmatprep.subr.mxu0 0.0
  %940 = vmatpush1.xpose.msra.mxu0 0.0
  %941 = vmatprep.subr.mxu0 0.0
  %942 = vmatpush1.xpose.msra.mxu0 0.0
  %943 = vmatprep.subr.mxu0 0.0
  %944 = vmatpush1.xpose.msra.mxu0 0.0
  %945 = vmatprep.subr.mxu0 0.0
  %946 = vmatpush1.xpose.msra.mxu0 0.0
  %947 = vmatprep.subr.mxu0 0.0
  %948 = vmatpush1.xpose.msra.mxu0 0.0
  %949 = vmatprep.subr.mxu0 0.0
  %950 = vmatpush1.xpose.msra.mxu0 0.0
  %951 = vmatprep.subr.mxu0 0.0
  %952 = vmatpush1.xpose.msra.mxu0 0.0
  %953 = vmatprep.mubr.f32.mxu0 0.0
  %954 = vmatmul.mubr.f32.gmra.mrb[0].mxu0 %v881
  %v955 = vpop.f32.mrb[0].mxu0
  %v956 = vadd.f32 %v179, %v955
  %v957 = vpop.f32.mrb[0].mxu0
  %958 = vmatprep.mubr.f32.mxu0 0.0
  %959 = vmatmul.mubr.f32.gmra.mrb[0].mxu0 %v883
  %v960 = vpop.f32.mrb[0].mxu0
  %v961 = vadd.f32 %v180, %v960
  %v962 = vpop.f32.mrb[0].mxu0
  %963 = vdwg.mxu0
  %v964 = vsel %vm363, %v956, -inf
  %965 = vmax.xlane.f32.xlu0 %v964
  %v966 = vpop.xlane.xlu0 %965
  %v967 = vsel %vm363, %v961, -inf
  %968 = vmax.xlane.f32.xlu0 %v967
  %v969 = vpop.xlane.xlu0 %968
  %v970 = vsub.f32 %v956, %v966
  %v971 = vsub.f32 %v961, %v969
  %v972 = vmul.f32 %v970, 1.442695
  %v973 = vpow.pop %v972
  %v974 = vmul.f32 %v971, 1.442695
  %v975 = vpow.pop %v974
  %v976 = vsel %vm363, %v973, 0.0
  %977 = vadd.xlane.f32.xlu0 %v976
  %v978 = vpop.xlane.xlu0 %977
  %v979 = vsel %vm363, %v975, 0.0
  %980 = vadd.xlane.f32.xlu0 %v979
  %v981 = vpop.xlane.xlu0 %980
  %982 = vrot.lane.b32.xlu0 %v265, 40
  %v983 = vpop.permute.xlu0 %982
  %984 = vrot.lane.b32.xlu0 %v270, 40
  %v985 = vpop.permute.xlu0 %984
  %v989 = vsel %vm363, %v973, 0
  %v992 = vsel %vm363, %v975, 0
  %994 = vmatprep.subr.mxu0 0.0
  %995 = vmatpush1.msra.mxu0 %v983
  %996 = vmatprep.subr.mxu0 0.0
  %997 = vmatpush1.msra.mxu0 %v985
  %998 = vmatprep.subr.mxu0 0.0
  %999 = vmatpush1.msra.mxu0 0.0
  %1000 = vmatprep.subr.mxu0 0.0
  %1001 = vmatpush1.msra.mxu0 0.0
  %1002 = vmatprep.subr.mxu0 0.0
  %1003 = vmatpush1.msra.mxu0 0.0
  %1004 = vmatprep.subr.mxu0 0.0
  %1005 = vmatpush1.msra.mxu0 0.0
  %1006 = vmatprep.subr.mxu0 0.0
  %1007 = vmatpush1.msra.mxu0 0.0
  %1008 = vmatprep.subr.mxu0 0.0
  %1009 = vmatpush1.msra.mxu0 0.0
  %1010 = vmatprep.subr.mxu0 0.0
  %1011 = vmatpush1.msra.mxu0 0.0
  %1012 = vmatprep.subr.mxu0 0.0
  %1013 = vmatpush1.msra.mxu0 0.0
  %1014 = vmatprep.subr.mxu0 0.0
  %1015 = vmatpush1.msra.mxu0 0.0
  %1016 = vmatprep.subr.mxu0 0.0
  %1017 = vmatpush1.msra.mxu0 0.0
  %1018 = vmatprep.subr.mxu0 0.0
  %1019 = vmatpush1.msra.mxu0 0.0
  %1020 = vmatprep.subr.mxu0 0.0
  %1021 = vmatpush1.msra.mxu0 0.0
  %1022 = vmatprep.subr.mxu0 0.0
  %1023 = vmatpush1.msra.mxu0 0.0
  %1024 = vmatprep.subr.mxu0 0.0
  %1025 = vmatpush1.msra.mxu0 0.0
  %1026 = vmatprep.subr.mxu0 0.0
  %1027 = vmatpush1.msra.mxu0 0.0
  %1028 = vmatprep.subr.mxu0 0.0
  %1029 = vmatpush1.msra.mxu0 0.0
  %1030 = vmatprep.subr.mxu0 0.0
  %1031 = vmatpush1.msra.mxu0 0.0
  %1032 = vmatprep.subr.mxu0 0.0
  %1033 = vmatpush1.msra.mxu0 0.0
  %1034 = vmatprep.subr.mxu0 0.0
  %1035 = vmatpush1.msra.mxu0 0.0
  %1036 = vmatprep.subr.mxu0 0.0
  %1037 = vmatpush1.msra.mxu0 0.0
  %1038 = vmatprep.subr.mxu0 0.0
  %1039 = vmatpush1.msra.mxu0 0.0
  %1040 = vmatprep.subr.mxu0 0.0
  %1041 = vmatpush1.msra.mxu0 0.0
  %1042 = vmatprep.subr.mxu0 0.0
  %1043 = vmatpush1.msra.mxu0 0.0
  %1044 = vmatprep.subr.mxu0 0.0
  %1045 = vmatpush1.msra.mxu0 0.0
  %1046 = vmatprep.subr.mxu0 0.0
  %1047 = vmatpush1.msra.mxu0 0.0
  %1048 = vmatprep.subr.mxu0 0.0
  %1049 = vmatpush1.msra.mxu0 0.0
  %1050 = vmatprep.subr.mxu0 0.0
  %1051 = vmatpush1.msra.mxu0 0.0
  %1052 = vmatprep.subr.mxu0 0.0
  %1053 = vmatpush1.msra.mxu0 0.0
  %1054 = vmatprep.subr.mxu0 0.0
  %1055 = vmatpush1.msra.mxu0 0.0
  %1056 = vmatprep.subr.mxu0 0.0
  %1057 = vmatpush1.msra.mxu0 0.0
  %1058 = vmatprep.mubr.f32.mxu0 0.0
  %1059 = vmatmul.mubr.f32.gmra.mrb[0].mxu0 %v989
  %v1060 = vpop.f32.mrb[0].mxu0
  %v1061 = vadd.f32 0.0, %v1060
  %v1062 = vpop.f32.mrb[0].mxu0
  %1063 = vmatprep.mubr.f32.mxu0 0.0
  %1064 = vmatmul.mubr.f32.gmra.mrb[0].mxu0 %v992
  %v1065 = vpop.f32.mrb[0].mxu0
  %v1066 = vadd.f32 0.0, %v1065
  %v1067 = vpop.f32.mrb[0].mxu0
  %1068 = vdwg.mxu0
  %v1069 = vrcp.pop %v978
  %v1070 = vrcp.pop %v981
  %v1071 = vmul.f32 %v1061, %v1069
  %v1072 = vmul.f32 %v1066, %v1070
  %1075 = vrot.lane.b32.xlu0 %v671, 8
  %v1076 = vpop.permute.xlu0 %1075
  %1077 = vrot.lane.b32.xlu0 %v672, 8
  %v1078 = vpop.permute.xlu0 %1077
  %1083 = vrot.lane.b32.xlu0 %v871, 16
  %v1084 = vpop.permute.xlu0 %1083
  %1085 = vrot.lane.b32.xlu0 %v872, 16
  %v1086 = vpop.permute.xlu0 %1085
  %1091 = vrot.lane.b32.xlu0 %v1071, 24
  %v1092 = vpop.permute.xlu0 %1091
  %1093 = vrot.lane.b32.xlu0 %v1072, 24
  %v1094 = vpop.permute.xlu0 %1093
  %v1097 = vsel %vm279, %v471, %v1076
  %v1098 = vsel %vm279, %v472, %v1078
  %v1099 = vsel %vm363, %v1097, %v1084
  %v1100 = vsel %vm363, %v1098, %v1086
  %vm1101 = vcmask 195584
  %v1102 = vsel %vm1101, %v1099, %v1092
  %v1103 = vsel %vm1101, %v1100, %v1094
  %v1104 = vld [vmem:[%s6] sm:$0xff]
  %v1105 = vld [vmem:[%s6 + $0x8] sm:$0xff]
  %v1106 = vld [vmem:[%s6 + $0x10] sm:$0xff]
  %v1107 = vld [vmem:[%s6 + $0x18] sm:$0xff]
  %v1108 = vld [vmem:[%s7] sm:$0x1]
  %v1110 = vlaneseq
  %v1111 = vshrl.u32 %v1110, 7
  %v1112 = vsub.s32 0, %v1111
  %v1113 = vrot.slane %v1108, %v1112
  %v1116 = vsel %vm82, %v1102, 0
  %v1119 = vsel %vm82, %v1103, 0
  %1121 = vmatprep.subr.mxu0 0.0
  %1122 = vmatpush1.msra.mxu0 %v1104
  %1123 = vmatprep.subr.mxu0 0.0
  %1124 = vmatpush1.msra.mxu0 %v1105
  %1125 = vmatprep.subr.mxu0 0.0
  %1126 = vmatpush1.msra.mxu0 %v1106
  %1127 = vmatprep.subr.mxu0 0.0
  %1128 = vmatpush1.msra.mxu0 %v1107
  %1129 = vmatprep.subr.mxu0 0.0
  %1130 = vmatpush1.msra.mxu0 0.0
  %1131 = vmatprep.subr.mxu0 0.0
  %1132 = vmatpush1.msra.mxu0 0.0
  %1133 = vmatprep.subr.mxu0 0.0
  %1134 = vmatpush1.msra.mxu0 0.0
  %1135 = vmatprep.subr.mxu0 0.0
  %1136 = vmatpush1.msra.mxu0 0.0
  %1137 = vmatprep.subr.mxu0 0.0
  %1138 = vmatpush1.msra.mxu0 0.0
  %1139 = vmatprep.subr.mxu0 0.0
  %1140 = vmatpush1.msra.mxu0 0.0
  %1141 = vmatprep.subr.mxu0 0.0
  %1142 = vmatpush1.msra.mxu0 0.0
  %1143 = vmatprep.subr.mxu0 0.0
  %1144 = vmatpush1.msra.mxu0 0.0
  %1145 = vmatprep.subr.mxu0 0.0
  %1146 = vmatpush1.msra.mxu0 0.0
  %1147 = vmatprep.subr.mxu0 0.0
  %1148 = vmatpush1.msra.mxu0 0.0
  %1149 = vmatprep.subr.mxu0 0.0
  %1150 = vmatpush1.msra.mxu0 0.0
  %1151 = vmatprep.subr.mxu0 0.0
  %1152 = vmatpush1.msra.mxu0 0.0
  %1153 = vmatprep.subr.mxu0 0.0
  %1154 = vmatpush1.msra.mxu0 0.0
  %1155 = vmatprep.subr.mxu0 0.0
  %1156 = vmatpush1.msra.mxu0 0.0
  %1157 = vmatprep.subr.mxu0 0.0
  %1158 = vmatpush1.msra.mxu0 0.0
  %1159 = vmatprep.subr.mxu0 0.0
  %1160 = vmatpush1.msra.mxu0 0.0
  %1161 = vmatprep.subr.mxu0 0.0
  %1162 = vmatpush1.msra.mxu0 0.0
  %1163 = vmatprep.subr.mxu0 0.0
  %1164 = vmatpush1.msra.mxu0 0.0
  %1165 = vmatprep.subr.mxu0 0.0
  %1166 = vmatpush1.msra.mxu0 0.0
  %1167 = vmatprep.subr.mxu0 0.0
  %1168 = vmatpush1.msra.mxu0 0.0
  %1169 = vmatprep.subr.mxu0 0.0
  %1170 = vmatpush1.msra.mxu0 0.0
  %1171 = vmatprep.subr.mxu0 0.0
  %1172 = vmatpush1.msra.mxu0 0.0
  %1173 = vmatprep.subr.mxu0 0.0
  %1174 = vmatpush1.msra.mxu0 0.0
  %1175 = vmatprep.subr.mxu0 0.0
  %1176 = vmatpush1.msra.mxu0 0.0
  %1177 = vmatprep.subr.mxu0 0.0
  %1178 = vmatpush1.msra.mxu0 0.0
  %1179 = vmatprep.subr.mxu0 0.0
  %1180 = vmatpush1.msra.mxu0 0.0
  %1181 = vmatprep.subr.mxu0 0.0
  %1182 = vmatpush1.msra.mxu0 0.0
  %1183 = vmatprep.subr.mxu0 0.0
  %1184 = vmatpush1.msra.mxu0 0.0
  %1185 = vmatprep.mubr.f32.mxu0 0.0
  %1186 = vmatmul.mubr.f32.gmra.mrb[0].mxu0 %v1116
  %v1187 = vpop.f32.mrb[0].mxu0
  %v1188 = vadd.f32 %v1113, %v1187
  %v1189 = vpop.f32.mrb[0].mxu0
  %1190 = vmatprep.mubr.f32.mxu0 0.0
  %1191 = vmatmul.mubr.f32.gmra.mrb[0].mxu0 %v1119
  %v1192 = vpop.f32.mrb[0].mxu0
  %v1193 = vadd.f32 %v1113, %v1192
  %v1194 = vpop.f32.mrb[0].mxu0
  %1195 = vdwg.mxu0
  %v1196 = vadd.f32 %v156, %v1188
  %v1197 = vadd.f32 %v161, %v1193
  %v1198 = vld [vmem:[%s8] sm:$0x1]
  %v1199 = vld [vmem:[%s9] sm:$0x1]
  %v1200 = vsel %vm82, %v1196, 0.0
  %1201 = vadd.xlane.f32.xlu0 %v1200
  %v1202 = vpop.xlane.xlu0 %1201
  %v1203 = vsel %vm82, %v1197, 0.0
  %1204 = vadd.xlane.f32.xlu0 %v1203
  %v1205 = vpop.xlane.xlu0 %1204
  %v1206 = vrcp.pop 32.0
  %v1207 = vmul.f32 %v1202, %v1206
  %v1208 = vmul.f32 %v1205, %v1206
  %v1209 = vsub.f32 %v1196, %v1207
  %v1210 = vsub.f32 %v1197, %v1208
  %v1211 = vmul.f32 %v1209, %v1209
  %v1212 = vmul.f32 %v1210, %v1210
  %v1213 = vsel %vm82, %v1211, 0.0
  %1214 = vadd.xlane.f32.xlu0 %v1213
  %v1215 = vpop.xlane.xlu0 %1214
  %v1216 = vsel %vm82, %v1212, 0.0
  %1217 = vadd.xlane.f32.xlu0 %v1216
  %v1218 = vpop.xlane.xlu0 %1217
  %v1219 = vmul.f32 %v1215, %v1206
  %v1220 = vmul.f32 %v1218, %v1206
  %v1221 = vadd.f32 %v1219, 1e-05
  %v1222 = vadd.f32 %v1220, 1e-05
  %v1223 = vrsqrt.pop %v1221
  %v1224 = vrsqrt.pop %v1222
  %v1225 = vmul.f32 %v1209, %v1223
  %v1226 = vmul.f32 %v1210, %v1224
  %v1228 = vlaneseq
  %v1229 = vshrl.u32 %v1228, 7
  %v1230 = vsub.s32 0, %v1229
  %v1231 = vrot.slane %v1198, %v1230
  %v1233 = vmul.f32 %v1225, %v1231
  %v1234 = vmul.f32 %v1226, %v1231
  %v1236 = vlaneseq
  %v1237 = vshrl.u32 %v1236, 7
  %v1238 = vsub.s32 0, %v1237
  %v1239 = vrot.slane %v1199, %v1238
  %v1241 = vadd.f32 %v1233, %v1239
  %v1242 = vadd.f32 %v1234, %v1239
  %v1243 = vpack.c.bf16 %v1242, %v1241
  %v1244 = vld [vmem:[%s10] sm:$0xff]
  %v1245 = vld [vmem:[%s10 + $0x8] sm:$0xff]
  %v1246 = vld [vmem:[%s10 + $0x40] sm:$0xff]
  %v1247 = vld [vmem:[%s10 + $0x48] sm:$0xff]
  %v1248 = vld [vmem:[%s10 + $0x80] sm:$0xff]
  %v1249 = vld [vmem:[%s10 + $0x88] sm:$0xff]
  %v1250 = vld [vmem:[%s10 + $0xc0] sm:$0xff]
  %v1251 = vld [vmem:[%s10 + $0xc8] sm:$0xff]
  %v1252 = vld [vmem:[%s11] sm:$0xf]
  %v1254 = vlaneseq
  %v1255 = vshrl.u32 %v1254, 7
  %v1256 = vsub.s32 0, %v1255
  %v1257 = vrot.slane %v1252, %v1256
  %v1258 = vlaneseq
  %v1259 = vshrl.u32 %v1258, 7
  %v1260 = vsub.s32 1, %v1259
  %v1261 = vrot.slane %v1252, %v1260
  %v1262 = vlaneseq
  %v1263 = vshrl.u32 %v1262, 7
  %v1264 = vsub.s32 2, %v1263
  %v1265 = vrot.slane %v1252, %v1264
  %v1266 = vlaneseq
  %v1267 = vshrl.u32 %v1266, 7
  %v1268 = vsub.s32 3, %v1267
  %v1269 = vrot.slane %v1252, %v1268
  %v1282 = vunpack.c.l.b16 %v1244
  %v1283 = vunpack.c.h.b16 %v1244
  %v1284 = vunpack.c.l.b16 %v1245
  %v1285 = vunpack.c.h.b16 %v1245
  %v1286 = vunpack.c.l.b16 %v1246
  %v1287 = vunpack.c.h.b16 %v1246
  %v1288 = vunpack.c.l.b16 %v1247
  %v1289 = vunpack.c.h.b16 %v1247
  %v1290 = vunpack.c.l.b16 %v1248
  %v1291 = vunpack.c.h.b16 %v1248
  %v1292 = vunpack.c.l.b16 %v1249
  %v1293 = vunpack.c.h.b16 %v1249
  %v1294 = vunpack.c.l.b16 %v1250
  %v1295 = vunpack.c.h.b16 %v1250
  %v1296 = vunpack.c.l.b16 %v1251
  %v1297 = vunpack.c.h.b16 %v1251
  %v1298 = vpack.c.b16 %v1286, %v1282
  %v1299 = vpack.c.b16 %v1287, %v1283
  %v1300 = vpack.c.b16 %v1288, %v1284
  %v1301 = vpack.c.b16 %v1289, %v1285
  %v1302 = vpack.c.b16 %v1294, %v1290
  %v1303 = vpack.c.b16 %v1295, %v1291
  %v1304 = vpack.c.b16 %v1296, %v1292
  %v1305 = vpack.c.b16 %v1297, %v1293
  %v1315 = vsel %vm82, %v1243, 0
  %1317 = vmatprep.subr.bf16.mxu0 %v1299
  %1318 = vmatpush1.bf16.msra.mxu0 %v1298
  %1319 = vmatprep.subr.bf16.mxu0 %v1303
  %1320 = vmatpush1.bf16.msra.mxu0 %v1302
  %1321 = vmatprep.subr.bf16.mxu0 0
  %1322 = vmatpush1.bf16.msra.mxu0 0
  %1323 = vmatprep.subr.bf16.mxu0 0
  %1324 = vmatpush1.bf16.msra.mxu0 0
  %1325 = vmatprep.subr.bf16.mxu0 0
  %1326 = vmatpush1.bf16.msra.mxu0 0
  %1327 = vmatprep.subr.bf16.mxu0 0
  %1328 = vmatpush1.bf16.msra.mxu0 0
  %1329 = vmatprep.subr.bf16.mxu0 0
  %1330 = vmatpush1.bf16.msra.mxu0 0
  %1331 = vmatprep.subr.bf16.mxu0 0
  %1332 = vmatpush1.bf16.msra.mxu0 0
  %1333 = vmatprep.subr.bf16.mxu0 0
  %1334 = vmatpush1.bf16.msra.mxu0 0
  %1335 = vmatprep.subr.bf16.mxu0 0
  %1336 = vmatpush1.bf16.msra.mxu0 0
  %1337 = vmatprep.subr.bf16.mxu0 0
  %1338 = vmatpush1.bf16.msra.mxu0 0
  %1339 = vmatprep.subr.bf16.mxu0 0
  %1340 = vmatpush1.bf16.msra.mxu0 0
  %1341 = vmatprep.subr.bf16.mxu0 0
  %1342 = vmatpush1.bf16.msra.mxu0 0
  %1343 = vmatprep.subr.bf16.mxu0 0
  %1344 = vmatpush1.bf16.msra.mxu0 0
  %1345 = vmatprep.subr.bf16.mxu0 0
  %1346 = vmatpush1.bf16.msra.mxu0 0
  %1347 = vmatprep.subr.bf16.mxu0 0
  %1348 = vmatpush1.bf16.msra.mxu0 0
  %1349 = vmatprep.mubr.bf16.mxu0 0
  %1350 = vmatmul.mubr.bf16.gmra.mrb[0].mxu0 %v1315
  %v1351 = vpop.f32.mrb[0].mxu0
  %v1352 = vadd.f32 %v1257, %v1351
  %v1353 = vpop.f32.mrb[0].mxu0
  %v1354 = vadd.f32 %v1261, %v1353
  %v1355 = vpop.f32.mrb[0].mxu0
  %v1356 = vadd.f32 %v1257, %v1355
  %v1357 = vpop.f32.mrb[0].mxu0
  %v1358 = vadd.f32 %v1261, %v1357
  %1359 = vdwg.mxu0
  %1360 = vmatprep.subr.bf16.mxu0 %v1301
  %1361 = vmatpush1.bf16.msra.mxu0 %v1300
  %1362 = vmatprep.subr.bf16.mxu0 %v1305
  %1363 = vmatpush1.bf16.msra.mxu0 %v1304
  %1364 = vmatprep.subr.bf16.mxu0 0
  %1365 = vmatpush1.bf16.msra.mxu0 0
  %1366 = vmatprep.subr.bf16.mxu0 0
  %1367 = vmatpush1.bf16.msra.mxu0 0
  %1368 = vmatprep.subr.bf16.mxu0 0
  %1369 = vmatpush1.bf16.msra.mxu0 0
  %1370 = vmatprep.subr.bf16.mxu0 0
  %1371 = vmatpush1.bf16.msra.mxu0 0
  %1372 = vmatprep.subr.bf16.mxu0 0
  %1373 = vmatpush1.bf16.msra.mxu0 0
  %1374 = vmatprep.subr.bf16.mxu0 0
  %1375 = vmatpush1.bf16.msra.mxu0 0
  %1376 = vmatprep.subr.bf16.mxu0 0
  %1377 = vmatpush1.bf16.msra.mxu0 0
  %1378 = vmatprep.subr.bf16.mxu0 0
  %1379 = vmatpush1.bf16.msra.mxu0 0
  %1380 = vmatprep.subr.bf16.mxu0 0
  %1381 = vmatpush1.bf16.msra.mxu0 0
  %1382 = vmatprep.subr.bf16.mxu0 0
  %1383 = vmatpush1.bf16.msra.mxu0 0
  %1384 = vmatprep.subr.bf16.mxu0 0
  %1385 = vmatpush1.bf16.msra.mxu0 0
  %1386 = vmatprep.subr.bf16.mxu0 0
  %1387 = vmatpush1.bf16.msra.mxu0 0
  %1388 = vmatprep.subr.bf16.mxu0 0
  %1389 = vmatpush1.bf16.msra.mxu0 0
  %1390 = vmatprep.subr.bf16.mxu0 0
  %1391 = vmatpush1.bf16.msra.mxu0 0
  %1392 = vmatprep.mubr.bf16.mxu0 0
  %1393 = vmatmul.mubr.bf16.gmra.mrb[0].mxu0 %v1315
  %v1394 = vpop.f32.mrb[0].mxu0
  %v1395 = vadd.f32 %v1265, %v1394
  %v1396 = vpop.f32.mrb[0].mxu0
  %v1397 = vadd.f32 %v1269, %v1396
  %v1398 = vpop.f32.mrb[0].mxu0
  %v1399 = vadd.f32 %v1265, %v1398
  %v1400 = vpop.f32.mrb[0].mxu0
  %v1401 = vadd.f32 %v1269, %v1400
  %1402 = vdwg.mxu0
  %v1403 = vmax.f32 %v1352, 0.0
  %v1404 = vmax.f32 %v1354, 0.0
  %v1405 = vmax.f32 %v1395, 0.0
  %v1406 = vmax.f32 %v1397, 0.0
  %v1407 = vmax.f32 %v1356, 0.0
  %v1408 = vmax.f32 %v1358, 0.0
  %v1409 = vmax.f32 %v1399, 0.0
  %v1410 = vmax.f32 %v1401, 0.0
  %v1411 = vpack.c.bf16 %v1407, %v1403
  %v1412 = vpack.c.bf16 %v1408, %v1404
  %v1413 = vpack.c.bf16 %v1409, %v1405
  %v1414 = vpack.c.bf16 %v1410, %v1406
  %v1415 = vld [vmem:[%s12] sm:$0xf]
  %v1416 = vld [vmem:[%s12 + $0x4] sm:$0xf]
  %v1417 = vld [vmem:[%s12 + $0x8] sm:$0xf]
  %v1418 = vld [vmem:[%s12 + $0xc] sm:$0xf]
  %v1419 = vld [vmem:[%s12 + $0x10] sm:$0xf]
  %v1420 = vld [vmem:[%s12 + $0x14] sm:$0xf]
  %v1421 = vld [vmem:[%s12 + $0x18] sm:$0xf]
  %v1422 = vld [vmem:[%s12 + $0x1c] sm:$0xf]
  %v1423 = vld [vmem:[%s12 + $0x20] sm:$0xf]
  %v1424 = vld [vmem:[%s12 + $0x24] sm:$0xf]
  %v1425 = vld [vmem:[%s12 + $0x28] sm:$0xf]
  %v1426 = vld [vmem:[%s12 + $0x2c] sm:$0xf]
  %v1427 = vld [vmem:[%s12 + $0x30] sm:$0xf]
  %v1428 = vld [vmem:[%s12 + $0x34] sm:$0xf]
  %v1429 = vld [vmem:[%s12 + $0x38] sm:$0xf]
  %v1430 = vld [vmem:[%s12 + $0x3c] sm:$0xf]
  %v1431 = vld [vmem:[%s12 + $0x40] sm:$0xf]
  %v1432 = vld [vmem:[%s12 + $0x44] sm:$0xf]
  %v1433 = vld [vmem:[%s12 + $0x48] sm:$0xf]
  %v1434 = vld [vmem:[%s12 + $0x4c] sm:$0xf]
  %v1435 = vld [vmem:[%s12 + $0x50] sm:$0xf]
  %v1436 = vld [vmem:[%s12 + $0x54] sm:$0xf]
  %v1437 = vld [vmem:[%s12 + $0x58] sm:$0xf]
  %v1438 = vld [vmem:[%s12 + $0x5c] sm:$0xf]
  %v1439 = vld [vmem:[%s12 + $0x60] sm:$0xf]
  %v1440 = vld [vmem:[%s12 + $0x64] sm:$0xf]
  %v1441 = vld [vmem:[%s12 + $0x68] sm:$0xf]
  %v1442 = vld [vmem:[%s12 + $0x6c] sm:$0xf]
  %v1443 = vld [vmem:[%s12 + $0x70] sm:$0xf]
  %v1444 = vld [vmem:[%s12 + $0x74] sm:$0xf]
  %v1445 = vld [vmem:[%s12 + $0x78] sm:$0xf]
  %v1446 = vld [vmem:[%s12 + $0x7c] sm:$0xf]
  %v1447 = vld [vmem:[%s12 + $0x80] sm:$0xf]
  %v1448 = vld [vmem:[%s12 + $0x84] sm:$0xf]
  %v1449 = vld [vmem:[%s12 + $0x88] sm:$0xf]
  %v1450 = vld [vmem:[%s12 + $0x8c] sm:$0xf]
  %v1451 = vld [vmem:[%s12 + $0x90] sm:$0xf]
  %v1452 = vld [vmem:[%s12 + $0x94] sm:$0xf]
  %v1453 = vld [vmem:[%s12 + $0x98] sm:$0xf]
  %v1454 = vld [vmem:[%s12 + $0x9c] sm:$0xf]
  %v1455 = vld [vmem:[%s12 + $0xa0] sm:$0xf]
  %v1456 = vld [vmem:[%s12 + $0xa4] sm:$0xf]
  %v1457 = vld [vmem:[%s12 + $0xa8] sm:$0xf]
  %v1458 = vld [vmem:[%s12 + $0xac] sm:$0xf]
  %v1459 = vld [vmem:[%s12 + $0xb0] sm:$0xf]
  %v1460 = vld [vmem:[%s12 + $0xb4] sm:$0xf]
  %v1461 = vld [vmem:[%s12 + $0xb8] sm:$0xf]
  %v1462 = vld [vmem:[%s12 + $0xbc] sm:$0xf]
  %v1463 = vld [vmem:[%s12 + $0xc0] sm:$0xf]
  %v1464 = vld [vmem:[%s12 + $0xc4] sm:$0xf]
  %v1465 = vld [vmem:[%s12 + $0xc8] sm:$0xf]
  %v1466 = vld [vmem:[%s12 + $0xcc] sm:$0xf]
  %v1467 = vld [vmem:[%s12 + $0xd0] sm:$0xf]
  %v1468 = vld [vmem:[%s12 + $0xd4] sm:$0xf]
  %v1469 = vld [vmem:[%s12 + $0xd8] sm:$0xf]
  %v1470 = vld [vmem:[%s12 + $0xdc] sm:$0xf]
  %v1471 = vld [vmem:[%s12 + $0xe0] sm:$0xf]
  %v1472 = vld [vmem:[%s12 + $0xe4] sm:$0xf]
  %v1473 = vld [vmem:[%s12 + $0xe8] sm:$0xf]
  %v1474 = vld [vmem:[%s12 + $0xec] sm:$0xf]
  %v1475 = vld [vmem:[%s12 + $0xf0] sm:$0xf]
  %v1476 = vld [vmem:[%s12 + $0xf4] sm:$0xf]
  %v1477 = vld [vmem:[%s12 + $0xf8] sm:$0xf]
  %v1478 = vld [vmem:[%s12 + $0xfc] sm:$0xf]
  %v1479 = vld [vmem:[%s10 + $0x10] sm:$0xff]
  %v1480 = vld [vmem:[%s10 + $0x18] sm:$0xff]
  %v1481 = vld [vmem:[%s10 + $0x50] sm:$0xff]
  %v1482 = vld [vmem:[%s10 + $0x58] sm:$0xff]
  %v1483 = vld [vmem:[%s10 + $0x90] sm:$0xff]
  %v1484 = vld [vmem:[%s10 + $0x98] sm:$0xff]
  %v1485 = vld [vmem:[%s10 + $0xd0] sm:$0xff]
  %v1486 = vld [vmem:[%s10 + $0xd8] sm:$0xff]
  %v1487 = vld [vmem:[%s11 + $0x4] sm:$0xf]
  %v1489 = vlaneseq
  %v1490 = vshrl.u32 %v1489, 7
  %v1491 = vsub.s32 0, %v1490
  %v1492 = vrot.slane %v1487, %v1491
  %v1493 = vlaneseq
  %v1494 = vshrl.u32 %v1493, 7
  %v1495 = vsub.s32 1, %v1494
  %v1496 = vrot.slane %v1487, %v1495
  %v1497 = vlaneseq
  %v1498 = vshrl.u32 %v1497, 7
  %v1499 = vsub.s32 2, %v1498
  %v1500 = vrot.slane %v1487, %v1499
  %v1501 = vlaneseq
  %v1502 = vshrl.u32 %v1501, 7
  %v1503 = vsub.s32 3, %v1502
  %v1504 = vrot.slane %v1487, %v1503
  %v1517 = vunpack.c.l.b16 %v1479
  %v1518 = vunpack.c.h.b16 %v1479
  %v1519 = vunpack.c.l.b16 %v1480
  %v1520 = vunpack.c.h.b16 %v1480
  %v1521 = vunpack.c.l.b16 %v1481
  %v1522 = vunpack.c.h.b16 %v1481
  %v1523 = vunpack.c.l.b16 %v1482
  %v1524 = vunpack.c.h.b16 %v1482
  %v1525 = vunpack.c.l.b16 %v1483
  %v1526 = vunpack.c.h.b16 %v1483
  %v1527 = vunpack.c.l.b16 %v1484
  %v1528 = vunpack.c.h.b16 %v1484
  %v1529 = vunpack.c.l.b16 %v1485
  %v1530 = vunpack.c.h.b16 %v1485
  %v1531 = vunpack.c.l.b16 %v1486
  %v1532 = vunpack.c.h.b16 %v1486
  %v1533 = vpack.c.b16 %v1521, %v1517
  %v1534 = vpack.c.b16 %v1522, %v1518
  %v1535 = vpack.c.b16 %v1523, %v1519
  %v1536 = vpack.c.b16 %v1524, %v1520
  %v1537 = vpack.c.b16 %v1529, %v1525
  %v1538 = vpack.c.b16 %v1530, %v1526
  %v1539 = vpack.c.b16 %v1531, %v1527
  %v1540 = vpack.c.b16 %v1532, %v1528
  %1549 = vmatprep.subr.bf16.mxu0 %v1534
  %1550 = vmatpush1.bf16.msra.mxu0 %v1533
  %1551 = vmatprep.subr.bf16.mxu0 %v1538
  %1552 = vmatpush1.bf16.msra.mxu0 %v1537
  %1553 = vmatprep.subr.bf16.mxu0 0
  %1554 = vmatpush1.bf16.msra.mxu0 0
  %1555 = vmatprep.subr.bf16.mxu0 0
  %1556 = vmatpush1.bf16.msra.mxu0 0
  %1557 = vmatprep.subr.bf16.mxu0 0
  %1558 = vmatpush1.bf16.msra.mxu0 0
  %1559 = vmatprep.subr.bf16.mxu0 0
  %1560 = vmatpush1.bf16.msra.mxu0 0
  %1561 = vmatprep.subr.bf16.mxu0 0
  %1562 = vmatpush1.bf16.msra.mxu0 0
  %1563 = vmatprep.subr.bf16.mxu0 0
  %1564 = vmatpush1.bf16.msra.mxu0 0
  %1565 = vmatprep.subr.bf16.mxu0 0
  %1566 = vmatpush1.bf16.msra.mxu0 0
  %1567 = vmatprep.subr.bf16.mxu0 0
  %1568 = vmatpush1.bf16.msra.mxu0 0
  %1569 = vmatprep.subr.bf16.mxu0 0
  %1570 = vmatpush1.bf16.msra.mxu0 0
  %1571 = vmatprep.subr.bf16.mxu0 0
  %1572 = vmatpush1.bf16.msra.mxu0 0
  %1573 = vmatprep.subr.bf16.mxu0 0
  %1574 = vmatpush1.bf16.msra.mxu0 0
  %1575 = vmatprep.subr.bf16.mxu0 0
  %1576 = vmatpush1.bf16.msra.mxu0 0
  %1577 = vmatprep.subr.bf16.mxu0 0
  %1578 = vmatpush1.bf16.msra.mxu0 0
  %1579 = vmatprep.subr.bf16.mxu0 0
  %1580 = vmatpush1.bf16.msra.mxu0 0
  %1581 = vmatprep.mubr.bf16.mxu0 0
  %1582 = vmatmul.mubr.bf16.gmra.mrb[0].mxu0 %v1315
  %v1583 = vpop.f32.mrb[0].mxu0
  %v1584 = vadd.f32 %v1492, %v1583
  %v1585 = vpop.f32.mrb[0].mxu0
  %v1586 = vadd.f32 %v1496, %v1585
  %v1587 = vpop.f32.mrb[0].mxu0
  %v1588 = vadd.f32 %v1492, %v1587
  %v1589 = vpop.f32.mrb[0].mxu0
  %v1590 = vadd.f32 %v1496, %v1589
  %1591 = vdwg.mxu0
  %1592 = vmatprep.subr.bf16.mxu0 %v1536
  %1593 = vmatpush1.bf16.msra.mxu0 %v1535
  %1594 = vmatprep.subr.bf16.mxu0 %v1540
  %1595 = vmatpush1.bf16.msra.mxu0 %v1539
  %1596 = vmatprep.subr.bf16.mxu0 0
  %1597 = vmatpush1.bf16.msra.mxu0 0
  %1598 = vmatprep.subr.bf16.mxu0 0
  %1599 = vmatpush1.bf16.msra.mxu0 0
  %1600 = vmatprep.subr.bf16.mxu0 0
  %1601 = vmatpush1.bf16.msra.mxu0 0
  %1602 = vmatprep.subr.bf16.mxu0 0
  %1603 = vmatpush1.bf16.msra.mxu0 0
  %1604 = vmatprep.subr.bf16.mxu0 0
  %1605 = vmatpush1.bf16.msra.mxu0 0
  %1606 = vmatprep.subr.bf16.mxu0 0
  %1607 = vmatpush1.bf16.msra.mxu0 0
  %1608 = vmatprep.subr.bf16.mxu0 0
  %1609 = vmatpush1.bf16.msra.mxu0 0
  %1610 = vmatprep.subr.bf16.mxu0 0
  %1611 = vmatpush1.bf16.msra.mxu0 0
  %1612 = vmatprep.subr.bf16.mxu0 0
  %1613 = vmatpush1.bf16.msra.mxu0 0
  %1614 = vmatprep.subr.bf16.mxu0 0
  %1615 = vmatpush1.bf16.msra.mxu0 0
  %1616 = vmatprep.subr.bf16.mxu0 0
  %1617 = vmatpush1.bf16.msra.mxu0 0
  %1618 = vmatprep.subr.bf16.mxu0 0
  %1619 = vmatpush1.bf16.msra.mxu0 0
  %1620 = vmatprep.subr.bf16.mxu0 0
  %1621 = vmatpush1.bf16.msra.mxu0 0
  %1622 = vmatprep.subr.bf16.mxu0 0
  %1623 = vmatpush1.bf16.msra.mxu0 0
  %1624 = vmatprep.mubr.bf16.mxu0 0
  %1625 = vmatmul.mubr.bf16.gmra.mrb[0].mxu0 %v1315
  %v1626 = vpop.f32.mrb[0].mxu0
  %v1627 = vadd.f32 %v1500, %v1626
  %v1628 = vpop.f32.mrb[0].mxu0
  %v1629 = vadd.f32 %v1504, %v1628
  %v1630 = vpop.f32.mrb[0].mxu0
  %v1631 = vadd.f32 %v1500, %v1630
  %v1632 = vpop.f32.mrb[0].mxu0
  %v1633 = vadd.f32 %v1504, %v1632
  %1634 = vdwg.mxu0
  %v1635 = vmax.f32 %v1584, 0.0
  %v1636 = vmax.f32 %v1586, 0.0
  %v1637 = vmax.f32 %v1627, 0.0
  %v1638 = vmax.f32 %v1629, 0.0
  %v1639 = vmax.f32 %v1588, 0.0
  %v1640 = vmax.f32 %v1590, 0.0
  %v1641 = vmax.f32 %v1631, 0.0
  %v1642 = vmax.f32 %v1633, 0.0
  %v1643 = vpack.c.bf16 %v1639, %v1635
  %v1644 = vpack.c.bf16 %v1640, %v1636
  %v1645 = vpack.c.bf16 %v1641, %v1637
  %v1646 = vpack.c.bf16 %v1642, %v1638
  %v1647 = vld [vmem:[%s12 + $0x100] sm:$0xf]
  %v1648 = vld [vmem:[%s12 + $0x104] sm:$0xf]
  %v1649 = vld [vmem:[%s12 + $0x108] sm:$0xf]
  %v1650 = vld [vmem:[%s12 + $0x10c] sm:$0xf]
  %v1651 = vld [vmem:[%s12 + $0x110] sm:$0xf]
  %v1652 = vld [vmem:[%s12 + $0x114] sm:$0xf]
  %v1653 = vld [vmem:[%s12 + $0x118] sm:$0xf]
  %v1654 = vld [vmem:[%s12 + $0x11c] sm:$0xf]
  %v1655 = vld [vmem:[%s12 + $0x120] sm:$0xf]
  %v1656 = vld [vmem:[%s12 + $0x124] sm:$0xf]
  %v1657 = vld [vmem:[%s12 + $0x128] sm:$0xf]
  %v1658 = vld [vmem:[%s12 + $0x12c] sm:$0xf]
  %v1659 = vld [vmem:[%s12 + $0x130] sm:$0xf]
  %v1660 = vld [vmem:[%s12 + $0x134] sm:$0xf]
  %v1661 = vld [vmem:[%s12 + $0x138] sm:$0xf]
  %v1662 = vld [vmem:[%s12 + $0x13c] sm:$0xf]
  %v1663 = vld [vmem:[%s12 + $0x140] sm:$0xf]
  %v1664 = vld [vmem:[%s12 + $0x144] sm:$0xf]
  %v1665 = vld [vmem:[%s12 + $0x148] sm:$0xf]
  %v1666 = vld [vmem:[%s12 + $0x14c] sm:$0xf]
  %v1667 = vld [vmem:[%s12 + $0x150] sm:$0xf]
  %v1668 = vld [vmem:[%s12 + $0x154] sm:$0xf]
  %v1669 = vld [vmem:[%s12 + $0x158] sm:$0xf]
  %v1670 = vld [vmem:[%s12 + $0x15c] sm:$0xf]
  %v1671 = vld [vmem:[%s12 + $0x160] sm:$0xf]
  %v1672 = vld [vmem:[%s12 + $0x164] sm:$0xf]
  %v1673 = vld [vmem:[%s12 + $0x168] sm:$0xf]
  %v1674 = vld [vmem:[%s12 + $0x16c] sm:$0xf]
  %v1675 = vld [vmem:[%s12 + $0x170] sm:$0xf]
  %v1676 = vld [vmem:[%s12 + $0x174] sm:$0xf]
  %v1677 = vld [vmem:[%s12 + $0x178] sm:$0xf]
  %v1678 = vld [vmem:[%s12 + $0x17c] sm:$0xf]
  %v1679 = vld [vmem:[%s12 + $0x180] sm:$0xf]
  %v1680 = vld [vmem:[%s12 + $0x184] sm:$0xf]
  %v1681 = vld [vmem:[%s12 + $0x188] sm:$0xf]
  %v1682 = vld [vmem:[%s12 + $0x18c] sm:$0xf]
  %v1683 = vld [vmem:[%s12 + $0x190] sm:$0xf]
  %v1684 = vld [vmem:[%s12 + $0x194] sm:$0xf]
  %v1685 = vld [vmem:[%s12 + $0x198] sm:$0xf]
  %v1686 = vld [vmem:[%s12 + $0x19c] sm:$0xf]
  %v1687 = vld [vmem:[%s12 + $0x1a0] sm:$0xf]
  %v1688 = vld [vmem:[%s12 + $0x1a4] sm:$0xf]
  %v1689 = vld [vmem:[%s12 + $0x1a8] sm:$0xf]
  %v1690 = vld [vmem:[%s12 + $0x1ac] sm:$0xf]
  %v1691 = vld [vmem:[%s12 + $0x1b0] sm:$0xf]
  %v1692 = vld [vmem:[%s12 + $0x1b4] sm:$0xf]
  %v1693 = vld [vmem:[%s12 + $0x1b8] sm:$0xf]
  %v1694 = vld [vmem:[%s12 + $0x1bc] sm:$0xf]
  %v1695 = vld [vmem:[%s12 + $0x1c0] sm:$0xf]
  %v1696 = vld [vmem:[%s12 + $0x1c4] sm:$0xf]
  %v1697 = vld [vmem:[%s12 + $0x1c8] sm:$0xf]
  %v1698 = vld [vmem:[%s12 + $0x1cc] sm:$0xf]
  %v1699 = vld [vmem:[%s12 + $0x1d0] sm:$0xf]
  %v1700 = vld [vmem:[%s12 + $0x1d4] sm:$0xf]
  %v1701 = vld [vmem:[%s12 + $0x1d8] sm:$0xf]
  %v1702 = vld [vmem:[%s12 + $0x1dc] sm:$0xf]
  %v1703 = vld [vmem:[%s12 + $0x1e0] sm:$0xf]
  %v1704 = vld [vmem:[%s12 + $0x1e4] sm:$0xf]
  %v1705 = vld [vmem:[%s12 + $0x1e8] sm:$0xf]
  %v1706 = vld [vmem:[%s12 + $0x1ec] sm:$0xf]
  %v1707 = vld [vmem:[%s12 + $0x1f0] sm:$0xf]
  %v1708 = vld [vmem:[%s12 + $0x1f4] sm:$0xf]
  %v1709 = vld [vmem:[%s12 + $0x1f8] sm:$0xf]
  %v1710 = vld [vmem:[%s12 + $0x1fc] sm:$0xf]
  %v1775 = vunpack.c.l.b16 %v1647
  %v1776 = vunpack.c.l.b16 %v1648
  %v1777 = vunpack.c.l.b16 %v1649
  %v1778 = vunpack.c.l.b16 %v1650
  %v1779 = vunpack.c.l.b16 %v1651
  %v1780 = vunpack.c.l.b16 %v1652
  %v1781 = vunpack.c.l.b16 %v1653
  %v1782 = vunpack.c.l.b16 %v1654
  %v1783 = vunpack.c.l.b16 %v1655
  %v1784 = vunpack.c.l.b16 %v1656
  %v1785 = vunpack.c.l.b16 %v1657
  %v1786 = vunpack.c.l.b16 %v1658
  %v1787 = vunpack.c.l.b16 %v1659
  %v1788 = vunpack.c.l.b16 %v1660
  %v1789 = vunpack.c.l.b16 %v1661
  %v1790 = vunpack.c.l.b16 %v1662
  %v1791 = vunpack.c.l.b16 %v1663
  %v1792 = vunpack.c.l.b16 %v1664
  %v1793 = vunpack.c.l.b16 %v1665
  %v1794 = vunpack.c.l.b16 %v1666
  %v1795 = vunpack.c.l.b16 %v1667
  %v1796 = vunpack.c.l.b16 %v1668
  %v1797 = vunpack.c.l.b16 %v1669
  %v1798 = vunpack.c.l.b16 %v1670
  %v1799 = vunpack.c.l.b16 %v1671
  %v1800 = vunpack.c.l.b16 %v1672
  %v1801 = vunpack.c.l.b16 %v1673
  %v1802 = vunpack.c.l.b16 %v1674
  %v1803 = vunpack.c.l.b16 %v1675
  %v1804 = vunpack.c.l.b16 %v1676
  %v1805 = vunpack.c.l.b16 %v1677
  %v1806 = vunpack.c.l.b16 %v1678
  %v1807 = vunpack.c.l.b16 %v1679
  %v1808 = vunpack.c.l.b16 %v1680
  %v1809 = vunpack.c.l.b16 %v1681
  %v1810 = vunpack.c.l.b16 %v1682
  %v1811 = vunpack.c.l.b16 %v1683
  %v1812 = vunpack.c.l.b16 %v1684
  %v1813 = vunpack.c.l.b16 %v1685
  %v1814 = vunpack.c.l.b16 %v1686
  %v1815 = vunpack.c.l.b16 %v1687
  %v1816 = vunpack.c.l.b16 %v1688
  %v1817 = vunpack.c.l.b16 %v1689
  %v1818 = vunpack.c.l.b16 %v1690
  %v1819 = vunpack.c.l.b16 %v1691
  %v1820 = vunpack.c.l.b16 %v1692
  %v1821 = vunpack.c.l.b16 %v1693
  %v1822 = vunpack.c.l.b16 %v1694
  %v1823 = vunpack.c.l.b16 %v1695
  %v1824 = vunpack.c.l.b16 %v1696
  %v1825 = vunpack.c.l.b16 %v1697
  %v1826 = vunpack.c.l.b16 %v1698
  %v1827 = vunpack.c.l.b16 %v1699
  %v1828 = vunpack.c.l.b16 %v1700
  %v1829 = vunpack.c.l.b16 %v1701
  %v1830 = vunpack.c.l.b16 %v1702
  %v1831 = vunpack.c.l.b16 %v1703
  %v1832 = vunpack.c.l.b16 %v1704
  %v1833 = vunpack.c.l.b16 %v1705
  %v1834 = vunpack.c.l.b16 %v1706
  %v1835 = vunpack.c.l.b16 %v1707
  %v1836 = vunpack.c.l.b16 %v1708
  %v1837 = vunpack.c.l.b16 %v1709
  %v1838 = vunpack.c.l.b16 %v1710
  %v1839 = vpack.c.b16 %v1776, %v1775
  %v1840 = vpack.c.b16 %v1778, %v1777
  %v1841 = vpack.c.b16 %v1780, %v1779
  %v1842 = vpack.c.b16 %v1782, %v1781
  %v1843 = vpack.c.b16 %v1784, %v1783
  %v1844 = vpack.c.b16 %v1786, %v1785
  %v1845 = vpack.c.b16 %v1788, %v1787
  %v1846 = vpack.c.b16 %v1790, %v1789
  %v1847 = vpack.c.b16 %v1792, %v1791
  %v1848 = vpack.c.b16 %v1794, %v1793
  %v1849 = vpack.c.b16 %v1796, %v1795
  %v1850 = vpack.c.b16 %v1798, %v1797
  %v1851 = vpack.c.b16 %v1800, %v1799
  %v1852 = vpack.c.b16 %v1802, %v1801
  %v1853 = vpack.c.b16 %v1804, %v1803
  %v1854 = vpack.c.b16 %v1806, %v1805
  %v1855 = vpack.c.b16 %v1808, %v1807
  %v1856 = vpack.c.b16 %v1810, %v1809
  %v1857 = vpack.c.b16 %v1812, %v1811
  %v1858 = vpack.c.b16 %v1814, %v1813
  %v1859 = vpack.c.b16 %v1816, %v1815
  %v1860 = vpack.c.b16 %v1818, %v1817
  %v1861 = vpack.c.b16 %v1820, %v1819
  %v1862 = vpack.c.b16 %v1822, %v1821
  %v1863 = vpack.c.b16 %v1824, %v1823
  %v1864 = vpack.c.b16 %v1826, %v1825
  %v1865 = vpack.c.b16 %v1828, %v1827
  %v1866 = vpack.c.b16 %v1830, %v1829
  %v1867 = vpack.c.b16 %v1832, %v1831
  %v1868 = vpack.c.b16 %v1834, %v1833
  %v1869 = vpack.c.b16 %v1836, %v1835
  %v1870 = vpack.c.b16 %v1838, %v1837
  %1903 = vmatprep.subr.bf16.mxu0 0
  %1904 = vmatpush1.bf16.msra.mxu0 %v1839
  %1905 = vmatprep.subr.bf16.mxu0 0
  %1906 = vmatpush1.bf16.msra.mxu0 %v1840
  %1907 = vmatprep.subr.bf16.mxu0 0
  %1908 = vmatpush1.bf16.msra.mxu0 %v1841
  %1909 = vmatprep.subr.bf16.mxu0 0
  %1910 = vmatpush1.bf16.msra.mxu0 %v1842
  %1911 = vmatprep.subr.bf16.mxu0 0
  %1912 = vmatpush1.bf16.msra.mxu0 %v1843
  %1913 = vmatprep.subr.bf16.mxu0 0
  %1914 = vmatpush1.bf16.msra.mxu0 %v1844
  %1915 = vmatprep.subr.bf16.mxu0 0
  %1916 = vmatpush1.bf16.msra.mxu0 %v1845
  %1917 = vmatprep.subr.bf16.mxu0 0
  %1918 = vmatpush1.bf16.msra.mxu0 %v1846
  %1919 = vmatprep.subr.bf16.mxu0 0
  %1920 = vmatpush1.bf16.msra.mxu0 %v1847
  %1921 = vmatprep.subr.bf16.mxu0 0
  %1922 = vmatpush1.bf16.msra.mxu0 %v1848
  %1923 = vmatprep.subr.bf16.mxu0 0
  %1924 = vmatpush1.bf16.msra.mxu0 %v1849
  %1925 = vmatprep.subr.bf16.mxu0 0
  %1926 = vmatpush1.bf16.msra.mxu0 %v1850
  %1927 = vmatprep.subr.bf16.mxu0 0
  %1928 = vmatpush1.bf16.msra.mxu0 %v1851
  %1929 = vmatprep.subr.bf16.mxu0 0
  %1930 = vmatpush1.bf16.msra.mxu0 %v1852
  %1931 = vmatprep.subr.bf16.mxu0 0
  %1932 = vmatpush1.bf16.msra.mxu0 %v1853
  %1933 = vmatprep.subr.bf16.mxu0 0
  %1934 = vmatpush1.bf16.msra.mxu0 %v1854
  %1935 = vmatprep.mubr.bf16.mxu0 %v1644
  %1936 = vmatmul.mubr.bf16.gmra.mrb[0].mxu0 %v1643
  %v1937 = vpop.f32.mrb[0].mxu0
  %v1938 = vadd.f32 0.0, %v1937
  %v1939 = vpop.f32.mrb[0].mxu0
  %v1940 = vpop.f32.mrb[0].mxu0
  %v1941 = vadd.f32 0.0, %v1940
  %v1942 = vpop.f32.mrb[0].mxu0
  %1943 = vdwg.mxu0
  %1944 = vmatprep.subr.bf16.mxu0 0
  %1945 = vmatpush1.bf16.msra.mxu0 %v1855
  %1946 = vmatprep.subr.bf16.mxu0 0
  %1947 = vmatpush1.bf16.msra.mxu0 %v1856
  %1948 = vmatprep.subr.bf16.mxu0 0
  %1949 = vmatpush1.bf16.msra.mxu0 %v1857
  %1950 = vmatprep.subr.bf16.mxu0 0
  %1951 = vmatpush1.bf16.msra.mxu0 %v1858
  %1952 = vmatprep.subr.bf16.mxu0 0
  %1953 = vmatpush1.bf16.msra.mxu0 %v1859
  %1954 = vmatprep.subr.bf16.mxu0 0
  %1955 = vmatpush1.bf16.msra.mxu0 %v1860
  %1956 = vmatprep.subr.bf16.mxu0 0
  %1957 = vmatpush1.bf16.msra.mxu0 %v1861
  %1958 = vmatprep.subr.bf16.mxu0 0
  %1959 = vmatpush1.bf16.msra.mxu0 %v1862
  %1960 = vmatprep.subr.bf16.mxu0 0
  %1961 = vmatpush1.bf16.msra.mxu0 %v1863
  %1962 = vmatprep.subr.bf16.mxu0 0
  %1963 = vmatpush1.bf16.msra.mxu0 %v1864
  %1964 = vmatprep.subr.bf16.mxu0 0
  %1965 = vmatpush1.bf16.msra.mxu0 %v1865
  %1966 = vmatprep.subr.bf16.mxu0 0
  %1967 = vmatpush1.bf16.msra.mxu0 %v1866
  %1968 = vmatprep.subr.bf16.mxu0 0
  %1969 = vmatpush1.bf16.msra.mxu0 %v1867
  %1970 = vmatprep.subr.bf16.mxu0 0
  %1971 = vmatpush1.bf16.msra.mxu0 %v1868
  %1972 = vmatprep.subr.bf16.mxu0 0
  %1973 = vmatpush1.bf16.msra.mxu0 %v1869
  %1974 = vmatprep.subr.bf16.mxu0 0
  %1975 = vmatpush1.bf16.msra.mxu0 %v1870
  %1976 = vmatprep.mubr.bf16.mxu0 %v1646
  %1977 = vmatmul.mubr.bf16.gmra.mrb[0].mxu0 %v1645
  %v1978 = vpop.f32.mrb[0].mxu0
  %v1979 = vadd.f32 %v1938, %v1978
  %v1980 = vpop.f32.mrb[0].mxu0
  %v1981 = vpop.f32.mrb[0].mxu0
  %v1982 = vadd.f32 %v1941, %v1981
  %v1983 = vpop.f32.mrb[0].mxu0
  %1984 = vdwg.mxu0
  %v2049 = vunpack.c.l.b16 %v1415
  %v2050 = vunpack.c.l.b16 %v1416
  %v2051 = vunpack.c.l.b16 %v1417
  %v2052 = vunpack.c.l.b16 %v1418
  %v2053 = vunpack.c.l.b16 %v1419
  %v2054 = vunpack.c.l.b16 %v1420
  %v2055 = vunpack.c.l.b16 %v1421
  %v2056 = vunpack.c.l.b16 %v1422
  %v2057 = vunpack.c.l.b16 %v1423
  %v2058 = vunpack.c.l.b16 %v1424
  %v2059 = vunpack.c.l.b16 %v1425
  %v2060 = vunpack.c.l.b16 %v1426
  %v2061 = vunpack.c.l.b16 %v1427
  %v2062 = vunpack.c.l.b16 %v1428
  %v2063 = vunpack.c.l.b16 %v1429
  %v2064 = vunpack.c.l.b16 %v1430
  %v2065 = vunpack.c.l.b16 %v1431
  %v2066 = vunpack.c.l.b16 %v1432
  %v2067 = vunpack.c.l.b16 %v1433
  %v2068 = vunpack.c.l.b16 %v1434
  %v2069 = vunpack.c.l.b16 %v1435
  %v2070 = vunpack.c.l.b16 %v1436
  %v2071 = vunpack.c.l.b16 %v1437
  %v2072 = vunpack.c.l.b16 %v1438
  %v2073 = vunpack.c.l.b16 %v1439
  %v2074 = vunpack.c.l.b16 %v1440
  %v2075 = vunpack.c.l.b16 %v1441
  %v2076 = vunpack.c.l.b16 %v1442
  %v2077 = vunpack.c.l.b16 %v1443
  %v2078 = vunpack.c.l.b16 %v1444
  %v2079 = vunpack.c.l.b16 %v1445
  %v2080 = vunpack.c.l.b16 %v1446
  %v2081 = vunpack.c.l.b16 %v1447
  %v2082 = vunpack.c.l.b16 %v1448
  %v2083 = vunpack.c.l.b16 %v1449
  %v2084 = vunpack.c.l.b16 %v1450
  %v2085 = vunpack.c.l.b16 %v1451
  %v2086 = vunpack.c.l.b16 %v1452
  %v2087 = vunpack.c.l.b16 %v1453
  %v2088 = vunpack.c.l.b16 %v1454
  %v2089 = vunpack.c.l.b16 %v1455
  %v2090 = vunpack.c.l.b16 %v1456
  %v2091 = vunpack.c.l.b16 %v1457
  %v2092 = vunpack.c.l.b16 %v1458
  %v2093 = vunpack.c.l.b16 %v1459
  %v2094 = vunpack.c.l.b16 %v1460
  %v2095 = vunpack.c.l.b16 %v1461
  %v2096 = vunpack.c.l.b16 %v1462
  %v2097 = vunpack.c.l.b16 %v1463
  %v2098 = vunpack.c.l.b16 %v1464
  %v2099 = vunpack.c.l.b16 %v1465
  %v2100 = vunpack.c.l.b16 %v1466
  %v2101 = vunpack.c.l.b16 %v1467
  %v2102 = vunpack.c.l.b16 %v1468
  %v2103 = vunpack.c.l.b16 %v1469
  %v2104 = vunpack.c.l.b16 %v1470
  %v2105 = vunpack.c.l.b16 %v1471
  %v2106 = vunpack.c.l.b16 %v1472
  %v2107 = vunpack.c.l.b16 %v1473
  %v2108 = vunpack.c.l.b16 %v1474
  %v2109 = vunpack.c.l.b16 %v1475
  %v2110 = vunpack.c.l.b16 %v1476
  %v2111 = vunpack.c.l.b16 %v1477
  %v2112 = vunpack.c.l.b16 %v1478
  %v2113 = vpack.c.b16 %v2050, %v2049
  %v2114 = vpack.c.b16 %v2052, %v2051
  %v2115 = vpack.c.b16 %v2054, %v2053
  %v2116 = vpack.c.b16 %v2056, %v2055
  %v2117 = vpack.c.b16 %v2058, %v2057
  %v2118 = vpack.c.b16 %v2060, %v2059
  %v2119 = vpack.c.b16 %v2062, %v2061
  %v2120 = vpack.c.b16 %v2064, %v2063
  %v2121 = vpack.c.b16 %v2066, %v2065
  %v2122 = vpack.c.b16 %v2068, %v2067
  %v2123 = vpack.c.b16 %v2070, %v2069
  %v2124 = vpack.c.b16 %v2072, %v2071
  %v2125 = vpack.c.b16 %v2074, %v2073
  %v2126 = vpack.c.b16 %v2076, %v2075
  %v2127 = vpack.c.b16 %v2078, %v2077
  %v2128 = vpack.c.b16 %v2080, %v2079
  %v2129 = vpack.c.b16 %v2082, %v2081
  %v2130 = vpack.c.b16 %v2084, %v2083
  %v2131 = vpack.c.b16 %v2086, %v2085
  %v2132 = vpack.c.b16 %v2088, %v2087
  %v2133 = vpack.c.b16 %v2090, %v2089
  %v2134 = vpack.c.b16 %v2092, %v2091
  %v2135 = vpack.c.b16 %v2094, %v2093
  %v2136 = vpack.c.b16 %v2096, %v2095
  %v2137 = vpack.c.b16 %v2098, %v2097
  %v2138 = vpack.c.b16 %v2100, %v2099
  %v2139 = vpack.c.b16 %v2102, %v2101
  %v2140 = vpack.c.b16 %v2104, %v2103
  %v2141 = vpack.c.b16 %v2106, %v2105
  %v2142 = vpack.c.b16 %v2108, %v2107
  %v2143 = vpack.c.b16 %v2110, %v2109
  %v2144 = vpack.c.b16 %v2112, %v2111
  %2177 = vmatprep.subr.bf16.mxu0 0
  %2178 = vmatpush1.bf16.msra.mxu0 %v2113
  %2179 = vmatprep.subr.bf16.mxu0 0
  %2180 = vmatpush1.bf16.msra.mxu0 %v2114
  %2181 = vmatprep.subr.bf16.mxu0 0
  %2182 = vmatpush1.bf16.msra.mxu0 %v2115
  %2183 = vmatprep.subr.bf16.mxu0 0
  %2184 = vmatpush1.bf16.msra.mxu0 %v2116
  %2185 = vmatprep.subr.bf16.mxu0 0
  %2186 = vmatpush1.bf16.msra.mxu0 %v2117
  %2187 = vmatprep.subr.bf16.mxu0 0
  %2188 = vmatpush1.bf16.msra.mxu0 %v2118
  %2189 = vmatprep.subr.bf16.mxu0 0
  %2190 = vmatpush1.bf16.msra.mxu0 %v2119
  %2191 = vmatprep.subr.bf16.mxu0 0
  %2192 = vmatpush1.bf16.msra.mxu0 %v2120
  %2193 = vmatprep.subr.bf16.mxu0 0
  %2194 = vmatpush1.bf16.msra.mxu0 %v2121
  %2195 = vmatprep.subr.bf16.mxu0 0
  %2196 = vmatpush1.bf16.msra.mxu0 %v2122
  %2197 = vmatprep.subr.bf16.mxu0 0
  %2198 = vmatpush1.bf16.msra.mxu0 %v2123
  %2199 = vmatprep.subr.bf16.mxu0 0
  %2200 = vmatpush1.bf16.msra.mxu0 %v2124
  %2201 = vmatprep.subr.bf16.mxu0 0
  %2202 = vmatpush1.bf16.msra.mxu0 %v2125
  %2203 = vmatprep.subr.bf16.mxu0 0
  %2204 = vmatpush1.bf16.msra.mxu0 %v2126
  %2205 = vmatprep.subr.bf16.mxu0 0
  %2206 = vmatpush1.bf16.msra.mxu0 %v2127
  %2207 = vmatprep.subr.bf16.mxu0 0
  %2208 = vmatpush1.bf16.msra.mxu0 %v2128
  %2209 = vmatprep.mubr.bf16.mxu0 %v1412
  %2210 = vmatmul.mubr.bf16.gmra.mrb[0].mxu0 %v1411
  %v2211 = vpop.f32.mrb[0].mxu0
  %v2212 = vadd.f32 %v1979, %v2211
  %v2213 = vpop.f32.mrb[0].mxu0
  %v2214 = vpop.f32.mrb[0].mxu0
  %v2215 = vadd.f32 %v1982, %v2214
  %v2216 = vpop.f32.mrb[0].mxu0
  %2217 = vdwg.mxu0
  %2218 = vmatprep.subr.bf16.mxu0 0
  %2219 = vmatpush1.bf16.msra.mxu0 %v2129
  %2220 = vmatprep.subr.bf16.mxu0 0
  %2221 = vmatpush1.bf16.msra.mxu0 %v2130
  %2222 = vmatprep.subr.bf16.mxu0 0
  %2223 = vmatpush1.bf16.msra.mxu0 %v2131
  %2224 = vmatprep.subr.bf16.mxu0 0
  %2225 = vmatpush1.bf16.msra.mxu0 %v2132
  %2226 = vmatprep.subr.bf16.mxu0 0
  %2227 = vmatpush1.bf16.msra.mxu0 %v2133
  %2228 = vmatprep.subr.bf16.mxu0 0
  %2229 = vmatpush1.bf16.msra.mxu0 %v2134
  %2230 = vmatprep.subr.bf16.mxu0 0
  %2231 = vmatpush1.bf16.msra.mxu0 %v2135
  %2232 = vmatprep.subr.bf16.mxu0 0
  %2233 = vmatpush1.bf16.msra.mxu0 %v2136
  %2234 = vmatprep.subr.bf16.mxu0 0
  %2235 = vmatpush1.bf16.msra.mxu0 %v2137
  %2236 = vmatprep.subr.bf16.mxu0 0
  %2237 = vmatpush1.bf16.msra.mxu0 %v2138
  %2238 = vmatprep.subr.bf16.mxu0 0
  %2239 = vmatpush1.bf16.msra.mxu0 %v2139
  %2240 = vmatprep.subr.bf16.mxu0 0
  %2241 = vmatpush1.bf16.msra.mxu0 %v2140
  %2242 = vmatprep.subr.bf16.mxu0 0
  %2243 = vmatpush1.bf16.msra.mxu0 %v2141
  %2244 = vmatprep.subr.bf16.mxu0 0
  %2245 = vmatpush1.bf16.msra.mxu0 %v2142
  %2246 = vmatprep.subr.bf16.mxu0 0
  %2247 = vmatpush1.bf16.msra.mxu0 %v2143
  %2248 = vmatprep.subr.bf16.mxu0 0
  %2249 = vmatpush1.bf16.msra.mxu0 %v2144
  %2250 = vmatprep.mubr.bf16.mxu0 %v1414
  %2251 = vmatmul.mubr.bf16.gmra.mrb[0].mxu0 %v1413
  %v2252 = vpop.f32.mrb[0].mxu0
  %v2253 = vadd.f32 %v2212, %v2252
  %v2254 = vpop.f32.mrb[0].mxu0
  %v2255 = vpop.f32.mrb[0].mxu0
  %v2256 = vadd.f32 %v2215, %v2255
  %v2257 = vpop.f32.mrb[0].mxu0
  %2258 = vdwg.mxu0
  %v2259 = vld [vmem:[%s10 + $0x20] sm:$0xff]
  %v2260 = vld [vmem:[%s10 + $0x28] sm:$0xff]
  %v2261 = vld [vmem:[%s10 + $0x60] sm:$0xff]
  %v2262 = vld [vmem:[%s10 + $0x68] sm:$0xff]
  %v2263 = vld [vmem:[%s10 + $0xa0] sm:$0xff]
  %v2264 = vld [vmem:[%s10 + $0xa8] sm:$0xff]
  %v2265 = vld [vmem:[%s10 + $0xe0] sm:$0xff]
  %v2266 = vld [vmem:[%s10 + $0xe8] sm:$0xff]
  %v2267 = vld [vmem:[%s11 + $0x8] sm:$0xf]
  %v2269 = vlaneseq
  %v2270 = vshrl.u32 %v2269, 7
  %v2271 = vsub.s32 0, %v2270
  %v2272 = vrot.slane %v2267, %v2271
  %v2273 = vlaneseq
  %v2274 = vshrl.u32 %v2273, 7
  %v2275 = vsub.s32 1, %v2274
  %v2276 = vrot.slane %v2267, %v2275
  %v2277 = vlaneseq
  %v2278 = vshrl.u32 %v2277, 7
  %v2279 = vsub.s32 2, %v2278
  %v2280 = vrot.slane %v2267, %v2279
  %v2281 = vlaneseq
  %v2282 = vshrl.u32 %v2281, 7
  %v2283 = vsub.s32 3, %v2282
  %v2284 = vrot.slane %v2267, %v2283
  %v2297 = vunpack.c.l.b16 %v2259
  %v2298 = vunpack.c.h.b16 %v2259
  %v2299 = vunpack.c.l.b16 %v2260
  %v2300 = vunpack.c.h.b16 %v2260
  %v2301 = vunpack.c.l.b16 %v2261
  %v2302 = vunpack.c.h.b16 %v2261
  %v2303 = vunpack.c.l.b16 %v2262
  %v2304 = vunpack.c.h.b16 %v2262
  %v2305 = vunpack.c.l.b16 %v2263
  %v2306 = vunpack.c.h.b16 %v2263
  %v2307 = vunpack.c.l.b16 %v2264
  %v2308 = vunpack.c.h.b16 %v2264
  %v2309 = vunpack.c.l.b16 %v2265
  %v2310 = vunpack.c.h.b16 %v2265
  %v2311 = vunpack.c.l.b16 %v2266
  %v2312 = vunpack.c.h.b16 %v2266
  %v2313 = vpack.c.b16 %v2301, %v2297
  %v2314 = vpack.c.b16 %v2302, %v2298
  %v2315 = vpack.c.b16 %v2303, %v2299
  %v2316 = vpack.c.b16 %v2304, %v2300
  %v2317 = vpack.c.b16 %v2309, %v2305
  %v2318 = vpack.c.b16 %v2310, %v2306
  %v2319 = vpack.c.b16 %v2311, %v2307
  %v2320 = vpack.c.b16 %v2312, %v2308
  %2329 = vmatprep.subr.bf16.mxu0 %v2314
  %2330 = vmatpush1.bf16.msra.mxu0 %v2313
  %2331 = vmatprep.subr.bf16.mxu0 %v2318
  %2332 = vmatpush1.bf16.msra.mxu0 %v2317
  %2333 = vmatprep.subr.bf16.mxu0 0
  %2334 = vmatpush1.bf16.msra.mxu0 0
  %2335 = vmatprep.subr.bf16.mxu0 0
  %2336 = vmatpush1.bf16.msra.mxu0 0
  %2337 = vmatprep.subr.bf16.mxu0 0
  %2338 = vmatpush1.bf16.msra.mxu0 0
  %2339 = vmatprep.subr.bf16.mxu0 0
  %2340 = vmatpush1.bf16.msra.mxu0 0
  %2341 = vmatprep.subr.bf16.mxu0 0
  %2342 = vmatpush1.bf16.msra.mxu0 0
  %2343 = vmatprep.subr.bf16.mxu0 0
  %2344 = vmatpush1.bf16.msra.mxu0 0
  %2345 = vmatprep.subr.bf16.mxu0 0
  %2346 = vmatpush1.bf16.msra.mxu0 0
  %2347 = vmatprep.subr.bf16.mxu0 0
  %2348 = vmatpush1.bf16.msra.mxu0 0
  %2349 = vmatprep.subr.bf16.mxu0 0
  %2350 = vmatpush1.bf16.msra.mxu0 0
  %2351 = vmatprep.subr.bf16.mxu0 0
  %2352 = vmatpush1.bf16.msra.mxu0 0
  %2353 = vmatprep.subr.bf16.mxu0 0
  %2354 = vmatpush1.bf16.msra.mxu0 0
  %2355 = vmatprep.subr.bf16.mxu0 0
  %2356 = vmatpush1.bf16.msra.mxu0 0
  %2357 = vmatprep.subr.bf16.mxu0 0
  %2358 = vmatpush1.bf16.msra.mxu0 0
  %2359 = vmatprep.subr.bf16.mxu0 0
  %2360 = vmatpush1.bf16.msra.mxu0 0
  %2361 = vmatprep.mubr.bf16.mxu0 0
  %2362 = vmatmul.mubr.bf16.gmra.mrb[0].mxu0 %v1315
  %v2363 = vpop.f32.mrb[0].mxu0
  %v2364 = vadd.f32 %v2272, %v2363
  %v2365 = vpop.f32.mrb[0].mxu0
  %v2366 = vadd.f32 %v2276, %v2365
  %v2367 = vpop.f32.mrb[0].mxu0
  %v2368 = vadd.f32 %v2272, %v2367
  %v2369 = vpop.f32.mrb[0].mxu0
  %v2370 = vadd.f32 %v2276, %v2369
  %2371 = vdwg.mxu0
  %2372 = vmatprep.subr.bf16.mxu0 %v2316
  %2373 = vmatpush1.bf16.msra.mxu0 %v2315
  %2374 = vmatprep.subr.bf16.mxu0 %v2320
  %2375 = vmatpush1.bf16.msra.mxu0 %v2319
  %2376 = vmatprep.subr.bf16.mxu0 0
  %2377 = vmatpush1.bf16.msra.mxu0 0
  %2378 = vmatprep.subr.bf16.mxu0 0
  %2379 = vmatpush1.bf16.msra.mxu0 0
  %2380 = vmatprep.subr.bf16.mxu0 0
  %2381 = vmatpush1.bf16.msra.mxu0 0
  %2382 = vmatprep.subr.bf16.mxu0 0
  %2383 = vmatpush1.bf16.msra.mxu0 0
  %2384 = vmatprep.subr.bf16.mxu0 0
  %2385 = vmatpush1.bf16.msra.mxu0 0
  %2386 = vmatprep.subr.bf16.mxu0 0
  %2387 = vmatpush1.bf16.msra.mxu0 0
  %2388 = vmatprep.subr.bf16.mxu0 0
  %2389 = vmatpush1.bf16.msra.mxu0 0
  %2390 = vmatprep.subr.bf16.mxu0 0
  %2391 = vmatpush1.bf16.msra.mxu0 0
  %2392 = vmatprep.subr.bf16.mxu0 0
  %2393 = vmatpush1.bf16.msra.mxu0 0
  %2394 = vmatprep.subr.bf16.mxu0 0
  %2395 = vmatpush1.bf16.msra.mxu0 0
  %2396 = vmatprep.subr.bf16.mxu0 0
  %2397 = vmatpush1.bf16.msra.mxu0 0
  %2398 = vmatprep.subr.bf16.mxu0 0
  %2399 = vmatpush1.bf16.msra.mxu0 0
  %2400 = vmatprep.subr.bf16.mxu0 0
  %2401 = vmatpush1.bf16.msra.mxu0 0
  %2402 = vmatprep.subr.bf16.mxu0 0
  %2403 = vmatpush1.bf16.msra.mxu0 0
  %2404 = vmatprep.mubr.bf16.mxu0 0
  %2405 = vmatmul.mubr.bf16.gmra.mrb[0].mxu0 %v1315
  %v2406 = vpop.f32.mrb[0].mxu0
  %v2407 = vadd.f32 %v2280, %v2406
  %v2408 = vpop.f32.mrb[0].mxu0
  %v2409 = vadd.f32 %v2284, %v2408
  %v2410 = vpop.f32.mrb[0].mxu0
  %v2411 = vadd.f32 %v2280, %v2410
  %v2412 = vpop.f32.mrb[0].mxu0
  %v2413 = vadd.f32 %v2284, %v2412
  %2414 = vdwg.mxu0
  %v2415 = vmax.f32 %v2364, 0.0
  %v2416 = vmax.f32 %v2366, 0.0
  %v2417 = vmax.f32 %v2407, 0.0
  %v2418 = vmax.f32 %v2409, 0.0
  %v2419 = vmax.f32 %v2368, 0.0
  %v2420 = vmax.f32 %v2370, 0.0
  %v2421 = vmax.f32 %v2411, 0.0
  %v2422 = vmax.f32 %v2413, 0.0
  %v2423 = vpack.c.bf16 %v2419, %v2415
  %v2424 = vpack.c.bf16 %v2420, %v2416
  %v2425 = vpack.c.bf16 %v2421, %v2417
  %v2426 = vpack.c.bf16 %v2422, %v2418
  %v2427 = vld [vmem:[%s12 + $0x200] sm:$0xf]
  %v2428 = vld [vmem:[%s12 + $0x204] sm:$0xf]
  %v2429 = vld [vmem:[%s12 + $0x208] sm:$0xf]
  %v2430 = vld [vmem:[%s12 + $0x20c] sm:$0xf]
  %v2431 = vld [vmem:[%s12 + $0x210] sm:$0xf]
  %v2432 = vld [vmem:[%s12 + $0x214] sm:$0xf]
  %v2433 = vld [vmem:[%s12 + $0x218] sm:$0xf]
  %v2434 = vld [vmem:[%s12 + $0x21c] sm:$0xf]
  %v2435 = vld [vmem:[%s12 + $0x220] sm:$0xf]
  %v2436 = vld [vmem:[%s12 + $0x224] sm:$0xf]
  %v2437 = vld [vmem:[%s12 + $0x228] sm:$0xf]
  %v2438 = vld [vmem:[%s12 + $0x22c] sm:$0xf]
  %v2439 = vld [vmem:[%s12 + $0x230] sm:$0xf]
  %v2440 = vld [vmem:[%s12 + $0x234] sm:$0xf]
  %v2441 = vld [vmem:[%s12 + $0x238] sm:$0xf]
  %v2442 = vld [vmem:[%s12 + $0x23c] sm:$0xf]
  %v2443 = vld [vmem:[%s12 + $0x240] sm:$0xf]
  %v2444 = vld [vmem:[%s12 + $0x244] sm:$0xf]
  %v2445 = vld [vmem:[%s12 + $0x248] sm:$0xf]
  %v2446 = vld [vmem:[%s12 + $0x24c] sm:$0xf]
  %v2447 = vld [vmem:[%s12 + $0x250] sm:$0xf]
  %v2448 = vld [vmem:[%s12 + $0x254] sm:$0xf]
  %v2449 = vld [vmem:[%s12 + $0x258] sm:$0xf]
  %v2450 = vld [vmem:[%s12 + $0x25c] sm:$0xf]
  %v2451 = vld [vmem:[%s12 + $0x260] sm:$0xf]
  %v2452 = vld [vmem:[%s12 + $0x264] sm:$0xf]
  %v2453 = vld [vmem:[%s12 + $0x268] sm:$0xf]
  %v2454 = vld [vmem:[%s12 + $0x26c] sm:$0xf]
  %v2455 = vld [vmem:[%s12 + $0x270] sm:$0xf]
  %v2456 = vld [vmem:[%s12 + $0x274] sm:$0xf]
  %v2457 = vld [vmem:[%s12 + $0x278] sm:$0xf]
  %v2458 = vld [vmem:[%s12 + $0x27c] sm:$0xf]
  %v2459 = vld [vmem:[%s12 + $0x280] sm:$0xf]
  %v2460 = vld [vmem:[%s12 + $0x284] sm:$0xf]
  %v2461 = vld [vmem:[%s12 + $0x288] sm:$0xf]
  %v2462 = vld [vmem:[%s12 + $0x28c] sm:$0xf]
  %v2463 = vld [vmem:[%s12 + $0x290] sm:$0xf]
  %v2464 = vld [vmem:[%s12 + $0x294] sm:$0xf]
  %v2465 = vld [vmem:[%s12 + $0x298] sm:$0xf]
  %v2466 = vld [vmem:[%s12 + $0x29c] sm:$0xf]
  %v2467 = vld [vmem:[%s12 + $0x2a0] sm:$0xf]
  %v2468 = vld [vmem:[%s12 + $0x2a4] sm:$0xf]
  %v2469 = vld [vmem:[%s12 + $0x2a8] sm:$0xf]
  %v2470 = vld [vmem:[%s12 + $0x2ac] sm:$0xf]
  %v2471 = vld [vmem:[%s12 + $0x2b0] sm:$0xf]
  %v2472 = vld [vmem:[%s12 + $0x2b4] sm:$0xf]
  %v2473 = vld [vmem:[%s12 + $0x2b8] sm:$0xf]
  %v2474 = vld [vmem:[%s12 + $0x2bc] sm:$0xf]
  %v2475 = vld [vmem:[%s12 + $0x2c0] sm:$0xf]
  %v2476 = vld [vmem:[%s12 + $0x2c4] sm:$0xf]
  %v2477 = vld [vmem:[%s12 + $0x2c8] sm:$0xf]
  %v2478 = vld [vmem:[%s12 + $0x2cc] sm:$0xf]
  %v2479 = vld [vmem:[%s12 + $0x2d0] sm:$0xf]
  %v2480 = vld [vmem:[%s12 + $0x2d4] sm:$0xf]
  %v2481 = vld [vmem:[%s12 + $0x2d8] sm:$0xf]
  %v2482 = vld [vmem:[%s12 + $0x2dc] sm:$0xf]
  %v2483 = vld [vmem:[%s12 + $0x2e0] sm:$0xf]
  %v2484 = vld [vmem:[%s12 + $0x2e4] sm:$0xf]
  %v2485 = vld [vmem:[%s12 + $0x2e8] sm:$0xf]
  %v2486 = vld [vmem:[%s12 + $0x2ec] sm:$0xf]
  %v2487 = vld [vmem:[%s12 + $0x2f0] sm:$0xf]
  %v2488 = vld [vmem:[%s12 + $0x2f4] sm:$0xf]
  %v2489 = vld [vmem:[%s12 + $0x2f8] sm:$0xf]
  %v2490 = vld [vmem:[%s12 + $0x2fc] sm:$0xf]
  %v2555 = vunpack.c.l.b16 %v2427
  %v2556 = vunpack.c.l.b16 %v2428
  %v2557 = vunpack.c.l.b16 %v2429
  %v2558 = vunpack.c.l.b16 %v2430
  %v2559 = vunpack.c.l.b16 %v2431
  %v2560 = vunpack.c.l.b16 %v2432
  %v2561 = vunpack.c.l.b16 %v2433
  %v2562 = vunpack.c.l.b16 %v2434
  %v2563 = vunpack.c.l.b16 %v2435
  %v2564 = vunpack.c.l.b16 %v2436
  %v2565 = vunpack.c.l.b16 %v2437
  %v2566 = vunpack.c.l.b16 %v2438
  %v2567 = vunpack.c.l.b16 %v2439
  %v2568 = vunpack.c.l.b16 %v2440
  %v2569 = vunpack.c.l.b16 %v2441
  %v2570 = vunpack.c.l.b16 %v2442
  %v2571 = vunpack.c.l.b16 %v2443
  %v2572 = vunpack.c.l.b16 %v2444
  %v2573 = vunpack.c.l.b16 %v2445
  %v2574 = vunpack.c.l.b16 %v2446
  %v2575 = vunpack.c.l.b16 %v2447
  %v2576 = vunpack.c.l.b16 %v2448
  %v2577 = vunpack.c.l.b16 %v2449
  %v2578 = vunpack.c.l.b16 %v2450
  %v2579 = vunpack.c.l.b16 %v2451
  %v2580 = vunpack.c.l.b16 %v2452
  %v2581 = vunpack.c.l.b16 %v2453
  %v2582 = vunpack.c.l.b16 %v2454
  %v2583 = vunpack.c.l.b16 %v2455
  %v2584 = vunpack.c.l.b16 %v2456
  %v2585 = vunpack.c.l.b16 %v2457
  %v2586 = vunpack.c.l.b16 %v2458
  %v2587 = vunpack.c.l.b16 %v2459
  %v2588 = vunpack.c.l.b16 %v2460
  %v2589 = vunpack.c.l.b16 %v2461
  %v2590 = vunpack.c.l.b16 %v2462
  %v2591 = vunpack.c.l.b16 %v2463
  %v2592 = vunpack.c.l.b16 %v2464
  %v2593 = vunpack.c.l.b16 %v2465
  %v2594 = vunpack.c.l.b16 %v2466
  %v2595 = vunpack.c.l.b16 %v2467
  %v2596 = vunpack.c.l.b16 %v2468
  %v2597 = vunpack.c.l.b16 %v2469
  %v2598 = vunpack.c.l.b16 %v2470
  %v2599 = vunpack.c.l.b16 %v2471
  %v2600 = vunpack.c.l.b16 %v2472
  %v2601 = vunpack.c.l.b16 %v2473
  %v2602 = vunpack.c.l.b16 %v2474
  %v2603 = vunpack.c.l.b16 %v2475
  %v2604 = vunpack.c.l.b16 %v2476
  %v2605 = vunpack.c.l.b16 %v2477
  %v2606 = vunpack.c.l.b16 %v2478
  %v2607 = vunpack.c.l.b16 %v2479
  %v2608 = vunpack.c.l.b16 %v2480
  %v2609 = vunpack.c.l.b16 %v2481
  %v2610 = vunpack.c.l.b16 %v2482
  %v2611 = vunpack.c.l.b16 %v2483
  %v2612 = vunpack.c.l.b16 %v2484
  %v2613 = vunpack.c.l.b16 %v2485
  %v2614 = vunpack.c.l.b16 %v2486
  %v2615 = vunpack.c.l.b16 %v2487
  %v2616 = vunpack.c.l.b16 %v2488
  %v2617 = vunpack.c.l.b16 %v2489
  %v2618 = vunpack.c.l.b16 %v2490
  %v2619 = vpack.c.b16 %v2556, %v2555
  %v2620 = vpack.c.b16 %v2558, %v2557
  %v2621 = vpack.c.b16 %v2560, %v2559
  %v2622 = vpack.c.b16 %v2562, %v2561
  %v2623 = vpack.c.b16 %v2564, %v2563
  %v2624 = vpack.c.b16 %v2566, %v2565
  %v2625 = vpack.c.b16 %v2568, %v2567
  %v2626 = vpack.c.b16 %v2570, %v2569
  %v2627 = vpack.c.b16 %v2572, %v2571
  %v2628 = vpack.c.b16 %v2574, %v2573
  %v2629 = vpack.c.b16 %v2576, %v2575
  %v2630 = vpack.c.b16 %v2578, %v2577
  %v2631 = vpack.c.b16 %v2580, %v2579
  %v2632 = vpack.c.b16 %v2582, %v2581
  %v2633 = vpack.c.b16 %v2584, %v2583
  %v2634 = vpack.c.b16 %v2586, %v2585
  %v2635 = vpack.c.b16 %v2588, %v2587
  %v2636 = vpack.c.b16 %v2590, %v2589
  %v2637 = vpack.c.b16 %v2592, %v2591
  %v2638 = vpack.c.b16 %v2594, %v2593
  %v2639 = vpack.c.b16 %v2596, %v2595
  %v2640 = vpack.c.b16 %v2598, %v2597
  %v2641 = vpack.c.b16 %v2600, %v2599
  %v2642 = vpack.c.b16 %v2602, %v2601
  %v2643 = vpack.c.b16 %v2604, %v2603
  %v2644 = vpack.c.b16 %v2606, %v2605
  %v2645 = vpack.c.b16 %v2608, %v2607
  %v2646 = vpack.c.b16 %v2610, %v2609
  %v2647 = vpack.c.b16 %v2612, %v2611
  %v2648 = vpack.c.b16 %v2614, %v2613
  %v2649 = vpack.c.b16 %v2616, %v2615
  %v2650 = vpack.c.b16 %v2618, %v2617
  %2683 = vmatprep.subr.bf16.mxu0 0
  %2684 = vmatpush1.bf16.msra.mxu0 %v2619
  %2685 = vmatprep.subr.bf16.mxu0 0
  %2686 = vmatpush1.bf16.msra.mxu0 %v2620
  %2687 = vmatprep.subr.bf16.mxu0 0
  %2688 = vmatpush1.bf16.msra.mxu0 %v2621
  %2689 = vmatprep.subr.bf16.mxu0 0
  %2690 = vmatpush1.bf16.msra.mxu0 %v2622
  %2691 = vmatprep.subr.bf16.mxu0 0
  %2692 = vmatpush1.bf16.msra.mxu0 %v2623
  %2693 = vmatprep.subr.bf16.mxu0 0
  %2694 = vmatpush1.bf16.msra.mxu0 %v2624
  %2695 = vmatprep.subr.bf16.mxu0 0
  %2696 = vmatpush1.bf16.msra.mxu0 %v2625
  %2697 = vmatprep.subr.bf16.mxu0 0
  %2698 = vmatpush1.bf16.msra.mxu0 %v2626
  %2699 = vmatprep.subr.bf16.mxu0 0
  %2700 = vmatpush1.bf16.msra.mxu0 %v2627
  %2701 = vmatprep.subr.bf16.mxu0 0
  %2702 = vmatpush1.bf16.msra.mxu0 %v2628
  %2703 = vmatprep.subr.bf16.mxu0 0
  %2704 = vmatpush1.bf16.msra.mxu0 %v2629
  %2705 = vmatprep.subr.bf16.mxu0 0
  %2706 = vmatpush1.bf16.msra.mxu0 %v2630
  %2707 = vmatprep.subr.bf16.mxu0 0
  %2708 = vmatpush1.bf16.msra.mxu0 %v2631
  %2709 = vmatprep.subr.bf16.mxu0 0
  %2710 = vmatpush1.bf16.msra.mxu0 %v2632
  %2711 = vmatprep.subr.bf16.mxu0 0
  %2712 = vmatpush1.bf16.msra.mxu0 %v2633
  %2713 = vmatprep.subr.bf16.mxu0 0
  %2714 = vmatpush1.bf16.msra.mxu0 %v2634
  %2715 = vmatprep.mubr.bf16.mxu0 %v2424
  %2716 = vmatmul.mubr.bf16.gmra.mrb[0].mxu0 %v2423
  %v2717 = vpop.f32.mrb[0].mxu0
  %v2718 = vadd.f32 0.0, %v2717
  %v2719 = vpop.f32.mrb[0].mxu0
  %v2720 = vpop.f32.mrb[0].mxu0
  %v2721 = vadd.f32 0.0, %v2720
  %v2722 = vpop.f32.mrb[0].mxu0
  %2723 = vdwg.mxu0
  %2724 = vmatprep.subr.bf16.mxu0 0
  %2725 = vmatpush1.bf16.msra.mxu0 %v2635
  %2726 = vmatprep.subr.bf16.mxu0 0
  %2727 = vmatpush1.bf16.msra.mxu0 %v2636
  %2728 = vmatprep.subr.bf16.mxu0 0
  %2729 = vmatpush1.bf16.msra.mxu0 %v2637
  %2730 = vmatprep.subr.bf16.mxu0 0
  %2731 = vmatpush1.bf16.msra.mxu0 %v2638
  %2732 = vmatprep.subr.bf16.mxu0 0
  %2733 = vmatpush1.bf16.msra.mxu0 %v2639
  %2734 = vmatprep.subr.bf16.mxu0 0
  %2735 = vmatpush1.bf16.msra.mxu0 %v2640
  %2736 = vmatprep.subr.bf16.mxu0 0
  %2737 = vmatpush1.bf16.msra.mxu0 %v2641
  %2738 = vmatprep.subr.bf16.mxu0 0
  %2739 = vmatpush1.bf16.msra.mxu0 %v2642
  %2740 = vmatprep.subr.bf16.mxu0 0
  %2741 = vmatpush1.bf16.msra.mxu0 %v2643
  %2742 = vmatprep.subr.bf16.mxu0 0
  %2743 = vmatpush1.bf16.msra.mxu0 %v2644
  %2744 = vmatprep.subr.bf16.mxu0 0
  %2745 = vmatpush1.bf16.msra.mxu0 %v2645
  %2746 = vmatprep.subr.bf16.mxu0 0
  %2747 = vmatpush1.bf16.msra.mxu0 %v2646
  %2748 = vmatprep.subr.bf16.mxu0 0
  %2749 = vmatpush1.bf16.msra.mxu0 %v2647
  %2750 = vmatprep.subr.bf16.mxu0 0
  %2751 = vmatpush1.bf16.msra.mxu0 %v2648
  %2752 = vmatprep.subr.bf16.mxu0 0
  %2753 = vmatpush1.bf16.msra.mxu0 %v2649
  %2754 = vmatprep.subr.bf16.mxu0 0
  %2755 = vmatpush1.bf16.msra.mxu0 %v2650
  %2756 = vmatprep.mubr.bf16.mxu0 %v2426
  %2757 = vmatmul.mubr.bf16.gmra.mrb[0].mxu0 %v2425
  %v2758 = vpop.f32.mrb[0].mxu0
  %v2759 = vadd.f32 %v2718, %v2758
  %v2760 = vpop.f32.mrb[0].mxu0
  %v2761 = vpop.f32.mrb[0].mxu0
  %v2762 = vadd.f32 %v2721, %v2761
  %v2763 = vpop.f32.mrb[0].mxu0
  %2764 = vdwg.mxu0
  %v2765 = vadd.f32 %v2253, %v2759
  %v2766 = vadd.f32 %v2256, %v2762
  %v2767 = vld [vmem:[%s10 + $0x30] sm:$0xff]
  %v2768 = vld [vmem:[%s10 + $0x38] sm:$0xff]
  %v2769 = vld [vmem:[%s10 + $0x70] sm:$0xff]
  %v2770 = vld [vmem:[%s10 + $0x78] sm:$0xff]
  %v2771 = vld [vmem:[%s10 + $0xb0] sm:$0xff]
  %v2772 = vld [vmem:[%s10 + $0xb8] sm:$0xff]
  %v2773 = vld [vmem:[%s10 + $0xf0] sm:$0xff]
  %v2774 = vld [vmem:[%s10 + $0xf8] sm:$0xff]
  %v2775 = vld [vmem:[%s11 + $0xc] sm:$0xf]
  %v2777 = vlaneseq
  %v2778 = vshrl.u32 %v2777, 7
  %v2779 = vsub.s32 0, %v2778
  %v2780 = vrot.slane %v2775, %v2779
  %v2781 = vlaneseq
  %v2782 = vshrl.u32 %v2781, 7
  %v2783 = vsub.s32 1, %v2782
  %v2784 = vrot.slane %v2775, %v2783
  %v2785 = vlaneseq
  %v2786 = vshrl.u32 %v2785, 7
  %v2787 = vsub.s32 2, %v2786
  %v2788 = vrot.slane %v2775, %v2787
  %v2789 = vlaneseq
  %v2790 = vshrl.u32 %v2789, 7
  %v2791 = vsub.s32 3, %v2790
  %v2792 = vrot.slane %v2775, %v2791
  %v2805 = vunpack.c.l.b16 %v2767
  %v2806 = vunpack.c.h.b16 %v2767
  %v2807 = vunpack.c.l.b16 %v2768
  %v2808 = vunpack.c.h.b16 %v2768
  %v2809 = vunpack.c.l.b16 %v2769
  %v2810 = vunpack.c.h.b16 %v2769
  %v2811 = vunpack.c.l.b16 %v2770
  %v2812 = vunpack.c.h.b16 %v2770
  %v2813 = vunpack.c.l.b16 %v2771
  %v2814 = vunpack.c.h.b16 %v2771
  %v2815 = vunpack.c.l.b16 %v2772
  %v2816 = vunpack.c.h.b16 %v2772
  %v2817 = vunpack.c.l.b16 %v2773
  %v2818 = vunpack.c.h.b16 %v2773
  %v2819 = vunpack.c.l.b16 %v2774
  %v2820 = vunpack.c.h.b16 %v2774
  %v2821 = vpack.c.b16 %v2809, %v2805
  %v2822 = vpack.c.b16 %v2810, %v2806
  %v2823 = vpack.c.b16 %v2811, %v2807
  %v2824 = vpack.c.b16 %v2812, %v2808
  %v2825 = vpack.c.b16 %v2817, %v2813
  %v2826 = vpack.c.b16 %v2818, %v2814
  %v2827 = vpack.c.b16 %v2819, %v2815
  %v2828 = vpack.c.b16 %v2820, %v2816
  %2837 = vmatprep.subr.bf16.mxu0 %v2822
  %2838 = vmatpush1.bf16.msra.mxu0 %v2821
  %2839 = vmatprep.subr.bf16.mxu0 %v2826
  %2840 = vmatpush1.bf16.msra.mxu0 %v2825
  %2841 = vmatprep.subr.bf16.mxu0 0
  %2842 = vmatpush1.bf16.msra.mxu0 0
  %2843 = vmatprep.subr.bf16.mxu0 0
  %2844 = vmatpush1.bf16.msra.mxu0 0
  %2845 = vmatprep.subr.bf16.mxu0 0
  %2846 = vmatpush1.bf16.msra.mxu0 0
  %2847 = vmatprep.subr.bf16.mxu0 0
  %2848 = vmatpush1.bf16.msra.mxu0 0
  %2849 = vmatprep.subr.bf16.mxu0 0
  %2850 = vmatpush1.bf16.msra.mxu0 0
  %2851 = vmatprep.subr.bf16.mxu0 0
  %2852 = vmatpush1.bf16.msra.mxu0 0
  %2853 = vmatprep.subr.bf16.mxu0 0
  %2854 = vmatpush1.bf16.msra.mxu0 0
  %2855 = vmatprep.subr.bf16.mxu0 0
  %2856 = vmatpush1.bf16.msra.mxu0 0
  %2857 = vmatprep.subr.bf16.mxu0 0
  %2858 = vmatpush1.bf16.msra.mxu0 0
  %2859 = vmatprep.subr.bf16.mxu0 0
  %2860 = vmatpush1.bf16.msra.mxu0 0
  %2861 = vmatprep.subr.bf16.mxu0 0
  %2862 = vmatpush1.bf16.msra.mxu0 0
  %2863 = vmatprep.subr.bf16.mxu0 0
  %2864 = vmatpush1.bf16.msra.mxu0 0
  %2865 = vmatprep.subr.bf16.mxu0 0
  %2866 = vmatpush1.bf16.msra.mxu0 0
  %2867 = vmatprep.subr.bf16.mxu0 0
  %2868 = vmatpush1.bf16.msra.mxu0 0
  %2869 = vmatprep.mubr.bf16.mxu0 0
  %2870 = vmatmul.mubr.bf16.gmra.mrb[0].mxu0 %v1315
  %v2871 = vpop.f32.mrb[0].mxu0
  %v2872 = vadd.f32 %v2780, %v2871
  %v2873 = vpop.f32.mrb[0].mxu0
  %v2874 = vadd.f32 %v2784, %v2873
  %v2875 = vpop.f32.mrb[0].mxu0
  %v2876 = vadd.f32 %v2780, %v2875
  %v2877 = vpop.f32.mrb[0].mxu0
  %v2878 = vadd.f32 %v2784, %v2877
  %2879 = vdwg.mxu0
  %2880 = vmatprep.subr.bf16.mxu0 %v2824
  %2881 = vmatpush1.bf16.msra.mxu0 %v2823
  %2882 = vmatprep.subr.bf16.mxu0 %v2828
  %2883 = vmatpush1.bf16.msra.mxu0 %v2827
  %2884 = vmatprep.subr.bf16.mxu0 0
  %2885 = vmatpush1.bf16.msra.mxu0 0
  %2886 = vmatprep.subr.bf16.mxu0 0
  %2887 = vmatpush1.bf16.msra.mxu0 0
  %2888 = vmatprep.subr.bf16.mxu0 0
  %2889 = vmatpush1.bf16.msra.mxu0 0
  %2890 = vmatprep.subr.bf16.mxu0 0
  %2891 = vmatpush1.bf16.msra.mxu0 0
  %2892 = vmatprep.subr.bf16.mxu0 0
  %2893 = vmatpush1.bf16.msra.mxu0 0
  %2894 = vmatprep.subr.bf16.mxu0 0
  %2895 = vmatpush1.bf16.msra.mxu0 0
  %2896 = vmatprep.subr.bf16.mxu0 0
  %2897 = vmatpush1.bf16.msra.mxu0 0
  %2898 = vmatprep.subr.bf16.mxu0 0
  %2899 = vmatpush1.bf16.msra.mxu0 0
  %2900 = vmatprep.subr.bf16.mxu0 0
  %2901 = vmatpush1.bf16.msra.mxu0 0
  %2902 = vmatprep.subr.bf16.mxu0 0
  %2903 = vmatpush1.bf16.msra.mxu0 0
  %2904 = vmatprep.subr.bf16.mxu0 0
  %2905 = vmatpush1.bf16.msra.mxu0 0
  %2906 = vmatprep.subr.bf16.mxu0 0
  %2907 = vmatpush1.bf16.msra.mxu0 0
  %2908 = vmatprep.subr.bf16.mxu0 0
  %2909 = vmatpush1.bf16.msra.mxu0 0
  %2910 = vmatprep.subr.bf16.mxu0 0
  %2911 = vmatpush1.bf16.msra.mxu0 0
  %2912 = vmatprep.mubr.bf16.mxu0 0
  %2913 = vmatmul.mubr.bf16.gmra.mrb[0].mxu0 %v1315
  %v2914 = vpop.f32.mrb[0].mxu0
  %v2915 = vadd.f32 %v2788, %v2914
  %v2916 = vpop.f32.mrb[0].mxu0
  %v2917 = vadd.f32 %v2792, %v2916
  %v2918 = vpop.f32.mrb[0].mxu0
  %v2919 = vadd.f32 %v2788, %v2918
  %v2920 = vpop.f32.mrb[0].mxu0
  %v2921 = vadd.f32 %v2792, %v2920
  %2922 = vdwg.mxu0
  %v2923 = vmax.f32 %v2872, 0.0
  %v2924 = vmax.f32 %v2874, 0.0
  %v2925 = vmax.f32 %v2915, 0.0
  %v2926 = vmax.f32 %v2917, 0.0
  %v2927 = vmax.f32 %v2876, 0.0
  %v2928 = vmax.f32 %v2878, 0.0
  %v2929 = vmax.f32 %v2919, 0.0
  %v2930 = vmax.f32 %v2921, 0.0
  %v2931 = vpack.c.bf16 %v2927, %v2923
  %v2932 = vpack.c.bf16 %v2928, %v2924
  %v2933 = vpack.c.bf16 %v2929, %v2925
  %v2934 = vpack.c.bf16 %v2930, %v2926
  %v2935 = vld [vmem:[%s12 + $0x300] sm:$0xf]
  %v2936 = vld [vmem:[%s12 + $0x304] sm:$0xf]
  %v2937 = vld [vmem:[%s12 + $0x308] sm:$0xf]
  %v2938 = vld [vmem:[%s12 + $0x30c] sm:$0xf]
  %v2939 = vld [vmem:[%s12 + $0x310] sm:$0xf]
  %v2940 = vld [vmem:[%s12 + $0x314] sm:$0xf]
  %v2941 = vld [vmem:[%s12 + $0x318] sm:$0xf]
  %v2942 = vld [vmem:[%s12 + $0x31c] sm:$0xf]
  %v2943 = vld [vmem:[%s12 + $0x320] sm:$0xf]
  %v2944 = vld [vmem:[%s12 + $0x324] sm:$0xf]
  %v2945 = vld [vmem:[%s12 + $0x328] sm:$0xf]
  %v2946 = vld [vmem:[%s12 + $0x32c] sm:$0xf]
  %v2947 = vld [vmem:[%s12 + $0x330] sm:$0xf]
  %v2948 = vld [vmem:[%s12 + $0x334] sm:$0xf]
  %v2949 = vld [vmem:[%s12 + $0x338] sm:$0xf]
  %v2950 = vld [vmem:[%s12 + $0x33c] sm:$0xf]
  %v2951 = vld [vmem:[%s12 + $0x340] sm:$0xf]
  %v2952 = vld [vmem:[%s12 + $0x344] sm:$0xf]
  %v2953 = vld [vmem:[%s12 + $0x348] sm:$0xf]
  %v2954 = vld [vmem:[%s12 + $0x34c] sm:$0xf]
  %v2955 = vld [vmem:[%s12 + $0x350] sm:$0xf]
  %v2956 = vld [vmem:[%s12 + $0x354] sm:$0xf]
  %v2957 = vld [vmem:[%s12 + $0x358] sm:$0xf]
  %v2958 = vld [vmem:[%s12 + $0x35c] sm:$0xf]
  %v2959 = vld [vmem:[%s12 + $0x360] sm:$0xf]
  %v2960 = vld [vmem:[%s12 + $0x364] sm:$0xf]
  %v2961 = vld [vmem:[%s12 + $0x368] sm:$0xf]
  %v2962 = vld [vmem:[%s12 + $0x36c] sm:$0xf]
  %v2963 = vld [vmem:[%s12 + $0x370] sm:$0xf]
  %v2964 = vld [vmem:[%s12 + $0x374] sm:$0xf]
  %v2965 = vld [vmem:[%s12 + $0x378] sm:$0xf]
  %v2966 = vld [vmem:[%s12 + $0x37c] sm:$0xf]
  %v2967 = vld [vmem:[%s12 + $0x380] sm:$0xf]
  %v2968 = vld [vmem:[%s12 + $0x384] sm:$0xf]
  %v2969 = vld [vmem:[%s12 + $0x388] sm:$0xf]
  %v2970 = vld [vmem:[%s12 + $0x38c] sm:$0xf]
  %v2971 = vld [vmem:[%s12 + $0x390] sm:$0xf]
  %v2972 = vld [vmem:[%s12 + $0x394] sm:$0xf]
  %v2973 = vld [vmem:[%s12 + $0x398] sm:$0xf]
  %v2974 = vld [vmem:[%s12 + $0x39c] sm:$0xf]
  %v2975 = vld [vmem:[%s12 + $0x3a0] sm:$0xf]
  %v2976 = vld [vmem:[%s12 + $0x3a4] sm:$0xf]
  %v2977 = vld [vmem:[%s12 + $0x3a8] sm:$0xf]
  %v2978 = vld [vmem:[%s12 + $0x3ac] sm:$0xf]
  %v2979 = vld [vmem:[%s12 + $0x3b0] sm:$0xf]
  %v2980 = vld [vmem:[%s12 + $0x3b4] sm:$0xf]
  %v2981 = vld [vmem:[%s12 + $0x3b8] sm:$0xf]
  %v2982 = vld [vmem:[%s12 + $0x3bc] sm:$0xf]
  %v2983 = vld [vmem:[%s12 + $0x3c0] sm:$0xf]
  %v2984 = vld [vmem:[%s12 + $0x3c4] sm:$0xf]
  %v2985 = vld [vmem:[%s12 + $0x3c8] sm:$0xf]
  %v2986 = vld [vmem:[%s12 + $0x3cc] sm:$0xf]
  %v2987 = vld [vmem:[%s12 + $0x3d0] sm:$0xf]
  %v2988 = vld [vmem:[%s12 + $0x3d4] sm:$0xf]
  %v2989 = vld [vmem:[%s12 + $0x3d8] sm:$0xf]
  %v2990 = vld [vmem:[%s12 + $0x3dc] sm:$0xf]
  %v2991 = vld [vmem:[%s12 + $0x3e0] sm:$0xf]
  %v2992 = vld [vmem:[%s12 + $0x3e4] sm:$0xf]
  %v2993 = vld [vmem:[%s12 + $0x3e8] sm:$0xf]
  %v2994 = vld [vmem:[%s12 + $0x3ec] sm:$0xf]
  %v2995 = vld [vmem:[%s12 + $0x3f0] sm:$0xf]
  %v2996 = vld [vmem:[%s12 + $0x3f4] sm:$0xf]
  %v2997 = vld [vmem:[%s12 + $0x3f8] sm:$0xf]
  %v2998 = vld [vmem:[%s12 + $0x3fc] sm:$0xf]
  %v3063 = vunpack.c.l.b16 %v2935
  %v3064 = vunpack.c.l.b16 %v2936
  %v3065 = vunpack.c.l.b16 %v2937
  %v3066 = vunpack.c.l.b16 %v2938
  %v3067 = vunpack.c.l.b16 %v2939
  %v3068 = vunpack.c.l.b16 %v2940
  %v3069 = vunpack.c.l.b16 %v2941
  %v3070 = vunpack.c.l.b16 %v2942
  %v3071 = vunpack.c.l.b16 %v2943
  %v3072 = vunpack.c.l.b16 %v2944
  %v3073 = vunpack.c.l.b16 %v2945
  %v3074 = vunpack.c.l.b16 %v2946
  %v3075 = vunpack.c.l.b16 %v2947
  %v3076 = vunpack.c.l.b16 %v2948
  %v3077 = vunpack.c.l.b16 %v2949
  %v3078 = vunpack.c.l.b16 %v2950
  %v3079 = vunpack.c.l.b16 %v2951
  %v3080 = vunpack.c.l.b16 %v2952
  %v3081 = vunpack.c.l.b16 %v2953
  %v3082 = vunpack.c.l.b16 %v2954
  %v3083 = vunpack.c.l.b16 %v2955
  %v3084 = vunpack.c.l.b16 %v2956
  %v3085 = vunpack.c.l.b16 %v2957
  %v3086 = vunpack.c.l.b16 %v2958
  %v3087 = vunpack.c.l.b16 %v2959
  %v3088 = vunpack.c.l.b16 %v2960
  %v3089 = vunpack.c.l.b16 %v2961
  %v3090 = vunpack.c.l.b16 %v2962
  %v3091 = vunpack.c.l.b16 %v2963
  %v3092 = vunpack.c.l.b16 %v2964
  %v3093 = vunpack.c.l.b16 %v2965
  %v3094 = vunpack.c.l.b16 %v2966
  %v3095 = vunpack.c.l.b16 %v2967
  %v3096 = vunpack.c.l.b16 %v2968
  %v3097 = vunpack.c.l.b16 %v2969
  %v3098 = vunpack.c.l.b16 %v2970
  %v3099 = vunpack.c.l.b16 %v2971
  %v3100 = vunpack.c.l.b16 %v2972
  %v3101 = vunpack.c.l.b16 %v2973
  %v3102 = vunpack.c.l.b16 %v2974
  %v3103 = vunpack.c.l.b16 %v2975
  %v3104 = vunpack.c.l.b16 %v2976
  %v3105 = vunpack.c.l.b16 %v2977
  %v3106 = vunpack.c.l.b16 %v2978
  %v3107 = vunpack.c.l.b16 %v2979
  %v3108 = vunpack.c.l.b16 %v2980
  %v3109 = vunpack.c.l.b16 %v2981
  %v3110 = vunpack.c.l.b16 %v2982
  %v3111 = vunpack.c.l.b16 %v2983
  %v3112 = vunpack.c.l.b16 %v2984
  %v3113 = vunpack.c.l.b16 %v2985
  %v3114 = vunpack.c.l.b16 %v2986
  %v3115 = vunpack.c.l.b16 %v2987
  %v3116 = vunpack.c.l.b16 %v2988
  %v3117 = vunpack.c.l.b16 %v2989
  %v3118 = vunpack.c.l.b16 %v2990
  %v3119 = vunpack.c.l.b16 %v2991
  %v3120 = vunpack.c.l.b16 %v2992
  %v3121 = vunpack.c.l.b16 %v2993
  %v3122 = vunpack.c.l.b16 %v2994
  %v3123 = vunpack.c.l.b16 %v2995
  %v3124 = vunpack.c.l.b16 %v2996
  %v3125 = vunpack.c.l.b16 %v2997
  %v3126 = vunpack.c.l.b16 %v2998
  %v3127 = vpack.c.b16 %v3064, %v3063
  %v3128 = vpack.c.b16 %v3066, %v3065
  %v3129 = vpack.c.b16 %v3068, %v3067
  %v3130 = vpack.c.b16 %v3070, %v3069
  %v3131 = vpack.c.b16 %v3072, %v3071
  %v3132 = vpack.c.b16 %v3074, %v3073
  %v3133 = vpack.c.b16 %v3076, %v3075
  %v3134 = vpack.c.b16 %v3078, %v3077
  %v3135 = vpack.c.b16 %v3080, %v3079
  %v3136 = vpack.c.b16 %v3082, %v3081
  %v3137 = vpack.c.b16 %v3084, %v3083
  %v3138 = vpack.c.b16 %v3086, %v3085
  %v3139 = vpack.c.b16 %v3088, %v3087
  %v3140 = vpack.c.b16 %v3090, %v3089
  %v3141 = vpack.c.b16 %v3092, %v3091
  %v3142 = vpack.c.b16 %v3094, %v3093
  %v3143 = vpack.c.b16 %v3096, %v3095
  %v3144 = vpack.c.b16 %v3098, %v3097
  %v3145 = vpack.c.b16 %v3100, %v3099
  %v3146 = vpack.c.b16 %v3102, %v3101
  %v3147 = vpack.c.b16 %v3104, %v3103
  %v3148 = vpack.c.b16 %v3106, %v3105
  %v3149 = vpack.c.b16 %v3108, %v3107
  %v3150 = vpack.c.b16 %v3110, %v3109
  %v3151 = vpack.c.b16 %v3112, %v3111
  %v3152 = vpack.c.b16 %v3114, %v3113
  %v3153 = vpack.c.b16 %v3116, %v3115
  %v3154 = vpack.c.b16 %v3118, %v3117
  %v3155 = vpack.c.b16 %v3120, %v3119
  %v3156 = vpack.c.b16 %v3122, %v3121
  %v3157 = vpack.c.b16 %v3124, %v3123
  %v3158 = vpack.c.b16 %v3126, %v3125
  %3191 = vmatprep.subr.bf16.mxu0 0
  %3192 = vmatpush1.bf16.msra.mxu0 %v3127
  %3193 = vmatprep.subr.bf16.mxu0 0
  %3194 = vmatpush1.bf16.msra.mxu0 %v3128
  %3195 = vmatprep.subr.bf16.mxu0 0
  %3196 = vmatpush1.bf16.msra.mxu0 %v3129
  %3197 = vmatprep.subr.bf16.mxu0 0
  %3198 = vmatpush1.bf16.msra.mxu0 %v3130
  %3199 = vmatprep.subr.bf16.mxu0 0
  %3200 = vmatpush1.bf16.msra.mxu0 %v3131
  %3201 = vmatprep.subr.bf16.mxu0 0
  %3202 = vmatpush1.bf16.msra.mxu0 %v3132
  %3203 = vmatprep.subr.bf16.mxu0 0
  %3204 = vmatpush1.bf16.msra.mxu0 %v3133
  %3205 = vmatprep.subr.bf16.mxu0 0
  %3206 = vmatpush1.bf16.msra.mxu0 %v3134
  %3207 = vmatprep.subr.bf16.mxu0 0
  %3208 = vmatpush1.bf16.msra.mxu0 %v3135
  %3209 = vmatprep.subr.bf16.mxu0 0
  %3210 = vmatpush1.bf16.msra.mxu0 %v3136
  %3211 = vmatprep.subr.bf16.mxu0 0
  %3212 = vmatpush1.bf16.msra.mxu0 %v3137
  %3213 = vmatprep.subr.bf16.mxu0 0
  %3214 = vmatpush1.bf16.msra.mxu0 %v3138
  %3215 = vmatprep.subr.bf16.mxu0 0
  %3216 = vmatpush1.bf16.msra.mxu0 %v3139
  %3217 = vmatprep.subr.bf16.mxu0 0
  %3218 = vmatpush1.bf16.msra.mxu0 %v3140
  %3219 = vmatprep.subr.bf16.mxu0 0
  %3220 = vmatpush1.bf16.msra.mxu0 %v3141
  %3221 = vmatprep.subr.bf16.mxu0 0
  %3222 = vmatpush1.bf16.msra.mxu0 %v3142
  %3223 = vmatprep.mubr.bf16.mxu0 %v2932
  %3224 = vmatmul.mubr.bf16.gmra.mrb[0].mxu0 %v2931
  %v3225 = vpop.f32.mrb[0].mxu0
  %v3226 = vadd.f32 0.0, %v3225
  %v3227 = vpop.f32.mrb[0].mxu0
  %v3228 = vpop.f32.mrb[0].mxu0
  %v3229 = vadd.f32 0.0, %v3228
  %v3230 = vpop.f32.mrb[0].mxu0
  %3231 = vdwg.mxu0
  %3232 = vmatprep.subr.bf16.mxu0 0
  %3233 = vmatpush1.bf16.msra.mxu0 %v3143
  %3234 = vmatprep.subr.bf16.mxu0 0
  %3235 = vmatpush1.bf16.msra.mxu0 %v3144
  %3236 = vmatprep.subr.bf16.mxu0 0
  %3237 = vmatpush1.bf16.msra.mxu0 %v3145
  %3238 = vmatprep.subr.bf16.mxu0 0
  %3239 = vmatpush1.bf16.msra.mxu0 %v3146
  %3240 = vmatprep.subr.bf16.mxu0 0
  %3241 = vmatpush1.bf16.msra.mxu0 %v3147
  %3242 = vmatprep.subr.bf16.mxu0 0
  %3243 = vmatpush1.bf16.msra.mxu0 %v3148
  %3244 = vmatprep.subr.bf16.mxu0 0
  %3245 = vmatpush1.bf16.msra.mxu0 %v3149
  %3246 = vmatprep.subr.bf16.mxu0 0
  %3247 = vmatpush1.bf16.msra.mxu0 %v3150
  %3248 = vmatprep.subr.bf16.mxu0 0
  %3249 = vmatpush1.bf16.msra.mxu0 %v3151
  %3250 = vmatprep.subr.bf16.mxu0 0
  %3251 = vmatpush1.bf16.msra.mxu0 %v3152
  %3252 = vmatprep.subr.bf16.mxu0 0
  %3253 = vmatpush1.bf16.msra.mxu0 %v3153
  %3254 = vmatprep.subr.bf16.mxu0 0
  %3255 = vmatpush1.bf16.msra.mxu0 %v3154
  %3256 = vmatprep.subr.bf16.mxu0 0
  %3257 = vmatpush1.bf16.msra.mxu0 %v3155
  %3258 = vmatprep.subr.bf16.mxu0 0
  %3259 = vmatpush1.bf16.msra.mxu0 %v3156
  %3260 = vmatprep.subr.bf16.mxu0 0
  %3261 = vmatpush1.bf16.msra.mxu0 %v3157
  %3262 = vmatprep.subr.bf16.mxu0 0
  %3263 = vmatpush1.bf16.msra.mxu0 %v3158
  %3264 = vmatprep.mubr.bf16.mxu0 %v2934
  %3265 = vmatmul.mubr.bf16.gmra.mrb[0].mxu0 %v2933
  %v3266 = vpop.f32.mrb[0].mxu0
  %v3267 = vadd.f32 %v3226, %v3266
  %v3268 = vpop.f32.mrb[0].mxu0
  %v3269 = vpop.f32.mrb[0].mxu0
  %v3270 = vadd.f32 %v3229, %v3269
  %v3271 = vpop.f32.mrb[0].mxu0
  %3272 = vdwg.mxu0
  %v3273 = vadd.f32 %v2765, %v3267
  %v3274 = vadd.f32 %v2766, %v3270
  %v3275 = vld [vmem:[%s13] sm:$0x1]
  %v3277 = vlaneseq
  %v3278 = vshrl.u32 %v3277, 7
  %v3279 = vsub.s32 0, %v3278
  %v3280 = vrot.slane %v3275, %v3279
  %v3282 = vadd.f32 %v3273, %v3280
  %v3283 = vadd.f32 %v3274, %v3280
  %v3284 = vadd.f32 %v1241, %v3282
  %v3285 = vadd.f32 %v1242, %v3283
  %v3286 = vld [vmem:[%s14] sm:$0x1]
  %v3287 = vld [vmem:[%s15] sm:$0x1]
  %v3288 = vsel %vm82, %v3284, 0.0
  %3289 = vadd.xlane.f32.xlu0 %v3288
  %v3290 = vpop.xlane.xlu0 %3289
  %v3291 = vsel %vm82, %v3285, 0.0
  %3292 = vadd.xlane.f32.xlu0 %v3291
  %v3293 = vpop.xlane.xlu0 %3292
  %v3294 = vmul.f32 %v3290, %v1206
  %v3295 = vmul.f32 %v3293, %v1206
  %v3296 = vsub.f32 %v3284, %v3294
  %v3297 = vsub.f32 %v3285, %v3295
  %v3298 = vmul.f32 %v3296, %v3296
  %v3299 = vmul.f32 %v3297, %v3297
  %v3300 = vsel %vm82, %v3298, 0.0
  %3301 = vadd.xlane.f32.xlu0 %v3300
  %v3302 = vpop.xlane.xlu0 %3301
  %v3303 = vsel %vm82, %v3299, 0.0
  %3304 = vadd.xlane.f32.xlu0 %v3303
  %v3305 = vpop.xlane.xlu0 %3304
  %v3306 = vmul.f32 %v3302, %v1206
  %v3307 = vmul.f32 %v3305, %v1206
  %v3308 = vadd.f32 %v3306, 1e-05
  %v3309 = vadd.f32 %v3307, 1e-05
  %v3310 = vrsqrt.pop %v3308
  %v3311 = vrsqrt.pop %v3309
  %v3312 = vmul.f32 %v3296, %v3310
  %v3313 = vmul.f32 %v3297, %v3311
  %v3315 = vlaneseq
  %v3316 = vshrl.u32 %v3315, 7
  %v3317 = vsub.s32 0, %v3316
  %v3318 = vrot.slane %v3286, %v3317
  %v3320 = vmul.f32 %v3312, %v3318
  %v3321 = vmul.f32 %v3313, %v3318
  %v3323 = vlaneseq
  %v3324 = vshrl.u32 %v3323, 7
  %v3325 = vsub.s32 0, %v3324
  %v3326 = vrot.slane %v3287, %v3325
  %v3328 = vadd.f32 %v3320, %v3326
  %v3329 = vadd.f32 %v3321, %v3326
  %s3330 = scalar_lea.vmem %s4, 32
  %v3331 = vld [vmem:[%s3330] sm:$0xff]
  %v3332 = vld [vmem:[%s3330 + $0x8] sm:$0xff]
  %v3333 = vld [vmem:[%s3330 + $0x10] sm:$0xff]
  %v3334 = vld [vmem:[%s3330 + $0x18] sm:$0xff]
  %s3335 = scalar_lea.vmem %s5, 1
  %v3336 = vld [vmem:[%s3335] sm:$0x1]
  %v3338 = vlaneseq
  %v3339 = vshrl.u32 %v3338, 7
  %v3340 = vsub.s32 0, %v3339
  %v3341 = vrot.slane %v3336, %v3340
  %v3344 = vsel %vm82, %v3328, 0
  %v3347 = vsel %vm82, %v3329, 0
  %3349 = vmatprep.subr.mxu0 0.0
  %3350 = vmatpush1.msra.mxu0 %v3331
  %3351 = vmatprep.subr.mxu0 0.0
  %3352 = vmatpush1.msra.mxu0 %v3332
  %3353 = vmatprep.subr.mxu0 0.0
  %3354 = vmatpush1.msra.mxu0 %v3333
  %3355 = vmatprep.subr.mxu0 0.0
  %3356 = vmatpush1.msra.mxu0 %v3334
  %3357 = vmatprep.subr.mxu0 0.0
  %3358 = vmatpush1.msra.mxu0 0.0
  %3359 = vmatprep.subr.mxu0 0.0
  %3360 = vmatpush1.msra.mxu0 0.0
  %3361 = vmatprep.subr.mxu0 0.0
  %3362 = vmatpush1.msra.mxu0 0.0
  %3363 = vmatprep.subr.mxu0 0.0
  %3364 = vmatpush1.msra.mxu0 0.0
  %3365 = vmatprep.subr.mxu0 0.0
  %3366 = vmatpush1.msra.mxu0 0.0
  %3367 = vmatprep.subr.mxu0 0.0
  %3368 = vmatpush1.msra.mxu0 0.0
  %3369 = vmatprep.subr.mxu0 0.0
  %3370 = vmatpush1.msra.mxu0 0.0
  %3371 = vmatprep.subr.mxu0 0.0
  %3372 = vmatpush1.msra.mxu0 0.0
  %3373 = vmatprep.subr.mxu0 0.0
  %3374 = vmatpush1.msra.mxu0 0.0
  %3375 = vmatprep.subr.mxu0 0.0
  %3376 = vmatpush1.msra.mxu0 0.0
  %3377 = vmatprep.subr.mxu0 0.0
  %3378 = vmatpush1.msra.mxu0 0.0
  %3379 = vmatprep.subr.mxu0 0.0
  %3380 = vmatpush1.msra.mxu0 0.0
  %3381 = vmatprep.subr.mxu0 0.0
  %3382 = vmatpush1.msra.mxu0 0.0
  %3383 = vmatprep.subr.mxu0 0.0
  %3384 = vmatpush1.msra.mxu0 0.0
  %3385 = vmatprep.subr.mxu0 0.0
  %3386 = vmatpush1.msra.mxu0 0.0
  %3387 = vmatprep.subr.mxu0 0.0
  %3388 = vmatpush1.msra.mxu0 0.0
  %3389 = vmatprep.subr.mxu0 0.0
  %3390 = vmatpush1.msra.mxu0 0.0
  %3391 = vmatprep.subr.mxu0 0.0
  %3392 = vmatpush1.msra.mxu0 0.0
  %3393 = vmatprep.subr.mxu0 0.0
  %3394 = vmatpush1.msra.mxu0 0.0
  %3395 = vmatprep.subr.mxu0 0.0
  %3396 = vmatpush1.msra.mxu0 0.0
  %3397 = vmatprep.subr.mxu0 0.0
  %3398 = vmatpush1.msra.mxu0 0.0
  %3399 = vmatprep.subr.mxu0 0.0
  %3400 = vmatpush1.msra.mxu0 0.0
  %3401 = vmatprep.subr.mxu0 0.0
  %3402 = vmatpush1.msra.mxu0 0.0
  %3403 = vmatprep.subr.mxu0 0.0
  %3404 = vmatpush1.msra.mxu0 0.0
  %3405 = vmatprep.subr.mxu0 0.0
  %3406 = vmatpush1.msra.mxu0 0.0
  %3407 = vmatprep.subr.mxu0 0.0
  %3408 = vmatpush1.msra.mxu0 0.0
  %3409 = vmatprep.subr.mxu0 0.0
  %3410 = vmatpush1.msra.mxu0 0.0
  %3411 = vmatprep.subr.mxu0 0.0
  %3412 = vmatpush1.msra.mxu0 0.0
  %3413 = vmatprep.mubr.f32.mxu0 0.0
  %3414 = vmatmul.mubr.f32.gmra.mrb[0].mxu0 %v3344
  %v3415 = vpop.f32.mrb[0].mxu0
  %v3416 = vadd.f32 %v3341, %v3415
  %v3417 = vpop.f32.mrb[0].mxu0
  %3418 = vmatprep.mubr.f32.mxu0 0.0
  %3419 = vmatmul.mubr.f32.gmra.mrb[0].mxu0 %v3347
  %v3420 = vpop.f32.mrb[0].mxu0
  %v3421 = vadd.f32 %v3341, %v3420
  %v3422 = vpop.f32.mrb[0].mxu0
  %3423 = vdwg.mxu0
  %3426 = vrot.lane.b32.xlu0 %v3416, 96
  %v3427 = vpop.permute.xlu0 %3426
  %3428 = vrot.lane.b32.xlu0 %v3421, 96
  %v3429 = vpop.permute.xlu0 %3428
  %v3430 = vsel %vm279, %v3416, 0
  %v3432 = vsel %vm279, %v3421, 0
  %v3434 = vsel %vm279, %v3427, 0
  %v3436 = vsel %vm279, %v3429, 0
  %3438 = vmatprep.subr.mxu0 0.0
  %3439 = vmatpush1.xpose.msra.mxu0 %v3434
  %3440 = vmatprep.subr.mxu0 0.0
  %3441 = vmatpush1.xpose.msra.mxu0 %v3436
  %3442 = vmatprep.subr.mxu0 0.0
  %3443 = vmatpush1.xpose.msra.mxu0 0.0
  %3444 = vmatprep.subr.mxu0 0.0
  %3445 = vmatpush1.xpose.msra.mxu0 0.0
  %3446 = vmatprep.subr.mxu0 0.0
  %3447 = vmatpush1.xpose.msra.mxu0 0.0
  %3448 = vmatprep.subr.mxu0 0.0
  %3449 = vmatpush1.xpose.msra.mxu0 0.0
  %3450 = vmatprep.subr.mxu0 0.0
  %3451 = vmatpush1.xpose.msra.mxu0 0.0
  %3452 = vmatprep.subr.mxu0 0.0
  %3453 = vmatpush1.xpose.msra.mxu0 0.0
  %3454 = vmatprep.subr.mxu0 0.0
  %3455 = vmatpush1.xpose.msra.mxu0 0.0
  %3456 = vmatprep.subr.mxu0 0.0
  %3457 = vmatpush1.xpose.msra.mxu0 0.0
  %3458 = vmatprep.subr.mxu0 0.0
  %3459 = vmatpush1.xpose.msra.mxu0 0.0
  %3460 = vmatprep.subr.mxu0 0.0
  %3461 = vmatpush1.xpose.msra.mxu0 0.0
  %3462 = vmatprep.subr.mxu0 0.0
  %3463 = vmatpush1.xpose.msra.mxu0 0.0
  %3464 = vmatprep.subr.mxu0 0.0
  %3465 = vmatpush1.xpose.msra.mxu0 0.0
  %3466 = vmatprep.subr.mxu0 0.0
  %3467 = vmatpush1.xpose.msra.mxu0 0.0
  %3468 = vmatprep.subr.mxu0 0.0
  %3469 = vmatpush1.xpose.msra.mxu0 0.0
  %3470 = vmatprep.subr.mxu0 0.0
  %3471 = vmatpush1.xpose.msra.mxu0 0.0
  %3472 = vmatprep.subr.mxu0 0.0
  %3473 = vmatpush1.xpose.msra.mxu0 0.0
  %3474 = vmatprep.subr.mxu0 0.0
  %3475 = vmatpush1.xpose.msra.mxu0 0.0
  %3476 = vmatprep.subr.mxu0 0.0
  %3477 = vmatpush1.xpose.msra.mxu0 0.0
  %3478 = vmatprep.subr.mxu0 0.0
  %3479 = vmatpush1.xpose.msra.mxu0 0.0
  %3480 = vmatprep.subr.mxu0 0.0
  %3481 = vmatpush1.xpose.msra.mxu0 0.0
  %3482 = vmatprep.subr.mxu0 0.0
  %3483 = vmatpush1.xpose.msra.mxu0 0.0
  %3484 = vmatprep.subr.mxu0 0.0
  %3485 = vmatpush1.xpose.msra.mxu0 0.0
  %3486 = vmatprep.subr.mxu0 0.0
  %3487 = vmatpush1.xpose.msra.mxu0 0.0
  %3488 = vmatprep.subr.mxu0 0.0
  %3489 = vmatpush1.xpose.msra.mxu0 0.0
  %3490 = vmatprep.subr.mxu0 0.0
  %3491 = vmatpush1.xpose.msra.mxu0 0.0
  %3492 = vmatprep.subr.mxu0 0.0
  %3493 = vmatpush1.xpose.msra.mxu0 0.0
  %3494 = vmatprep.subr.mxu0 0.0
  %3495 = vmatpush1.xpose.msra.mxu0 0.0
  %3496 = vmatprep.subr.mxu0 0.0
  %3497 = vmatpush1.xpose.msra.mxu0 0.0
  %3498 = vmatprep.subr.mxu0 0.0
  %3499 = vmatpush1.xpose.msra.mxu0 0.0
  %3500 = vmatprep.subr.mxu0 0.0
  %3501 = vmatpush1.xpose.msra.mxu0 0.0
  %3502 = vmatprep.mubr.f32.mxu0 0.0
  %3503 = vmatmul.mubr.f32.gmra.mrb[0].mxu0 %v3430
  %v3504 = vpop.f32.mrb[0].mxu0
  %v3505 = vadd.f32 %v179, %v3504
  %v3506 = vpop.f32.mrb[0].mxu0
  %3507 = vmatprep.mubr.f32.mxu0 0.0
  %3508 = vmatmul.mubr.f32.gmra.mrb[0].mxu0 %v3432
  %v3509 = vpop.f32.mrb[0].mxu0
  %v3510 = vadd.f32 %v180, %v3509
  %v3511 = vpop.f32.mrb[0].mxu0
  %3512 = vdwg.mxu0
  %v3513 = vsel %vm363, %v3505, -inf
  %3514 = vmax.xlane.f32.xlu0 %v3513
  %v3515 = vpop.xlane.xlu0 %3514
  %v3516 = vsel %vm363, %v3510, -inf
  %3517 = vmax.xlane.f32.xlu0 %v3516
  %v3518 = vpop.xlane.xlu0 %3517
  %v3519 = vsub.f32 %v3505, %v3515
  %v3520 = vsub.f32 %v3510, %v3518
  %v3521 = vmul.f32 %v3519, 1.442695
  %v3522 = vpow.pop %v3521
  %v3523 = vmul.f32 %v3520, 1.442695
  %v3524 = vpow.pop %v3523
  %v3525 = vsel %vm363, %v3522, 0.0
  %3526 = vadd.xlane.f32.xlu0 %v3525
  %v3527 = vpop.xlane.xlu0 %3526
  %v3528 = vsel %vm363, %v3524, 0.0
  %3529 = vadd.xlane.f32.xlu0 %v3528
  %v3530 = vpop.xlane.xlu0 %3529
  %3531 = vrot.lane.b32.xlu0 %v3416, 64
  %v3532 = vpop.permute.xlu0 %3531
  %3533 = vrot.lane.b32.xlu0 %v3421, 64
  %v3534 = vpop.permute.xlu0 %3533
  %v3538 = vsel %vm363, %v3522, 0
  %v3541 = vsel %vm363, %v3524, 0
  %3543 = vmatprep.subr.mxu0 0.0
  %3544 = vmatpush1.msra.mxu0 %v3532
  %3545 = vmatprep.subr.mxu0 0.0
  %3546 = vmatpush1.msra.mxu0 %v3534
  %3547 = vmatprep.subr.mxu0 0.0
  %3548 = vmatpush1.msra.mxu0 0.0
  %3549 = vmatprep.subr.mxu0 0.0
  %3550 = vmatpush1.msra.mxu0 0.0
  %3551 = vmatprep.subr.mxu0 0.0
  %3552 = vmatpush1.msra.mxu0 0.0
  %3553 = vmatprep.subr.mxu0 0.0
  %3554 = vmatpush1.msra.mxu0 0.0
  %3555 = vmatprep.subr.mxu0 0.0
  %3556 = vmatpush1.msra.mxu0 0.0
  %3557 = vmatprep.subr.mxu0 0.0
  %3558 = vmatpush1.msra.mxu0 0.0
  %3559 = vmatprep.subr.mxu0 0.0
  %3560 = vmatpush1.msra.mxu0 0.0
  %3561 = vmatprep.subr.mxu0 0.0
  %3562 = vmatpush1.msra.mxu0 0.0
  %3563 = vmatprep.subr.mxu0 0.0
  %3564 = vmatpush1.msra.mxu0 0.0
  %3565 = vmatprep.subr.mxu0 0.0
  %3566 = vmatpush1.msra.mxu0 0.0
  %3567 = vmatprep.subr.mxu0 0.0
  %3568 = vmatpush1.msra.mxu0 0.0
  %3569 = vmatprep.subr.mxu0 0.0
  %3570 = vmatpush1.msra.mxu0 0.0
  %3571 = vmatprep.subr.mxu0 0.0
  %3572 = vmatpush1.msra.mxu0 0.0
  %3573 = vmatprep.subr.mxu0 0.0
  %3574 = vmatpush1.msra.mxu0 0.0
  %3575 = vmatprep.subr.mxu0 0.0
  %3576 = vmatpush1.msra.mxu0 0.0
  %3577 = vmatprep.subr.mxu0 0.0
  %3578 = vmatpush1.msra.mxu0 0.0
  %3579 = vmatprep.subr.mxu0 0.0
  %3580 = vmatpush1.msra.mxu0 0.0
  %3581 = vmatprep.subr.mxu0 0.0
  %3582 = vmatpush1.msra.mxu0 0.0
  %3583 = vmatprep.subr.mxu0 0.0
  %3584 = vmatpush1.msra.mxu0 0.0
  %3585 = vmatprep.subr.mxu0 0.0
  %3586 = vmatpush1.msra.mxu0 0.0
  %3587 = vmatprep.subr.mxu0 0.0
  %3588 = vmatpush1.msra.mxu0 0.0
  %3589 = vmatprep.subr.mxu0 0.0
  %3590 = vmatpush1.msra.mxu0 0.0
  %3591 = vmatprep.subr.mxu0 0.0
  %3592 = vmatpush1.msra.mxu0 0.0
  %3593 = vmatprep.subr.mxu0 0.0
  %3594 = vmatpush1.msra.mxu0 0.0
  %3595 = vmatprep.subr.mxu0 0.0
  %3596 = vmatpush1.msra.mxu0 0.0
  %3597 = vmatprep.subr.mxu0 0.0
  %3598 = vmatpush1.msra.mxu0 0.0
  %3599 = vmatprep.subr.mxu0 0.0
  %3600 = vmatpush1.msra.mxu0 0.0
  %3601 = vmatprep.subr.mxu0 0.0
  %3602 = vmatpush1.msra.mxu0 0.0
  %3603 = vmatprep.subr.mxu0 0.0
  %3604 = vmatpush1.msra.mxu0 0.0
  %3605 = vmatprep.subr.mxu0 0.0
  %3606 = vmatpush1.msra.mxu0 0.0
  %3607 = vmatprep.mubr.f32.mxu0 0.0
  %3608 = vmatmul.mubr.f32.gmra.mrb[0].mxu0 %v3538
  %v3609 = vpop.f32.mrb[0].mxu0
  %v3610 = vadd.f32 0.0, %v3609
  %v3611 = vpop.f32.mrb[0].mxu0
  %3612 = vmatprep.mubr.f32.mxu0 0.0
  %3613 = vmatmul.mubr.f32.gmra.mrb[0].mxu0 %v3541
  %v3614 = vpop.f32.mrb[0].mxu0
  %v3615 = vadd.f32 0.0, %v3614
  %v3616 = vpop.f32.mrb[0].mxu0
  %3617 = vdwg.mxu0
  %v3618 = vrcp.pop %v3527
  %v3619 = vrcp.pop %v3530
  %v3620 = vmul.f32 %v3610, %v3618
  %v3621 = vmul.f32 %v3615, %v3619
  %3622 = vrot.lane.b32.xlu0 %v3416, 120
  %v3623 = vpop.permute.xlu0 %3622
  %3624 = vrot.lane.b32.xlu0 %v3421, 120
  %v3625 = vpop.permute.xlu0 %3624
  %3626 = vrot.lane.b32.xlu0 %v3416, 88
  %v3627 = vpop.permute.xlu0 %3626
  %3628 = vrot.lane.b32.xlu0 %v3421, 88
  %v3629 = vpop.permute.xlu0 %3628
  %v3630 = vsel %vm279, %v3623, 0
  %v3632 = vsel %vm279, %v3625, 0
  %v3634 = vsel %vm279, %v3627, 0
  %v3636 = vsel %vm279, %v3629, 0
  %3638 = vmatprep.subr.mxu0 0.0
  %3639 = vmatpush1.xpose.msra.mxu0 %v3634
  %3640 = vmatprep.subr.mxu0 0.0
  %3641 = vmatpush1.xpose.msra.mxu0 %v3636
  %3642 = vmatprep.subr.mxu0 0.0
  %3643 = vmatpush1.xpose.msra.mxu0 0.0
  %3644 = vmatprep.subr.mxu0 0.0
  %3645 = vmatpush1.xpose.msra.mxu0 0.0
  %3646 = vmatprep.subr.mxu0 0.0
  %3647 = vmatpush1.xpose.msra.mxu0 0.0
  %3648 = vmatprep.subr.mxu0 0.0
  %3649 = vmatpush1.xpose.msra.mxu0 0.0
  %3650 = vmatprep.subr.mxu0 0.0
  %3651 = vmatpush1.xpose.msra.mxu0 0.0
  %3652 = vmatprep.subr.mxu0 0.0
  %3653 = vmatpush1.xpose.msra.mxu0 0.0
  %3654 = vmatprep.subr.mxu0 0.0
  %3655 = vmatpush1.xpose.msra.mxu0 0.0
  %3656 = vmatprep.subr.mxu0 0.0
  %3657 = vmatpush1.xpose.msra.mxu0 0.0
  %3658 = vmatprep.subr.mxu0 0.0
  %3659 = vmatpush1.xpose.msra.mxu0 0.0
  %3660 = vmatprep.subr.mxu0 0.0
  %3661 = vmatpush1.xpose.msra.mxu0 0.0
  %3662 = vmatprep.subr.mxu0 0.0
  %3663 = vmatpush1.xpose.msra.mxu0 0.0
  %3664 = vmatprep.subr.mxu0 0.0
  %3665 = vmatpush1.xpose.msra.mxu0 0.0
  %3666 = vmatprep.subr.mxu0 0.0
  %3667 = vmatpush1.xpose.msra.mxu0 0.0
  %3668 = vmatprep.subr.mxu0 0.0
  %3669 = vmatpush1.xpose.msra.mxu0 0.0
  %3670 = vmatprep.subr.mxu0 0.0
  %3671 = vmatpush1.xpose.msra.mxu0 0.0
  %3672 = vmatprep.subr.mxu0 0.0
  %3673 = vmatpush1.xpose.msra.mxu0 0.0
  %3674 = vmatprep.subr.mxu0 0.0
  %3675 = vmatpush1.xpose.msra.mxu0 0.0
  %3676 = vmatprep.subr.mxu0 0.0
  %3677 = vmatpush1.xpose.msra.mxu0 0.0
  %3678 = vmatprep.subr.mxu0 0.0
  %3679 = vmatpush1.xpose.msra.mxu0 0.0
  %3680 = vmatprep.subr.mxu0 0.0
  %3681 = vmatpush1.xpose.msra.mxu0 0.0
  %3682 = vmatprep.subr.mxu0 0.0
  %3683 = vmatpush1.xpose.msra.mxu0 0.0
  %3684 = vmatprep.subr.mxu0 0.0
  %3685 = vmatpush1.xpose.msra.mxu0 0.0
  %3686 = vmatprep.subr.mxu0 0.0
  %3687 = vmatpush1.xpose.msra.mxu0 0.0
  %3688 = vmatprep.subr.mxu0 0.0
  %3689 = vmatpush1.xpose.msra.mxu0 0.0
  %3690 = vmatprep.subr.mxu0 0.0
  %3691 = vmatpush1.xpose.msra.mxu0 0.0
  %3692 = vmatprep.subr.mxu0 0.0
  %3693 = vmatpush1.xpose.msra.mxu0 0.0
  %3694 = vmatprep.subr.mxu0 0.0
  %3695 = vmatpush1.xpose.msra.mxu0 0.0
  %3696 = vmatprep.subr.mxu0 0.0
  %3697 = vmatpush1.xpose.msra.mxu0 0.0
  %3698 = vmatprep.subr.mxu0 0.0
  %3699 = vmatpush1.xpose.msra.mxu0 0.0
  %3700 = vmatprep.subr.mxu0 0.0
  %3701 = vmatpush1.xpose.msra.mxu0 0.0
  %3702 = vmatprep.mubr.f32.mxu0 0.0
  %3703 = vmatmul.mubr.f32.gmra.mrb[0].mxu0 %v3630
  %v3704 = vpop.f32.mrb[0].mxu0
  %v3705 = vadd.f32 %v179, %v3704
  %v3706 = vpop.f32.mrb[0].mxu0
  %3707 = vmatprep.mubr.f32.mxu0 0.0
  %3708 = vmatmul.mubr.f32.gmra.mrb[0].mxu0 %v3632
  %v3709 = vpop.f32.mrb[0].mxu0
  %v3710 = vadd.f32 %v180, %v3709
  %v3711 = vpop.f32.mrb[0].mxu0
  %3712 = vdwg.mxu0
  %v3713 = vsel %vm363, %v3705, -inf
  %3714 = vmax.xlane.f32.xlu0 %v3713
  %v3715 = vpop.xlane.xlu0 %3714
  %v3716 = vsel %vm363, %v3710, -inf
  %3717 = vmax.xlane.f32.xlu0 %v3716
  %v3718 = vpop.xlane.xlu0 %3717
  %v3719 = vsub.f32 %v3705, %v3715
  %v3720 = vsub.f32 %v3710, %v3718
  %v3721 = vmul.f32 %v3719, 1.442695
  %v3722 = vpow.pop %v3721
  %v3723 = vmul.f32 %v3720, 1.442695
  %v3724 = vpow.pop %v3723
  %v3725 = vsel %vm363, %v3722, 0.0
  %3726 = vadd.xlane.f32.xlu0 %v3725
  %v3727 = vpop.xlane.xlu0 %3726
  %v3728 = vsel %vm363, %v3724, 0.0
  %3729 = vadd.xlane.f32.xlu0 %v3728
  %v3730 = vpop.xlane.xlu0 %3729
  %3731 = vrot.lane.b32.xlu0 %v3416, 56
  %v3732 = vpop.permute.xlu0 %3731
  %3733 = vrot.lane.b32.xlu0 %v3421, 56
  %v3734 = vpop.permute.xlu0 %3733
  %v3738 = vsel %vm363, %v3722, 0
  %v3741 = vsel %vm363, %v3724, 0
  %3743 = vmatprep.subr.mxu0 0.0
  %3744 = vmatpush1.msra.mxu0 %v3732
  %3745 = vmatprep.subr.mxu0 0.0
  %3746 = vmatpush1.msra.mxu0 %v3734
  %3747 = vmatprep.subr.mxu0 0.0
  %3748 = vmatpush1.msra.mxu0 0.0
  %3749 = vmatprep.subr.mxu0 0.0
  %3750 = vmatpush1.msra.mxu0 0.0
  %3751 = vmatprep.subr.mxu0 0.0
  %3752 = vmatpush1.msra.mxu0 0.0
  %3753 = vmatprep.subr.mxu0 0.0
  %3754 = vmatpush1.msra.mxu0 0.0
  %3755 = vmatprep.subr.mxu0 0.0
  %3756 = vmatpush1.msra.mxu0 0.0
  %3757 = vmatprep.subr.mxu0 0.0
  %3758 = vmatpush1.msra.mxu0 0.0
  %3759 = vmatprep.subr.mxu0 0.0
  %3760 = vmatpush1.msra.mxu0 0.0
  %3761 = vmatprep.subr.mxu0 0.0
  %3762 = vmatpush1.msra.mxu0 0.0
  %3763 = vmatprep.subr.mxu0 0.0
  %3764 = vmatpush1.msra.mxu0 0.0
  %3765 = vmatprep.subr.mxu0 0.0
  %3766 = vmatpush1.msra.mxu0 0.0
  %3767 = vmatprep.subr.mxu0 0.0
  %3768 = vmatpush1.msra.mxu0 0.0
  %3769 = vmatprep.subr.mxu0 0.0
  %3770 = vmatpush1.msra.mxu0 0.0
  %3771 = vmatprep.subr.mxu0 0.0
  %3772 = vmatpush1.msra.mxu0 0.0
  %3773 = vmatprep.subr.mxu0 0.0
  %3774 = vmatpush1.msra.mxu0 0.0
  %3775 = vmatprep.subr.mxu0 0.0
  %3776 = vmatpush1.msra.mxu0 0.0
  %3777 = vmatprep.subr.mxu0 0.0
  %3778 = vmatpush1.msra.mxu0 0.0
  %3779 = vmatprep.subr.mxu0 0.0
  %3780 = vmatpush1.msra.mxu0 0.0
  %3781 = vmatprep.subr.mxu0 0.0
  %3782 = vmatpush1.msra.mxu0 0.0
  %3783 = vmatprep.subr.mxu0 0.0
  %3784 = vmatpush1.msra.mxu0 0.0
  %3785 = vmatprep.subr.mxu0 0.0
  %3786 = vmatpush1.msra.mxu0 0.0
  %3787 = vmatprep.subr.mxu0 0.0
  %3788 = vmatpush1.msra.mxu0 0.0
  %3789 = vmatprep.subr.mxu0 0.0
  %3790 = vmatpush1.msra.mxu0 0.0
  %3791 = vmatprep.subr.mxu0 0.0
  %3792 = vmatpush1.msra.mxu0 0.0
  %3793 = vmatprep.subr.mxu0 0.0
  %3794 = vmatpush1.msra.mxu0 0.0
  %3795 = vmatprep.subr.mxu0 0.0
  %3796 = vmatpush1.msra.mxu0 0.0
  %3797 = vmatprep.subr.mxu0 0.0
  %3798 = vmatpush1.msra.mxu0 0.0
  %3799 = vmatprep.subr.mxu0 0.0
  %3800 = vmatpush1.msra.mxu0 0.0
  %3801 = vmatprep.subr.mxu0 0.0
  %3802 = vmatpush1.msra.mxu0 0.0
  %3803 = vmatprep.subr.mxu0 0.0
  %3804 = vmatpush1.msra.mxu0 0.0
  %3805 = vmatprep.subr.mxu0 0.0
  %3806 = vmatpush1.msra.mxu0 0.0
  %3807 = vmatprep.mubr.f32.mxu0 0.0
  %3808 = vmatmul.mubr.f32.gmra.mrb[0].mxu0 %v3738
  %v3809 = vpop.f32.mrb[0].mxu0
  %v3810 = vadd.f32 0.0, %v3809
  %v3811 = vpop.f32.mrb[0].mxu0
  %3812 = vmatprep.mubr.f32.mxu0 0.0
  %3813 = vmatmul.mubr.f32.gmra.mrb[0].mxu0 %v3741
  %v3814 = vpop.f32.mrb[0].mxu0
  %v3815 = vadd.f32 0.0, %v3814
  %v3816 = vpop.f32.mrb[0].mxu0
  %3817 = vdwg.mxu0
  %v3818 = vrcp.pop %v3727
  %v3819 = vrcp.pop %v3730
  %v3820 = vmul.f32 %v3810, %v3818
  %v3821 = vmul.f32 %v3815, %v3819
  %3822 = vrot.lane.b32.xlu0 %v3416, 112
  %v3823 = vpop.permute.xlu0 %3822
  %3824 = vrot.lane.b32.xlu0 %v3421, 112
  %v3825 = vpop.permute.xlu0 %3824
  %3826 = vrot.lane.b32.xlu0 %v3416, 80
  %v3827 = vpop.permute.xlu0 %3826
  %3828 = vrot.lane.b32.xlu0 %v3421, 80
  %v3829 = vpop.permute.xlu0 %3828
  %v3830 = vsel %vm279, %v3823, 0
  %v3832 = vsel %vm279, %v3825, 0
  %v3834 = vsel %vm279, %v3827, 0
  %v3836 = vsel %vm279, %v3829, 0
  %3838 = vmatprep.subr.mxu0 0.0
  %3839 = vmatpush1.xpose.msra.mxu0 %v3834
  %3840 = vmatprep.subr.mxu0 0.0
  %3841 = vmatpush1.xpose.msra.mxu0 %v3836
  %3842 = vmatprep.subr.mxu0 0.0
  %3843 = vmatpush1.xpose.msra.mxu0 0.0
  %3844 = vmatprep.subr.mxu0 0.0
  %3845 = vmatpush1.xpose.msra.mxu0 0.0
  %3846 = vmatprep.subr.mxu0 0.0
  %3847 = vmatpush1.xpose.msra.mxu0 0.0
  %3848 = vmatprep.subr.mxu0 0.0
  %3849 = vmatpush1.xpose.msra.mxu0 0.0
  %3850 = vmatprep.subr.mxu0 0.0
  %3851 = vmatpush1.xpose.msra.mxu0 0.0
  %3852 = vmatprep.subr.mxu0 0.0
  %3853 = vmatpush1.xpose.msra.mxu0 0.0
  %3854 = vmatprep.subr.mxu0 0.0
  %3855 = vmatpush1.xpose.msra.mxu0 0.0
  %3856 = vmatprep.subr.mxu0 0.0
  %3857 = vmatpush1.xpose.msra.mxu0 0.0
  %3858 = vmatprep.subr.mxu0 0.0
  %3859 = vmatpush1.xpose.msra.mxu0 0.0
  %3860 = vmatprep.subr.mxu0 0.0
  %3861 = vmatpush1.xpose.msra.mxu0 0.0
  %3862 = vmatprep.subr.mxu0 0.0
  %3863 = vmatpush1.xpose.msra.mxu0 0.0
  %3864 = vmatprep.subr.mxu0 0.0
  %3865 = vmatpush1.xpose.msra.mxu0 0.0
  %3866 = vmatprep.subr.mxu0 0.0
  %3867 = vmatpush1.xpose.msra.mxu0 0.0
  %3868 = vmatprep.subr.mxu0 0.0
  %3869 = vmatpush1.xpose.msra.mxu0 0.0
  %3870 = vmatprep.subr.mxu0 0.0
  %3871 = vmatpush1.xpose.msra.mxu0 0.0
  %3872 = vmatprep.subr.mxu0 0.0
  %3873 = vmatpush1.xpose.msra.mxu0 0.0
  %3874 = vmatprep.subr.mxu0 0.0
  %3875 = vmatpush1.xpose.msra.mxu0 0.0
  %3876 = vmatprep.subr.mxu0 0.0
  %3877 = vmatpush1.xpose.msra.mxu0 0.0
  %3878 = vmatprep.subr.mxu0 0.0
  %3879 = vmatpush1.xpose.msra.mxu0 0.0
  %3880 = vmatprep.subr.mxu0 0.0
  %3881 = vmatpush1.xpose.msra.mxu0 0.0
  %3882 = vmatprep.subr.mxu0 0.0
  %3883 = vmatpush1.xpose.msra.mxu0 0.0
  %3884 = vmatprep.subr.mxu0 0.0
  %3885 = vmatpush1.xpose.msra.mxu0 0.0
  %3886 = vmatprep.subr.mxu0 0.0
  %3887 = vmatpush1.xpose.msra.mxu0 0.0
  %3888 = vmatprep.subr.mxu0 0.0
  %3889 = vmatpush1.xpose.msra.mxu0 0.0
  %3890 = vmatprep.subr.mxu0 0.0
  %3891 = vmatpush1.xpose.msra.mxu0 0.0
  %3892 = vmatprep.subr.mxu0 0.0
  %3893 = vmatpush1.xpose.msra.mxu0 0.0
  %3894 = vmatprep.subr.mxu0 0.0
  %3895 = vmatpush1.xpose.msra.mxu0 0.0
  %3896 = vmatprep.subr.mxu0 0.0
  %3897 = vmatpush1.xpose.msra.mxu0 0.0
  %3898 = vmatprep.subr.mxu0 0.0
  %3899 = vmatpush1.xpose.msra.mxu0 0.0
  %3900 = vmatprep.subr.mxu0 0.0
  %3901 = vmatpush1.xpose.msra.mxu0 0.0
  %3902 = vmatprep.mubr.f32.mxu0 0.0
  %3903 = vmatmul.mubr.f32.gmra.mrb[0].mxu0 %v3830
  %v3904 = vpop.f32.mrb[0].mxu0
  %v3905 = vadd.f32 %v179, %v3904
  %v3906 = vpop.f32.mrb[0].mxu0
  %3907 = vmatprep.mubr.f32.mxu0 0.0
  %3908 = vmatmul.mubr.f32.gmra.mrb[0].mxu0 %v3832
  %v3909 = vpop.f32.mrb[0].mxu0
  %v3910 = vadd.f32 %v180, %v3909
  %v3911 = vpop.f32.mrb[0].mxu0
  %3912 = vdwg.mxu0
  %v3913 = vsel %vm363, %v3905, -inf
  %3914 = vmax.xlane.f32.xlu0 %v3913
  %v3915 = vpop.xlane.xlu0 %3914
  %v3916 = vsel %vm363, %v3910, -inf
  %3917 = vmax.xlane.f32.xlu0 %v3916
  %v3918 = vpop.xlane.xlu0 %3917
  %v3919 = vsub.f32 %v3905, %v3915
  %v3920 = vsub.f32 %v3910, %v3918
  %v3921 = vmul.f32 %v3919, 1.442695
  %v3922 = vpow.pop %v3921
  %v3923 = vmul.f32 %v3920, 1.442695
  %v3924 = vpow.pop %v3923
  %v3925 = vsel %vm363, %v3922, 0.0
  %3926 = vadd.xlane.f32.xlu0 %v3925
  %v3927 = vpop.xlane.xlu0 %3926
  %v3928 = vsel %vm363, %v3924, 0.0
  %3929 = vadd.xlane.f32.xlu0 %v3928
  %v3930 = vpop.xlane.xlu0 %3929
  %3931 = vrot.lane.b32.xlu0 %v3416, 48
  %v3932 = vpop.permute.xlu0 %3931
  %3933 = vrot.lane.b32.xlu0 %v3421, 48
  %v3934 = vpop.permute.xlu0 %3933
  %v3938 = vsel %vm363, %v3922, 0
  %v3941 = vsel %vm363, %v3924, 0
  %3943 = vmatprep.subr.mxu0 0.0
  %3944 = vmatpush1.msra.mxu0 %v3932
  %3945 = vmatprep.subr.mxu0 0.0
  %3946 = vmatpush1.msra.mxu0 %v3934
  %3947 = vmatprep.subr.mxu0 0.0
  %3948 = vmatpush1.msra.mxu0 0.0
  %3949 = vmatprep.subr.mxu0 0.0
  %3950 = vmatpush1.msra.mxu0 0.0
  %3951 = vmatprep.subr.mxu0 0.0
  %3952 = vmatpush1.msra.mxu0 0.0
  %3953 = vmatprep.subr.mxu0 0.0
  %3954 = vmatpush1.msra.mxu0 0.0
  %3955 = vmatprep.subr.mxu0 0.0
  %3956 = vmatpush1.msra.mxu0 0.0
  %3957 = vmatprep.subr.mxu0 0.0
  %3958 = vmatpush1.msra.mxu0 0.0
  %3959 = vmatprep.subr.mxu0 0.0
  %3960 = vmatpush1.msra.mxu0 0.0
  %3961 = vmatprep.subr.mxu0 0.0
  %3962 = vmatpush1.msra.mxu0 0.0
  %3963 = vmatprep.subr.mxu0 0.0
  %3964 = vmatpush1.msra.mxu0 0.0
  %3965 = vmatprep.subr.mxu0 0.0
  %3966 = vmatpush1.msra.mxu0 0.0
  %3967 = vmatprep.subr.mxu0 0.0
  %3968 = vmatpush1.msra.mxu0 0.0
  %3969 = vmatprep.subr.mxu0 0.0
  %3970 = vmatpush1.msra.mxu0 0.0
  %3971 = vmatprep.subr.mxu0 0.0
  %3972 = vmatpush1.msra.mxu0 0.0
  %3973 = vmatprep.subr.mxu0 0.0
  %3974 = vmatpush1.msra.mxu0 0.0
  %3975 = vmatprep.subr.mxu0 0.0
  %3976 = vmatpush1.msra.mxu0 0.0
  %3977 = vmatprep.subr.mxu0 0.0
  %3978 = vmatpush1.msra.mxu0 0.0
  %3979 = vmatprep.subr.mxu0 0.0
  %3980 = vmatpush1.msra.mxu0 0.0
  %3981 = vmatprep.subr.mxu0 0.0
  %3982 = vmatpush1.msra.mxu0 0.0
  %3983 = vmatprep.subr.mxu0 0.0
  %3984 = vmatpush1.msra.mxu0 0.0
  %3985 = vmatprep.subr.mxu0 0.0
  %3986 = vmatpush1.msra.mxu0 0.0
  %3987 = vmatprep.subr.mxu0 0.0
  %3988 = vmatpush1.msra.mxu0 0.0
  %3989 = vmatprep.subr.mxu0 0.0
  %3990 = vmatpush1.msra.mxu0 0.0
  %3991 = vmatprep.subr.mxu0 0.0
  %3992 = vmatpush1.msra.mxu0 0.0
  %3993 = vmatprep.subr.mxu0 0.0
  %3994 = vmatpush1.msra.mxu0 0.0
  %3995 = vmatprep.subr.mxu0 0.0
  %3996 = vmatpush1.msra.mxu0 0.0
  %3997 = vmatprep.subr.mxu0 0.0
  %3998 = vmatpush1.msra.mxu0 0.0
  %3999 = vmatprep.subr.mxu0 0.0
  %4000 = vmatpush1.msra.mxu0 0.0
  %4001 = vmatprep.subr.mxu0 0.0
  %4002 = vmatpush1.msra.mxu0 0.0
  %4003 = vmatprep.subr.mxu0 0.0
  %4004 = vmatpush1.msra.mxu0 0.0
  %4005 = vmatprep.subr.mxu0 0.0
  %4006 = vmatpush1.msra.mxu0 0.0
  %4007 = vmatprep.mubr.f32.mxu0 0.0
  %4008 = vmatmul.mubr.f32.gmra.mrb[0].mxu0 %v3938
  %v4009 = vpop.f32.mrb[0].mxu0
  %v4010 = vadd.f32 0.0, %v4009
  %v4011 = vpop.f32.mrb[0].mxu0
  %4012 = vmatprep.mubr.f32.mxu0 0.0
  %4013 = vmatmul.mubr.f32.gmra.mrb[0].mxu0 %v3941
  %v4014 = vpop.f32.mrb[0].mxu0
  %v4015 = vadd.f32 0.0, %v4014
  %v4016 = vpop.f32.mrb[0].mxu0
  %4017 = vdwg.mxu0
  %v4018 = vrcp.pop %v3927
  %v4019 = vrcp.pop %v3930
  %v4020 = vmul.f32 %v4010, %v4018
  %v4021 = vmul.f32 %v4015, %v4019
  %4022 = vrot.lane.b32.xlu0 %v3416, 104
  %v4023 = vpop.permute.xlu0 %4022
  %4024 = vrot.lane.b32.xlu0 %v3421, 104
  %v4025 = vpop.permute.xlu0 %4024
  %4026 = vrot.lane.b32.xlu0 %v3416, 72
  %v4027 = vpop.permute.xlu0 %4026
  %4028 = vrot.lane.b32.xlu0 %v3421, 72
  %v4029 = vpop.permute.xlu0 %4028
  %v4030 = vsel %vm279, %v4023, 0
  %v4032 = vsel %vm279, %v4025, 0
  %v4034 = vsel %vm279, %v4027, 0
  %v4036 = vsel %vm279, %v4029, 0
  %4038 = vmatprep.subr.mxu0 0.0
  %4039 = vmatpush1.xpose.msra.mxu0 %v4034
  %4040 = vmatprep.subr.mxu0 0.0
  %4041 = vmatpush1.xpose.msra.mxu0 %v4036
  %4042 = vmatprep.subr.mxu0 0.0
  %4043 = vmatpush1.xpose.msra.mxu0 0.0
  %4044 = vmatprep.subr.mxu0 0.0
  %4045 = vmatpush1.xpose.msra.mxu0 0.0
  %4046 = vmatprep.subr.mxu0 0.0
  %4047 = vmatpush1.xpose.msra.mxu0 0.0
  %4048 = vmatprep.subr.mxu0 0.0
  %4049 = vmatpush1.xpose.msra.mxu0 0.0
  %4050 = vmatprep.subr.mxu0 0.0
  %4051 = vmatpush1.xpose.msra.mxu0 0.0
  %4052 = vmatprep.subr.mxu0 0.0
  %4053 = vmatpush1.xpose.msra.mxu0 0.0
  %4054 = vmatprep.subr.mxu0 0.0
  %4055 = vmatpush1.xpose.msra.mxu0 0.0
  %4056 = vmatprep.subr.mxu0 0.0
  %4057 = vmatpush1.xpose.msra.mxu0 0.0
  %4058 = vmatprep.subr.mxu0 0.0
  %4059 = vmatpush1.xpose.msra.mxu0 0.0
  %4060 = vmatprep.subr.mxu0 0.0
  %4061 = vmatpush1.xpose.msra.mxu0 0.0
  %4062 = vmatprep.subr.mxu0 0.0
  %4063 = vmatpush1.xpose.msra.mxu0 0.0
  %4064 = vmatprep.subr.mxu0 0.0
  %4065 = vmatpush1.xpose.msra.mxu0 0.0
  %4066 = vmatprep.subr.mxu0 0.0
  %4067 = vmatpush1.xpose.msra.mxu0 0.0
  %4068 = vmatprep.subr.mxu0 0.0
  %4069 = vmatpush1.xpose.msra.mxu0 0.0
  %4070 = vmatprep.subr.mxu0 0.0
  %4071 = vmatpush1.xpose.msra.mxu0 0.0
  %4072 = vmatprep.subr.mxu0 0.0
  %4073 = vmatpush1.xpose.msra.mxu0 0.0
  %4074 = vmatprep.subr.mxu0 0.0
  %4075 = vmatpush1.xpose.msra.mxu0 0.0
  %4076 = vmatprep.subr.mxu0 0.0
  %4077 = vmatpush1.xpose.msra.mxu0 0.0
  %4078 = vmatprep.subr.mxu0 0.0
  %4079 = vmatpush1.xpose.msra.mxu0 0.0
  %4080 = vmatprep.subr.mxu0 0.0
  %4081 = vmatpush1.xpose.msra.mxu0 0.0
  %4082 = vmatprep.subr.mxu0 0.0
  %4083 = vmatpush1.xpose.msra.mxu0 0.0
  %4084 = vmatprep.subr.mxu0 0.0
  %4085 = vmatpush1.xpose.msra.mxu0 0.0
  %4086 = vmatprep.subr.mxu0 0.0
  %4087 = vmatpush1.xpose.msra.mxu0 0.0
  %4088 = vmatprep.subr.mxu0 0.0
  %4089 = vmatpush1.xpose.msra.mxu0 0.0
  %4090 = vmatprep.subr.mxu0 0.0
  %4091 = vmatpush1.xpose.msra.mxu0 0.0
  %4092 = vmatprep.subr.mxu0 0.0
  %4093 = vmatpush1.xpose.msra.mxu0 0.0
  %4094 = vmatprep.subr.mxu0 0.0
  %4095 = vmatpush1.xpose.msra.mxu0 0.0
  %4096 = vmatprep.subr.mxu0 0.0
  %4097 = vmatpush1.xpose.msra.mxu0 0.0
  %4098 = vmatprep.subr.mxu0 0.0
  %4099 = vmatpush1.xpose.msra.mxu0 0.0
  %4100 = vmatprep.subr.mxu0 0.0
  %4101 = vmatpush1.xpose.msra.mxu0 0.0
  %4102 = vmatprep.mubr.f32.mxu0 0.0
  %4103 = vmatmul.mubr.f32.gmra.mrb[0].mxu0 %v4030
  %v4104 = vpop.f32.mrb[0].mxu0
  %v4105 = vadd.f32 %v179, %v4104
  %v4106 = vpop.f32.mrb[0].mxu0
  %4107 = vmatprep.mubr.f32.mxu0 0.0
  %4108 = vmatmul.mubr.f32.gmra.mrb[0].mxu0 %v4032
  %v4109 = vpop.f32.mrb[0].mxu0
  %v4110 = vadd.f32 %v180, %v4109
  %v4111 = vpop.f32.mrb[0].mxu0
  %4112 = vdwg.mxu0
  %v4113 = vsel %vm363, %v4105, -inf
  %4114 = vmax.xlane.f32.xlu0 %v4113
  %v4115 = vpop.xlane.xlu0 %4114
  %v4116 = vsel %vm363, %v4110, -inf
  %4117 = vmax.xlane.f32.xlu0 %v4116
  %v4118 = vpop.xlane.xlu0 %4117
  %v4119 = vsub.f32 %v4105, %v4115
  %v4120 = vsub.f32 %v4110, %v4118
  %v4121 = vmul.f32 %v4119, 1.442695
  %v4122 = vpow.pop %v4121
  %v4123 = vmul.f32 %v4120, 1.442695
  %v4124 = vpow.pop %v4123
  %v4125 = vsel %vm363, %v4122, 0.0
  %4126 = vadd.xlane.f32.xlu0 %v4125
  %v4127 = vpop.xlane.xlu0 %4126
  %v4128 = vsel %vm363, %v4124, 0.0
  %4129 = vadd.xlane.f32.xlu0 %v4128
  %v4130 = vpop.xlane.xlu0 %4129
  %4131 = vrot.lane.b32.xlu0 %v3416, 40
  %v4132 = vpop.permute.xlu0 %4131
  %4133 = vrot.lane.b32.xlu0 %v3421, 40
  %v4134 = vpop.permute.xlu0 %4133
  %v4138 = vsel %vm363, %v4122, 0
  %v4141 = vsel %vm363, %v4124, 0
  %4143 = vmatprep.subr.mxu0 0.0
  %4144 = vmatpush1.msra.mxu0 %v4132
  %4145 = vmatprep.subr.mxu0 0.0
  %4146 = vmatpush1.msra.mxu0 %v4134
  %4147 = vmatprep.subr.mxu0 0.0
  %4148 = vmatpush1.msra.mxu0 0.0
  %4149 = vmatprep.subr.mxu0 0.0
  %4150 = vmatpush1.msra.mxu0 0.0
  %4151 = vmatprep.subr.mxu0 0.0
  %4152 = vmatpush1.msra.mxu0 0.0
  %4153 = vmatprep.subr.mxu0 0.0
  %4154 = vmatpush1.msra.mxu0 0.0
  %4155 = vmatprep.subr.mxu0 0.0
  %4156 = vmatpush1.msra.mxu0 0.0
  %4157 = vmatprep.subr.mxu0 0.0
  %4158 = vmatpush1.msra.mxu0 0.0
  %4159 = vmatprep.subr.mxu0 0.0
  %4160 = vmatpush1.msra.mxu0 0.0
  %4161 = vmatprep.subr.mxu0 0.0
  %4162 = vmatpush1.msra.mxu0 0.0
  %4163 = vmatprep.subr.mxu0 0.0
  %4164 = vmatpush1.msra.mxu0 0.0
  %4165 = vmatprep.subr.mxu0 0.0
  %4166 = vmatpush1.msra.mxu0 0.0
  %4167 = vmatprep.subr.mxu0 0.0
  %4168 = vmatpush1.msra.mxu0 0.0
  %4169 = vmatprep.subr.mxu0 0.0
  %4170 = vmatpush1.msra.mxu0 0.0
  %4171 = vmatprep.subr.mxu0 0.0
  %4172 = vmatpush1.msra.mxu0 0.0
  %4173 = vmatprep.subr.mxu0 0.0
  %4174 = vmatpush1.msra.mxu0 0.0
  %4175 = vmatprep.subr.mxu0 0.0
  %4176 = vmatpush1.msra.mxu0 0.0
  %4177 = vmatprep.subr.mxu0 0.0
  %4178 = vmatpush1.msra.mxu0 0.0
  %4179 = vmatprep.subr.mxu0 0.0
  %4180 = vmatpush1.msra.mxu0 0.0
  %4181 = vmatprep.subr.mxu0 0.0
  %4182 = vmatpush1.msra.mxu0 0.0
  %4183 = vmatprep.subr.mxu0 0.0
  %4184 = vmatpush1.msra.mxu0 0.0
  %4185 = vmatprep.subr.mxu0 0.0
  %4186 = vmatpush1.msra.mxu0 0.0
  %4187 = vmatprep.subr.mxu0 0.0
  %4188 = vmatpush1.msra.mxu0 0.0
  %4189 = vmatprep.subr.mxu0 0.0
  %4190 = vmatpush1.msra.mxu0 0.0
  %4191 = vmatprep.subr.mxu0 0.0
  %4192 = vmatpush1.msra.mxu0 0.0
  %4193 = vmatprep.subr.mxu0 0.0
  %4194 = vmatpush1.msra.mxu0 0.0
  %4195 = vmatprep.subr.mxu0 0.0
  %4196 = vmatpush1.msra.mxu0 0.0
  %4197 = vmatprep.subr.mxu0 0.0
  %4198 = vmatpush1.msra.mxu0 0.0
  %4199 = vmatprep.subr.mxu0 0.0
  %4200 = vmatpush1.msra.mxu0 0.0
  %4201 = vmatprep.subr.mxu0 0.0
  %4202 = vmatpush1.msra.mxu0 0.0
  %4203 = vmatprep.subr.mxu0 0.0
  %4204 = vmatpush1.msra.mxu0 0.0
  %4205 = vmatprep.subr.mxu0 0.0
  %4206 = vmatpush1.msra.mxu0 0.0
  %4207 = vmatprep.mubr.f32.mxu0 0.0
  %4208 = vmatmul.mubr.f32.gmra.mrb[0].mxu0 %v4138
  %v4209 = vpop.f32.mrb[0].mxu0
  %v4210 = vadd.f32 0.0, %v4209
  %v4211 = vpop.f32.mrb[0].mxu0
  %4212 = vmatprep.mubr.f32.mxu0 0.0
  %4213 = vmatmul.mubr.f32.gmra.mrb[0].mxu0 %v4141
  %v4214 = vpop.f32.mrb[0].mxu0
  %v4215 = vadd.f32 0.0, %v4214
  %v4216 = vpop.f32.mrb[0].mxu0
  %4217 = vdwg.mxu0
  %v4218 = vrcp.pop %v4127
  %v4219 = vrcp.pop %v4130
  %v4220 = vmul.f32 %v4210, %v4218
  %v4221 = vmul.f32 %v4215, %v4219
  %4224 = vrot.lane.b32.xlu0 %v3820, 8
  %v4225 = vpop.permute.xlu0 %4224
  %4226 = vrot.lane.b32.xlu0 %v3821, 8
  %v4227 = vpop.permute.xlu0 %4226
  %4232 = vrot.lane.b32.xlu0 %v4020, 16
  %v4233 = vpop.permute.xlu0 %4232
  %4234 = vrot.lane.b32.xlu0 %v4021, 16
  %v4235 = vpop.permute.xlu0 %4234
  %4240 = vrot.lane.b32.xlu0 %v4220, 24
  %v4241 = vpop.permute.xlu0 %4240
  %4242 = vrot.lane.b32.xlu0 %v4221, 24
  %v4243 = vpop.permute.xlu0 %4242
  %v4246 = vsel %vm279, %v3620, %v4225
  %v4247 = vsel %vm279, %v3621, %v4227
  %v4248 = vsel %vm363, %v4246, %v4233
  %v4249 = vsel %vm363, %v4247, %v4235
  %v4250 = vsel %vm1101, %v4248, %v4241
  %v4251 = vsel %vm1101, %v4249, %v4243
  %s4252 = scalar_lea.vmem %s6, 32
  %v4253 = vld [vmem:[%s4252] sm:$0xff]
  %v4254 = vld [vmem:[%s4252 + $0x8] sm:$0xff]
  %v4255 = vld [vmem:[%s4252 + $0x10] sm:$0xff]
  %v4256 = vld [vmem:[%s4252 + $0x18] sm:$0xff]
  %s4257 = scalar_lea.vmem %s7, 1
  %v4258 = vld [vmem:[%s4257] sm:$0x1]
  %v4260 = vlaneseq
  %v4261 = vshrl.u32 %v4260, 7
  %v4262 = vsub.s32 0, %v4261
  %v4263 = vrot.slane %v4258, %v4262
  %v4266 = vsel %vm82, %v4250, 0
  %v4269 = vsel %vm82, %v4251, 0
  %4271 = vmatprep.subr.mxu0 0.0
  %4272 = vmatpush1.msra.mxu0 %v4253
  %4273 = vmatprep.subr.mxu0 0.0
  %4274 = vmatpush1.msra.mxu0 %v4254
  %4275 = vmatprep.subr.mxu0 0.0
  %4276 = vmatpush1.msra.mxu0 %v4255
  %4277 = vmatprep.subr.mxu0 0.0
  %4278 = vmatpush1.msra.mxu0 %v4256
  %4279 = vmatprep.subr.mxu0 0.0
  %4280 = vmatpush1.msra.mxu0 0.0
  %4281 = vmatprep.subr.mxu0 0.0
  %4282 = vmatpush1.msra.mxu0 0.0
  %4283 = vmatprep.subr.mxu0 0.0
  %4284 = vmatpush1.msra.mxu0 0.0
  %4285 = vmatprep.subr.mxu0 0.0
  %4286 = vmatpush1.msra.mxu0 0.0
  %4287 = vmatprep.subr.mxu0 0.0
  %4288 = vmatpush1.msra.mxu0 0.0
  %4289 = vmatprep.subr.mxu0 0.0
  %4290 = vmatpush1.msra.mxu0 0.0
  %4291 = vmatprep.subr.mxu0 0.0
  %4292 = vmatpush1.msra.mxu0 0.0
  %4293 = vmatprep.subr.mxu0 0.0
  %4294 = vmatpush1.msra.mxu0 0.0
  %4295 = vmatprep.subr.mxu0 0.0
  %4296 = vmatpush1.msra.mxu0 0.0
  %4297 = vmatprep.subr.mxu0 0.0
  %4298 = vmatpush1.msra.mxu0 0.0
  %4299 = vmatprep.subr.mxu0 0.0
  %4300 = vmatpush1.msra.mxu0 0.0
  %4301 = vmatprep.subr.mxu0 0.0
  %4302 = vmatpush1.msra.mxu0 0.0
  %4303 = vmatprep.subr.mxu0 0.0
  %4304 = vmatpush1.msra.mxu0 0.0
  %4305 = vmatprep.subr.mxu0 0.0
  %4306 = vmatpush1.msra.mxu0 0.0
  %4307 = vmatprep.subr.mxu0 0.0
  %4308 = vmatpush1.msra.mxu0 0.0
  %4309 = vmatprep.subr.mxu0 0.0
  %4310 = vmatpush1.msra.mxu0 0.0
  %4311 = vmatprep.subr.mxu0 0.0
  %4312 = vmatpush1.msra.mxu0 0.0
  %4313 = vmatprep.subr.mxu0 0.0
  %4314 = vmatpush1.msra.mxu0 0.0
  %4315 = vmatprep.subr.mxu0 0.0
  %4316 = vmatpush1.msra.mxu0 0.0
  %4317 = vmatprep.subr.mxu0 0.0
  %4318 = vmatpush1.msra.mxu0 0.0
  %4319 = vmatprep.subr.mxu0 0.0
  %4320 = vmatpush1.msra.mxu0 0.0
  %4321 = vmatprep.subr.mxu0 0.0
  %4322 = vmatpush1.msra.mxu0 0.0
  %4323 = vmatprep.subr.mxu0 0.0
  %4324 = vmatpush1.msra.mxu0 0.0
  %4325 = vmatprep.subr.mxu0 0.0
  %4326 = vmatpush1.msra.mxu0 0.0
  %4327 = vmatprep.subr.mxu0 0.0
  %4328 = vmatpush1.msra.mxu0 0.0
  %4329 = vmatprep.subr.mxu0 0.0
  %4330 = vmatpush1.msra.mxu0 0.0
  %4331 = vmatprep.subr.mxu0 0.0
  %4332 = vmatpush1.msra.mxu0 0.0
  %4333 = vmatprep.subr.mxu0 0.0
  %4334 = vmatpush1.msra.mxu0 0.0
  %4335 = vmatprep.mubr.f32.mxu0 0.0
  %4336 = vmatmul.mubr.f32.gmra.mrb[0].mxu0 %v4266
  %v4337 = vpop.f32.mrb[0].mxu0
  %v4338 = vadd.f32 %v4263, %v4337
  %v4339 = vpop.f32.mrb[0].mxu0
  %4340 = vmatprep.mubr.f32.mxu0 0.0
  %4341 = vmatmul.mubr.f32.gmra.mrb[0].mxu0 %v4269
  %v4342 = vpop.f32.mrb[0].mxu0
  %v4343 = vadd.f32 %v4263, %v4342
  %v4344 = vpop.f32.mrb[0].mxu0
  %4345 = vdwg.mxu0
  %v4346 = vadd.f32 %v3328, %v4338
  %v4347 = vadd.f32 %v3329, %v4343
  %s4348 = scalar_lea.vmem %s8, 1
  %v4349 = vld [vmem:[%s4348] sm:$0x1]
  %s4350 = scalar_lea.vmem %s9, 1
  %v4351 = vld [vmem:[%s4350] sm:$0x1]
  %v4352 = vsel %vm82, %v4346, 0.0
  %4353 = vadd.xlane.f32.xlu0 %v4352
  %v4354 = vpop.xlane.xlu0 %4353
  %v4355 = vsel %vm82, %v4347, 0.0
  %4356 = vadd.xlane.f32.xlu0 %v4355
  %v4357 = vpop.xlane.xlu0 %4356
  %v4358 = vmul.f32 %v4354, %v1206
  %v4359 = vmul.f32 %v4357, %v1206
  %v4360 = vsub.f32 %v4346, %v4358
  %v4361 = vsub.f32 %v4347, %v4359
  %v4362 = vmul.f32 %v4360, %v4360
  %v4363 = vmul.f32 %v4361, %v4361
  %v4364 = vsel %vm82, %v4362, 0.0
  %4365 = vadd.xlane.f32.xlu0 %v4364
  %v4366 = vpop.xlane.xlu0 %4365
  %v4367 = vsel %vm82, %v4363, 0.0
  %4368 = vadd.xlane.f32.xlu0 %v4367
  %v4369 = vpop.xlane.xlu0 %4368
  %v4370 = vmul.f32 %v4366, %v1206
  %v4371 = vmul.f32 %v4369, %v1206
  %v4372 = vadd.f32 %v4370, 1e-05
  %v4373 = vadd.f32 %v4371, 1e-05
  %v4374 = vrsqrt.pop %v4372
  %v4375 = vrsqrt.pop %v4373
  %v4376 = vmul.f32 %v4360, %v4374
  %v4377 = vmul.f32 %v4361, %v4375
  %v4379 = vlaneseq
  %v4380 = vshrl.u32 %v4379, 7
  %v4381 = vsub.s32 0, %v4380
  %v4382 = vrot.slane %v4349, %v4381
  %v4384 = vmul.f32 %v4376, %v4382
  %v4385 = vmul.f32 %v4377, %v4382
  %v4387 = vlaneseq
  %v4388 = vshrl.u32 %v4387, 7
  %v4389 = vsub.s32 0, %v4388
  %v4390 = vrot.slane %v4351, %v4389
  %v4392 = vadd.f32 %v4384, %v4390
  %v4393 = vadd.f32 %v4385, %v4390
  %v4394 = vpack.c.bf16 %v4393, %v4392
  %s4395 = scalar_lea.vmem %s10, 256
  %v4396 = vld [vmem:[%s4395] sm:$0xff]
  %v4397 = vld [vmem:[%s4395 + $0x8] sm:$0xff]
  %v4398 = vld [vmem:[%s4395 + $0x40] sm:$0xff]
  %v4399 = vld [vmem:[%s4395 + $0x48] sm:$0xff]
  %v4400 = vld [vmem:[%s4395 + $0x80] sm:$0xff]
  %v4401 = vld [vmem:[%s4395 + $0x88] sm:$0xff]
  %v4402 = vld [vmem:[%s4395 + $0xc0] sm:$0xff]
  %v4403 = vld [vmem:[%s4395 + $0xc8] sm:$0xff]
  %s4404 = scalar_lea.vmem %s11, 16
  %v4405 = vld [vmem:[%s4404] sm:$0xf]
  %v4407 = vlaneseq
  %v4408 = vshrl.u32 %v4407, 7
  %v4409 = vsub.s32 0, %v4408
  %v4410 = vrot.slane %v4405, %v4409
  %v4411 = vlaneseq
  %v4412 = vshrl.u32 %v4411, 7
  %v4413 = vsub.s32 1, %v4412
  %v4414 = vrot.slane %v4405, %v4413
  %v4415 = vlaneseq
  %v4416 = vshrl.u32 %v4415, 7
  %v4417 = vsub.s32 2, %v4416
  %v4418 = vrot.slane %v4405, %v4417
  %v4419 = vlaneseq
  %v4420 = vshrl.u32 %v4419, 7
  %v4421 = vsub.s32 3, %v4420
  %v4422 = vrot.slane %v4405, %v4421
  %v4435 = vunpack.c.l.b16 %v4396
  %v4436 = vunpack.c.h.b16 %v4396
  %v4437 = vunpack.c.l.b16 %v4397
  %v4438 = vunpack.c.h.b16 %v4397
  %v4439 = vunpack.c.l.b16 %v4398
  %v4440 = vunpack.c.h.b16 %v4398
  %v4441 = vunpack.c.l.b16 %v4399
  %v4442 = vunpack.c.h.b16 %v4399
  %v4443 = vunpack.c.l.b16 %v4400
  %v4444 = vunpack.c.h.b16 %v4400
  %v4445 = vunpack.c.l.b16 %v4401
  %v4446 = vunpack.c.h.b16 %v4401
  %v4447 = vunpack.c.l.b16 %v4402
  %v4448 = vunpack.c.h.b16 %v4402
  %v4449 = vunpack.c.l.b16 %v4403
  %v4450 = vunpack.c.h.b16 %v4403
  %v4451 = vpack.c.b16 %v4439, %v4435
  %v4452 = vpack.c.b16 %v4440, %v4436
  %v4453 = vpack.c.b16 %v4441, %v4437
  %v4454 = vpack.c.b16 %v4442, %v4438
  %v4455 = vpack.c.b16 %v4447, %v4443
  %v4456 = vpack.c.b16 %v4448, %v4444
  %v4457 = vpack.c.b16 %v4449, %v4445
  %v4458 = vpack.c.b16 %v4450, %v4446
  %v4468 = vsel %vm82, %v4394, 0
  %4470 = vmatprep.subr.bf16.mxu0 %v4452
  %4471 = vmatpush1.bf16.msra.mxu0 %v4451
  %4472 = vmatprep.subr.bf16.mxu0 %v4456
  %4473 = vmatpush1.bf16.msra.mxu0 %v4455
  %4474 = vmatprep.subr.bf16.mxu0 0
  %4475 = vmatpush1.bf16.msra.mxu0 0
  %4476 = vmatprep.subr.bf16.mxu0 0
  %4477 = vmatpush1.bf16.msra.mxu0 0
  %4478 = vmatprep.subr.bf16.mxu0 0
  %4479 = vmatpush1.bf16.msra.mxu0 0
  %4480 = vmatprep.subr.bf16.mxu0 0
  %4481 = vmatpush1.bf16.msra.mxu0 0
  %4482 = vmatprep.subr.bf16.mxu0 0
  %4483 = vmatpush1.bf16.msra.mxu0 0
  %4484 = vmatprep.subr.bf16.mxu0 0
  %4485 = vmatpush1.bf16.msra.mxu0 0
  %4486 = vmatprep.subr.bf16.mxu0 0
  %4487 = vmatpush1.bf16.msra.mxu0 0
  %4488 = vmatprep.subr.bf16.mxu0 0
  %4489 = vmatpush1.bf16.msra.mxu0 0
  %4490 = vmatprep.subr.bf16.mxu0 0
  %4491 = vmatpush1.bf16.msra.mxu0 0
  %4492 = vmatprep.subr.bf16.mxu0 0
  %4493 = vmatpush1.bf16.msra.mxu0 0
  %4494 = vmatprep.subr.bf16.mxu0 0
  %4495 = vmatpush1.bf16.msra.mxu0 0
  %4496 = vmatprep.subr.bf16.mxu0 0
  %4497 = vmatpush1.bf16.msra.mxu0 0
  %4498 = vmatprep.subr.bf16.mxu0 0
  %4499 = vmatpush1.bf16.msra.mxu0 0
  %4500 = vmatprep.subr.bf16.mxu0 0
  %4501 = vmatpush1.bf16.msra.mxu0 0
  %4502 = vmatprep.mubr.bf16.mxu0 0
  %4503 = vmatmul.mubr.bf16.gmra.mrb[0].mxu0 %v4468
  %v4504 = vpop.f32.mrb[0].mxu0
  %v4505 = vadd.f32 %v4410, %v4504
  %v4506 = vpop.f32.mrb[0].mxu0
  %v4507 = vadd.f32 %v4414, %v4506
  %v4508 = vpop.f32.mrb[0].mxu0
  %v4509 = vadd.f32 %v4410, %v4508
  %v4510 = vpop.f32.mrb[0].mxu0
  %v4511 = vadd.f32 %v4414, %v4510
  %4512 = vdwg.mxu0
  %4513 = vmatprep.subr.bf16.mxu0 %v4454
  %4514 = vmatpush1.bf16.msra.mxu0 %v4453
  %4515 = vmatprep.subr.bf16.mxu0 %v4458
  %4516 = vmatpush1.bf16.msra.mxu0 %v4457
  %4517 = vmatprep.subr.bf16.mxu0 0
  %4518 = vmatpush1.bf16.msra.mxu0 0
  %4519 = vmatprep.subr.bf16.mxu0 0
  %4520 = vmatpush1.bf16.msra.mxu0 0
  %4521 = vmatprep.subr.bf16.mxu0 0
  %4522 = vmatpush1.bf16.msra.mxu0 0
  %4523 = vmatprep.subr.bf16.mxu0 0
  %4524 = vmatpush1.bf16.msra.mxu0 0
  %4525 = vmatprep.subr.bf16.mxu0 0
  %4526 = vmatpush1.bf16.msra.mxu0 0
  %4527 = vmatprep.subr.bf16.mxu0 0
  %4528 = vmatpush1.bf16.msra.mxu0 0
  %4529 = vmatprep.subr.bf16.mxu0 0
  %4530 = vmatpush1.bf16.msra.mxu0 0
  %4531 = vmatprep.subr.bf16.mxu0 0
  %4532 = vmatpush1.bf16.msra.mxu0 0
  %4533 = vmatprep.subr.bf16.mxu0 0
  %4534 = vmatpush1.bf16.msra.mxu0 0
  %4535 = vmatprep.subr.bf16.mxu0 0
  %4536 = vmatpush1.bf16.msra.mxu0 0
  %4537 = vmatprep.subr.bf16.mxu0 0
  %4538 = vmatpush1.bf16.msra.mxu0 0
  %4539 = vmatprep.subr.bf16.mxu0 0
  %4540 = vmatpush1.bf16.msra.mxu0 0
  %4541 = vmatprep.subr.bf16.mxu0 0
  %4542 = vmatpush1.bf16.msra.mxu0 0
  %4543 = vmatprep.subr.bf16.mxu0 0
  %4544 = vmatpush1.bf16.msra.mxu0 0
  %4545 = vmatprep.mubr.bf16.mxu0 0
  %4546 = vmatmul.mubr.bf16.gmra.mrb[0].mxu0 %v4468
  %v4547 = vpop.f32.mrb[0].mxu0
  %v4548 = vadd.f32 %v4418, %v4547
  %v4549 = vpop.f32.mrb[0].mxu0
  %v4550 = vadd.f32 %v4422, %v4549
  %v4551 = vpop.f32.mrb[0].mxu0
  %v4552 = vadd.f32 %v4418, %v4551
  %v4553 = vpop.f32.mrb[0].mxu0
  %v4554 = vadd.f32 %v4422, %v4553
  %4555 = vdwg.mxu0
  %v4556 = vmax.f32 %v4505, 0.0
  %v4557 = vmax.f32 %v4507, 0.0
  %v4558 = vmax.f32 %v4548, 0.0
  %v4559 = vmax.f32 %v4550, 0.0
  %v4560 = vmax.f32 %v4509, 0.0
  %v4561 = vmax.f32 %v4511, 0.0
  %v4562 = vmax.f32 %v4552, 0.0
  %v4563 = vmax.f32 %v4554, 0.0
  %v4564 = vpack.c.bf16 %v4560, %v4556
  %v4565 = vpack.c.bf16 %v4561, %v4557
  %v4566 = vpack.c.bf16 %v4562, %v4558
  %v4567 = vpack.c.bf16 %v4563, %v4559
  %s4568 = scalar_lea.vmem %s12, 1024
  %v4569 = vld [vmem:[%s4568] sm:$0xf]
  %v4570 = vld [vmem:[%s4568 + $0x4] sm:$0xf]
  %v4571 = vld [vmem:[%s4568 + $0x8] sm:$0xf]
  %v4572 = vld [vmem:[%s4568 + $0xc] sm:$0xf]
  %v4573 = vld [vmem:[%s4568 + $0x10] sm:$0xf]
  %v4574 = vld [vmem:[%s4568 + $0x14] sm:$0xf]
  %v4575 = vld [vmem:[%s4568 + $0x18] sm:$0xf]
  %v4576 = vld [vmem:[%s4568 + $0x1c] sm:$0xf]
  %v4577 = vld [vmem:[%s4568 + $0x20] sm:$0xf]
  %v4578 = vld [vmem:[%s4568 + $0x24] sm:$0xf]
  %v4579 = vld [vmem:[%s4568 + $0x28] sm:$0xf]
  %v4580 = vld [vmem:[%s4568 + $0x2c] sm:$0xf]
  %v4581 = vld [vmem:[%s4568 + $0x30] sm:$0xf]
  %v4582 = vld [vmem:[%s4568 + $0x34] sm:$0xf]
  %v4583 = vld [vmem:[%s4568 + $0x38] sm:$0xf]
  %v4584 = vld [vmem:[%s4568 + $0x3c] sm:$0xf]
  %v4585 = vld [vmem:[%s4568 + $0x40] sm:$0xf]
  %v4586 = vld [vmem:[%s4568 + $0x44] sm:$0xf]
  %v4587 = vld [vmem:[%s4568 + $0x48] sm:$0xf]
  %v4588 = vld [vmem:[%s4568 + $0x4c] sm:$0xf]
  %v4589 = vld [vmem:[%s4568 + $0x50] sm:$0xf]
  %v4590 = vld [vmem:[%s4568 + $0x54] sm:$0xf]
  %v4591 = vld [vmem:[%s4568 + $0x58] sm:$0xf]
  %v4592 = vld [vmem:[%s4568 + $0x5c] sm:$0xf]
  %v4593 = vld [vmem:[%s4568 + $0x60] sm:$0xf]
  %v4594 = vld [vmem:[%s4568 + $0x64] sm:$0xf]
  %v4595 = vld [vmem:[%s4568 + $0x68] sm:$0xf]
  %v4596 = vld [vmem:[%s4568 + $0x6c] sm:$0xf]
  %v4597 = vld [vmem:[%s4568 + $0x70] sm:$0xf]
  %v4598 = vld [vmem:[%s4568 + $0x74] sm:$0xf]
  %v4599 = vld [vmem:[%s4568 + $0x78] sm:$0xf]
  %v4600 = vld [vmem:[%s4568 + $0x7c] sm:$0xf]
  %v4601 = vld [vmem:[%s4568 + $0x80] sm:$0xf]
  %v4602 = vld [vmem:[%s4568 + $0x84] sm:$0xf]
  %v4603 = vld [vmem:[%s4568 + $0x88] sm:$0xf]
  %v4604 = vld [vmem:[%s4568 + $0x8c] sm:$0xf]
  %v4605 = vld [vmem:[%s4568 + $0x90] sm:$0xf]
  %v4606 = vld [vmem:[%s4568 + $0x94] sm:$0xf]
  %v4607 = vld [vmem:[%s4568 + $0x98] sm:$0xf]
  %v4608 = vld [vmem:[%s4568 + $0x9c] sm:$0xf]
  %v4609 = vld [vmem:[%s4568 + $0xa0] sm:$0xf]
  %v4610 = vld [vmem:[%s4568 + $0xa4] sm:$0xf]
  %v4611 = vld [vmem:[%s4568 + $0xa8] sm:$0xf]
  %v4612 = vld [vmem:[%s4568 + $0xac] sm:$0xf]
  %v4613 = vld [vmem:[%s4568 + $0xb0] sm:$0xf]
  %v4614 = vld [vmem:[%s4568 + $0xb4] sm:$0xf]
  %v4615 = vld [vmem:[%s4568 + $0xb8] sm:$0xf]
  %v4616 = vld [vmem:[%s4568 + $0xbc] sm:$0xf]
  %v4617 = vld [vmem:[%s4568 + $0xc0] sm:$0xf]
  %v4618 = vld [vmem:[%s4568 + $0xc4] sm:$0xf]
  %v4619 = vld [vmem:[%s4568 + $0xc8] sm:$0xf]
  %v4620 = vld [vmem:[%s4568 + $0xcc] sm:$0xf]
  %v4621 = vld [vmem:[%s4568 + $0xd0] sm:$0xf]
  %v4622 = vld [vmem:[%s4568 + $0xd4] sm:$0xf]
  %v4623 = vld [vmem:[%s4568 + $0xd8] sm:$0xf]
  %v4624 = vld [vmem:[%s4568 + $0xdc] sm:$0xf]
  %v4625 = vld [vmem:[%s4568 + $0xe0] sm:$0xf]
  %v4626 = vld [vmem:[%s4568 + $0xe4] sm:$0xf]
  %v4627 = vld [vmem:[%s4568 + $0xe8] sm:$0xf]
  %v4628 = vld [vmem:[%s4568 + $0xec] sm:$0xf]
  %v4629 = vld [vmem:[%s4568 + $0xf0] sm:$0xf]
  %v4630 = vld [vmem:[%s4568 + $0xf4] sm:$0xf]
  %v4631 = vld [vmem:[%s4568 + $0xf8] sm:$0xf]
  %v4632 = vld [vmem:[%s4568 + $0xfc] sm:$0xf]
  %v4633 = vld [vmem:[%s4395 + $0x10] sm:$0xff]
  %v4634 = vld [vmem:[%s4395 + $0x18] sm:$0xff]
  %v4635 = vld [vmem:[%s4395 + $0x50] sm:$0xff]
  %v4636 = vld [vmem:[%s4395 + $0x58] sm:$0xff]
  %v4637 = vld [vmem:[%s4395 + $0x90] sm:$0xff]
  %v4638 = vld [vmem:[%s4395 + $0x98] sm:$0xff]
  %v4639 = vld [vmem:[%s4395 + $0xd0] sm:$0xff]
  %v4640 = vld [vmem:[%s4395 + $0xd8] sm:$0xff]
  %v4641 = vld [vmem:[%s4404 + $0x4] sm:$0xf]
  %v4643 = vlaneseq
  %v4644 = vshrl.u32 %v4643, 7
  %v4645 = vsub.s32 0, %v4644
  %v4646 = vrot.slane %v4641, %v4645
  %v4647 = vlaneseq
  %v4648 = vshrl.u32 %v4647, 7
  %v4649 = vsub.s32 1, %v4648
  %v4650 = vrot.slane %v4641, %v4649
  %v4651 = vlaneseq
  %v4652 = vshrl.u32 %v4651, 7
  %v4653 = vsub.s32 2, %v4652
  %v4654 = vrot.slane %v4641, %v4653
  %v4655 = vlaneseq
  %v4656 = vshrl.u32 %v4655, 7
  %v4657 = vsub.s32 3, %v4656
  %v4658 = vrot.slane %v4641, %v4657
  %v4671 = vunpack.c.l.b16 %v4633
  %v4672 = vunpack.c.h.b16 %v4633
  %v4673 = vunpack.c.l.b16 %v4634
  %v4674 = vunpack.c.h.b16 %v4634
  %v4675 = vunpack.c.l.b16 %v4635
  %v4676 = vunpack.c.h.b16 %v4635
  %v4677 = vunpack.c.l.b16 %v4636
  %v4678 = vunpack.c.h.b16 %v4636
  %v4679 = vunpack.c.l.b16 %v4637
  %v4680 = vunpack.c.h.b16 %v4637
  %v4681 = vunpack.c.l.b16 %v4638
  %v4682 = vunpack.c.h.b16 %v4638
  %v4683 = vunpack.c.l.b16 %v4639
  %v4684 = vunpack.c.h.b16 %v4639
  %v4685 = vunpack.c.l.b16 %v4640
  %v4686 = vunpack.c.h.b16 %v4640
  %v4687 = vpack.c.b16 %v4675, %v4671
  %v4688 = vpack.c.b16 %v4676, %v4672
  %v4689 = vpack.c.b16 %v4677, %v4673
  %v4690 = vpack.c.b16 %v4678, %v4674
  %v4691 = vpack.c.b16 %v4683, %v4679
  %v4692 = vpack.c.b16 %v4684, %v4680
  %v4693 = vpack.c.b16 %v4685, %v4681
  %v4694 = vpack.c.b16 %v4686, %v4682
  %4703 = vmatprep.subr.bf16.mxu0 %v4688
  %4704 = vmatpush1.bf16.msra.mxu0 %v4687
  %4705 = vmatprep.subr.bf16.mxu0 %v4692
  %4706 = vmatpush1.bf16.msra.mxu0 %v4691
  %4707 = vmatprep.subr.bf16.mxu0 0
  %4708 = vmatpush1.bf16.msra.mxu0 0
  %4709 = vmatprep.subr.bf16.mxu0 0
  %4710 = vmatpush1.bf16.msra.mxu0 0
  %4711 = vmatprep.subr.bf16.mxu0 0
  %4712 = vmatpush1.bf16.msra.mxu0 0
  %4713 = vmatprep.subr.bf16.mxu0 0
  %4714 = vmatpush1.bf16.msra.mxu0 0
  %4715 = vmatprep.subr.bf16.mxu0 0
  %4716 = vmatpush1.bf16.msra.mxu0 0
  %4717 = vmatprep.subr.bf16.mxu0 0
  %4718 = vmatpush1.bf16.msra.mxu0 0
  %4719 = vmatprep.subr.bf16.mxu0 0
  %4720 = vmatpush1.bf16.msra.mxu0 0
  %4721 = vmatprep.subr.bf16.mxu0 0
  %4722 = vmatpush1.bf16.msra.mxu0 0
  %4723 = vmatprep.subr.bf16.mxu0 0
  %4724 = vmatpush1.bf16.msra.mxu0 0
  %4725 = vmatprep.subr.bf16.mxu0 0
  %4726 = vmatpush1.bf16.msra.mxu0 0
  %4727 = vmatprep.subr.bf16.mxu0 0
  %4728 = vmatpush1.bf16.msra.mxu0 0
  %4729 = vmatprep.subr.bf16.mxu0 0
  %4730 = vmatpush1.bf16.msra.mxu0 0
  %4731 = vmatprep.subr.bf16.mxu0 0
  %4732 = vmatpush1.bf16.msra.mxu0 0
  %4733 = vmatprep.subr.bf16.mxu0 0
  %4734 = vmatpush1.bf16.msra.mxu0 0
  %4735 = vmatprep.mubr.bf16.mxu0 0
  %4736 = vmatmul.mubr.bf16.gmra.mrb[0].mxu0 %v4468
  %v4737 = vpop.f32.mrb[0].mxu0
  %v4738 = vadd.f32 %v4646, %v4737
  %v4739 = vpop.f32.mrb[0].mxu0
  %v4740 = vadd.f32 %v4650, %v4739
  %v4741 = vpop.f32.mrb[0].mxu0
  %v4742 = vadd.f32 %v4646, %v4741
  %v4743 = vpop.f32.mrb[0].mxu0
  %v4744 = vadd.f32 %v4650, %v4743
  %4745 = vdwg.mxu0
  %4746 = vmatprep.subr.bf16.mxu0 %v4690
  %4747 = vmatpush1.bf16.msra.mxu0 %v4689
  %4748 = vmatprep.subr.bf16.mxu0 %v4694
  %4749 = vmatpush1.bf16.msra.mxu0 %v4693
  %4750 = vmatprep.subr.bf16.mxu0 0
  %4751 = vmatpush1.bf16.msra.mxu0 0
  %4752 = vmatprep.subr.bf16.mxu0 0
  %4753 = vmatpush1.bf16.msra.mxu0 0
  %4754 = vmatprep.subr.bf16.mxu0 0
  %4755 = vmatpush1.bf16.msra.mxu0 0
  %4756 = vmatprep.subr.bf16.mxu0 0
  %4757 = vmatpush1.bf16.msra.mxu0 0
  %4758 = vmatprep.subr.bf16.mxu0 0
  %4759 = vmatpush1.bf16.msra.mxu0 0
  %4760 = vmatprep.subr.bf16.mxu0 0
  %4761 = vmatpush1.bf16.msra.mxu0 0
  %4762 = vmatprep.subr.bf16.mxu0 0
  %4763 = vmatpush1.bf16.msra.mxu0 0
  %4764 = vmatprep.subr.bf16.mxu0 0
  %4765 = vmatpush1.bf16.msra.mxu0 0
  %4766 = vmatprep.subr.bf16.mxu0 0
  %4767 = vmatpush1.bf16.msra.mxu0 0
  %4768 = vmatprep.subr.bf16.mxu0 0
  %4769 = vmatpush1.bf16.msra.mxu0 0
  %4770 = vmatprep.subr.bf16.mxu0 0
  %4771 = vmatpush1.bf16.msra.mxu0 0
  %4772 = vmatprep.subr.bf16.mxu0 0
  %4773 = vmatpush1.bf16.msra.mxu0 0
  %4774 = vmatprep.subr.bf16.mxu0 0
  %4775 = vmatpush1.bf16.msra.mxu0 0
  %4776 = vmatprep.subr.bf16.mxu0 0
  %4777 = vmatpush1.bf16.msra.mxu0 0
  %4778 = vmatprep.mubr.bf16.mxu0 0
  %4779 = vmatmul.mubr.bf16.gmra.mrb[0].mxu0 %v4468
  %v4780 = vpop.f32.mrb[0].mxu0
  %v4781 = vadd.f32 %v4654, %v4780
  %v4782 = vpop.f32.mrb[0].mxu0
  %v4783 = vadd.f32 %v4658, %v4782
  %v4784 = vpop.f32.mrb[0].mxu0
  %v4785 = vadd.f32 %v4654, %v4784
  %v4786 = vpop.f32.mrb[0].mxu0
  %v4787 = vadd.f32 %v4658, %v4786
  %4788 = vdwg.mxu0
  %v4789 = vmax.f32 %v4738, 0.0
  %v4790 = vmax.f32 %v4740, 0.0
  %v4791 = vmax.f32 %v4781, 0.0
  %v4792 = vmax.f32 %v4783, 0.0
  %v4793 = vmax.f32 %v4742, 0.0
  %v4794 = vmax.f32 %v4744, 0.0
  %v4795 = vmax.f32 %v4785, 0.0
  %v4796 = vmax.f32 %v4787, 0.0
  %v4797 = vpack.c.bf16 %v4793, %v4789
  %v4798 = vpack.c.bf16 %v4794, %v4790
  %v4799 = vpack.c.bf16 %v4795, %v4791
  %v4800 = vpack.c.bf16 %v4796, %v4792
  %v4801 = vld [vmem:[%s4568 + $0x100] sm:$0xf]
  %v4802 = vld [vmem:[%s4568 + $0x104] sm:$0xf]
  %v4803 = vld [vmem:[%s4568 + $0x108] sm:$0xf]
  %v4804 = vld [vmem:[%s4568 + $0x10c] sm:$0xf]
  %v4805 = vld [vmem:[%s4568 + $0x110] sm:$0xf]
  %v4806 = vld [vmem:[%s4568 + $0x114] sm:$0xf]
  %v4807 = vld [vmem:[%s4568 + $0x118] sm:$0xf]
  %v4808 = vld [vmem:[%s4568 + $0x11c] sm:$0xf]
  %v4809 = vld [vmem:[%s4568 + $0x120] sm:$0xf]
  %v4810 = vld [vmem:[%s4568 + $0x124] sm:$0xf]
  %v4811 = vld [vmem:[%s4568 + $0x128] sm:$0xf]
  %v4812 = vld [vmem:[%s4568 + $0x12c] sm:$0xf]
  %v4813 = vld [vmem:[%s4568 + $0x130] sm:$0xf]
  %v4814 = vld [vmem:[%s4568 + $0x134] sm:$0xf]
  %v4815 = vld [vmem:[%s4568 + $0x138] sm:$0xf]
  %v4816 = vld [vmem:[%s4568 + $0x13c] sm:$0xf]
  %v4817 = vld [vmem:[%s4568 + $0x140] sm:$0xf]
  %v4818 = vld [vmem:[%s4568 + $0x144] sm:$0xf]
  %v4819 = vld [vmem:[%s4568 + $0x148] sm:$0xf]
  %v4820 = vld [vmem:[%s4568 + $0x14c] sm:$0xf]
  %v4821 = vld [vmem:[%s4568 + $0x150] sm:$0xf]
  %v4822 = vld [vmem:[%s4568 + $0x154] sm:$0xf]
  %v4823 = vld [vmem:[%s4568 + $0x158] sm:$0xf]
  %v4824 = vld [vmem:[%s4568 + $0x15c] sm:$0xf]
  %v4825 = vld [vmem:[%s4568 + $0x160] sm:$0xf]
  %v4826 = vld [vmem:[%s4568 + $0x164] sm:$0xf]
  %v4827 = vld [vmem:[%s4568 + $0x168] sm:$0xf]
  %v4828 = vld [vmem:[%s4568 + $0x16c] sm:$0xf]
  %v4829 = vld [vmem:[%s4568 + $0x170] sm:$0xf]
  %v4830 = vld [vmem:[%s4568 + $0x174] sm:$0xf]
  %v4831 = vld [vmem:[%s4568 + $0x178] sm:$0xf]
  %v4832 = vld [vmem:[%s4568 + $0x17c] sm:$0xf]
  %v4833 = vld [vmem:[%s4568 + $0x180] sm:$0xf]
  %v4834 = vld [vmem:[%s4568 + $0x184] sm:$0xf]
  %v4835 = vld [vmem:[%s4568 + $0x188] sm:$0xf]
  %v4836 = vld [vmem:[%s4568 + $0x18c] sm:$0xf]
  %v4837 = vld [vmem:[%s4568 + $0x190] sm:$0xf]
  %v4838 = vld [vmem:[%s4568 + $0x194] sm:$0xf]
  %v4839 = vld [vmem:[%s4568 + $0x198] sm:$0xf]
  %v4840 = vld [vmem:[%s4568 + $0x19c] sm:$0xf]
  %v4841 = vld [vmem:[%s4568 + $0x1a0] sm:$0xf]
  %v4842 = vld [vmem:[%s4568 + $0x1a4] sm:$0xf]
  %v4843 = vld [vmem:[%s4568 + $0x1a8] sm:$0xf]
  %v4844 = vld [vmem:[%s4568 + $0x1ac] sm:$0xf]
  %v4845 = vld [vmem:[%s4568 + $0x1b0] sm:$0xf]
  %v4846 = vld [vmem:[%s4568 + $0x1b4] sm:$0xf]
  %v4847 = vld [vmem:[%s4568 + $0x1b8] sm:$0xf]
  %v4848 = vld [vmem:[%s4568 + $0x1bc] sm:$0xf]
  %v4849 = vld [vmem:[%s4568 + $0x1c0] sm:$0xf]
  %v4850 = vld [vmem:[%s4568 + $0x1c4] sm:$0xf]
  %v4851 = vld [vmem:[%s4568 + $0x1c8] sm:$0xf]
  %v4852 = vld [vmem:[%s4568 + $0x1cc] sm:$0xf]
  %v4853 = vld [vmem:[%s4568 + $0x1d0] sm:$0xf]
  %v4854 = vld [vmem:[%s4568 + $0x1d4] sm:$0xf]
  %v4855 = vld [vmem:[%s4568 + $0x1d8] sm:$0xf]
  %v4856 = vld [vmem:[%s4568 + $0x1dc] sm:$0xf]
  %v4857 = vld [vmem:[%s4568 + $0x1e0] sm:$0xf]
  %v4858 = vld [vmem:[%s4568 + $0x1e4] sm:$0xf]
  %v4859 = vld [vmem:[%s4568 + $0x1e8] sm:$0xf]
  %v4860 = vld [vmem:[%s4568 + $0x1ec] sm:$0xf]
  %v4861 = vld [vmem:[%s4568 + $0x1f0] sm:$0xf]
  %v4862 = vld [vmem:[%s4568 + $0x1f4] sm:$0xf]
  %v4863 = vld [vmem:[%s4568 + $0x1f8] sm:$0xf]
  %v4864 = vld [vmem:[%s4568 + $0x1fc] sm:$0xf]
  %v4929 = vunpack.c.l.b16 %v4801
  %v4930 = vunpack.c.l.b16 %v4802
  %v4931 = vunpack.c.l.b16 %v4803
  %v4932 = vunpack.c.l.b16 %v4804
  %v4933 = vunpack.c.l.b16 %v4805
  %v4934 = vunpack.c.l.b16 %v4806
  %v4935 = vunpack.c.l.b16 %v4807
  %v4936 = vunpack.c.l.b16 %v4808
  %v4937 = vunpack.c.l.b16 %v4809
  %v4938 = vunpack.c.l.b16 %v4810
  %v4939 = vunpack.c.l.b16 %v4811
  %v4940 = vunpack.c.l.b16 %v4812
  %v4941 = vunpack.c.l.b16 %v4813
  %v4942 = vunpack.c.l.b16 %v4814
  %v4943 = vunpack.c.l.b16 %v4815
  %v4944 = vunpack.c.l.b16 %v4816
  %v4945 = vunpack.c.l.b16 %v4817
  %v4946 = vunpack.c.l.b16 %v4818
  %v4947 = vunpack.c.l.b16 %v4819
  %v4948 = vunpack.c.l.b16 %v4820
  %v4949 = vunpack.c.l.b16 %v4821
  %v4950 = vunpack.c.l.b16 %v4822
  %v4951 = vunpack.c.l.b16 %v4823
  %v4952 = vunpack.c.l.b16 %v4824
  %v4953 = vunpack.c.l.b16 %v4825
  %v4954 = vunpack.c.l.b16 %v4826
  %v4955 = vunpack.c.l.b16 %v4827
  %v4956 = vunpack.c.l.b16 %v4828
  %v4957 = vunpack.c.l.b16 %v4829
  %v4958 = vunpack.c.l.b16 %v4830
  %v4959 = vunpack.c.l.b16 %v4831
  %v4960 = vunpack.c.l.b16 %v4832
  %v4961 = vunpack.c.l.b16 %v4833
  %v4962 = vunpack.c.l.b16 %v4834
  %v4963 = vunpack.c.l.b16 %v4835
  %v4964 = vunpack.c.l.b16 %v4836
  %v4965 = vunpack.c.l.b16 %v4837
  %v4966 = vunpack.c.l.b16 %v4838
  %v4967 = vunpack.c.l.b16 %v4839
  %v4968 = vunpack.c.l.b16 %v4840
  %v4969 = vunpack.c.l.b16 %v4841
  %v4970 = vunpack.c.l.b16 %v4842
  %v4971 = vunpack.c.l.b16 %v4843
  %v4972 = vunpack.c.l.b16 %v4844
  %v4973 = vunpack.c.l.b16 %v4845
  %v4974 = vunpack.c.l.b16 %v4846
  %v4975 = vunpack.c.l.b16 %v4847
  %v4976 = vunpack.c.l.b16 %v4848
  %v4977 = vunpack.c.l.b16 %v4849
  %v4978 = vunpack.c.l.b16 %v4850
  %v4979 = vunpack.c.l.b16 %v4851
  %v4980 = vunpack.c.l.b16 %v4852
  %v4981 = vunpack.c.l.b16 %v4853
  %v4982 = vunpack.c.l.b16 %v4854
  %v4983 = vunpack.c.l.b16 %v4855
  %v4984 = vunpack.c.l.b16 %v4856
  %v4985 = vunpack.c.l.b16 %v4857
  %v4986 = vunpack.c.l.b16 %v4858
  %v4987 = vunpack.c.l.b16 %v4859
  %v4988 = vunpack.c.l.b16 %v4860
  %v4989 = vunpack.c.l.b16 %v4861
  %v4990 = vunpack.c.l.b16 %v4862
  %v4991 = vunpack.c.l.b16 %v4863
  %v4992 = vunpack.c.l.b16 %v4864
  %v4993 = vpack.c.b16 %v4930, %v4929
  %v4994 = vpack.c.b16 %v4932, %v4931
  %v4995 = vpack.c.b16 %v4934, %v4933
  %v4996 = vpack.c.b16 %v4936, %v4935
  %v4997 = vpack.c.b16 %v4938, %v4937
  %v4998 = vpack.c.b16 %v4940, %v4939
  %v4999 = vpack.c.b16 %v4942, %v4941
  %v5000 = vpack.c.b16 %v4944, %v4943
  %v5001 = vpack.c.b16 %v4946, %v4945
  %v5002 = vpack.c.b16 %v4948, %v4947
  %v5003 = vpack.c.b16 %v4950, %v4949
  %v5004 = vpack.c.b16 %v4952, %v4951
  %v5005 = vpack.c.b16 %v4954, %v4953
  %v5006 = vpack.c.b16 %v4956, %v4955
  %v5007 = vpack.c.b16 %v4958, %v4957
  %v5008 = vpack.c.b16 %v4960, %v4959
  %v5009 = vpack.c.b16 %v4962, %v4961
  %v5010 = vpack.c.b16 %v4964, %v4963
  %v5011 = vpack.c.b16 %v4966, %v4965
  %v5012 = vpack.c.b16 %v4968, %v4967
  %v5013 = vpack.c.b16 %v4970, %v4969
  %v5014 = vpack.c.b16 %v4972, %v4971
  %v5015 = vpack.c.b16 %v4974, %v4973
  %v5016 = vpack.c.b16 %v4976, %v4975
  %v5017 = vpack.c.b16 %v4978, %v4977
  %v5018 = vpack.c.b16 %v4980, %v4979
  %v5019 = vpack.c.b16 %v4982, %v4981
  %v5020 = vpack.c.b16 %v4984, %v4983
  %v5021 = vpack.c.b16 %v4986, %v4985
  %v5022 = vpack.c.b16 %v4988, %v4987
  %v5023 = vpack.c.b16 %v4990, %v4989
  %v5024 = vpack.c.b16 %v4992, %v4991
  %5057 = vmatprep.subr.bf16.mxu0 0
  %5058 = vmatpush1.bf16.msra.mxu0 %v4993
  %5059 = vmatprep.subr.bf16.mxu0 0
  %5060 = vmatpush1.bf16.msra.mxu0 %v4994
  %5061 = vmatprep.subr.bf16.mxu0 0
  %5062 = vmatpush1.bf16.msra.mxu0 %v4995
  %5063 = vmatprep.subr.bf16.mxu0 0
  %5064 = vmatpush1.bf16.msra.mxu0 %v4996
  %5065 = vmatprep.subr.bf16.mxu0 0
  %5066 = vmatpush1.bf16.msra.mxu0 %v4997
  %5067 = vmatprep.subr.bf16.mxu0 0
  %5068 = vmatpush1.bf16.msra.mxu0 %v4998
  %5069 = vmatprep.subr.bf16.mxu0 0
  %5070 = vmatpush1.bf16.msra.mxu0 %v4999
  %5071 = vmatprep.subr.bf16.mxu0 0
  %5072 = vmatpush1.bf16.msra.mxu0 %v5000
  %5073 = vmatprep.subr.bf16.mxu0 0
  %5074 = vmatpush1.bf16.msra.mxu0 %v5001
  %5075 = vmatprep.subr.bf16.mxu0 0
  %5076 = vmatpush1.bf16.msra.mxu0 %v5002
  %5077 = vmatprep.subr.bf16.mxu0 0
  %5078 = vmatpush1.bf16.msra.mxu0 %v5003
  %5079 = vmatprep.subr.bf16.mxu0 0
  %5080 = vmatpush1.bf16.msra.mxu0 %v5004
  %5081 = vmatprep.subr.bf16.mxu0 0
  %5082 = vmatpush1.bf16.msra.mxu0 %v5005
  %5083 = vmatprep.subr.bf16.mxu0 0
  %5084 = vmatpush1.bf16.msra.mxu0 %v5006
  %5085 = vmatprep.subr.bf16.mxu0 0
  %5086 = vmatpush1.bf16.msra.mxu0 %v5007
  %5087 = vmatprep.subr.bf16.mxu0 0
  %5088 = vmatpush1.bf16.msra.mxu0 %v5008
  %5089 = vmatprep.mubr.bf16.mxu0 %v4798
  %5090 = vmatmul.mubr.bf16.gmra.mrb[0].mxu0 %v4797
  %v5091 = vpop.f32.mrb[0].mxu0
  %v5092 = vadd.f32 0.0, %v5091
  %v5093 = vpop.f32.mrb[0].mxu0
  %v5094 = vpop.f32.mrb[0].mxu0
  %v5095 = vadd.f32 0.0, %v5094
  %v5096 = vpop.f32.mrb[0].mxu0
  %5097 = vdwg.mxu0
  %5098 = vmatprep.subr.bf16.mxu0 0
  %5099 = vmatpush1.bf16.msra.mxu0 %v5009
  %5100 = vmatprep.subr.bf16.mxu0 0
  %5101 = vmatpush1.bf16.msra.mxu0 %v5010
  %5102 = vmatprep.subr.bf16.mxu0 0
  %5103 = vmatpush1.bf16.msra.mxu0 %v5011
  %5104 = vmatprep.subr.bf16.mxu0 0
  %5105 = vmatpush1.bf16.msra.mxu0 %v5012
  %5106 = vmatprep.subr.bf16.mxu0 0
  %5107 = vmatpush1.bf16.msra.mxu0 %v5013
  %5108 = vmatprep.subr.bf16.mxu0 0
  %5109 = vmatpush1.bf16.msra.mxu0 %v5014
  %5110 = vmatprep.subr.bf16.mxu0 0
  %5111 = vmatpush1.bf16.msra.mxu0 %v5015
  %5112 = vmatprep.subr.bf16.mxu0 0
  %5113 = vmatpush1.bf16.msra.mxu0 %v5016
  %5114 = vmatprep.subr.bf16.mxu0 0
  %5115 = vmatpush1.bf16.msra.mxu0 %v5017
  %5116 = vmatprep.subr.bf16.mxu0 0
  %5117 = vmatpush1.bf16.msra.mxu0 %v5018
  %5118 = vmatprep.subr.bf16.mxu0 0
  %5119 = vmatpush1.bf16.msra.mxu0 %v5019
  %5120 = vmatprep.subr.bf16.mxu0 0
  %5121 = vmatpush1.bf16.msra.mxu0 %v5020
  %5122 = vmatprep.subr.bf16.mxu0 0
  %5123 = vmatpush1.bf16.msra.mxu0 %v5021
  %5124 = vmatprep.subr.bf16.mxu0 0
  %5125 = vmatpush1.bf16.msra.mxu0 %v5022
  %5126 = vmatprep.subr.bf16.mxu0 0
  %5127 = vmatpush1.bf16.msra.mxu0 %v5023
  %5128 = vmatprep.subr.bf16.mxu0 0
  %5129 = vmatpush1.bf16.msra.mxu0 %v5024
  %5130 = vmatprep.mubr.bf16.mxu0 %v4800
  %5131 = vmatmul.mubr.bf16.gmra.mrb[0].mxu0 %v4799
  %v5132 = vpop.f32.mrb[0].mxu0
  %v5133 = vadd.f32 %v5092, %v5132
  %v5134 = vpop.f32.mrb[0].mxu0
  %v5135 = vpop.f32.mrb[0].mxu0
  %v5136 = vadd.f32 %v5095, %v5135
  %v5137 = vpop.f32.mrb[0].mxu0
  %5138 = vdwg.mxu0
  %v5203 = vunpack.c.l.b16 %v4569
  %v5204 = vunpack.c.l.b16 %v4570
  %v5205 = vunpack.c.l.b16 %v4571
  %v5206 = vunpack.c.l.b16 %v4572
  %v5207 = vunpack.c.l.b16 %v4573
  %v5208 = vunpack.c.l.b16 %v4574
  %v5209 = vunpack.c.l.b16 %v4575
  %v5210 = vunpack.c.l.b16 %v4576
  %v5211 = vunpack.c.l.b16 %v4577
  %v5212 = vunpack.c.l.b16 %v4578
  %v5213 = vunpack.c.l.b16 %v4579
  %v5214 = vunpack.c.l.b16 %v4580
  %v5215 = vunpack.c.l.b16 %v4581
  %v5216 = vunpack.c.l.b16 %v4582
  %v5217 = vunpack.c.l.b16 %v4583
  %v5218 = vunpack.c.l.b16 %v4584
  %v5219 = vunpack.c.l.b16 %v4585
  %v5220 = vunpack.c.l.b16 %v4586
  %v5221 = vunpack.c.l.b16 %v4587
  %v5222 = vunpack.c.l.b16 %v4588
  %v5223 = vunpack.c.l.b16 %v4589
  %v5224 = vunpack.c.l.b16 %v4590
  %v5225 = vunpack.c.l.b16 %v4591
  %v5226 = vunpack.c.l.b16 %v4592
  %v5227 = vunpack.c.l.b16 %v4593
  %v5228 = vunpack.c.l.b16 %v4594
  %v5229 = vunpack.c.l.b16 %v4595
  %v5230 = vunpack.c.l.b16 %v4596
  %v5231 = vunpack.c.l.b16 %v4597
  %v5232 = vunpack.c.l.b16 %v4598
  %v5233 = vunpack.c.l.b16 %v4599
  %v5234 = vunpack.c.l.b16 %v4600
  %v5235 = vunpack.c.l.b16 %v4601
  %v5236 = vunpack.c.l.b16 %v4602
  %v5237 = vunpack.c.l.b16 %v4603
  %v5238 = vunpack.c.l.b16 %v4604
  %v5239 = vunpack.c.l.b16 %v4605
  %v5240 = vunpack.c.l.b16 %v4606
  %v5241 = vunpack.c.l.b16 %v4607
  %v5242 = vunpack.c.l.b16 %v4608
  %v5243 = vunpack.c.l.b16 %v4609
  %v5244 = vunpack.c.l.b16 %v4610
  %v5245 = vunpack.c.l.b16 %v4611
  %v5246 = vunpack.c.l.b16 %v4612
  %v5247 = vunpack.c.l.b16 %v4613
  %v5248 = vunpack.c.l.b16 %v4614
  %v5249 = vunpack.c.l.b16 %v4615
  %v5250 = vunpack.c.l.b16 %v4616
  %v5251 = vunpack.c.l.b16 %v4617
  %v5252 = vunpack.c.l.b16 %v4618
  %v5253 = vunpack.c.l.b16 %v4619
  %v5254 = vunpack.c.l.b16 %v4620
  %v5255 = vunpack.c.l.b16 %v4621
  %v5256 = vunpack.c.l.b16 %v4622
  %v5257 = vunpack.c.l.b16 %v4623
  %v5258 = vunpack.c.l.b16 %v4624
  %v5259 = vunpack.c.l.b16 %v4625
  %v5260 = vunpack.c.l.b16 %v4626
  %v5261 = vunpack.c.l.b16 %v4627
  %v5262 = vunpack.c.l.b16 %v4628
  %v5263 = vunpack.c.l.b16 %v4629
  %v5264 = vunpack.c.l.b16 %v4630
  %v5265 = vunpack.c.l.b16 %v4631
  %v5266 = vunpack.c.l.b16 %v4632
  %v5267 = vpack.c.b16 %v5204, %v5203
  %v5268 = vpack.c.b16 %v5206, %v5205
  %v5269 = vpack.c.b16 %v5208, %v5207
  %v5270 = vpack.c.b16 %v5210, %v5209
  %v5271 = vpack.c.b16 %v5212, %v5211
  %v5272 = vpack.c.b16 %v5214, %v5213
  %v5273 = vpack.c.b16 %v5216, %v5215
  %v5274 = vpack.c.b16 %v5218, %v5217
  %v5275 = vpack.c.b16 %v5220, %v5219
  %v5276 = vpack.c.b16 %v5222, %v5221
  %v5277 = vpack.c.b16 %v5224, %v5223
  %v5278 = vpack.c.b16 %v5226, %v5225
  %v5279 = vpack.c.b16 %v5228, %v5227
  %v5280 = vpack.c.b16 %v5230, %v5229
  %v5281 = vpack.c.b16 %v5232, %v5231
  %v5282 = vpack.c.b16 %v5234, %v5233
  %v5283 = vpack.c.b16 %v5236, %v5235
  %v5284 = vpack.c.b16 %v5238, %v5237
  %v5285 = vpack.c.b16 %v5240, %v5239
  %v5286 = vpack.c.b16 %v5242, %v5241
  %v5287 = vpack.c.b16 %v5244, %v5243
  %v5288 = vpack.c.b16 %v5246, %v5245
  %v5289 = vpack.c.b16 %v5248, %v5247
  %v5290 = vpack.c.b16 %v5250, %v5249
  %v5291 = vpack.c.b16 %v5252, %v5251
  %v5292 = vpack.c.b16 %v5254, %v5253
  %v5293 = vpack.c.b16 %v5256, %v5255
  %v5294 = vpack.c.b16 %v5258, %v5257
  %v5295 = vpack.c.b16 %v5260, %v5259
  %v5296 = vpack.c.b16 %v5262, %v5261
  %v5297 = vpack.c.b16 %v5264, %v5263
  %v5298 = vpack.c.b16 %v5266, %v5265
  %5331 = vmatprep.subr.bf16.mxu0 0
  %5332 = vmatpush1.bf16.msra.mxu0 %v5267
  %5333 = vmatprep.subr.bf16.mxu0 0
  %5334 = vmatpush1.bf16.msra.mxu0 %v5268
  %5335 = vmatprep.subr.bf16.mxu0 0
  %5336 = vmatpush1.bf16.msra.mxu0 %v5269
  %5337 = vmatprep.subr.bf16.mxu0 0
  %5338 = vmatpush1.bf16.msra.mxu0 %v5270
  %5339 = vmatprep.subr.bf16.mxu0 0
  %5340 = vmatpush1.bf16.msra.mxu0 %v5271
  %5341 = vmatprep.subr.bf16.mxu0 0
  %5342 = vmatpush1.bf16.msra.mxu0 %v5272
  %5343 = vmatprep.subr.bf16.mxu0 0
  %5344 = vmatpush1.bf16.msra.mxu0 %v5273
  %5345 = vmatprep.subr.bf16.mxu0 0
  %5346 = vmatpush1.bf16.msra.mxu0 %v5274
  %5347 = vmatprep.subr.bf16.mxu0 0
  %5348 = vmatpush1.bf16.msra.mxu0 %v5275
  %5349 = vmatprep.subr.bf16.mxu0 0
  %5350 = vmatpush1.bf16.msra.mxu0 %v5276
  %5351 = vmatprep.subr.bf16.mxu0 0
  %5352 = vmatpush1.bf16.msra.mxu0 %v5277
  %5353 = vmatprep.subr.bf16.mxu0 0
  %5354 = vmatpush1.bf16.msra.mxu0 %v5278
  %5355 = vmatprep.subr.bf16.mxu0 0
  %5356 = vmatpush1.bf16.msra.mxu0 %v5279
  %5357 = vmatprep.subr.bf16.mxu0 0
  %5358 = vmatpush1.bf16.msra.mxu0 %v5280
  %5359 = vmatprep.subr.bf16.mxu0 0
  %5360 = vmatpush1.bf16.msra.mxu0 %v5281
  %5361 = vmatprep.subr.bf16.mxu0 0
  %5362 = vmatpush1.bf16.msra.mxu0 %v5282
  %5363 = vmatprep.mubr.bf16.mxu0 %v4565
  %5364 = vmatmul.mubr.bf16.gmra.mrb[0].mxu0 %v4564
  %v5365 = vpop.f32.mrb[0].mxu0
  %v5366 = vadd.f32 %v5133, %v5365
  %v5367 = vpop.f32.mrb[0].mxu0
  %v5368 = vpop.f32.mrb[0].mxu0
  %v5369 = vadd.f32 %v5136, %v5368
  %v5370 = vpop.f32.mrb[0].mxu0
  %5371 = vdwg.mxu0
  %5372 = vmatprep.subr.bf16.mxu0 0
  %5373 = vmatpush1.bf16.msra.mxu0 %v5283
  %5374 = vmatprep.subr.bf16.mxu0 0
  %5375 = vmatpush1.bf16.msra.mxu0 %v5284
  %5376 = vmatprep.subr.bf16.mxu0 0
  %5377 = vmatpush1.bf16.msra.mxu0 %v5285
  %5378 = vmatprep.subr.bf16.mxu0 0
  %5379 = vmatpush1.bf16.msra.mxu0 %v5286
  %5380 = vmatprep.subr.bf16.mxu0 0
  %5381 = vmatpush1.bf16.msra.mxu0 %v5287
  %5382 = vmatprep.subr.bf16.mxu0 0
  %5383 = vmatpush1.bf16.msra.mxu0 %v5288
  %5384 = vmatprep.subr.bf16.mxu0 0
  %5385 = vmatpush1.bf16.msra.mxu0 %v5289
  %5386 = vmatprep.subr.bf16.mxu0 0
  %5387 = vmatpush1.bf16.msra.mxu0 %v5290
  %5388 = vmatprep.subr.bf16.mxu0 0
  %5389 = vmatpush1.bf16.msra.mxu0 %v5291
  %5390 = vmatprep.subr.bf16.mxu0 0
  %5391 = vmatpush1.bf16.msra.mxu0 %v5292
  %5392 = vmatprep.subr.bf16.mxu0 0
  %5393 = vmatpush1.bf16.msra.mxu0 %v5293
  %5394 = vmatprep.subr.bf16.mxu0 0
  %5395 = vmatpush1.bf16.msra.mxu0 %v5294
  %5396 = vmatprep.subr.bf16.mxu0 0
  %5397 = vmatpush1.bf16.msra.mxu0 %v5295
  %5398 = vmatprep.subr.bf16.mxu0 0
  %5399 = vmatpush1.bf16.msra.mxu0 %v5296
  %5400 = vmatprep.subr.bf16.mxu0 0
  %5401 = vmatpush1.bf16.msra.mxu0 %v5297
  %5402 = vmatprep.subr.bf16.mxu0 0
  %5403 = vmatpush1.bf16.msra.mxu0 %v5298
  %5404 = vmatprep.mubr.bf16.mxu0 %v4567
  %5405 = vmatmul.mubr.bf16.gmra.mrb[0].mxu0 %v4566
  %v5406 = vpop.f32.mrb[0].mxu0
  %v5407 = vadd.f32 %v5366, %v5406
  %v5408 = vpop.f32.mrb[0].mxu0
  %v5409 = vpop.f32.mrb[0].mxu0
  %v5410 = vadd.f32 %v5369, %v5409
  %v5411 = vpop.f32.mrb[0].mxu0
  %5412 = vdwg.mxu0
  %v5413 = vld [vmem:[%s4395 + $0x20] sm:$0xff]
  %v5414 = vld [vmem:[%s4395 + $0x28] sm:$0xff]
  %v5415 = vld [vmem:[%s4395 + $0x60] sm:$0xff]
  %v5416 = vld [vmem:[%s4395 + $0x68] sm:$0xff]
  %v5417 = vld [vmem:[%s4395 + $0xa0] sm:$0xff]
  %v5418 = vld [vmem:[%s4395 + $0xa8] sm:$0xff]
  %v5419 = vld [vmem:[%s4395 + $0xe0] sm:$0xff]
  %v5420 = vld [vmem:[%s4395 + $0xe8] sm:$0xff]
  %v5421 = vld [vmem:[%s4404 + $0x8] sm:$0xf]
  %v5423 = vlaneseq
  %v5424 = vshrl.u32 %v5423, 7
  %v5425 = vsub.s32 0, %v5424
  %v5426 = vrot.slane %v5421, %v5425
  %v5427 = vlaneseq
  %v5428 = vshrl.u32 %v5427, 7
  %v5429 = vsub.s32 1, %v5428
  %v5430 = vrot.slane %v5421, %v5429
  %v5431 = vlaneseq
  %v5432 = vshrl.u32 %v5431, 7
  %v5433 = vsub.s32 2, %v5432
  %v5434 = vrot.slane %v5421, %v5433
  %v5435 = vlaneseq
  %v5436 = vshrl.u32 %v5435, 7
  %v5437 = vsub.s32 3, %v5436
  %v5438 = vrot.slane %v5421, %v5437
  %v5451 = vunpack.c.l.b16 %v5413
  %v5452 = vunpack.c.h.b16 %v5413
  %v5453 = vunpack.c.l.b16 %v5414
  %v5454 = vunpack.c.h.b16 %v5414
  %v5455 = vunpack.c.l.b16 %v5415
  %v5456 = vunpack.c.h.b16 %v5415
  %v5457 = vunpack.c.l.b16 %v5416
  %v5458 = vunpack.c.h.b16 %v5416
  %v5459 = vunpack.c.l.b16 %v5417
  %v5460 = vunpack.c.h.b16 %v5417
  %v5461 = vunpack.c.l.b16 %v5418
  %v5462 = vunpack.c.h.b16 %v5418
  %v5463 = vunpack.c.l.b16 %v5419
  %v5464 = vunpack.c.h.b16 %v5419
  %v5465 = vunpack.c.l.b16 %v5420
  %v5466 = vunpack.c.h.b16 %v5420
  %v5467 = vpack.c.b16 %v5455, %v5451
  %v5468 = vpack.c.b16 %v5456, %v5452
  %v5469 = vpack.c.b16 %v5457, %v5453
  %v5470 = vpack.c.b16 %v5458, %v5454
  %v5471 = vpack.c.b16 %v5463, %v5459
  %v5472 = vpack.c.b16 %v5464, %v5460
  %v5473 = vpack.c.b16 %v5465, %v5461
  %v5474 = vpack.c.b16 %v5466, %v5462
  %5483 = vmatprep.subr.bf16.mxu0 %v5468
  %5484 = vmatpush1.bf16.msra.mxu0 %v5467
  %5485 = vmatprep.subr.bf16.mxu0 %v5472
  %5486 = vmatpush1.bf16.msra.mxu0 %v5471
  %5487 = vmatprep.subr.bf16.mxu0 0
  %5488 = vmatpush1.bf16.msra.mxu0 0
  %5489 = vmatprep.subr.bf16.mxu0 0
  %5490 = vmatpush1.bf16.msra.mxu0 0
  %5491 = vmatprep.subr.bf16.mxu0 0
  %5492 = vmatpush1.bf16.msra.mxu0 0
  %5493 = vmatprep.subr.bf16.mxu0 0
  %5494 = vmatpush1.bf16.msra.mxu0 0
  %5495 = vmatprep.subr.bf16.mxu0 0
  %5496 = vmatpush1.bf16.msra.mxu0 0
  %5497 = vmatprep.subr.bf16.mxu0 0
  %5498 = vmatpush1.bf16.msra.mxu0 0
  %5499 = vmatprep.subr.bf16.mxu0 0
  %5500 = vmatpush1.bf16.msra.mxu0 0
  %5501 = vmatprep.subr.bf16.mxu0 0
  %5502 = vmatpush1.bf16.msra.mxu0 0
  %5503 = vmatprep.subr.bf16.mxu0 0
  %5504 = vmatpush1.bf16.msra.mxu0 0
  %5505 = vmatprep.subr.bf16.mxu0 0
  %5506 = vmatpush1.bf16.msra.mxu0 0
  %5507 = vmatprep.subr.bf16.mxu0 0
  %5508 = vmatpush1.bf16.msra.mxu0 0
  %5509 = vmatprep.subr.bf16.mxu0 0
  %5510 = vmatpush1.bf16.msra.mxu0 0
  %5511 = vmatprep.subr.bf16.mxu0 0
  %5512 = vmatpush1.bf16.msra.mxu0 0
  %5513 = vmatprep.subr.bf16.mxu0 0
  %5514 = vmatpush1.bf16.msra.mxu0 0
  %5515 = vmatprep.mubr.bf16.mxu0 0
  %5516 = vmatmul.mubr.bf16.gmra.mrb[0].mxu0 %v4468
  %v5517 = vpop.f32.mrb[0].mxu0
  %v5518 = vadd.f32 %v5426, %v5517
  %v5519 = vpop.f32.mrb[0].mxu0
  %v5520 = vadd.f32 %v5430, %v5519
  %v5521 = vpop.f32.mrb[0].mxu0
  %v5522 = vadd.f32 %v5426, %v5521
  %v5523 = vpop.f32.mrb[0].mxu0
  %v5524 = vadd.f32 %v5430, %v5523
  %5525 = vdwg.mxu0
  %5526 = vmatprep.subr.bf16.mxu0 %v5470
  %5527 = vmatpush1.bf16.msra.mxu0 %v5469
  %5528 = vmatprep.subr.bf16.mxu0 %v5474
  %5529 = vmatpush1.bf16.msra.mxu0 %v5473
  %5530 = vmatprep.subr.bf16.mxu0 0
  %5531 = vmatpush1.bf16.msra.mxu0 0
  %5532 = vmatprep.subr.bf16.mxu0 0
  %5533 = vmatpush1.bf16.msra.mxu0 0
  %5534 = vmatprep.subr.bf16.mxu0 0
  %5535 = vmatpush1.bf16.msra.mxu0 0
  %5536 = vmatprep.subr.bf16.mxu0 0
  %5537 = vmatpush1.bf16.msra.mxu0 0
  %5538 = vmatprep.subr.bf16.mxu0 0
  %5539 = vmatpush1.bf16.msra.mxu0 0
  %5540 = vmatprep.subr.bf16.mxu0 0
  %5541 = vmatpush1.bf16.msra.mxu0 0
  %5542 = vmatprep.subr.bf16.mxu0 0
  %5543 = vmatpush1.bf16.msra.mxu0 0
  %5544 = vmatprep.subr.bf16.mxu0 0
  %5545 = vmatpush1.bf16.msra.mxu0 0
  %5546 = vmatprep.subr.bf16.mxu0 0
  %5547 = vmatpush1.bf16.msra.mxu0 0
  %5548 = vmatprep.subr.bf16.mxu0 0
  %5549 = vmatpush1.bf16.msra.mxu0 0
  %5550 = vmatprep.subr.bf16.mxu0 0
  %5551 = vmatpush1.bf16.msra.mxu0 0
  %5552 = vmatprep.subr.bf16.mxu0 0
  %5553 = vmatpush1.bf16.msra.mxu0 0
  %5554 = vmatprep.subr.bf16.mxu0 0
  %5555 = vmatpush1.bf16.msra.mxu0 0
  %5556 = vmatprep.subr.bf16.mxu0 0
  %5557 = vmatpush1.bf16.msra.mxu0 0
  %5558 = vmatprep.mubr.bf16.mxu0 0
  %5559 = vmatmul.mubr.bf16.gmra.mrb[0].mxu0 %v4468
  %v5560 = vpop.f32.mrb[0].mxu0
  %v5561 = vadd.f32 %v5434, %v5560
  %v5562 = vpop.f32.mrb[0].mxu0
  %v5563 = vadd.f32 %v5438, %v5562
  %v5564 = vpop.f32.mrb[0].mxu0
  %v5565 = vadd.f32 %v5434, %v5564
  %v5566 = vpop.f32.mrb[0].mxu0
  %v5567 = vadd.f32 %v5438, %v5566
  %5568 = vdwg.mxu0
  %v5569 = vmax.f32 %v5518, 0.0
  %v5570 = vmax.f32 %v5520, 0.0
  %v5571 = vmax.f32 %v5561, 0.0
  %v5572 = vmax.f32 %v5563, 0.0
  %v5573 = vmax.f32 %v5522, 0.0
  %v5574 = vmax.f32 %v5524, 0.0
  %v5575 = vmax.f32 %v5565, 0.0
  %v5576 = vmax.f32 %v5567, 0.0
  %v5577 = vpack.c.bf16 %v5573, %v5569
  %v5578 = vpack.c.bf16 %v5574, %v5570
  %v5579 = vpack.c.bf16 %v5575, %v5571
  %v5580 = vpack.c.bf16 %v5576, %v5572
  %v5581 = vld [vmem:[%s4568 + $0x200] sm:$0xf]
  %v5582 = vld [vmem:[%s4568 + $0x204] sm:$0xf]
  %v5583 = vld [vmem:[%s4568 + $0x208] sm:$0xf]
  %v5584 = vld [vmem:[%s4568 + $0x20c] sm:$0xf]
  %v5585 = vld [vmem:[%s4568 + $0x210] sm:$0xf]
  %v5586 = vld [vmem:[%s4568 + $0x214] sm:$0xf]
  %v5587 = vld [vmem:[%s4568 + $0x218] sm:$0xf]
  %v5588 = vld [vmem:[%s4568 + $0x21c] sm:$0xf]
  %v5589 = vld [vmem:[%s4568 + $0x220] sm:$0xf]
  %v5590 = vld [vmem:[%s4568 + $0x224] sm:$0xf]
  %v5591 = vld [vmem:[%s4568 + $0x228] sm:$0xf]
  %v5592 = vld [vmem:[%s4568 + $0x22c] sm:$0xf]
  %v5593 = vld [vmem:[%s4568 + $0x230] sm:$0xf]
  %v5594 = vld [vmem:[%s4568 + $0x234] sm:$0xf]
  %v5595 = vld [vmem:[%s4568 + $0x238] sm:$0xf]
  %v5596 = vld [vmem:[%s4568 + $0x23c] sm:$0xf]
  %v5597 = vld [vmem:[%s4568 + $0x240] sm:$0xf]
  %v5598 = vld [vmem:[%s4568 + $0x244] sm:$0xf]
  %v5599 = vld [vmem:[%s4568 + $0x248] sm:$0xf]
  %v5600 = vld [vmem:[%s4568 + $0x24c] sm:$0xf]
  %v5601 = vld [vmem:[%s4568 + $0x250] sm:$0xf]
  %v5602 = vld [vmem:[%s4568 + $0x254] sm:$0xf]
  %v5603 = vld [vmem:[%s4568 + $0x258] sm:$0xf]
  %v5604 = vld [vmem:[%s4568 + $0x25c] sm:$0xf]
  %v5605 = vld [vmem:[%s4568 + $0x260] sm:$0xf]
  %v5606 = vld [vmem:[%s4568 + $0x264] sm:$0xf]
  %v5607 = vld [vmem:[%s4568 + $0x268] sm:$0xf]
  %v5608 = vld [vmem:[%s4568 + $0x26c] sm:$0xf]
  %v5609 = vld [vmem:[%s4568 + $0x270] sm:$0xf]
  %v5610 = vld [vmem:[%s4568 + $0x274] sm:$0xf]
  %v5611 = vld [vmem:[%s4568 + $0x278] sm:$0xf]
  %v5612 = vld [vmem:[%s4568 + $0x27c] sm:$0xf]
  %v5613 = vld [vmem:[%s4568 + $0x280] sm:$0xf]
  %v5614 = vld [vmem:[%s4568 + $0x284] sm:$0xf]
  %v5615 = vld [vmem:[%s4568 + $0x288] sm:$0xf]
  %v5616 = vld [vmem:[%s4568 + $0x28c] sm:$0xf]
  %v5617 = vld [vmem:[%s4568 + $0x290] sm:$0xf]
  %v5618 = vld [vmem:[%s4568 + $0x294] sm:$0xf]
  %v5619 = vld [vmem:[%s4568 + $0x298] sm:$0xf]
  %v5620 = vld [vmem:[%s4568 + $0x29c] sm:$0xf]
  %v5621 = vld [vmem:[%s4568 + $0x2a0] sm:$0xf]
  %v5622 = vld [vmem:[%s4568 + $0x2a4] sm:$0xf]
  %v5623 = vld [vmem:[%s4568 + $0x2a8] sm:$0xf]
  %v5624 = vld [vmem:[%s4568 + $0x2ac] sm:$0xf]
  %v5625 = vld [vmem:[%s4568 + $0x2b0] sm:$0xf]
  %v5626 = vld [vmem:[%s4568 + $0x2b4] sm:$0xf]
  %v5627 = vld [vmem:[%s4568 + $0x2b8] sm:$0xf]
  %v5628 = vld [vmem:[%s4568 + $0x2bc] sm:$0xf]
  %v5629 = vld [vmem:[%s4568 + $0x2c0] sm:$0xf]
  %v5630 = vld [vmem:[%s4568 + $0x2c4] sm:$0xf]
  %v5631 = vld [vmem:[%s4568 + $0x2c8] sm:$0xf]
  %v5632 = vld [vmem:[%s4568 + $0x2cc] sm:$0xf]
  %v5633 = vld [vmem:[%s4568 + $0x2d0] sm:$0xf]
  %v5634 = vld [vmem:[%s4568 + $0x2d4] sm:$0xf]
  %v5635 = vld [vmem:[%s4568 + $0x2d8] sm:$0xf]
  %v5636 = vld [vmem:[%s4568 + $0x2dc] sm:$0xf]
  %v5637 = vld [vmem:[%s4568 + $0x2e0] sm:$0xf]
  %v5638 = vld [vmem:[%s4568 + $0x2e4] sm:$0xf]
  %v5639 = vld [vmem:[%s4568 + $0x2e8] sm:$0xf]
  %v5640 = vld [vmem:[%s4568 + $0x2ec] sm:$0xf]
  %v5641 = vld [vmem:[%s4568 + $0x2f0] sm:$0xf]
  %v5642 = vld [vmem:[%s4568 + $0x2f4] sm:$0xf]
  %v5643 = vld [vmem:[%s4568 + $0x2f8] sm:$0xf]
  %v5644 = vld [vmem:[%s4568 + $0x2fc] sm:$0xf]
  %v5709 = vunpack.c.l.b16 %v5581
  %v5710 = vunpack.c.l.b16 %v5582
  %v5711 = vunpack.c.l.b16 %v5583
  %v5712 = vunpack.c.l.b16 %v5584
  %v5713 = vunpack.c.l.b16 %v5585
  %v5714 = vunpack.c.l.b16 %v5586
  %v5715 = vunpack.c.l.b16 %v5587
  %v5716 = vunpack.c.l.b16 %v5588
  %v5717 = vunpack.c.l.b16 %v5589
  %v5718 = vunpack.c.l.b16 %v5590
  %v5719 = vunpack.c.l.b16 %v5591
  %v5720 = vunpack.c.l.b16 %v5592
  %v5721 = vunpack.c.l.b16 %v5593
  %v5722 = vunpack.c.l.b16 %v5594
  %v5723 = vunpack.c.l.b16 %v5595
  %v5724 = vunpack.c.l.b16 %v5596
  %v5725 = vunpack.c.l.b16 %v5597
  %v5726 = vunpack.c.l.b16 %v5598
  %v5727 = vunpack.c.l.b16 %v5599
  %v5728 = vunpack.c.l.b16 %v5600
  %v5729 = vunpack.c.l.b16 %v5601
  %v5730 = vunpack.c.l.b16 %v5602
  %v5731 = vunpack.c.l.b16 %v5603
  %v5732 = vunpack.c.l.b16 %v5604
  %v5733 = vunpack.c.l.b16 %v5605
  %v5734 = vunpack.c.l.b16 %v5606
  %v5735 = vunpack.c.l.b16 %v5607
  %v5736 = vunpack.c.l.b16 %v5608
  %v5737 = vunpack.c.l.b16 %v5609
  %v5738 = vunpack.c.l.b16 %v5610
  %v5739 = vunpack.c.l.b16 %v5611
  %v5740 = vunpack.c.l.b16 %v5612
  %v5741 = vunpack.c.l.b16 %v5613
  %v5742 = vunpack.c.l.b16 %v5614
  %v5743 = vunpack.c.l.b16 %v5615
  %v5744 = vunpack.c.l.b16 %v5616
  %v5745 = vunpack.c.l.b16 %v5617
  %v5746 = vunpack.c.l.b16 %v5618
  %v5747 = vunpack.c.l.b16 %v5619
  %v5748 = vunpack.c.l.b16 %v5620
  %v5749 = vunpack.c.l.b16 %v5621
  %v5750 = vunpack.c.l.b16 %v5622
  %v5751 = vunpack.c.l.b16 %v5623
  %v5752 = vunpack.c.l.b16 %v5624
  %v5753 = vunpack.c.l.b16 %v5625
  %v5754 = vunpack.c.l.b16 %v5626
  %v5755 = vunpack.c.l.b16 %v5627
  %v5756 = vunpack.c.l.b16 %v5628
  %v5757 = vunpack.c.l.b16 %v5629
  %v5758 = vunpack.c.l.b16 %v5630
  %v5759 = vunpack.c.l.b16 %v5631
  %v5760 = vunpack.c.l.b16 %v5632
  %v5761 = vunpack.c.l.b16 %v5633
  %v5762 = vunpack.c.l.b16 %v5634
  %v5763 = vunpack.c.l.b16 %v5635
  %v5764 = vunpack.c.l.b16 %v5636
  %v5765 = vunpack.c.l.b16 %v5637
  %v5766 = vunpack.c.l.b16 %v5638
  %v5767 = vunpack.c.l.b16 %v5639
  %v5768 = vunpack.c.l.b16 %v5640
  %v5769 = vunpack.c.l.b16 %v5641
  %v5770 = vunpack.c.l.b16 %v5642
  %v5771 = vunpack.c.l.b16 %v5643
  %v5772 = vunpack.c.l.b16 %v5644
  %v5773 = vpack.c.b16 %v5710, %v5709
  %v5774 = vpack.c.b16 %v5712, %v5711
  %v5775 = vpack.c.b16 %v5714, %v5713
  %v5776 = vpack.c.b16 %v5716, %v5715
  %v5777 = vpack.c.b16 %v5718, %v5717
  %v5778 = vpack.c.b16 %v5720, %v5719
  %v5779 = vpack.c.b16 %v5722, %v5721
  %v5780 = vpack.c.b16 %v5724, %v5723
  %v5781 = vpack.c.b16 %v5726, %v5725
  %v5782 = vpack.c.b16 %v5728, %v5727
  %v5783 = vpack.c.b16 %v5730, %v5729
  %v5784 = vpack.c.b16 %v5732, %v5731
  %v5785 = vpack.c.b16 %v5734, %v5733
  %v5786 = vpack.c.b16 %v5736, %v5735
  %v5787 = vpack.c.b16 %v5738, %v5737
  %v5788 = vpack.c.b16 %v5740, %v5739
  %v5789 = vpack.c.b16 %v5742, %v5741
  %v5790 = vpack.c.b16 %v5744, %v5743
  %v5791 = vpack.c.b16 %v5746, %v5745
  %v5792 = vpack.c.b16 %v5748, %v5747
  %v5793 = vpack.c.b16 %v5750, %v5749
  %v5794 = vpack.c.b16 %v5752, %v5751
  %v5795 = vpack.c.b16 %v5754, %v5753
  %v5796 = vpack.c.b16 %v5756, %v5755
  %v5797 = vpack.c.b16 %v5758, %v5757
  %v5798 = vpack.c.b16 %v5760, %v5759
  %v5799 = vpack.c.b16 %v5762, %v5761
  %v5800 = vpack.c.b16 %v5764, %v5763
  %v5801 = vpack.c.b16 %v5766, %v5765
  %v5802 = vpack.c.b16 %v5768, %v5767
  %v5803 = vpack.c.b16 %v5770, %v5769
  %v5804 = vpack.c.b16 %v5772, %v5771
  %5837 = vmatprep.subr.bf16.mxu0 0
  %5838 = vmatpush1.bf16.msra.mxu0 %v5773
  %5839 = vmatprep.subr.bf16.mxu0 0
  %5840 = vmatpush1.bf16.msra.mxu0 %v5774
  %5841 = vmatprep.subr.bf16.mxu0 0
  %5842 = vmatpush1.bf16.msra.mxu0 %v5775
  %5843 = vmatprep.subr.bf16.mxu0 0
  %5844 = vmatpush1.bf16.msra.mxu0 %v5776
  %5845 = vmatprep.subr.bf16.mxu0 0
  %5846 = vmatpush1.bf16.msra.mxu0 %v5777
  %5847 = vmatprep.subr.bf16.mxu0 0
  %5848 = vmatpush1.bf16.msra.mxu0 %v5778
  %5849 = vmatprep.subr.bf16.mxu0 0
  %5850 = vmatpush1.bf16.msra.mxu0 %v5779
  %5851 = vmatprep.subr.bf16.mxu0 0
  %5852 = vmatpush1.bf16.msra.mxu0 %v5780
  %5853 = vmatprep.subr.bf16.mxu0 0
  %5854 = vmatpush1.bf16.msra.mxu0 %v5781
  %5855 = vmatprep.subr.bf16.mxu0 0
  %5856 = vmatpush1.bf16.msra.mxu0 %v5782
  %5857 = vmatprep.subr.bf16.mxu0 0
  %5858 = vmatpush1.bf16.msra.mxu0 %v5783
  %5859 = vmatprep.subr.bf16.mxu0 0
  %5860 = vmatpush1.bf16.msra.mxu0 %v5784
  %5861 = vmatprep.subr.bf16.mxu0 0
  %5862 = vmatpush1.bf16.msra.mxu0 %v5785
  %5863 = vmatprep.subr.bf16.mxu0 0
  %5864 = vmatpush1.bf16.msra.mxu0 %v5786
  %5865 = vmatprep.subr.bf16.mxu0 0
  %5866 = vmatpush1.bf16.msra.mxu0 %v5787
  %5867 = vmatprep.subr.bf16.mxu0 0
  %5868 = vmatpush1.bf16.msra.mxu0 %v5788
  %5869 = vmatprep.mubr.bf16.mxu0 %v5578
  %5870 = vmatmul.mubr.bf16.gmra.mrb[0].mxu0 %v5577
  %v5871 = vpop.f32.mrb[0].mxu0
  %v5872 = vadd.f32 0.0, %v5871
  %v5873 = vpop.f32.mrb[0].mxu0
  %v5874 = vpop.f32.mrb[0].mxu0
  %v5875 = vadd.f32 0.0, %v5874
  %v5876 = vpop.f32.mrb[0].mxu0
  %5877 = vdwg.mxu0
  %5878 = vmatprep.subr.bf16.mxu0 0
  %5879 = vmatpush1.bf16.msra.mxu0 %v5789
  %5880 = vmatprep.subr.bf16.mxu0 0
  %5881 = vmatpush1.bf16.msra.mxu0 %v5790
  %5882 = vmatprep.subr.bf16.mxu0 0
  %5883 = vmatpush1.bf16.msra.mxu0 %v5791
  %5884 = vmatprep.subr.bf16.mxu0 0
  %5885 = vmatpush1.bf16.msra.mxu0 %v5792
  %5886 = vmatprep.subr.bf16.mxu0 0
  %5887 = vmatpush1.bf16.msra.mxu0 %v5793
  %5888 = vmatprep.subr.bf16.mxu0 0
  %5889 = vmatpush1.bf16.msra.mxu0 %v5794
  %5890 = vmatprep.subr.bf16.mxu0 0
  %5891 = vmatpush1.bf16.msra.mxu0 %v5795
  %5892 = vmatprep.subr.bf16.mxu0 0
  %5893 = vmatpush1.bf16.msra.mxu0 %v5796
  %5894 = vmatprep.subr.bf16.mxu0 0
  %5895 = vmatpush1.bf16.msra.mxu0 %v5797
  %5896 = vmatprep.subr.bf16.mxu0 0
  %5897 = vmatpush1.bf16.msra.mxu0 %v5798
  %5898 = vmatprep.subr.bf16.mxu0 0
  %5899 = vmatpush1.bf16.msra.mxu0 %v5799
  %5900 = vmatprep.subr.bf16.mxu0 0
  %5901 = vmatpush1.bf16.msra.mxu0 %v5800
  %5902 = vmatprep.subr.bf16.mxu0 0
  %5903 = vmatpush1.bf16.msra.mxu0 %v5801
  %5904 = vmatprep.subr.bf16.mxu0 0
  %5905 = vmatpush1.bf16.msra.mxu0 %v5802
  %5906 = vmatprep.subr.bf16.mxu0 0
  %5907 = vmatpush1.bf16.msra.mxu0 %v5803
  %5908 = vmatprep.subr.bf16.mxu0 0
  %5909 = vmatpush1.bf16.msra.mxu0 %v5804
  %5910 = vmatprep.mubr.bf16.mxu0 %v5580
  %5911 = vmatmul.mubr.bf16.gmra.mrb[0].mxu0 %v5579
  %v5912 = vpop.f32.mrb[0].mxu0
  %v5913 = vadd.f32 %v5872, %v5912
  %v5914 = vpop.f32.mrb[0].mxu0
  %v5915 = vpop.f32.mrb[0].mxu0
  %v5916 = vadd.f32 %v5875, %v5915
  %v5917 = vpop.f32.mrb[0].mxu0
  %5918 = vdwg.mxu0
  %v5919 = vadd.f32 %v5407, %v5913
  %v5920 = vadd.f32 %v5410, %v5916
  %v5921 = vld [vmem:[%s4395 + $0x30] sm:$0xff]
  %v5922 = vld [vmem:[%s4395 + $0x38] sm:$0xff]
  %v5923 = vld [vmem:[%s4395 + $0x70] sm:$0xff]
  %v5924 = vld [vmem:[%s4395 + $0x78] sm:$0xff]
  %v5925 = vld [vmem:[%s4395 + $0xb0] sm:$0xff]
  %v5926 = vld [vmem:[%s4395 + $0xb8] sm:$0xff]
  %v5927 = vld [vmem:[%s4395 + $0xf0] sm:$0xff]
  %v5928 = vld [vmem:[%s4395 + $0xf8] sm:$0xff]
  %v5929 = vld [vmem:[%s4404 + $0xc] sm:$0xf]
  %v5931 = vlaneseq
  %v5932 = vshrl.u32 %v5931, 7
  %v5933 = vsub.s32 0, %v5932
  %v5934 = vrot.slane %v5929, %v5933
  %v5935 = vlaneseq
  %v5936 = vshrl.u32 %v5935, 7
  %v5937 = vsub.s32 1, %v5936
  %v5938 = vrot.slane %v5929, %v5937
  %v5939 = vlaneseq
  %v5940 = vshrl.u32 %v5939, 7
  %v5941 = vsub.s32 2, %v5940
  %v5942 = vrot.slane %v5929, %v5941
  %v5943 = vlaneseq
  %v5944 = vshrl.u32 %v5943, 7
  %v5945 = vsub.s32 3, %v5944
  %v5946 = vrot.slane %v5929, %v5945
  %v5959 = vunpack.c.l.b16 %v5921
  %v5960 = vunpack.c.h.b16 %v5921
  %v5961 = vunpack.c.l.b16 %v5922
  %v5962 = vunpack.c.h.b16 %v5922
  %v5963 = vunpack.c.l.b16 %v5923
  %v5964 = vunpack.c.h.b16 %v5923
  %v5965 = vunpack.c.l.b16 %v5924
  %v5966 = vunpack.c.h.b16 %v5924
  %v5967 = vunpack.c.l.b16 %v5925
  %v5968 = vunpack.c.h.b16 %v5925
  %v5969 = vunpack.c.l.b16 %v5926
  %v5970 = vunpack.c.h.b16 %v5926
  %v5971 = vunpack.c.l.b16 %v5927
  %v5972 = vunpack.c.h.b16 %v5927
  %v5973 = vunpack.c.l.b16 %v5928
  %v5974 = vunpack.c.h.b16 %v5928
  %v5975 = vpack.c.b16 %v5963, %v5959
  %v5976 = vpack.c.b16 %v5964, %v5960
  %v5977 = vpack.c.b16 %v5965, %v5961
  %v5978 = vpack.c.b16 %v5966, %v5962
  %v5979 = vpack.c.b16 %v5971, %v5967
  %v5980 = vpack.c.b16 %v5972, %v5968
  %v5981 = vpack.c.b16 %v5973, %v5969
  %v5982 = vpack.c.b16 %v5974, %v5970
  %5991 = vmatprep.subr.bf16.mxu0 %v5976
  %5992 = vmatpush1.bf16.msra.mxu0 %v5975
  %5993 = vmatprep.subr.bf16.mxu0 %v5980
  %5994 = vmatpush1.bf16.msra.mxu0 %v5979
  %5995 = vmatprep.subr.bf16.mxu0 0
  %5996 = vmatpush1.bf16.msra.mxu0 0
  %5997 = vmatprep.subr.bf16.mxu0 0
  %5998 = vmatpush1.bf16.msra.mxu0 0
  %5999 = vmatprep.subr.bf16.mxu0 0
  %6000 = vmatpush1.bf16.msra.mxu0 0
  %6001 = vmatprep.subr.bf16.mxu0 0
  %6002 = vmatpush1.bf16.msra.mxu0 0
  %6003 = vmatprep.subr.bf16.mxu0 0
  %6004 = vmatpush1.bf16.msra.mxu0 0
  %6005 = vmatprep.subr.bf16.mxu0 0
  %6006 = vmatpush1.bf16.msra.mxu0 0
  %6007 = vmatprep.subr.bf16.mxu0 0
  %6008 = vmatpush1.bf16.msra.mxu0 0
  %6009 = vmatprep.subr.bf16.mxu0 0
  %6010 = vmatpush1.bf16.msra.mxu0 0
  %6011 = vmatprep.subr.bf16.mxu0 0
  %6012 = vmatpush1.bf16.msra.mxu0 0
  %6013 = vmatprep.subr.bf16.mxu0 0
  %6014 = vmatpush1.bf16.msra.mxu0 0
  %6015 = vmatprep.subr.bf16.mxu0 0
  %6016 = vmatpush1.bf16.msra.mxu0 0
  %6017 = vmatprep.subr.bf16.mxu0 0
  %6018 = vmatpush1.bf16.msra.mxu0 0
  %6019 = vmatprep.subr.bf16.mxu0 0
  %6020 = vmatpush1.bf16.msra.mxu0 0
  %6021 = vmatprep.subr.bf16.mxu0 0
  %6022 = vmatpush1.bf16.msra.mxu0 0
  %6023 = vmatprep.mubr.bf16.mxu0 0
  %6024 = vmatmul.mubr.bf16.gmra.mrb[0].mxu0 %v4468
  %v6025 = vpop.f32.mrb[0].mxu0
  %v6026 = vadd.f32 %v5934, %v6025
  %v6027 = vpop.f32.mrb[0].mxu0
  %v6028 = vadd.f32 %v5938, %v6027
  %v6029 = vpop.f32.mrb[0].mxu0
  %v6030 = vadd.f32 %v5934, %v6029
  %v6031 = vpop.f32.mrb[0].mxu0
  %v6032 = vadd.f32 %v5938, %v6031
  %6033 = vdwg.mxu0
  %6034 = vmatprep.subr.bf16.mxu0 %v5978
  %6035 = vmatpush1.bf16.msra.mxu0 %v5977
  %6036 = vmatprep.subr.bf16.mxu0 %v5982
  %6037 = vmatpush1.bf16.msra.mxu0 %v5981
  %6038 = vmatprep.subr.bf16.mxu0 0
  %6039 = vmatpush1.bf16.msra.mxu0 0
  %6040 = vmatprep.subr.bf16.mxu0 0
  %6041 = vmatpush1.bf16.msra.mxu0 0
  %6042 = vmatprep.subr.bf16.mxu0 0
  %6043 = vmatpush1.bf16.msra.mxu0 0
  %6044 = vmatprep.subr.bf16.mxu0 0
  %6045 = vmatpush1.bf16.msra.mxu0 0
  %6046 = vmatprep.subr.bf16.mxu0 0
  %6047 = vmatpush1.bf16.msra.mxu0 0
  %6048 = vmatprep.subr.bf16.mxu0 0
  %6049 = vmatpush1.bf16.msra.mxu0 0
  %6050 = vmatprep.subr.bf16.mxu0 0
  %6051 = vmatpush1.bf16.msra.mxu0 0
  %6052 = vmatprep.subr.bf16.mxu0 0
  %6053 = vmatpush1.bf16.msra.mxu0 0
  %6054 = vmatprep.subr.bf16.mxu0 0
  %6055 = vmatpush1.bf16.msra.mxu0 0
  %6056 = vmatprep.subr.bf16.mxu0 0
  %6057 = vmatpush1.bf16.msra.mxu0 0
  %6058 = vmatprep.subr.bf16.mxu0 0
  %6059 = vmatpush1.bf16.msra.mxu0 0
  %6060 = vmatprep.subr.bf16.mxu0 0
  %6061 = vmatpush1.bf16.msra.mxu0 0
  %6062 = vmatprep.subr.bf16.mxu0 0
  %6063 = vmatpush1.bf16.msra.mxu0 0
  %6064 = vmatprep.subr.bf16.mxu0 0
  %6065 = vmatpush1.bf16.msra.mxu0 0
  %6066 = vmatprep.mubr.bf16.mxu0 0
  %6067 = vmatmul.mubr.bf16.gmra.mrb[0].mxu0 %v4468
  %v6068 = vpop.f32.mrb[0].mxu0
  %v6069 = vadd.f32 %v5942, %v6068
  %v6070 = vpop.f32.mrb[0].mxu0
  %v6071 = vadd.f32 %v5946, %v6070
  %v6072 = vpop.f32.mrb[0].mxu0
  %v6073 = vadd.f32 %v5942, %v6072
  %v6074 = vpop.f32.mrb[0].mxu0
  %v6075 = vadd.f32 %v5946, %v6074
  %6076 = vdwg.mxu0
  %v6077 = vmax.f32 %v6026, 0.0
  %v6078 = vmax.f32 %v6028, 0.0
  %v6079 = vmax.f32 %v6069, 0.0
  %v6080 = vmax.f32 %v6071, 0.0
  %v6081 = vmax.f32 %v6030, 0.0
  %v6082 = vmax.f32 %v6032, 0.0
  %v6083 = vmax.f32 %v6073, 0.0
  %v6084 = vmax.f32 %v6075, 0.0
  %v6085 = vpack.c.bf16 %v6081, %v6077
  %v6086 = vpack.c.bf16 %v6082, %v6078
  %v6087 = vpack.c.bf16 %v6083, %v6079
  %v6088 = vpack.c.bf16 %v6084, %v6080
  %v6089 = vld [vmem:[%s4568 + $0x300] sm:$0xf]
  %v6090 = vld [vmem:[%s4568 + $0x304] sm:$0xf]
  %v6091 = vld [vmem:[%s4568 + $0x308] sm:$0xf]
  %v6092 = vld [vmem:[%s4568 + $0x30c] sm:$0xf]
  %v6093 = vld [vmem:[%s4568 + $0x310] sm:$0xf]
  %v6094 = vld [vmem:[%s4568 + $0x314] sm:$0xf]
  %v6095 = vld [vmem:[%s4568 + $0x318] sm:$0xf]
  %v6096 = vld [vmem:[%s4568 + $0x31c] sm:$0xf]
  %v6097 = vld [vmem:[%s4568 + $0x320] sm:$0xf]
  %v6098 = vld [vmem:[%s4568 + $0x324] sm:$0xf]
  %v6099 = vld [vmem:[%s4568 + $0x328] sm:$0xf]
  %v6100 = vld [vmem:[%s4568 + $0x32c] sm:$0xf]
  %v6101 = vld [vmem:[%s4568 + $0x330] sm:$0xf]
  %v6102 = vld [vmem:[%s4568 + $0x334] sm:$0xf]
  %v6103 = vld [vmem:[%s4568 + $0x338] sm:$0xf]
  %v6104 = vld [vmem:[%s4568 + $0x33c] sm:$0xf]
  %v6105 = vld [vmem:[%s4568 + $0x340] sm:$0xf]
  %v6106 = vld [vmem:[%s4568 + $0x344] sm:$0xf]
  %v6107 = vld [vmem:[%s4568 + $0x348] sm:$0xf]
  %v6108 = vld [vmem:[%s4568 + $0x34c] sm:$0xf]
  %v6109 = vld [vmem:[%s4568 + $0x350] sm:$0xf]
  %v6110 = vld [vmem:[%s4568 + $0x354] sm:$0xf]
  %v6111 = vld [vmem:[%s4568 + $0x358] sm:$0xf]
  %v6112 = vld [vmem:[%s4568 + $0x35c] sm:$0xf]
  %v6113 = vld [vmem:[%s4568 + $0x360] sm:$0xf]
  %v6114 = vld [vmem:[%s4568 + $0x364] sm:$0xf]
  %v6115 = vld [vmem:[%s4568 + $0x368] sm:$0xf]
  %v6116 = vld [vmem:[%s4568 + $0x36c] sm:$0xf]
  %v6117 = vld [vmem:[%s4568 + $0x370] sm:$0xf]
  %v6118 = vld [vmem:[%s4568 + $0x374] sm:$0xf]
  %v6119 = vld [vmem:[%s4568 + $0x378] sm:$0xf]
  %v6120 = vld [vmem:[%s4568 + $0x37c] sm:$0xf]
  %v6121 = vld [vmem:[%s4568 + $0x380] sm:$0xf]
  %v6122 = vld [vmem:[%s4568 + $0x384] sm:$0xf]
  %v6123 = vld [vmem:[%s4568 + $0x388] sm:$0xf]
  %v6124 = vld [vmem:[%s4568 + $0x38c] sm:$0xf]
  %v6125 = vld [vmem:[%s4568 + $0x390] sm:$0xf]
  %v6126 = vld [vmem:[%s4568 + $0x394] sm:$0xf]
  %v6127 = vld [vmem:[%s4568 + $0x398] sm:$0xf]
  %v6128 = vld [vmem:[%s4568 + $0x39c] sm:$0xf]
  %v6129 = vld [vmem:[%s4568 + $0x3a0] sm:$0xf]
  %v6130 = vld [vmem:[%s4568 + $0x3a4] sm:$0xf]
  %v6131 = vld [vmem:[%s4568 + $0x3a8] sm:$0xf]
  %v6132 = vld [vmem:[%s4568 + $0x3ac] sm:$0xf]
  %v6133 = vld [vmem:[%s4568 + $0x3b0] sm:$0xf]
  %v6134 = vld [vmem:[%s4568 + $0x3b4] sm:$0xf]
  %v6135 = vld [vmem:[%s4568 + $0x3b8] sm:$0xf]
  %v6136 = vld [vmem:[%s4568 + $0x3bc] sm:$0xf]
  %v6137 = vld [vmem:[%s4568 + $0x3c0] sm:$0xf]
  %v6138 = vld [vmem:[%s4568 + $0x3c4] sm:$0xf]
  %v6139 = vld [vmem:[%s4568 + $0x3c8] sm:$0xf]
  %v6140 = vld [vmem:[%s4568 + $0x3cc] sm:$0xf]
  %v6141 = vld [vmem:[%s4568 + $0x3d0] sm:$0xf]
  %v6142 = vld [vmem:[%s4568 + $0x3d4] sm:$0xf]
  %v6143 = vld [vmem:[%s4568 + $0x3d8] sm:$0xf]
  %v6144 = vld [vmem:[%s4568 + $0x3dc] sm:$0xf]
  %v6145 = vld [vmem:[%s4568 + $0x3e0] sm:$0xf]
  %v6146 = vld [vmem:[%s4568 + $0x3e4] sm:$0xf]
  %v6147 = vld [vmem:[%s4568 + $0x3e8] sm:$0xf]
  %v6148 = vld [vmem:[%s4568 + $0x3ec] sm:$0xf]
  %v6149 = vld [vmem:[%s4568 + $0x3f0] sm:$0xf]
  %v6150 = vld [vmem:[%s4568 + $0x3f4] sm:$0xf]
  %v6151 = vld [vmem:[%s4568 + $0x3f8] sm:$0xf]
  %v6152 = vld [vmem:[%s4568 + $0x3fc] sm:$0xf]
  %v6217 = vunpack.c.l.b16 %v6089
  %v6218 = vunpack.c.l.b16 %v6090
  %v6219 = vunpack.c.l.b16 %v6091
  %v6220 = vunpack.c.l.b16 %v6092
  %v6221 = vunpack.c.l.b16 %v6093
  %v6222 = vunpack.c.l.b16 %v6094
  %v6223 = vunpack.c.l.b16 %v6095
  %v6224 = vunpack.c.l.b16 %v6096
  %v6225 = vunpack.c.l.b16 %v6097
  %v6226 = vunpack.c.l.b16 %v6098
  %v6227 = vunpack.c.l.b16 %v6099
  %v6228 = vunpack.c.l.b16 %v6100
  %v6229 = vunpack.c.l.b16 %v6101
  %v6230 = vunpack.c.l.b16 %v6102
  %v6231 = vunpack.c.l.b16 %v6103
  %v6232 = vunpack.c.l.b16 %v6104
  %v6233 = vunpack.c.l.b16 %v6105
  %v6234 = vunpack.c.l.b16 %v6106
  %v6235 = vunpack.c.l.b16 %v6107
  %v6236 = vunpack.c.l.b16 %v6108
  %v6237 = vunpack.c.l.b16 %v6109
  %v6238 = vunpack.c.l.b16 %v6110
  %v6239 = vunpack.c.l.b16 %v6111
  %v6240 = vunpack.c.l.b16 %v6112
  %v6241 = vunpack.c.l.b16 %v6113
  %v6242 = vunpack.c.l.b16 %v6114
  %v6243 = vunpack.c.l.b16 %v6115
  %v6244 = vunpack.c.l.b16 %v6116
  %v6245 = vunpack.c.l.b16 %v6117
  %v6246 = vunpack.c.l.b16 %v6118
  %v6247 = vunpack.c.l.b16 %v6119
  %v6248 = vunpack.c.l.b16 %v6120
  %v6249 = vunpack.c.l.b16 %v6121
  %v6250 = vunpack.c.l.b16 %v6122
  %v6251 = vunpack.c.l.b16 %v6123
  %v6252 = vunpack.c.l.b16 %v6124
  %v6253 = vunpack.c.l.b16 %v6125
  %v6254 = vunpack.c.l.b16 %v6126
  %v6255 = vunpack.c.l.b16 %v6127
  %v6256 = vunpack.c.l.b16 %v6128
  %v6257 = vunpack.c.l.b16 %v6129
  %v6258 = vunpack.c.l.b16 %v6130
  %v6259 = vunpack.c.l.b16 %v6131
  %v6260 = vunpack.c.l.b16 %v6132
  %v6261 = vunpack.c.l.b16 %v6133
  %v6262 = vunpack.c.l.b16 %v6134
  %v6263 = vunpack.c.l.b16 %v6135
  %v6264 = vunpack.c.l.b16 %v6136
  %v6265 = vunpack.c.l.b16 %v6137
  %v6266 = vunpack.c.l.b16 %v6138
  %v6267 = vunpack.c.l.b16 %v6139
  %v6268 = vunpack.c.l.b16 %v6140
  %v6269 = vunpack.c.l.b16 %v6141
  %v6270 = vunpack.c.l.b16 %v6142
  %v6271 = vunpack.c.l.b16 %v6143
  %v6272 = vunpack.c.l.b16 %v6144
  %v6273 = vunpack.c.l.b16 %v6145
  %v6274 = vunpack.c.l.b16 %v6146
  %v6275 = vunpack.c.l.b16 %v6147
  %v6276 = vunpack.c.l.b16 %v6148
  %v6277 = vunpack.c.l.b16 %v6149
  %v6278 = vunpack.c.l.b16 %v6150
  %v6279 = vunpack.c.l.b16 %v6151
  %v6280 = vunpack.c.l.b16 %v6152
  %v6281 = vpack.c.b16 %v6218, %v6217
  %v6282 = vpack.c.b16 %v6220, %v6219
  %v6283 = vpack.c.b16 %v6222, %v6221
  %v6284 = vpack.c.b16 %v6224, %v6223
  %v6285 = vpack.c.b16 %v6226, %v6225
  %v6286 = vpack.c.b16 %v6228, %v6227
  %v6287 = vpack.c.b16 %v6230, %v6229
  %v6288 = vpack.c.b16 %v6232, %v6231
  %v6289 = vpack.c.b16 %v6234, %v6233
  %v6290 = vpack.c.b16 %v6236, %v6235
  %v6291 = vpack.c.b16 %v6238, %v6237
  %v6292 = vpack.c.b16 %v6240, %v6239
  %v6293 = vpack.c.b16 %v6242, %v6241
  %v6294 = vpack.c.b16 %v6244, %v6243
  %v6295 = vpack.c.b16 %v6246, %v6245
  %v6296 = vpack.c.b16 %v6248, %v6247
  %v6297 = vpack.c.b16 %v6250, %v6249
  %v6298 = vpack.c.b16 %v6252, %v6251
  %v6299 = vpack.c.b16 %v6254, %v6253
  %v6300 = vpack.c.b16 %v6256, %v6255
  %v6301 = vpack.c.b16 %v6258, %v6257
  %v6302 = vpack.c.b16 %v6260, %v6259
  %v6303 = vpack.c.b16 %v6262, %v6261
  %v6304 = vpack.c.b16 %v6264, %v6263
  %v6305 = vpack.c.b16 %v6266, %v6265
  %v6306 = vpack.c.b16 %v6268, %v6267
  %v6307 = vpack.c.b16 %v6270, %v6269
  %v6308 = vpack.c.b16 %v6272, %v6271
  %v6309 = vpack.c.b16 %v6274, %v6273
  %v6310 = vpack.c.b16 %v6276, %v6275
  %v6311 = vpack.c.b16 %v6278, %v6277
  %v6312 = vpack.c.b16 %v6280, %v6279
  %6345 = vmatprep.subr.bf16.mxu0 0
  %6346 = vmatpush1.bf16.msra.mxu0 %v6281
  %6347 = vmatprep.subr.bf16.mxu0 0
  %6348 = vmatpush1.bf16.msra.mxu0 %v6282
  %6349 = vmatprep.subr.bf16.mxu0 0
  %6350 = vmatpush1.bf16.msra.mxu0 %v6283
  %6351 = vmatprep.subr.bf16.mxu0 0
  %6352 = vmatpush1.bf16.msra.mxu0 %v6284
  %6353 = vmatprep.subr.bf16.mxu0 0
  %6354 = vmatpush1.bf16.msra.mxu0 %v6285
  %6355 = vmatprep.subr.bf16.mxu0 0
  %6356 = vmatpush1.bf16.msra.mxu0 %v6286
  %6357 = vmatprep.subr.bf16.mxu0 0
  %6358 = vmatpush1.bf16.msra.mxu0 %v6287
  %6359 = vmatprep.subr.bf16.mxu0 0
  %6360 = vmatpush1.bf16.msra.mxu0 %v6288
  %6361 = vmatprep.subr.bf16.mxu0 0
  %6362 = vmatpush1.bf16.msra.mxu0 %v6289
  %6363 = vmatprep.subr.bf16.mxu0 0
  %6364 = vmatpush1.bf16.msra.mxu0 %v6290
  %6365 = vmatprep.subr.bf16.mxu0 0
  %6366 = vmatpush1.bf16.msra.mxu0 %v6291
  %6367 = vmatprep.subr.bf16.mxu0 0
  %6368 = vmatpush1.bf16.msra.mxu0 %v6292
  %6369 = vmatprep.subr.bf16.mxu0 0
  %6370 = vmatpush1.bf16.msra.mxu0 %v6293
  %6371 = vmatprep.subr.bf16.mxu0 0
  %6372 = vmatpush1.bf16.msra.mxu0 %v6294
  %6373 = vmatprep.subr.bf16.mxu0 0
  %6374 = vmatpush1.bf16.msra.mxu0 %v6295
  %6375 = vmatprep.subr.bf16.mxu0 0
  %6376 = vmatpush1.bf16.msra.mxu0 %v6296
  %6377 = vmatprep.mubr.bf16.mxu0 %v6086
  %6378 = vmatmul.mubr.bf16.gmra.mrb[0].mxu0 %v6085
  %v6379 = vpop.f32.mrb[0].mxu0
  %v6380 = vadd.f32 0.0, %v6379
  %v6381 = vpop.f32.mrb[0].mxu0
  %v6382 = vpop.f32.mrb[0].mxu0
  %v6383 = vadd.f32 0.0, %v6382
  %v6384 = vpop.f32.mrb[0].mxu0
  %6385 = vdwg.mxu0
  %6386 = vmatprep.subr.bf16.mxu0 0
  %6387 = vmatpush1.bf16.msra.mxu0 %v6297
  %6388 = vmatprep.subr.bf16.mxu0 0
  %6389 = vmatpush1.bf16.msra.mxu0 %v6298
  %6390 = vmatprep.subr.bf16.mxu0 0
  %6391 = vmatpush1.bf16.msra.mxu0 %v6299
  %6392 = vmatprep.subr.bf16.mxu0 0
  %6393 = vmatpush1.bf16.msra.mxu0 %v6300
  %6394 = vmatprep.subr.bf16.mxu0 0
  %6395 = vmatpush1.bf16.msra.mxu0 %v6301
  %6396 = vmatprep.subr.bf16.mxu0 0
  %6397 = vmatpush1.bf16.msra.mxu0 %v6302
  %6398 = vmatprep.subr.bf16.mxu0 0
  %6399 = vmatpush1.bf16.msra.mxu0 %v6303
  %6400 = vmatprep.subr.bf16.mxu0 0
  %6401 = vmatpush1.bf16.msra.mxu0 %v6304
  %6402 = vmatprep.subr.bf16.mxu0 0
  %6403 = vmatpush1.bf16.msra.mxu0 %v6305
  %6404 = vmatprep.subr.bf16.mxu0 0
  %6405 = vmatpush1.bf16.msra.mxu0 %v6306
  %6406 = vmatprep.subr.bf16.mxu0 0
  %6407 = vmatpush1.bf16.msra.mxu0 %v6307
  %6408 = vmatprep.subr.bf16.mxu0 0
  %6409 = vmatpush1.bf16.msra.mxu0 %v6308
  %6410 = vmatprep.subr.bf16.mxu0 0
  %6411 = vmatpush1.bf16.msra.mxu0 %v6309
  %6412 = vmatprep.subr.bf16.mxu0 0
  %6413 = vmatpush1.bf16.msra.mxu0 %v6310
  %6414 = vmatprep.subr.bf16.mxu0 0
  %6415 = vmatpush1.bf16.msra.mxu0 %v6311
  %6416 = vmatprep.subr.bf16.mxu0 0
  %6417 = vmatpush1.bf16.msra.mxu0 %v6312
  %6418 = vmatprep.mubr.bf16.mxu0 %v6088
  %6419 = vmatmul.mubr.bf16.gmra.mrb[0].mxu0 %v6087
  %v6420 = vpop.f32.mrb[0].mxu0
  %v6421 = vadd.f32 %v6380, %v6420
  %v6422 = vpop.f32.mrb[0].mxu0
  %v6423 = vpop.f32.mrb[0].mxu0
  %v6424 = vadd.f32 %v6383, %v6423
  %v6425 = vpop.f32.mrb[0].mxu0
  %6426 = vdwg.mxu0
  %v6427 = vadd.f32 %v5919, %v6421
  %v6428 = vadd.f32 %v5920, %v6424
  %s6429 = scalar_lea.vmem %s13, 1
  %v6430 = vld [vmem:[%s6429] sm:$0x1]
  %v6432 = vlaneseq
  %v6433 = vshrl.u32 %v6432, 7
  %v6434 = vsub.s32 0, %v6433
  %v6435 = vrot.slane %v6430, %v6434
  %v6437 = vadd.f32 %v6427, %v6435
  %v6438 = vadd.f32 %v6428, %v6435
  %v6439 = vadd.f32 %v4392, %v6437
  %v6440 = vadd.f32 %v4393, %v6438
  %s6441 = scalar_lea.vmem %s14, 1
  %v6442 = vld [vmem:[%s6441] sm:$0x1]
  %s6443 = scalar_lea.vmem %s15, 1
  %v6444 = vld [vmem:[%s6443] sm:$0x1]
  %v6445 = vsel %vm82, %v6439, 0.0
  %6446 = vadd.xlane.f32.xlu0 %v6445
  %v6447 = vpop.xlane.xlu0 %6446
  %v6448 = vsel %vm82, %v6440, 0.0
  %6449 = vadd.xlane.f32.xlu0 %v6448
  %v6450 = vpop.xlane.xlu0 %6449
  %v6451 = vmul.f32 %v6447, %v1206
  %v6452 = vmul.f32 %v6450, %v1206
  %v6453 = vsub.f32 %v6439, %v6451
  %v6454 = vsub.f32 %v6440, %v6452
  %v6455 = vmul.f32 %v6453, %v6453
  %v6456 = vmul.f32 %v6454, %v6454
  %v6457 = vsel %vm82, %v6455, 0.0
  %6458 = vadd.xlane.f32.xlu0 %v6457
  %v6459 = vpop.xlane.xlu0 %6458
  %v6460 = vsel %vm82, %v6456, 0.0
  %6461 = vadd.xlane.f32.xlu0 %v6460
  %v6462 = vpop.xlane.xlu0 %6461
  %v6463 = vmul.f32 %v6459, %v1206
  %v6464 = vmul.f32 %v6462, %v1206
  %v6465 = vadd.f32 %v6463, 1e-05
  %v6466 = vadd.f32 %v6464, 1e-05
  %v6467 = vrsqrt.pop %v6465
  %v6468 = vrsqrt.pop %v6466
  %v6469 = vmul.f32 %v6453, %v6467
  %v6470 = vmul.f32 %v6454, %v6468
  %v6472 = vlaneseq
  %v6473 = vshrl.u32 %v6472, 7
  %v6474 = vsub.s32 0, %v6473
  %v6475 = vrot.slane %v6442, %v6474
  %v6477 = vmul.f32 %v6469, %v6475
  %v6478 = vmul.f32 %v6470, %v6475
  %v6480 = vlaneseq
  %v6481 = vshrl.u32 %v6480, 7
  %v6482 = vsub.s32 0, %v6481
  %v6483 = vrot.slane %v6444, %v6482
  %v6485 = vadd.f32 %v6477, %v6483
  %v6486 = vadd.f32 %v6478, %v6483
  %v6487 = vld [vmem:[%s16] sm:$0xff]
  %v6488 = vld [vmem:[%s16 + $0x8] sm:$0xff]
  %v6489 = vld [vmem:[%s16 + $0x10] sm:$0xff]
  %v6490 = vld [vmem:[%s16 + $0x18] sm:$0xff]
  %v6491 = vld [vmem:[#allocation2] sm:$0x1]
  %v6493 = vlaneseq
  %v6494 = vshrl.u32 %v6493, 7
  %v6495 = vsub.s32 0, %v6494
  %v6496 = vrot.slane %v6491, %v6495
  %v6500 = vrot.slane %v6485, 7
  %v6501 = vrot.slane %v6486, 6
  %vm6502 = vcmask 1041409
  %v6503 = vsel %vm6502, %v6501, %v6500
  %v6504 = vsel %vm82, %v6503, 0
  %6506 = vmatprep.subr.mxu0 0.0
  %6507 = vmatpush1.msra.mxu0 %v6487
  %6508 = vmatprep.subr.mxu0 0.0
  %6509 = vmatpush1.msra.mxu0 %v6488
  %6510 = vmatprep.subr.mxu0 0.0
  %6511 = vmatpush1.msra.mxu0 %v6489
  %6512 = vmatprep.subr.mxu0 0.0
  %6513 = vmatpush1.msra.mxu0 %v6490
  %6514 = vmatprep.subr.mxu0 0.0
  %6515 = vmatpush1.msra.mxu0 0.0
  %6516 = vmatprep.subr.mxu0 0.0
  %6517 = vmatpush1.msra.mxu0 0.0
  %6518 = vmatprep.subr.mxu0 0.0
  %6519 = vmatpush1.msra.mxu0 0.0
  %6520 = vmatprep.subr.mxu0 0.0
  %6521 = vmatpush1.msra.mxu0 0.0
  %6522 = vmatprep.subr.mxu0 0.0
  %6523 = vmatpush1.msra.mxu0 0.0
  %6524 = vmatprep.subr.mxu0 0.0
  %6525 = vmatpush1.msra.mxu0 0.0
  %6526 = vmatprep.subr.mxu0 0.0
  %6527 = vmatpush1.msra.mxu0 0.0
  %6528 = vmatprep.subr.mxu0 0.0
  %6529 = vmatpush1.msra.mxu0 0.0
  %6530 = vmatprep.subr.mxu0 0.0
  %6531 = vmatpush1.msra.mxu0 0.0
  %6532 = vmatprep.subr.mxu0 0.0
  %6533 = vmatpush1.msra.mxu0 0.0
  %6534 = vmatprep.subr.mxu0 0.0
  %6535 = vmatpush1.msra.mxu0 0.0
  %6536 = vmatprep.subr.mxu0 0.0
  %6537 = vmatpush1.msra.mxu0 0.0
  %6538 = vmatprep.subr.mxu0 0.0
  %6539 = vmatpush1.msra.mxu0 0.0
  %6540 = vmatprep.subr.mxu0 0.0
  %6541 = vmatpush1.msra.mxu0 0.0
  %6542 = vmatprep.subr.mxu0 0.0
  %6543 = vmatpush1.msra.mxu0 0.0
  %6544 = vmatprep.subr.mxu0 0.0
  %6545 = vmatpush1.msra.mxu0 0.0
  %6546 = vmatprep.subr.mxu0 0.0
  %6547 = vmatpush1.msra.mxu0 0.0
  %6548 = vmatprep.subr.mxu0 0.0
  %6549 = vmatpush1.msra.mxu0 0.0
  %6550 = vmatprep.subr.mxu0 0.0
  %6551 = vmatpush1.msra.mxu0 0.0
  %6552 = vmatprep.subr.mxu0 0.0
  %6553 = vmatpush1.msra.mxu0 0.0
  %6554 = vmatprep.subr.mxu0 0.0
  %6555 = vmatpush1.msra.mxu0 0.0
  %6556 = vmatprep.subr.mxu0 0.0
  %6557 = vmatpush1.msra.mxu0 0.0
  %6558 = vmatprep.subr.mxu0 0.0
  %6559 = vmatpush1.msra.mxu0 0.0
  %6560 = vmatprep.subr.mxu0 0.0
  %6561 = vmatpush1.msra.mxu0 0.0
  %6562 = vmatprep.subr.mxu0 0.0
  %6563 = vmatpush1.msra.mxu0 0.0
  %6564 = vmatprep.subr.mxu0 0.0
  %6565 = vmatpush1.msra.mxu0 0.0
  %6566 = vmatprep.subr.mxu0 0.0
  %6567 = vmatpush1.msra.mxu0 0.0
  %6568 = vmatprep.subr.mxu0 0.0
  %6569 = vmatpush1.msra.mxu0 0.0
  %6570 = vmatprep.mubr.f32.mxu0 0.0
  %6571 = vmatmul.mubr.f32.gmra.mrb[0].mxu0 %v6504
  %v6572 = vpop.f32.mrb[0].mxu0
  %v6573 = vadd.f32 %v6496, %v6572
  %v6574 = vpop.f32.mrb[0].mxu0
  %6575 = vdwg.mxu0
  %vm6576 = vcmask 1024
  %6577 = vst.msk [vmem:[%s18] sm:$0x3] %vm6576, %v6573
  // Predicated region
  $region74: #{tpu_custom_call.1} parent=0 // pred_check
    _
  $region75: #{tpu_custom_call.1} parent=0 // pred_check_branch
    %6579 = sbr.rel (0) target = $region77
  $region76: #{tpu_custom_call.1} parent=0 // pred_region
    _
  $region77: #{tpu_custom_call.1} parent=0 // pred_fallthru
    _
  // Predicated region
  $region78: #{tpu_custom_call.1} parent=0 // pred_check
    _
  $region79: #{tpu_custom_call.1} parent=0 // pred_check_branch
    %6581 = sbr.rel (0) target = $region81
  $region80: #{tpu_custom_call.1} parent=0 // pred_region
    _
  $region81: #{tpu_custom_call.1} parent=0 // pred_fallthru
    _

</llo_original>
